<compile_context>
chip_gen: v7x
topology: tpu7x:2x2x1
jax: 0.10.0
libtpu: 0.0.40
codegen_flags: <defaults>
</compile_context>

<pallas_src>
import numpy as np

import jax
import jax.numpy as jnp
from jax.experimental import pallas as pl
from jax.experimental.pallas import tpu as pltpu


# Row-grid bookkeeping (input 32x32 -> conv1 28x28 -> pool 14x14 -> conv2
# 10x10 -> pool 5x5).  Conv outputs live on the *input-width* row grid, so a
# few wrap columns / trailing rows are junk that the pool selection never picks.
_CONV1_ROWS = 892     # last y1 row needed by pool1 = 2*13*32 + 2*13 + 33
_POOL1_LEN = 859      # rows entering the pool1 max / selection matmul
_P1_ROWS = 200        # 14*14 pooled rows + 4 zero-pad rows for conv2's shifts
_CONV2_ROWS = 140     # 10 output rows on the 14-wide pooled grid
_POOL2_LEN = 125
_P2_ROWS = 25         # 5*5


# ----------------------------------------------------------------------------
# The fused kernel (one grid step == one image)
# ----------------------------------------------------------------------------
def _lenet_kernel(x_ref, w1_ref, b1_ref, s1_ref, w2_ref, b2_ref, s2_ref,
                  wf1_ref, bf1_ref, wf2_ref, bf2_ref, wf3_ref, bf3_ref,
                  out_ref, y1_scr, p1_scr, y2_scr, p2_scr):
    bf16, f32 = jnp.bfloat16, jnp.float32

    def mm(a, b):  # bf16 MXU inputs, f32 accumulation
        return jnp.dot(a.astype(bf16), b.astype(bf16), preferred_element_type=f32)

    # ---- conv1 (5x5 valid): single matmul -- all 25 taps were folded into the
    #      32-wide lane dim of x by the wrapper.  Output rows stay on the
    #      32-wide input grid (cols 28..31 are wrap junk, never selected).
    y1_scr[...] = mm(x_ref[0, pl.ds(0, _CONV1_ROWS), :], w1_ref[...])   # (892, 6) f32

    # ---- pool1: max over the 2x2 window (row offsets {0,1,32,33}), then a
    #      one-hot selection matmul compacts stride-2 rows to the 14x14 grid.
    #      Bias + ReLU after the pool is mathematically identical.
    m1 = jnp.maximum(
        jnp.maximum(y1_scr[pl.ds(0, _POOL1_LEN), :], y1_scr[pl.ds(1, _POOL1_LEN), :]),
        jnp.maximum(y1_scr[pl.ds(32, _POOL1_LEN), :], y1_scr[pl.ds(33, _POOL1_LEN), :]))
    p1 = mm(s1_ref[...], m1)                                    # (200, 6)
    p1_scr[...] = jnp.maximum(p1 + b1_ref[...], 0.0)

    # ---- conv2 (5x5 valid) on the 14-wide pooled grid: 25 shifted matmuls.
    acc2 = mm(p1_scr[pl.ds(0, _CONV2_ROWS), :], w2_ref[0])
    for d in range(1, 25):
        i, j = divmod(d, 5)
        acc2 += mm(p1_scr[pl.ds(i * 14 + j, _CONV2_ROWS), :], w2_ref[d])
    y2_scr[...] = acc2                                          # (140, 16) f32

    # ---- pool2: row offsets {0,1,14,15}, compact to the 5x5 grid.
    m2 = jnp.maximum(
        jnp.maximum(y2_scr[pl.ds(0, _POOL2_LEN), :], y2_scr[pl.ds(1, _POOL2_LEN), :]),
        jnp.maximum(y2_scr[pl.ds(14, _POOL2_LEN), :], y2_scr[pl.ds(15, _POOL2_LEN), :]))
    p2 = mm(s2_ref[...], m2)                                    # (25, 16)
    p2_scr[...] = jnp.maximum(p2 + b2_ref[...], 0.0)

    # ---- fc1: torch's .view(-1, 400) flatten is folded into 25 per-position
    #      matmuls against pre-permuted, VMEM-resident weights.
    h = mm(p2_scr[pl.ds(0, 1), :], wf1_ref[0])
    for s in range(1, _P2_ROWS):
        h += mm(p2_scr[pl.ds(s, 1), :], wf1_ref[s])
    h = jnp.maximum(h + bf1_ref[...], 0.0)                      # (1, 128); cols >=120 are 0

    # ---- fc2 / fc3 (zero-padded to 128 lanes -> single unmasked vreg store).
    h = jnp.maximum(mm(h, wf2_ref[...]) + bf2_ref[...], 0.0)
    h = mm(h, wf3_ref[...]) + bf3_ref[...]
    out_ref[0] = h


def _full_spec(shape):
    rank = len(shape)
    return pl.BlockSpec(shape, lambda b, _r=rank: (0,) * _r)


def lenet_forward(kp, x):
    """x: (B, 1, 32, 32) float32 (NCHW, as in the PyTorch module) -> (B, 10)."""
    B = x.shape[0]
    # Fold all 25 conv1 taps into a 32-wide lane dim: a tiny shift-stack of the
    # flattened 8 KB image (replaces any NCHW<->NHWC transposes / im2col blowup
    # inside the kernel).  Cast to bf16 once here: the MXU eats bf16 anyway.
    xf = jnp.pad(x.reshape(B, 32 * 32), ((0, 0), (0, 4 * 32 + 4)))     # (B, 1156)
    xs = jnp.stack([xf[:, i * 32 + j: i * 32 + j + 1024]
                    for i in range(5) for j in range(5)], axis=-1)     # (B, 1024, 25)
    xs = jnp.pad(xs, ((0, 0), (0, 0), (0, 7))).astype(jnp.bfloat16)    # (B, 1024, 32)

    out = pl.pallas_call(
        _lenet_kernel,
        out_shape=jax.ShapeDtypeStruct((B, 1, 128), jnp.float32),
        grid=(B,),
        in_specs=[
            pl.BlockSpec((1, 1024, 32), lambda b: (b, 0, 0)),  # shifted input (bf16)
            _full_spec((32, 6)),                               # conv1 weights (25 taps)
            _full_spec((1, 6)),                                # conv1 bias
            _full_spec((_P1_ROWS, _POOL1_LEN)),                # pool1 selection
            _full_spec((25, 6, 16)),                           # conv2 weights
            _full_spec((1, 16)),                               # conv2 bias
            _full_spec((_P2_ROWS, _POOL2_LEN)),                # pool2 selection
            _full_spec((25, 16, 128)),                         # fc1 weights
            _full_spec((1, 128)),                              # fc1 bias
            _full_spec((128, 128)),                            # fc2 weights
            _full_spec((1, 128)),                              # fc2 bias
            _full_spec((128, 128)),                            # fc3 weights
            _full_spec((1, 128)),                              # fc3 bias
        ],
        out_specs=pl.BlockSpec((1, 1, 128), lambda b: (b, 0, 0)),
        scratch_shapes=[
            pltpu.VMEM((_CONV1_ROWS, 6), jnp.float32),
            pltpu.VMEM((_P1_ROWS, 6), jnp.float32),
            pltpu.VMEM((_CONV2_ROWS, 16), jnp.float32),
            pltpu.VMEM((_P2_ROWS, 16), jnp.float32),
        ],
        compiler_params=pltpu.CompilerParams(
            dimension_semantics=("parallel",)),
    )(xs, kp["w1"], kp["b1"], kp["s1"], kp["w2"], kp["b2"], kp["s2"],
      kp["wf1"], kp["bf1"], kp["wf2"], kp["bf2"], kp["wf3"], kp["bf3"])
    return out[:, 0, :10]


# ----------------------------------------------------------------------------
# One-time parameter preparation (pre-transpose / pad / bf16-cast)
# ----------------------------------------------------------------------------
def _pool_select(ph, pw, in_w, n_in, n_out):
    """One-hot matrix picking row 2*i*in_w + 2*j of the max-reduced conv grid
    for pooled position (i, j); extra output rows (>= ph*pw) stay zero."""
    s = np.zeros((n_out, n_in), np.float32)
    for i in range(ph):
        for j in range(pw):
            s[i * pw + j, 2 * i * in_w + 2 * j] = 1.0
    return s


def prepare_kernel_params(p):
    f32, bf16 = jnp.float32, jnp.bfloat16

    # conv1: (6,1,5,5) -> (KH*KW=25 taps padded to 32, OutC=6); tap index i*5+j
    # matches the wrapper's lane ordering.
    w1 = p["conv1_w"][:, 0].reshape(6, 25).T                           # (25, 6)
    w1 = jnp.pad(w1, ((0, 7), (0, 0))).astype(bf16)                    # (32, 6)
    # conv2: (16,6,5,5) -> (KH*KW=25, InC=6, OutC=16)
    w2 = jnp.transpose(p["conv2_w"], (2, 3, 1, 0)).reshape(25, 6, 16).astype(bf16)
    # fc1: (120, 400) -> (25 spatial, 16 ch, 128 out); matches torch's
    # .view(-1, 16*5*5) flatten order (feature index = c*25 + h*5 + w).
    wf1 = jnp.transpose(p["fc1_w"].reshape(120, 16, 25), (2, 1, 0))    # (25,16,120)
    wf1 = jnp.pad(wf1, ((0, 0), (0, 0), (0, 8))).astype(bf16)          # (25,16,128)
    # fc2 / fc3: pre-transposed and zero-padded to 128x128.
    wf2 = jnp.zeros((128, 128), f32).at[:120, :84].set(p["fc2_w"].T).astype(bf16)
    wf3 = jnp.zeros((128, 128), f32).at[:84, :10].set(p["fc3_w"].T).astype(bf16)

    def padb(b, n):
        return jnp.pad(b, (0, n - b.shape[0])).reshape(1, n).astype(f32)

    return {
        "w1": w1, "b1": p["conv1_b"].reshape(1, 6).astype(f32),
        "s1": jnp.asarray(_pool_select(14, 14, 32, _POOL1_LEN, _P1_ROWS), bf16),
        "w2": w2, "b2": p["conv2_b"].reshape(1, 16).astype(f32),
        "s2": jnp.asarray(_pool_select(5, 5, 14, _POOL2_LEN, _P2_ROWS), bf16),
        "wf1": wf1, "bf1": padb(p["fc1_b"], 128),
        "wf2": wf2, "bf2": padb(p["fc2_b"], 128),
        "wf3": wf3, "bf3": padb(p["fc3_b"], 128),
    }


def init_params(key):
    ks = jax.random.split(key, 10)
    s = 0.1
    return {
        "conv1_w": jax.random.normal(ks[0], (6, 1, 5, 5), jnp.float32) * s,
        "conv1_b": jax.random.normal(ks[1], (6,), jnp.float32) * s,
        "conv2_w": jax.random.normal(ks[2], (16, 6, 5, 5), jnp.float32) * s,
        "conv2_b": jax.random.normal(ks[3], (16,), jnp.float32) * s,
        "fc1_w": jax.random.normal(ks[4], (120, 16 * 5 * 5), jnp.float32) * s,
        "fc1_b": jax.random.normal(ks[5], (120,), jnp.float32) * s,
        "fc2_w": jax.random.normal(ks[6], (84, 120), jnp.float32) * s,
        "fc2_b": jax.random.normal(ks[7], (84,), jnp.float32) * s,
        "fc3_w": jax.random.normal(ks[8], (10, 84), jnp.float32) * s,
        "fc3_b": jax.random.normal(ks[9], (10,), jnp.float32) * s,
    }


# ----------------------------------------------------------------------------
# Plain-JAX reference (mirrors the PyTorch module) for a sanity check.
# ----------------------------------------------------------------------------
def _ref_forward(params, x):
    def conv(x, w, b):
        o, c, kh, kw = w.shape
        oh, ow = x.shape[2] - kh + 1, x.shape[3] - kw + 1
        patches = jnp.stack(
            [x[:, :, i:i + oh, j:j + ow] for i in range(kh) for j in range(kw)],
            axis=2)                                            # (B, C, kk, OH, OW)
        y = jnp.einsum('bckhw,ock->bohw', patches, w.reshape(o, c, kh * kw))
        return y + b[None, :, None, None]

    def pool(x):
        return jnp.maximum(
            jnp.maximum(x[:, :, 0::2, 0::2], x[:, :, 0::2, 1::2]),
            jnp.maximum(x[:, :, 1::2, 0::2], x[:, :, 1::2, 1::2]))

    h = pool(jax.nn.relu(conv(x, params["conv1_w"], params["conv1_b"])))
    h = pool(jax.nn.relu(conv(h, params["conv2_w"], params["conv2_b"])))
    h = h.reshape(x.shape[0], -1)
    h = jax.nn.relu(h @ params["fc1_w"].T + params["fc1_b"])
    h = jax.nn.relu(h @ params["fc2_w"].T + params["fc2_b"])
    return h @ params["fc3_w"].T + params["fc3_b"]


if __name__ == "__main__":
    key = jax.random.PRNGKey(0)
    pkey, xkey = jax.random.split(key)
    params = init_params(pkey)
    kparams = prepare_kernel_params(params)
    # LeNet's fc1 (16*5*5) requires 32x32 single-channel input.
    x = jax.random.normal(xkey, (2, 1, 32, 32), jnp.float32)

    fwd = jax.jit(lenet_forward)
    out = jax.block_until_ready(fwd(kparams, x))
    assert out.shape == (2, 10) and out.dtype == jnp.float32

    ref = _ref_forward(params, x)
    rel = float(jnp.max(jnp.abs(out - ref)) / (jnp.max(jnp.abs(ref)) + 1e-6))
    assert rel < 0.15, f"kernel/reference mismatch: rel_err={rel}"
    print("KERNEL_OK")
</pallas_src>

<mosaic_0001>
module attributes {stable_mosaic.version = 11 : i64} {
  func.func @_lenet_kernel(%arg0: i32, %arg1: memref<1x1024x32xbf16, #tpu.memory_space<vmem>>, %arg2: memref<32x6xbf16, #tpu.memory_space<vmem>>, %arg3: memref<1x6xf32, #tpu.memory_space<vmem>>, %arg4: memref<200x859xbf16, #tpu.memory_space<vmem>>, %arg5: memref<25x6x16xbf16, #tpu.memory_space<vmem>>, %arg6: memref<1x16xf32, #tpu.memory_space<vmem>>, %arg7: memref<25x125xbf16, #tpu.memory_space<vmem>>, %arg8: memref<25x16x128xbf16, #tpu.memory_space<vmem>>, %arg9: memref<1x128xf32, #tpu.memory_space<vmem>>, %arg10: memref<128x128xbf16, #tpu.memory_space<vmem>>, %arg11: memref<1x128xf32, #tpu.memory_space<vmem>>, %arg12: memref<128x128xbf16, #tpu.memory_space<vmem>>, %arg13: memref<1x128xf32, #tpu.memory_space<vmem>>, %arg14: memref<1x1x128xf32, #tpu.memory_space<vmem>>, %arg15: memref<892x6xf32, #tpu.memory_space<vmem>>, %arg16: memref<200x6xf32, #tpu.memory_space<vmem>>, %arg17: memref<140x16xf32, #tpu.memory_space<vmem>>, %arg18: memref<25x16xf32, #tpu.memory_space<vmem>>) attributes {dimension_semantics = [#tpu.dimension_semantics<parallel>], iteration_bounds = array<i64: 2>, scalar_prefetch = 0 : i64, scratch_operands = 4 : i64, tpu.core_type = #tpu.core_type<tc>, window_params = [{transform_indices = @transform_0, window_bounds = array<i64: 1, 1024, 32>}, {pipeline_mode = #tpu.pipeline_mode<synchronous>, transform_indices = @transform_1, window_bounds = array<i64: 32, 6>}, {pipeline_mode = #tpu.pipeline_mode<synchronous>, transform_indices = @transform_2, window_bounds = array<i64: 1, 6>}, {pipeline_mode = #tpu.pipeline_mode<synchronous>, transform_indices = @transform_3, window_bounds = array<i64: 200, 859>}, {pipeline_mode = #tpu.pipeline_mode<synchronous>, transform_indices = @transform_4, window_bounds = array<i64: 25, 6, 16>}, {pipeline_mode = #tpu.pipeline_mode<synchronous>, transform_indices = @transform_5, window_bounds = array<i64: 1, 16>}, {pipeline_mode = #tpu.pipeline_mode<synchronous>, transform_indices = @transform_6, window_bounds = array<i64: 25, 125>}, {pipeline_mode = #tpu.pipeline_mode<synchronous>, transform_indices = @transform_7, window_bounds = array<i64: 25, 16, 128>}, {pipeline_mode = #tpu.pipeline_mode<synchronous>, transform_indices = @transform_8, window_bounds = array<i64: 1, 128>}, {pipeline_mode = #tpu.pipeline_mode<synchronous>, transform_indices = @transform_9, window_bounds = array<i64: 128, 128>}, {pipeline_mode = #tpu.pipeline_mode<synchronous>, transform_indices = @transform_10, window_bounds = array<i64: 1, 128>}, {pipeline_mode = #tpu.pipeline_mode<synchronous>, transform_indices = @transform_11, window_bounds = array<i64: 128, 128>}, {pipeline_mode = #tpu.pipeline_mode<synchronous>, transform_indices = @transform_12, window_bounds = array<i64: 1, 128>}, {transform_indices = @transform_13, window_bounds = array<i64: 1, 1, 128>}]} {
    %c0 = arith.constant 0 : index
    %c0_0 = arith.constant 0 : index
    %c0_1 = arith.constant 0 : index
    %0 = vector.load %arg1[%c0, %c0_0, %c0_1] : memref<1x1024x32xbf16, #tpu.memory_space<vmem>>, vector<1x892x32xbf16>
    %1 = vector.shape_cast %0 : vector<1x892x32xbf16> to vector<892x32xbf16>
    %c0_2 = arith.constant 0 : index
    %c0_3 = arith.constant 0 : index
    %2 = vector.load %arg2[%c0_2, %c0_3] : memref<32x6xbf16, #tpu.memory_space<vmem>>, vector<32x6xbf16>
    %cst = arith.constant dense<0.000000e+00> : vector<892x6xf32>
    %3 = tpu.matmul %1, %2, %cst {dimension_numbers = #tpu.dot_dimension_numbers<[1], [0], [0], [1], [0, 0, 1, 1], [], []>} : vector<892x32xbf16>, vector<32x6xbf16>, vector<892x6xf32> -> vector<892x6xf32>
    %c0_4 = arith.constant 0 : index
    %c0_5 = arith.constant 0 : index
    %4 = vector.load %arg15[%c0_4, %c0_5] : memref<892x6xf32, #tpu.memory_space<vmem>>, vector<892x6xf32>
    tpu.vector_store %arg15[%c0_4, %c0_5], %3 {strides = array<i32>} : memref<892x6xf32, #tpu.memory_space<vmem>>, vector<892x6xf32>,
    %c0_6 = arith.constant 0 : index
    %c0_7 = arith.constant 0 : index
    %5 = vector.load %arg15[%c0_6, %c0_7] : memref<892x6xf32, #tpu.memory_space<vmem>>, vector<859x6xf32>
    %c1 = arith.constant 1 : index
    %c0_8 = arith.constant 0 : index
    %6 = vector.load %arg15[%c1, %c0_8] : memref<892x6xf32, #tpu.memory_space<vmem>>, vector<859x6xf32>
    %7 = arith.maximumf %5, %6 : vector<859x6xf32>
    %c32 = arith.constant 32 : index
    %c0_9 = arith.constant 0 : index
    %8 = vector.load %arg15[%c32, %c0_9] : memref<892x6xf32, #tpu.memory_space<vmem>>, vector<859x6xf32>
    %c33 = arith.constant 33 : index
    %c0_10 = arith.constant 0 : index
    %9 = vector.load %arg15[%c33, %c0_10] : memref<892x6xf32, #tpu.memory_space<vmem>>, vector<859x6xf32>
    %10 = arith.maximumf %8, %9 : vector<859x6xf32>
    %11 = arith.maximumf %7, %10 : vector<859x6xf32>
    %c0_11 = arith.constant 0 : index
    %c0_12 = arith.constant 0 : index
    %12 = vector.load %arg4[%c0_11, %c0_12] : memref<200x859xbf16, #tpu.memory_space<vmem>>, vector<200x859xbf16>
    %13 = arith.truncf %11 : vector<859x6xf32> to vector<859x6xbf16>
    %cst_13 = arith.constant dense<0.000000e+00> : vector<200x6xf32>
    %14 = tpu.matmul %12, %13, %cst_13 {dimension_numbers = #tpu.dot_dimension_numbers<[1], [0], [0], [1], [0, 0, 1, 1], [], []>} : vector<200x859xbf16>, vector<859x6xbf16>, vector<200x6xf32> -> vector<200x6xf32>
    %c0_14 = arith.constant 0 : index
    %c0_15 = arith.constant 0 : index
    %15 = vector.load %arg3[%c0_14, %c0_15] : memref<1x6xf32, #tpu.memory_space<vmem>>, vector<1x6xf32>
    %16 = vector.broadcast %15 : vector<1x6xf32> to vector<200x6xf32>
    %17 = arith.addf %14, %16 : vector<200x6xf32>
    %cst_16 = arith.constant 0.000000e+00 : f32
    %18 = vector.broadcast %cst_16 : f32 to vector<200x6xf32>
    %19 = arith.maximumf %17, %18 : vector<200x6xf32>
    %c0_17 = arith.constant 0 : index
    %c0_18 = arith.constant 0 : index
    %20 = vector.load %arg16[%c0_17, %c0_18] : memref<200x6xf32, #tpu.memory_space<vmem>>, vector<200x6xf32>
    tpu.vector_store %arg16[%c0_17, %c0_18], %19 {strides = array<i32>} : memref<200x6xf32, #tpu.memory_space<vmem>>, vector<200x6xf32>,
    %c0_19 = arith.constant 0 : index
    %c0_20 = arith.constant 0 : index
    %21 = vector.load %arg16[%c0_19, %c0_20] : memref<200x6xf32, #tpu.memory_space<vmem>>, vector<140x6xf32>
    %c0_21 = arith.constant 0 : index
    %c0_22 = arith.constant 0 : index
    %c0_23 = arith.constant 0 : index
    %22 = vector.load %arg5[%c0_21, %c0_22, %c0_23] : memref<25x6x16xbf16, #tpu.memory_space<vmem>>, vector<1x6x16xbf16>
    %23 = vector.shape_cast %22 : vector<1x6x16xbf16> to vector<6x16xbf16>
    %24 = arith.truncf %21 : vector<140x6xf32> to vector<140x6xbf16>
    %cst_24 = arith.constant dense<0.000000e+00> : vector<140x16xf32>
    %25 = tpu.matmul %24, %23, %cst_24 {dimension_numbers = #tpu.dot_dimension_numbers<[1], [0], [0], [1], [0, 0, 1, 1], [], []>} : vector<140x6xbf16>, vector<6x16xbf16>, vector<140x16xf32> -> vector<140x16xf32>
    %c1_25 = arith.constant 1 : index
    %c0_26 = arith.constant 0 : index
    %26 = vector.load %arg16[%c1_25, %c0_26] : memref<200x6xf32, #tpu.memory_space<vmem>>, vector<140x6xf32>
    %c1_27 = arith.constant 1 : index
    %c0_28 = arith.constant 0 : index
    %c0_29 = arith.constant 0 : index
    %27 = vector.load %arg5[%c1_27, %c0_28, %c0_29] : memref<25x6x16xbf16, #tpu.memory_space<vmem>>, vector<1x6x16xbf16>
    %28 = vector.shape_cast %27 : vector<1x6x16xbf16> to vector<6x16xbf16>
    %29 = arith.truncf %26 : vector<140x6xf32> to vector<140x6xbf16>
    %cst_30 = arith.constant dense<0.000000e+00> : vector<140x16xf32>
    %30 = tpu.matmul %29, %28, %cst_30 {dimension_numbers = #tpu.dot_dimension_numbers<[1], [0], [0], [1], [0, 0, 1, 1], [], []>} : vector<140x6xbf16>, vector<6x16xbf16>, vector<140x16xf32> -> vector<140x16xf32>
    %31 = arith.addf %25, %30 : vector<140x16xf32>
    %c2 = arith.constant 2 : index
    %c0_31 = arith.constant 0 : index
    %32 = vector.load %arg16[%c2, %c0_31] : memref<200x6xf32, #tpu.memory_space<vmem>>, vector<140x6xf32>
    %c2_32 = arith.constant 2 : index
    %c0_33 = arith.constant 0 : index
    %c0_34 = arith.constant 0 : index
    %33 = vector.load %arg5[%c2_32, %c0_33, %c0_34] : memref<25x6x16xbf16, #tpu.memory_space<vmem>>, vector<1x6x16xbf16>
    %34 = vector.shape_cast %33 : vector<1x6x16xbf16> to vector<6x16xbf16>
    %35 = arith.truncf %32 : vector<140x6xf32> to vector<140x6xbf16>
    %cst_35 = arith.constant dense<0.000000e+00> : vector<140x16xf32>
    %36 = tpu.matmul %35, %34, %cst_35 {dimension_numbers = #tpu.dot_dimension_numbers<[1], [0], [0], [1], [0, 0, 1, 1], [], []>} : vector<140x6xbf16>, vector<6x16xbf16>, vector<140x16xf32> -> vector<140x16xf32>
    %37 = arith.addf %31, %36 : vector<140x16xf32>
    %c3 = arith.constant 3 : index
    %c0_36 = arith.constant 0 : index
    %38 = vector.load %arg16[%c3, %c0_36] : memref<200x6xf32, #tpu.memory_space<vmem>>, vector<140x6xf32>
    %c3_37 = arith.constant 3 : index
    %c0_38 = arith.constant 0 : index
    %c0_39 = arith.constant 0 : index
    %39 = vector.load %arg5[%c3_37, %c0_38, %c0_39] : memref<25x6x16xbf16, #tpu.memory_space<vmem>>, vector<1x6x16xbf16>
    %40 = vector.shape_cast %39 : vector<1x6x16xbf16> to vector<6x16xbf16>
    %41 = arith.truncf %38 : vector<140x6xf32> to vector<140x6xbf16>
    %cst_40 = arith.constant dense<0.000000e+00> : vector<140x16xf32>
    %42 = tpu.matmul %41, %40, %cst_40 {dimension_numbers = #tpu.dot_dimension_numbers<[1], [0], [0], [1], [0, 0, 1, 1], [], []>} : vector<140x6xbf16>, vector<6x16xbf16>, vector<140x16xf32> -> vector<140x16xf32>
    %43 = arith.addf %37, %42 : vector<140x16xf32>
    %c4 = arith.constant 4 : index
    %c0_41 = arith.constant 0 : index
    %44 = vector.load %arg16[%c4, %c0_41] : memref<200x6xf32, #tpu.memory_space<vmem>>, vector<140x6xf32>
    %c4_42 = arith.constant 4 : index
    %c0_43 = arith.constant 0 : index
    %c0_44 = arith.constant 0 : index
    %45 = vector.load %arg5[%c4_42, %c0_43, %c0_44] : memref<25x6x16xbf16, #tpu.memory_space<vmem>>, vector<1x6x16xbf16>
    %46 = vector.shape_cast %45 : vector<1x6x16xbf16> to vector<6x16xbf16>
    %47 = arith.truncf %44 : vector<140x6xf32> to vector<140x6xbf16>
    %cst_45 = arith.constant dense<0.000000e+00> : vector<140x16xf32>
    %48 = tpu.matmul %47, %46, %cst_45 {dimension_numbers = #tpu.dot_dimension_numbers<[1], [0], [0], [1], [0, 0, 1, 1], [], []>} : vector<140x6xbf16>, vector<6x16xbf16>, vector<140x16xf32> -> vector<140x16xf32>
    %49 = arith.addf %43, %48 : vector<140x16xf32>
    %c14 = arith.constant 14 : index
    %c0_46 = arith.constant 0 : index
    %50 = vector.load %arg16[%c14, %c0_46] : memref<200x6xf32, #tpu.memory_space<vmem>>, vector<140x6xf32>
    %c5 = arith.constant 5 : index
    %c0_47 = arith.constant 0 : index
    %c0_48 = arith.constant 0 : index
    %51 = vector.load %arg5[%c5, %c0_47, %c0_48] : memref<25x6x16xbf16, #tpu.memory_space<vmem>>, vector<1x6x16xbf16>
    %52 = vector.shape_cast %51 : vector<1x6x16xbf16> to vector<6x16xbf16>
    %53 = arith.truncf %50 : vector<140x6xf32> to vector<140x6xbf16>
    %cst_49 = arith.constant dense<0.000000e+00> : vector<140x16xf32>
    %54 = tpu.matmul %53, %52, %cst_49 {dimension_numbers = #tpu.dot_dimension_numbers<[1], [0], [0], [1], [0, 0, 1, 1], [], []>} : vector<140x6xbf16>, vector<6x16xbf16>, vector<140x16xf32> -> vector<140x16xf32>
    %55 = arith.addf %49, %54 : vector<140x16xf32>
    %c15 = arith.constant 15 : index
    %c0_50 = arith.constant 0 : index
    %56 = vector.load %arg16[%c15, %c0_50] : memref<200x6xf32, #tpu.memory_space<vmem>>, vector<140x6xf32>
    %c6 = arith.constant 6 : index
    %c0_51 = arith.constant 0 : index
    %c0_52 = arith.constant 0 : index
    %57 = vector.load %arg5[%c6, %c0_51, %c0_52] : memref<25x6x16xbf16, #tpu.memory_space<vmem>>, vector<1x6x16xbf16>
    %58 = vector.shape_cast %57 : vector<1x6x16xbf16> to vector<6x16xbf16>
    %59 = arith.truncf %56 : vector<140x6xf32> to vector<140x6xbf16>
    %cst_53 = arith.constant dense<0.000000e+00> : vector<140x16xf32>
    %60 = tpu.matmul %59, %58, %cst_53 {dimension_numbers = #tpu.dot_dimension_numbers<[1], [0], [0], [1], [0, 0, 1, 1], [], []>} : vector<140x6xbf16>, vector<6x16xbf16>, vector<140x16xf32> -> vector<140x16xf32>
    %61 = arith.addf %55, %60 : vector<140x16xf32>
    %c16 = arith.constant 16 : index
    %c0_54 = arith.constant 0 : index
    %62 = vector.load %arg16[%c16, %c0_54] : memref<200x6xf32, #tpu.memory_space<vmem>>, vector<140x6xf32>
    %c7 = arith.constant 7 : index
    %c0_55 = arith.constant 0 : index
    %c0_56 = arith.constant 0 : index
    %63 = vector.load %arg5[%c7, %c0_55, %c0_56] : memref<25x6x16xbf16, #tpu.memory_space<vmem>>, vector<1x6x16xbf16>
    %64 = vector.shape_cast %63 : vector<1x6x16xbf16> to vector<6x16xbf16>
    %65 = arith.truncf %62 : vector<140x6xf32> to vector<140x6xbf16>
    %cst_57 = arith.constant dense<0.000000e+00> : vector<140x16xf32>
    %66 = tpu.matmul %65, %64, %cst_57 {dimension_numbers = #tpu.dot_dimension_numbers<[1], [0], [0], [1], [0, 0, 1, 1], [], []>} : vector<140x6xbf16>, vector<6x16xbf16>, vector<140x16xf32> -> vector<140x16xf32>
    %67 = arith.addf %61, %66 : vector<140x16xf32>
    %c17 = arith.constant 17 : index
    %c0_58 = arith.constant 0 : index
    %68 = vector.load %arg16[%c17, %c0_58] : memref<200x6xf32, #tpu.memory_space<vmem>>, vector<140x6xf32>
    %c8 = arith.constant 8 : index
    %c0_59 = arith.constant 0 : index
    %c0_60 = arith.constant 0 : index
    %69 = vector.load %arg5[%c8, %c0_59, %c0_60] : memref<25x6x16xbf16, #tpu.memory_space<vmem>>, vector<1x6x16xbf16>
    %70 = vector.shape_cast %69 : vector<1x6x16xbf16> to vector<6x16xbf16>
    %71 = arith.truncf %68 : vector<140x6xf32> to vector<140x6xbf16>
    %cst_61 = arith.constant dense<0.000000e+00> : vector<140x16xf32>
    %72 = tpu.matmul %71, %70, %cst_61 {dimension_numbers = #tpu.dot_dimension_numbers<[1], [0], [0], [1], [0, 0, 1, 1], [], []>} : vector<140x6xbf16>, vector<6x16xbf16>, vector<140x16xf32> -> vector<140x16xf32>
    %73 = arith.addf %67, %72 : vector<140x16xf32>
    %c18 = arith.constant 18 : index
    %c0_62 = arith.constant 0 : index
    %74 = vector.load %arg16[%c18, %c0_62] : memref<200x6xf32, #tpu.memory_space<vmem>>, vector<140x6xf32>
    %c9 = arith.constant 9 : index
    %c0_63 = arith.constant 0 : index
    %c0_64 = arith.constant 0 : index
    %75 = vector.load %arg5[%c9, %c0_63, %c0_64] : memref<25x6x16xbf16, #tpu.memory_space<vmem>>, vector<1x6x16xbf16>
    %76 = vector.shape_cast %75 : vector<1x6x16xbf16> to vector<6x16xbf16>
    %77 = arith.truncf %74 : vector<140x6xf32> to vector<140x6xbf16>
    %cst_65 = arith.constant dense<0.000000e+00> : vector<140x16xf32>
    %78 = tpu.matmul %77, %76, %cst_65 {dimension_numbers = #tpu.dot_dimension_numbers<[1], [0], [0], [1], [0, 0, 1, 1], [], []>} : vector<140x6xbf16>, vector<6x16xbf16>, vector<140x16xf32> -> vector<140x16xf32>
    %79 = arith.addf %73, %78 : vector<140x16xf32>
    %c28 = arith.constant 28 : index
    %c0_66 = arith.constant 0 : index
    %80 = vector.load %arg16[%c28, %c0_66] : memref<200x6xf32, #tpu.memory_space<vmem>>, vector<140x6xf32>
    %c10 = arith.constant 10 : index
    %c0_67 = arith.constant 0 : index
    %c0_68 = arith.constant 0 : index
    %81 = vector.load %arg5[%c10, %c0_67, %c0_68] : memref<25x6x16xbf16, #tpu.memory_space<vmem>>, vector<1x6x16xbf16>
    %82 = vector.shape_cast %81 : vector<1x6x16xbf16> to vector<6x16xbf16>
    %83 = arith.truncf %80 : vector<140x6xf32> to vector<140x6xbf16>
    %cst_69 = arith.constant dense<0.000000e+00> : vector<140x16xf32>
    %84 = tpu.matmul %83, %82, %cst_69 {dimension_numbers = #tpu.dot_dimension_numbers<[1], [0], [0], [1], [0, 0, 1, 1], [], []>} : vector<140x6xbf16>, vector<6x16xbf16>, vector<140x16xf32> -> vector<140x16xf32>
    %85 = arith.addf %79, %84 : vector<140x16xf32>
    %c29 = arith.constant 29 : index
    %c0_70 = arith.constant 0 : index
    %86 = vector.load %arg16[%c29, %c0_70] : memref<200x6xf32, #tpu.memory_space<vmem>>, vector<140x6xf32>
    %c11 = arith.constant 11 : index
    %c0_71 = arith.constant 0 : index
    %c0_72 = arith.constant 0 : index
    %87 = vector.load %arg5[%c11, %c0_71, %c0_72] : memref<25x6x16xbf16, #tpu.memory_space<vmem>>, vector<1x6x16xbf16>
    %88 = vector.shape_cast %87 : vector<1x6x16xbf16> to vector<6x16xbf16>
    %89 = arith.truncf %86 : vector<140x6xf32> to vector<140x6xbf16>
    %cst_73 = arith.constant dense<0.000000e+00> : vector<140x16xf32>
    %90 = tpu.matmul %89, %88, %cst_73 {dimension_numbers = #tpu.dot_dimension_numbers<[1], [0], [0], [1], [0, 0, 1, 1], [], []>} : vector<140x6xbf16>, vector<6x16xbf16>, vector<140x16xf32> -> vector<140x16xf32>
    %91 = arith.addf %85, %90 : vector<140x16xf32>
    %c30 = arith.constant 30 : index
    %c0_74 = arith.constant 0 : index
    %92 = vector.load %arg16[%c30, %c0_74] : memref<200x6xf32, #tpu.memory_space<vmem>>, vector<140x6xf32>
    %c12 = arith.constant 12 : index
    %c0_75 = arith.constant 0 : index
    %c0_76 = arith.constant 0 : index
    %93 = vector.load %arg5[%c12, %c0_75, %c0_76] : memref<25x6x16xbf16, #tpu.memory_space<vmem>>, vector<1x6x16xbf16>
    %94 = vector.shape_cast %93 : vector<1x6x16xbf16> to vector<6x16xbf16>
    %95 = arith.truncf %92 : vector<140x6xf32> to vector<140x6xbf16>
    %cst_77 = arith.constant dense<0.000000e+00> : vector<140x16xf32>
    %96 = tpu.matmul %95, %94, %cst_77 {dimension_numbers = #tpu.dot_dimension_numbers<[1], [0], [0], [1], [0, 0, 1, 1], [], []>} : vector<140x6xbf16>, vector<6x16xbf16>, vector<140x16xf32> -> vector<140x16xf32>
    %97 = arith.addf %91, %96 : vector<140x16xf32>
    %c31 = arith.constant 31 : index
    %c0_78 = arith.constant 0 : index
    %98 = vector.load %arg16[%c31, %c0_78] : memref<200x6xf32, #tpu.memory_space<vmem>>, vector<140x6xf32>
    %c13 = arith.constant 13 : index
    %c0_79 = arith.constant 0 : index
    %c0_80 = arith.constant 0 : index
    %99 = vector.load %arg5[%c13, %c0_79, %c0_80] : memref<25x6x16xbf16, #tpu.memory_space<vmem>>, vector<1x6x16xbf16>
    %100 = vector.shape_cast %99 : vector<1x6x16xbf16> to vector<6x16xbf16>
    %101 = arith.truncf %98 : vector<140x6xf32> to vector<140x6xbf16>
    %cst_81 = arith.constant dense<0.000000e+00> : vector<140x16xf32>
    %102 = tpu.matmul %101, %100, %cst_81 {dimension_numbers = #tpu.dot_dimension_numbers<[1], [0], [0], [1], [0, 0, 1, 1], [], []>} : vector<140x6xbf16>, vector<6x16xbf16>, vector<140x16xf32> -> vector<140x16xf32>
    %103 = arith.addf %97, %102 : vector<140x16xf32>
    %c32_82 = arith.constant 32 : index
    %c0_83 = arith.constant 0 : index
    %104 = vector.load %arg16[%c32_82, %c0_83] : memref<200x6xf32, #tpu.memory_space<vmem>>, vector<140x6xf32>
    %c14_84 = arith.constant 14 : index
    %c0_85 = arith.constant 0 : index
    %c0_86 = arith.constant 0 : index
    %105 = vector.load %arg5[%c14_84, %c0_85, %c0_86] : memref<25x6x16xbf16, #tpu.memory_space<vmem>>, vector<1x6x16xbf16>
    %106 = vector.shape_cast %105 : vector<1x6x16xbf16> to vector<6x16xbf16>
    %107 = arith.truncf %104 : vector<140x6xf32> to vector<140x6xbf16>
    %cst_87 = arith.constant dense<0.000000e+00> : vector<140x16xf32>
    %108 = tpu.matmul %107, %106, %cst_87 {dimension_numbers = #tpu.dot_dimension_numbers<[1], [0], [0], [1], [0, 0, 1, 1], [], []>} : vector<140x6xbf16>, vector<6x16xbf16>, vector<140x16xf32> -> vector<140x16xf32>
    %109 = arith.addf %103, %108 : vector<140x16xf32>
    %c42 = arith.constant 42 : index
    %c0_88 = arith.constant 0 : index
    %110 = vector.load %arg16[%c42, %c0_88] : memref<200x6xf32, #tpu.memory_space<vmem>>, vector<140x6xf32>
    %c15_89 = arith.constant 15 : index
    %c0_90 = arith.constant 0 : index
    %c0_91 = arith.constant 0 : index
    %111 = vector.load %arg5[%c15_89, %c0_90, %c0_91] : memref<25x6x16xbf16, #tpu.memory_space<vmem>>, vector<1x6x16xbf16>
    %112 = vector.shape_cast %111 : vector<1x6x16xbf16> to vector<6x16xbf16>
    %113 = arith.truncf %110 : vector<140x6xf32> to vector<140x6xbf16>
    %cst_92 = arith.constant dense<0.000000e+00> : vector<140x16xf32>
    %114 = tpu.matmul %113, %112, %cst_92 {dimension_numbers = #tpu.dot_dimension_numbers<[1], [0], [0], [1], [0, 0, 1, 1], [], []>} : vector<140x6xbf16>, vector<6x16xbf16>, vector<140x16xf32> -> vector<140x16xf32>
    %115 = arith.addf %109, %114 : vector<140x16xf32>
    %c43 = arith.constant 43 : index
    %c0_93 = arith.constant 0 : index
    %116 = vector.load %arg16[%c43, %c0_93] : memref<200x6xf32, #tpu.memory_space<vmem>>, vector<140x6xf32>
    %c16_94 = arith.constant 16 : index
    %c0_95 = arith.constant 0 : index
    %c0_96 = arith.constant 0 : index
    %117 = vector.load %arg5[%c16_94, %c0_95, %c0_96] : memref<25x6x16xbf16, #tpu.memory_space<vmem>>, vector<1x6x16xbf16>
    %118 = vector.shape_cast %117 : vector<1x6x16xbf16> to vector<6x16xbf16>
    %119 = arith.truncf %116 : vector<140x6xf32> to vector<140x6xbf16>
    %cst_97 = arith.constant dense<0.000000e+00> : vector<140x16xf32>
    %120 = tpu.matmul %119, %118, %cst_97 {dimension_numbers = #tpu.dot_dimension_numbers<[1], [0], [0], [1], [0, 0, 1, 1], [], []>} : vector<140x6xbf16>, vector<6x16xbf16>, vector<140x16xf32> -> vector<140x16xf32>
    %121 = arith.addf %115, %120 : vector<140x16xf32>
    %c44 = arith.constant 44 : index
    %c0_98 = arith.constant 0 : index
    %122 = vector.load %arg16[%c44, %c0_98] : memref<200x6xf32, #tpu.memory_space<vmem>>, vector<140x6xf32>
    %c17_99 = arith.constant 17 : index
    %c0_100 = arith.constant 0 : index
    %c0_101 = arith.constant 0 : index
    %123 = vector.load %arg5[%c17_99, %c0_100, %c0_101] : memref<25x6x16xbf16, #tpu.memory_space<vmem>>, vector<1x6x16xbf16>
    %124 = vector.shape_cast %123 : vector<1x6x16xbf16> to vector<6x16xbf16>
    %125 = arith.truncf %122 : vector<140x6xf32> to vector<140x6xbf16>
    %cst_102 = arith.constant dense<0.000000e+00> : vector<140x16xf32>
    %126 = tpu.matmul %125, %124, %cst_102 {dimension_numbers = #tpu.dot_dimension_numbers<[1], [0], [0], [1], [0, 0, 1, 1], [], []>} : vector<140x6xbf16>, vector<6x16xbf16>, vector<140x16xf32> -> vector<140x16xf32>
    %127 = arith.addf %121, %126 : vector<140x16xf32>
    %c45 = arith.constant 45 : index
    %c0_103 = arith.constant 0 : index
    %128 = vector.load %arg16[%c45, %c0_103] : memref<200x6xf32, #tpu.memory_space<vmem>>, vector<140x6xf32>
    %c18_104 = arith.constant 18 : index
    %c0_105 = arith.constant 0 : index
    %c0_106 = arith.constant 0 : index
    %129 = vector.load %arg5[%c18_104, %c0_105, %c0_106] : memref<25x6x16xbf16, #tpu.memory_space<vmem>>, vector<1x6x16xbf16>
    %130 = vector.shape_cast %129 : vector<1x6x16xbf16> to vector<6x16xbf16>
    %131 = arith.truncf %128 : vector<140x6xf32> to vector<140x6xbf16>
    %cst_107 = arith.constant dense<0.000000e+00> : vector<140x16xf32>
    %132 = tpu.matmul %131, %130, %cst_107 {dimension_numbers = #tpu.dot_dimension_numbers<[1], [0], [0], [1], [0, 0, 1, 1], [], []>} : vector<140x6xbf16>, vector<6x16xbf16>, vector<140x16xf32> -> vector<140x16xf32>
    %133 = arith.addf %127, %132 : vector<140x16xf32>
    %c46 = arith.constant 46 : index
    %c0_108 = arith.constant 0 : index
    %134 = vector.load %arg16[%c46, %c0_108] : memref<200x6xf32, #tpu.memory_space<vmem>>, vector<140x6xf32>
    %c19 = arith.constant 19 : index
    %c0_109 = arith.constant 0 : index
    %c0_110 = arith.constant 0 : index
    %135 = vector.load %arg5[%c19, %c0_109, %c0_110] : memref<25x6x16xbf16, #tpu.memory_space<vmem>>, vector<1x6x16xbf16>
    %136 = vector.shape_cast %135 : vector<1x6x16xbf16> to vector<6x16xbf16>
    %137 = arith.truncf %134 : vector<140x6xf32> to vector<140x6xbf16>
    %cst_111 = arith.constant dense<0.000000e+00> : vector<140x16xf32>
    %138 = tpu.matmul %137, %136, %cst_111 {dimension_numbers = #tpu.dot_dimension_numbers<[1], [0], [0], [1], [0, 0, 1, 1], [], []>} : vector<140x6xbf16>, vector<6x16xbf16>, vector<140x16xf32> -> vector<140x16xf32>
    %139 = arith.addf %133, %138 : vector<140x16xf32>
    %c56 = arith.constant 56 : index
    %c0_112 = arith.constant 0 : index
    %140 = vector.load %arg16[%c56, %c0_112] : memref<200x6xf32, #tpu.memory_space<vmem>>, vector<140x6xf32>
    %c20 = arith.constant 20 : index
    %c0_113 = arith.constant 0 : index
    %c0_114 = arith.constant 0 : index
    %141 = vector.load %arg5[%c20, %c0_113, %c0_114] : memref<25x6x16xbf16, #tpu.memory_space<vmem>>, vector<1x6x16xbf16>
    %142 = vector.shape_cast %141 : vector<1x6x16xbf16> to vector<6x16xbf16>
    %143 = arith.truncf %140 : vector<140x6xf32> to vector<140x6xbf16>
    %cst_115 = arith.constant dense<0.000000e+00> : vector<140x16xf32>
    %144 = tpu.matmul %143, %142, %cst_115 {dimension_numbers = #tpu.dot_dimension_numbers<[1], [0], [0], [1], [0, 0, 1, 1], [], []>} : vector<140x6xbf16>, vector<6x16xbf16>, vector<140x16xf32> -> vector<140x16xf32>
    %145 = arith.addf %139, %144 : vector<140x16xf32>
    %c57 = arith.constant 57 : index
    %c0_116 = arith.constant 0 : index
    %146 = vector.load %arg16[%c57, %c0_116] : memref<200x6xf32, #tpu.memory_space<vmem>>, vector<140x6xf32>
    %c21 = arith.constant 21 : index
    %c0_117 = arith.constant 0 : index
    %c0_118 = arith.constant 0 : index
    %147 = vector.load %arg5[%c21, %c0_117, %c0_118] : memref<25x6x16xbf16, #tpu.memory_space<vmem>>, vector<1x6x16xbf16>
    %148 = vector.shape_cast %147 : vector<1x6x16xbf16> to vector<6x16xbf16>
    %149 = arith.truncf %146 : vector<140x6xf32> to vector<140x6xbf16>
    %cst_119 = arith.constant dense<0.000000e+00> : vector<140x16xf32>
    %150 = tpu.matmul %149, %148, %cst_119 {dimension_numbers = #tpu.dot_dimension_numbers<[1], [0], [0], [1], [0, 0, 1, 1], [], []>} : vector<140x6xbf16>, vector<6x16xbf16>, vector<140x16xf32> -> vector<140x16xf32>
    %151 = arith.addf %145, %150 : vector<140x16xf32>
    %c58 = arith.constant 58 : index
    %c0_120 = arith.constant 0 : index
    %152 = vector.load %arg16[%c58, %c0_120] : memref<200x6xf32, #tpu.memory_space<vmem>>, vector<140x6xf32>
    %c22 = arith.constant 22 : index
    %c0_121 = arith.constant 0 : index
    %c0_122 = arith.constant 0 : index
    %153 = vector.load %arg5[%c22, %c0_121, %c0_122] : memref<25x6x16xbf16, #tpu.memory_space<vmem>>, vector<1x6x16xbf16>
    %154 = vector.shape_cast %153 : vector<1x6x16xbf16> to vector<6x16xbf16>
    %155 = arith.truncf %152 : vector<140x6xf32> to vector<140x6xbf16>
    %cst_123 = arith.constant dense<0.000000e+00> : vector<140x16xf32>
    %156 = tpu.matmul %155, %154, %cst_123 {dimension_numbers = #tpu.dot_dimension_numbers<[1], [0], [0], [1], [0, 0, 1, 1], [], []>} : vector<140x6xbf16>, vector<6x16xbf16>, vector<140x16xf32> -> vector<140x16xf32>
    %157 = arith.addf %151, %156 : vector<140x16xf32>
    %c59 = arith.constant 59 : index
    %c0_124 = arith.constant 0 : index
    %158 = vector.load %arg16[%c59, %c0_124] : memref<200x6xf32, #tpu.memory_space<vmem>>, vector<140x6xf32>
    %c23 = arith.constant 23 : index
    %c0_125 = arith.constant 0 : index
    %c0_126 = arith.constant 0 : index
    %159 = vector.load %arg5[%c23, %c0_125, %c0_126] : memref<25x6x16xbf16, #tpu.memory_space<vmem>>, vector<1x6x16xbf16>
    %160 = vector.shape_cast %159 : vector<1x6x16xbf16> to vector<6x16xbf16>
    %161 = arith.truncf %158 : vector<140x6xf32> to vector<140x6xbf16>
    %cst_127 = arith.constant dense<0.000000e+00> : vector<140x16xf32>
    %162 = tpu.matmul %161, %160, %cst_127 {dimension_numbers = #tpu.dot_dimension_numbers<[1], [0], [0], [1], [0, 0, 1, 1], [], []>} : vector<140x6xbf16>, vector<6x16xbf16>, vector<140x16xf32> -> vector<140x16xf32>
    %163 = arith.addf %157, %162 : vector<140x16xf32>
    %c60 = arith.constant 60 : index
    %c0_128 = arith.constant 0 : index
    %164 = vector.load %arg16[%c60, %c0_128] : memref<200x6xf32, #tpu.memory_space<vmem>>, vector<140x6xf32>
    %c24 = arith.constant 24 : index
    %c0_129 = arith.constant 0 : index
    %c0_130 = arith.constant 0 : index
    %165 = vector.load %arg5[%c24, %c0_129, %c0_130] : memref<25x6x16xbf16, #tpu.memory_space<vmem>>, vector<1x6x16xbf16>
    %166 = vector.shape_cast %165 : vector<1x6x16xbf16> to vector<6x16xbf16>
    %167 = arith.truncf %164 : vector<140x6xf32> to vector<140x6xbf16>
    %cst_131 = arith.constant dense<0.000000e+00> : vector<140x16xf32>
    %168 = tpu.matmul %167, %166, %cst_131 {dimension_numbers = #tpu.dot_dimension_numbers<[1], [0], [0], [1], [0, 0, 1, 1], [], []>} : vector<140x6xbf16>, vector<6x16xbf16>, vector<140x16xf32> -> vector<140x16xf32>
    %169 = arith.addf %163, %168 : vector<140x16xf32>
    %c0_132 = arith.constant 0 : index
    %c0_133 = arith.constant 0 : index
    %170 = vector.load %arg17[%c0_132, %c0_133] : memref<140x16xf32, #tpu.memory_space<vmem>>, vector<140x16xf32>
    tpu.vector_store %arg17[%c0_132, %c0_133], %169 {strides = array<i32>} : memref<140x16xf32, #tpu.memory_space<vmem>>, vector<140x16xf32>,
    %c0_134 = arith.constant 0 : index
    %c0_135 = arith.constant 0 : index
    %171 = vector.load %arg17[%c0_134, %c0_135] : memref<140x16xf32, #tpu.memory_space<vmem>>, vector<125x16xf32>
    %c1_136 = arith.constant 1 : index
    %c0_137 = arith.constant 0 : index
    %172 = vector.load %arg17[%c1_136, %c0_137] : memref<140x16xf32, #tpu.memory_space<vmem>>, vector<125x16xf32>
    %173 = arith.maximumf %171, %172 : vector<125x16xf32>
    %c14_138 = arith.constant 14 : index
    %c0_139 = arith.constant 0 : index
    %174 = vector.load %arg17[%c14_138, %c0_139] : memref<140x16xf32, #tpu.memory_space<vmem>>, vector<125x16xf32>
    %c15_140 = arith.constant 15 : index
    %c0_141 = arith.constant 0 : index
    %175 = vector.load %arg17[%c15_140, %c0_141] : memref<140x16xf32, #tpu.memory_space<vmem>>, vector<125x16xf32>
    %176 = arith.maximumf %174, %175 : vector<125x16xf32>
    %177 = arith.maximumf %173, %176 : vector<125x16xf32>
    %c0_142 = arith.constant 0 : index
    %c0_143 = arith.constant 0 : index
    %178 = vector.load %arg7[%c0_142, %c0_143] : memref<25x125xbf16, #tpu.memory_space<vmem>>, vector<25x125xbf16>
    %179 = arith.truncf %177 : vector<125x16xf32> to vector<125x16xbf16>
    %cst_144 = arith.constant dense<0.000000e+00> : vector<25x16xf32>
    %180 = tpu.matmul %178, %179, %cst_144 {dimension_numbers = #tpu.dot_dimension_numbers<[1], [0], [0], [1], [0, 0, 1, 1], [], []>} : vector<25x125xbf16>, vector<125x16xbf16>, vector<25x16xf32> -> vector<25x16xf32>
    %c0_145 = arith.constant 0 : index
    %c0_146 = arith.constant 0 : index
    %181 = vector.load %arg6[%c0_145, %c0_146] : memref<1x16xf32, #tpu.memory_space<vmem>>, vector<1x16xf32>
    %182 = vector.broadcast %181 : vector<1x16xf32> to vector<25x16xf32>
    %183 = arith.addf %180, %182 : vector<25x16xf32>
    %cst_147 = arith.constant 0.000000e+00 : f32
    %184 = vector.broadcast %cst_147 : f32 to vector<25x16xf32>
    %185 = arith.maximumf %183, %184 : vector<25x16xf32>
    %c0_148 = arith.constant 0 : index
    %c0_149 = arith.constant 0 : index
    %186 = vector.load %arg18[%c0_148, %c0_149] : memref<25x16xf32, #tpu.memory_space<vmem>>, vector<25x16xf32>
    tpu.vector_store %arg18[%c0_148, %c0_149], %185 {strides = array<i32>} : memref<25x16xf32, #tpu.memory_space<vmem>>, vector<25x16xf32>,
    %c0_150 = arith.constant 0 : index
    %c0_151 = arith.constant 0 : index
    %187 = vector.load %arg18[%c0_150, %c0_151] : memref<25x16xf32, #tpu.memory_space<vmem>>, vector<1x16xf32>
    %c0_152 = arith.constant 0 : index
    %c0_153 = arith.constant 0 : index
    %c0_154 = arith.constant 0 : index
    %188 = vector.load %arg8[%c0_152, %c0_153, %c0_154] : memref<25x16x128xbf16, #tpu.memory_space<vmem>>, vector<1x16x128xbf16>
    %189 = vector.shape_cast %188 : vector<1x16x128xbf16> to vector<16x128xbf16>
    %190 = arith.truncf %187 : vector<1x16xf32> to vector<1x16xbf16>
    %cst_155 = arith.constant dense<0.000000e+00> : vector<1x128xf32>
    %191 = tpu.matmul %190, %189, %cst_155 {dimension_numbers = #tpu.dot_dimension_numbers<[1], [0], [0], [1], [0, 0, 1, 1], [], []>} : vector<1x16xbf16>, vector<16x128xbf16>, vector<1x128xf32> -> vector<1x128xf32>
    %c1_156 = arith.constant 1 : index
    %c0_157 = arith.constant 0 : index
    %192 = vector.load %arg18[%c1_156, %c0_157] : memref<25x16xf32, #tpu.memory_space<vmem>>, vector<1x16xf32>
    %c1_158 = arith.constant 1 : index
    %c0_159 = arith.constant 0 : index
    %c0_160 = arith.constant 0 : index
    %193 = vector.load %arg8[%c1_158, %c0_159, %c0_160] : memref<25x16x128xbf16, #tpu.memory_space<vmem>>, vector<1x16x128xbf16>
    %194 = vector.shape_cast %193 : vector<1x16x128xbf16> to vector<16x128xbf16>
    %195 = arith.truncf %192 : vector<1x16xf32> to vector<1x16xbf16>
    %cst_161 = arith.constant dense<0.000000e+00> : vector<1x128xf32>
    %196 = tpu.matmul %195, %194, %cst_161 {dimension_numbers = #tpu.dot_dimension_numbers<[1], [0], [0], [1], [0, 0, 1, 1], [], []>} : vector<1x16xbf16>, vector<16x128xbf16>, vector<1x128xf32> -> vector<1x128xf32>
    %197 = arith.addf %191, %196 : vector<1x128xf32>
    %c2_162 = arith.constant 2 : index
    %c0_163 = arith.constant 0 : index
    %198 = vector.load %arg18[%c2_162, %c0_163] : memref<25x16xf32, #tpu.memory_space<vmem>>, vector<1x16xf32>
    %c2_164 = arith.constant 2 : index
    %c0_165 = arith.constant 0 : index
    %c0_166 = arith.constant 0 : index
    %199 = vector.load %arg8[%c2_164, %c0_165, %c0_166] : memref<25x16x128xbf16, #tpu.memory_space<vmem>>, vector<1x16x128xbf16>
    %200 = vector.shape_cast %199 : vector<1x16x128xbf16> to vector<16x128xbf16>
    %201 = arith.truncf %198 : vector<1x16xf32> to vector<1x16xbf16>
    %cst_167 = arith.constant dense<0.000000e+00> : vector<1x128xf32>
    %202 = tpu.matmul %201, %200, %cst_167 {dimension_numbers = #tpu.dot_dimension_numbers<[1], [0], [0], [1], [0, 0, 1, 1], [], []>} : vector<1x16xbf16>, vector<16x128xbf16>, vector<1x128xf32> -> vector<1x128xf32>
    %203 = arith.addf %197, %202 : vector<1x128xf32>
    %c3_168 = arith.constant 3 : index
    %c0_169 = arith.constant 0 : index
    %204 = vector.load %arg18[%c3_168, %c0_169] : memref<25x16xf32, #tpu.memory_space<vmem>>, vector<1x16xf32>
    %c3_170 = arith.constant 3 : index
    %c0_171 = arith.constant 0 : index
    %c0_172 = arith.constant 0 : index
    %205 = vector.load %arg8[%c3_170, %c0_171, %c0_172] : memref<25x16x128xbf16, #tpu.memory_space<vmem>>, vector<1x16x128xbf16>
    %206 = vector.shape_cast %205 : vector<1x16x128xbf16> to vector<16x128xbf16>
    %207 = arith.truncf %204 : vector<1x16xf32> to vector<1x16xbf16>
    %cst_173 = arith.constant dense<0.000000e+00> : vector<1x128xf32>
    %208 = tpu.matmul %207, %206, %cst_173 {dimension_numbers = #tpu.dot_dimension_numbers<[1], [0], [0], [1], [0, 0, 1, 1], [], []>} : vector<1x16xbf16>, vector<16x128xbf16>, vector<1x128xf32> -> vector<1x128xf32>
    %209 = arith.addf %203, %208 : vector<1x128xf32>
    %c4_174 = arith.constant 4 : index
    %c0_175 = arith.constant 0 : index
    %210 = vector.load %arg18[%c4_174, %c0_175] : memref<25x16xf32, #tpu.memory_space<vmem>>, vector<1x16xf32>
    %c4_176 = arith.constant 4 : index
    %c0_177 = arith.constant 0 : index
    %c0_178 = arith.constant 0 : index
    %211 = vector.load %arg8[%c4_176, %c0_177, %c0_178] : memref<25x16x128xbf16, #tpu.memory_space<vmem>>, vector<1x16x128xbf16>
    %212 = vector.shape_cast %211 : vector<1x16x128xbf16> to vector<16x128xbf16>
    %213 = arith.truncf %210 : vector<1x16xf32> to vector<1x16xbf16>
    %cst_179 = arith.constant dense<0.000000e+00> : vector<1x128xf32>
    %214 = tpu.matmul %213, %212, %cst_179 {dimension_numbers = #tpu.dot_dimension_numbers<[1], [0], [0], [1], [0, 0, 1, 1], [], []>} : vector<1x16xbf16>, vector<16x128xbf16>, vector<1x128xf32> -> vector<1x128xf32>
    %215 = arith.addf %209, %214 : vector<1x128xf32>
    %c5_180 = arith.constant 5 : index
    %c0_181 = arith.constant 0 : index
    %216 = vector.load %arg18[%c5_180, %c0_181] : memref<25x16xf32, #tpu.memory_space<vmem>>, vector<1x16xf32>
    %c5_182 = arith.constant 5 : index
    %c0_183 = arith.constant 0 : index
    %c0_184 = arith.constant 0 : index
    %217 = vector.load %arg8[%c5_182, %c0_183, %c0_184] : memref<25x16x128xbf16, #tpu.memory_space<vmem>>, vector<1x16x128xbf16>
    %218 = vector.shape_cast %217 : vector<1x16x128xbf16> to vector<16x128xbf16>
    %219 = arith.truncf %216 : vector<1x16xf32> to vector<1x16xbf16>
    %cst_185 = arith.constant dense<0.000000e+00> : vector<1x128xf32>
    %220 = tpu.matmul %219, %218, %cst_185 {dimension_numbers = #tpu.dot_dimension_numbers<[1], [0], [0], [1], [0, 0, 1, 1], [], []>} : vector<1x16xbf16>, vector<16x128xbf16>, vector<1x128xf32> -> vector<1x128xf32>
    %221 = arith.addf %215, %220 : vector<1x128xf32>
    %c6_186 = arith.constant 6 : index
    %c0_187 = arith.constant 0 : index
    %222 = vector.load %arg18[%c6_186, %c0_187] : memref<25x16xf32, #tpu.memory_space<vmem>>, vector<1x16xf32>
    %c6_188 = arith.constant 6 : index
    %c0_189 = arith.constant 0 : index
    %c0_190 = arith.constant 0 : index
    %223 = vector.load %arg8[%c6_188, %c0_189, %c0_190] : memref<25x16x128xbf16, #tpu.memory_space<vmem>>, vector<1x16x128xbf16>
    %224 = vector.shape_cast %223 : vector<1x16x128xbf16> to vector<16x128xbf16>
    %225 = arith.truncf %222 : vector<1x16xf32> to vector<1x16xbf16>
    %cst_191 = arith.constant dense<0.000000e+00> : vector<1x128xf32>
    %226 = tpu.matmul %225, %224, %cst_191 {dimension_numbers = #tpu.dot_dimension_numbers<[1], [0], [0], [1], [0, 0, 1, 1], [], []>} : vector<1x16xbf16>, vector<16x128xbf16>, vector<1x128xf32> -> vector<1x128xf32>
    %227 = arith.addf %221, %226 : vector<1x128xf32>
    %c7_192 = arith.constant 7 : index
    %c0_193 = arith.constant 0 : index
    %228 = vector.load %arg18[%c7_192, %c0_193] : memref<25x16xf32, #tpu.memory_space<vmem>>, vector<1x16xf32>
    %c7_194 = arith.constant 7 : index
    %c0_195 = arith.constant 0 : index
    %c0_196 = arith.constant 0 : index
    %229 = vector.load %arg8[%c7_194, %c0_195, %c0_196] : memref<25x16x128xbf16, #tpu.memory_space<vmem>>, vector<1x16x128xbf16>
    %230 = vector.shape_cast %229 : vector<1x16x128xbf16> to vector<16x128xbf16>
    %231 = arith.truncf %228 : vector<1x16xf32> to vector<1x16xbf16>
    %cst_197 = arith.constant dense<0.000000e+00> : vector<1x128xf32>
    %232 = tpu.matmul %231, %230, %cst_197 {dimension_numbers = #tpu.dot_dimension_numbers<[1], [0], [0], [1], [0, 0, 1, 1], [], []>} : vector<1x16xbf16>, vector<16x128xbf16>, vector<1x128xf32> -> vector<1x128xf32>
    %233 = arith.addf %227, %232 : vector<1x128xf32>
    %c8_198 = arith.constant 8 : index
    %c0_199 = arith.constant 0 : index
    %234 = vector.load %arg18[%c8_198, %c0_199] : memref<25x16xf32, #tpu.memory_space<vmem>>, vector<1x16xf32>
    %c8_200 = arith.constant 8 : index
    %c0_201 = arith.constant 0 : index
    %c0_202 = arith.constant 0 : index
    %235 = vector.load %arg8[%c8_200, %c0_201, %c0_202] : memref<25x16x128xbf16, #tpu.memory_space<vmem>>, vector<1x16x128xbf16>
    %236 = vector.shape_cast %235 : vector<1x16x128xbf16> to vector<16x128xbf16>
    %237 = arith.truncf %234 : vector<1x16xf32> to vector<1x16xbf16>
    %cst_203 = arith.constant dense<0.000000e+00> : vector<1x128xf32>
    %238 = tpu.matmul %237, %236, %cst_203 {dimension_numbers = #tpu.dot_dimension_numbers<[1], [0], [0], [1], [0, 0, 1, 1], [], []>} : vector<1x16xbf16>, vector<16x128xbf16>, vector<1x128xf32> -> vector<1x128xf32>
    %239 = arith.addf %233, %238 : vector<1x128xf32>
    %c9_204 = arith.constant 9 : index
    %c0_205 = arith.constant 0 : index
    %240 = vector.load %arg18[%c9_204, %c0_205] : memref<25x16xf32, #tpu.memory_space<vmem>>, vector<1x16xf32>
    %c9_206 = arith.constant 9 : index
    %c0_207 = arith.constant 0 : index
    %c0_208 = arith.constant 0 : index
    %241 = vector.load %arg8[%c9_206, %c0_207, %c0_208] : memref<25x16x128xbf16, #tpu.memory_space<vmem>>, vector<1x16x128xbf16>
    %242 = vector.shape_cast %241 : vector<1x16x128xbf16> to vector<16x128xbf16>
    %243 = arith.truncf %240 : vector<1x16xf32> to vector<1x16xbf16>
    %cst_209 = arith.constant dense<0.000000e+00> : vector<1x128xf32>
    %244 = tpu.matmul %243, %242, %cst_209 {dimension_numbers = #tpu.dot_dimension_numbers<[1], [0], [0], [1], [0, 0, 1, 1], [], []>} : vector<1x16xbf16>, vector<16x128xbf16>, vector<1x128xf32> -> vector<1x128xf32>
    %245 = arith.addf %239, %244 : vector<1x128xf32>
    %c10_210 = arith.constant 10 : index
    %c0_211 = arith.constant 0 : index
    %246 = vector.load %arg18[%c10_210, %c0_211] : memref<25x16xf32, #tpu.memory_space<vmem>>, vector<1x16xf32>
    %c10_212 = arith.constant 10 : index
    %c0_213 = arith.constant 0 : index
    %c0_214 = arith.constant 0 : index
    %247 = vector.load %arg8[%c10_212, %c0_213, %c0_214] : memref<25x16x128xbf16, #tpu.memory_space<vmem>>, vector<1x16x128xbf16>
    %248 = vector.shape_cast %247 : vector<1x16x128xbf16> to vector<16x128xbf16>
    %249 = arith.truncf %246 : vector<1x16xf32> to vector<1x16xbf16>
    %cst_215 = arith.constant dense<0.000000e+00> : vector<1x128xf32>
    %250 = tpu.matmul %249, %248, %cst_215 {dimension_numbers = #tpu.dot_dimension_numbers<[1], [0], [0], [1], [0, 0, 1, 1], [], []>} : vector<1x16xbf16>, vector<16x128xbf16>, vector<1x128xf32> -> vector<1x128xf32>
    %251 = arith.addf %245, %250 : vector<1x128xf32>
    %c11_216 = arith.constant 11 : index
    %c0_217 = arith.constant 0 : index
    %252 = vector.load %arg18[%c11_216, %c0_217] : memref<25x16xf32, #tpu.memory_space<vmem>>, vector<1x16xf32>
    %c11_218 = arith.constant 11 : index
    %c0_219 = arith.constant 0 : index
    %c0_220 = arith.constant 0 : index
    %253 = vector.load %arg8[%c11_218, %c0_219, %c0_220] : memref<25x16x128xbf16, #tpu.memory_space<vmem>>, vector<1x16x128xbf16>
    %254 = vector.shape_cast %253 : vector<1x16x128xbf16> to vector<16x128xbf16>
    %255 = arith.truncf %252 : vector<1x16xf32> to vector<1x16xbf16>
    %cst_221 = arith.constant dense<0.000000e+00> : vector<1x128xf32>
    %256 = tpu.matmul %255, %254, %cst_221 {dimension_numbers = #tpu.dot_dimension_numbers<[1], [0], [0], [1], [0, 0, 1, 1], [], []>} : vector<1x16xbf16>, vector<16x128xbf16>, vector<1x128xf32> -> vector<1x128xf32>
    %257 = arith.addf %251, %256 : vector<1x128xf32>
    %c12_222 = arith.constant 12 : index
    %c0_223 = arith.constant 0 : index
    %258 = vector.load %arg18[%c12_222, %c0_223] : memref<25x16xf32, #tpu.memory_space<vmem>>, vector<1x16xf32>
    %c12_224 = arith.constant 12 : index
    %c0_225 = arith.constant 0 : index
    %c0_226 = arith.constant 0 : index
    %259 = vector.load %arg8[%c12_224, %c0_225, %c0_226] : memref<25x16x128xbf16, #tpu.memory_space<vmem>>, vector<1x16x128xbf16>
    %260 = vector.shape_cast %259 : vector<1x16x128xbf16> to vector<16x128xbf16>
    %261 = arith.truncf %258 : vector<1x16xf32> to vector<1x16xbf16>
    %cst_227 = arith.constant dense<0.000000e+00> : vector<1x128xf32>
    %262 = tpu.matmul %261, %260, %cst_227 {dimension_numbers = #tpu.dot_dimension_numbers<[1], [0], [0], [1], [0, 0, 1, 1], [], []>} : vector<1x16xbf16>, vector<16x128xbf16>, vector<1x128xf32> -> vector<1x128xf32>
    %263 = arith.addf %257, %262 : vector<1x128xf32>
    %c13_228 = arith.constant 13 : index
    %c0_229 = arith.constant 0 : index
    %264 = vector.load %arg18[%c13_228, %c0_229] : memref<25x16xf32, #tpu.memory_space<vmem>>, vector<1x16xf32>
    %c13_230 = arith.constant 13 : index
    %c0_231 = arith.constant 0 : index
    %c0_232 = arith.constant 0 : index
    %265 = vector.load %arg8[%c13_230, %c0_231, %c0_232] : memref<25x16x128xbf16, #tpu.memory_space<vmem>>, vector<1x16x128xbf16>
    %266 = vector.shape_cast %265 : vector<1x16x128xbf16> to vector<16x128xbf16>
    %267 = arith.truncf %264 : vector<1x16xf32> to vector<1x16xbf16>
    %cst_233 = arith.constant dense<0.000000e+00> : vector<1x128xf32>
    %268 = tpu.matmul %267, %266, %cst_233 {dimension_numbers = #tpu.dot_dimension_numbers<[1], [0], [0], [1], [0, 0, 1, 1], [], []>} : vector<1x16xbf16>, vector<16x128xbf16>, vector<1x128xf32> -> vector<1x128xf32>
    %269 = arith.addf %263, %268 : vector<1x128xf32>
    %c14_234 = arith.constant 14 : index
    %c0_235 = arith.constant 0 : index
    %270 = vector.load %arg18[%c14_234, %c0_235] : memref<25x16xf32, #tpu.memory_space<vmem>>, vector<1x16xf32>
    %c14_236 = arith.constant 14 : index
    %c0_237 = arith.constant 0 : index
    %c0_238 = arith.constant 0 : index
    %271 = vector.load %arg8[%c14_236, %c0_237, %c0_238] : memref<25x16x128xbf16, #tpu.memory_space<vmem>>, vector<1x16x128xbf16>
    %272 = vector.shape_cast %271 : vector<1x16x128xbf16> to vector<16x128xbf16>
    %273 = arith.truncf %270 : vector<1x16xf32> to vector<1x16xbf16>
    %cst_239 = arith.constant dense<0.000000e+00> : vector<1x128xf32>
    %274 = tpu.matmul %273, %272, %cst_239 {dimension_numbers = #tpu.dot_dimension_numbers<[1], [0], [0], [1], [0, 0, 1, 1], [], []>} : vector<1x16xbf16>, vector<16x128xbf16>, vector<1x128xf32> -> vector<1x128xf32>
    %275 = arith.addf %269, %274 : vector<1x128xf32>
    %c15_240 = arith.constant 15 : index
    %c0_241 = arith.constant 0 : index
    %276 = vector.load %arg18[%c15_240, %c0_241] : memref<25x16xf32, #tpu.memory_space<vmem>>, vector<1x16xf32>
    %c15_242 = arith.constant 15 : index
    %c0_243 = arith.constant 0 : index
    %c0_244 = arith.constant 0 : index
    %277 = vector.load %arg8[%c15_242, %c0_243, %c0_244] : memref<25x16x128xbf16, #tpu.memory_space<vmem>>, vector<1x16x128xbf16>
    %278 = vector.shape_cast %277 : vector<1x16x128xbf16> to vector<16x128xbf16>
    %279 = arith.truncf %276 : vector<1x16xf32> to vector<1x16xbf16>
    %cst_245 = arith.constant dense<0.000000e+00> : vector<1x128xf32>
    %280 = tpu.matmul %279, %278, %cst_245 {dimension_numbers = #tpu.dot_dimension_numbers<[1], [0], [0], [1], [0, 0, 1, 1], [], []>} : vector<1x16xbf16>, vector<16x128xbf16>, vector<1x128xf32> -> vector<1x128xf32>
    %281 = arith.addf %275, %280 : vector<1x128xf32>
    %c16_246 = arith.constant 16 : index
    %c0_247 = arith.constant 0 : index
    %282 = vector.load %arg18[%c16_246, %c0_247] : memref<25x16xf32, #tpu.memory_space<vmem>>, vector<1x16xf32>
    %c16_248 = arith.constant 16 : index
    %c0_249 = arith.constant 0 : index
    %c0_250 = arith.constant 0 : index
    %283 = vector.load %arg8[%c16_248, %c0_249, %c0_250] : memref<25x16x128xbf16, #tpu.memory_space<vmem>>, vector<1x16x128xbf16>
    %284 = vector.shape_cast %283 : vector<1x16x128xbf16> to vector<16x128xbf16>
    %285 = arith.truncf %282 : vector<1x16xf32> to vector<1x16xbf16>
    %cst_251 = arith.constant dense<0.000000e+00> : vector<1x128xf32>
    %286 = tpu.matmul %285, %284, %cst_251 {dimension_numbers = #tpu.dot_dimension_numbers<[1], [0], [0], [1], [0, 0, 1, 1], [], []>} : vector<1x16xbf16>, vector<16x128xbf16>, vector<1x128xf32> -> vector<1x128xf32>
    %287 = arith.addf %281, %286 : vector<1x128xf32>
    %c17_252 = arith.constant 17 : index
    %c0_253 = arith.constant 0 : index
    %288 = vector.load %arg18[%c17_252, %c0_253] : memref<25x16xf32, #tpu.memory_space<vmem>>, vector<1x16xf32>
    %c17_254 = arith.constant 17 : index
    %c0_255 = arith.constant 0 : index
    %c0_256 = arith.constant 0 : index
    %289 = vector.load %arg8[%c17_254, %c0_255, %c0_256] : memref<25x16x128xbf16, #tpu.memory_space<vmem>>, vector<1x16x128xbf16>
    %290 = vector.shape_cast %289 : vector<1x16x128xbf16> to vector<16x128xbf16>
    %291 = arith.truncf %288 : vector<1x16xf32> to vector<1x16xbf16>
    %cst_257 = arith.constant dense<0.000000e+00> : vector<1x128xf32>
    %292 = tpu.matmul %291, %290, %cst_257 {dimension_numbers = #tpu.dot_dimension_numbers<[1], [0], [0], [1], [0, 0, 1, 1], [], []>} : vector<1x16xbf16>, vector<16x128xbf16>, vector<1x128xf32> -> vector<1x128xf32>
    %293 = arith.addf %287, %292 : vector<1x128xf32>
    %c18_258 = arith.constant 18 : index
    %c0_259 = arith.constant 0 : index
    %294 = vector.load %arg18[%c18_258, %c0_259] : memref<25x16xf32, #tpu.memory_space<vmem>>, vector<1x16xf32>
    %c18_260 = arith.constant 18 : index
    %c0_261 = arith.constant 0 : index
    %c0_262 = arith.constant 0 : index
    %295 = vector.load %arg8[%c18_260, %c0_261, %c0_262] : memref<25x16x128xbf16, #tpu.memory_space<vmem>>, vector<1x16x128xbf16>
    %296 = vector.shape_cast %295 : vector<1x16x128xbf16> to vector<16x128xbf16>
    %297 = arith.truncf %294 : vector<1x16xf32> to vector<1x16xbf16>
    %cst_263 = arith.constant dense<0.000000e+00> : vector<1x128xf32>
    %298 = tpu.matmul %297, %296, %cst_263 {dimension_numbers = #tpu.dot_dimension_numbers<[1], [0], [0], [1], [0, 0, 1, 1], [], []>} : vector<1x16xbf16>, vector<16x128xbf16>, vector<1x128xf32> -> vector<1x128xf32>
    %299 = arith.addf %293, %298 : vector<1x128xf32>
    %c19_264 = arith.constant 19 : index
    %c0_265 = arith.constant 0 : index
    %300 = vector.load %arg18[%c19_264, %c0_265] : memref<25x16xf32, #tpu.memory_space<vmem>>, vector<1x16xf32>
    %c19_266 = arith.constant 19 : index
    %c0_267 = arith.constant 0 : index
    %c0_268 = arith.constant 0 : index
    %301 = vector.load %arg8[%c19_266, %c0_267, %c0_268] : memref<25x16x128xbf16, #tpu.memory_space<vmem>>, vector<1x16x128xbf16>
    %302 = vector.shape_cast %301 : vector<1x16x128xbf16> to vector<16x128xbf16>
    %303 = arith.truncf %300 : vector<1x16xf32> to vector<1x16xbf16>
    %cst_269 = arith.constant dense<0.000000e+00> : vector<1x128xf32>
    %304 = tpu.matmul %303, %302, %cst_269 {dimension_numbers = #tpu.dot_dimension_numbers<[1], [0], [0], [1], [0, 0, 1, 1], [], []>} : vector<1x16xbf16>, vector<16x128xbf16>, vector<1x128xf32> -> vector<1x128xf32>
    %305 = arith.addf %299, %304 : vector<1x128xf32>
    %c20_270 = arith.constant 20 : index
    %c0_271 = arith.constant 0 : index
    %306 = vector.load %arg18[%c20_270, %c0_271] : memref<25x16xf32, #tpu.memory_space<vmem>>, vector<1x16xf32>
    %c20_272 = arith.constant 20 : index
    %c0_273 = arith.constant 0 : index
    %c0_274 = arith.constant 0 : index
    %307 = vector.load %arg8[%c20_272, %c0_273, %c0_274] : memref<25x16x128xbf16, #tpu.memory_space<vmem>>, vector<1x16x128xbf16>
    %308 = vector.shape_cast %307 : vector<1x16x128xbf16> to vector<16x128xbf16>
    %309 = arith.truncf %306 : vector<1x16xf32> to vector<1x16xbf16>
    %cst_275 = arith.constant dense<0.000000e+00> : vector<1x128xf32>
    %310 = tpu.matmul %309, %308, %cst_275 {dimension_numbers = #tpu.dot_dimension_numbers<[1], [0], [0], [1], [0, 0, 1, 1], [], []>} : vector<1x16xbf16>, vector<16x128xbf16>, vector<1x128xf32> -> vector<1x128xf32>
    %311 = arith.addf %305, %310 : vector<1x128xf32>
    %c21_276 = arith.constant 21 : index
    %c0_277 = arith.constant 0 : index
    %312 = vector.load %arg18[%c21_276, %c0_277] : memref<25x16xf32, #tpu.memory_space<vmem>>, vector<1x16xf32>
    %c21_278 = arith.constant 21 : index
    %c0_279 = arith.constant 0 : index
    %c0_280 = arith.constant 0 : index
    %313 = vector.load %arg8[%c21_278, %c0_279, %c0_280] : memref<25x16x128xbf16, #tpu.memory_space<vmem>>, vector<1x16x128xbf16>
    %314 = vector.shape_cast %313 : vector<1x16x128xbf16> to vector<16x128xbf16>
    %315 = arith.truncf %312 : vector<1x16xf32> to vector<1x16xbf16>
    %cst_281 = arith.constant dense<0.000000e+00> : vector<1x128xf32>
    %316 = tpu.matmul %315, %314, %cst_281 {dimension_numbers = #tpu.dot_dimension_numbers<[1], [0], [0], [1], [0, 0, 1, 1], [], []>} : vector<1x16xbf16>, vector<16x128xbf16>, vector<1x128xf32> -> vector<1x128xf32>
    %317 = arith.addf %311, %316 : vector<1x128xf32>
    %c22_282 = arith.constant 22 : index
    %c0_283 = arith.constant 0 : index
    %318 = vector.load %arg18[%c22_282, %c0_283] : memref<25x16xf32, #tpu.memory_space<vmem>>, vector<1x16xf32>
    %c22_284 = arith.constant 22 : index
    %c0_285 = arith.constant 0 : index
    %c0_286 = arith.constant 0 : index
    %319 = vector.load %arg8[%c22_284, %c0_285, %c0_286] : memref<25x16x128xbf16, #tpu.memory_space<vmem>>, vector<1x16x128xbf16>
    %320 = vector.shape_cast %319 : vector<1x16x128xbf16> to vector<16x128xbf16>
    %321 = arith.truncf %318 : vector<1x16xf32> to vector<1x16xbf16>
    %cst_287 = arith.constant dense<0.000000e+00> : vector<1x128xf32>
    %322 = tpu.matmul %321, %320, %cst_287 {dimension_numbers = #tpu.dot_dimension_numbers<[1], [0], [0], [1], [0, 0, 1, 1], [], []>} : vector<1x16xbf16>, vector<16x128xbf16>, vector<1x128xf32> -> vector<1x128xf32>
    %323 = arith.addf %317, %322 : vector<1x128xf32>
    %c23_288 = arith.constant 23 : index
    %c0_289 = arith.constant 0 : index
    %324 = vector.load %arg18[%c23_288, %c0_289] : memref<25x16xf32, #tpu.memory_space<vmem>>, vector<1x16xf32>
    %c23_290 = arith.constant 23 : index
    %c0_291 = arith.constant 0 : index
    %c0_292 = arith.constant 0 : index
    %325 = vector.load %arg8[%c23_290, %c0_291, %c0_292] : memref<25x16x128xbf16, #tpu.memory_space<vmem>>, vector<1x16x128xbf16>
    %326 = vector.shape_cast %325 : vector<1x16x128xbf16> to vector<16x128xbf16>
    %327 = arith.truncf %324 : vector<1x16xf32> to vector<1x16xbf16>
    %cst_293 = arith.constant dense<0.000000e+00> : vector<1x128xf32>
    %328 = tpu.matmul %327, %326, %cst_293 {dimension_numbers = #tpu.dot_dimension_numbers<[1], [0], [0], [1], [0, 0, 1, 1], [], []>} : vector<1x16xbf16>, vector<16x128xbf16>, vector<1x128xf32> -> vector<1x128xf32>
    %329 = arith.addf %323, %328 : vector<1x128xf32>
    %c24_294 = arith.constant 24 : index
    %c0_295 = arith.constant 0 : index
    %330 = vector.load %arg18[%c24_294, %c0_295] : memref<25x16xf32, #tpu.memory_space<vmem>>, vector<1x16xf32>
    %c24_296 = arith.constant 24 : index
    %c0_297 = arith.constant 0 : index
    %c0_298 = arith.constant 0 : index
    %331 = vector.load %arg8[%c24_296, %c0_297, %c0_298] : memref<25x16x128xbf16, #tpu.memory_space<vmem>>, vector<1x16x128xbf16>
    %332 = vector.shape_cast %331 : vector<1x16x128xbf16> to vector<16x128xbf16>
    %333 = arith.truncf %330 : vector<1x16xf32> to vector<1x16xbf16>
    %cst_299 = arith.constant dense<0.000000e+00> : vector<1x128xf32>
    %334 = tpu.matmul %333, %332, %cst_299 {dimension_numbers = #tpu.dot_dimension_numbers<[1], [0], [0], [1], [0, 0, 1, 1], [], []>} : vector<1x16xbf16>, vector<16x128xbf16>, vector<1x128xf32> -> vector<1x128xf32>
    %335 = arith.addf %329, %334 : vector<1x128xf32>
    %c0_300 = arith.constant 0 : index
    %c0_301 = arith.constant 0 : index
    %336 = vector.load %arg9[%c0_300, %c0_301] : memref<1x128xf32, #tpu.memory_space<vmem>>, vector<1x128xf32>
    %337 = arith.addf %335, %336 : vector<1x128xf32>
    %cst_302 = arith.constant 0.000000e+00 : f32
    %338 = vector.broadcast %cst_302 : f32 to vector<1x128xf32>
    %339 = arith.maximumf %337, %338 : vector<1x128xf32>
    %c0_303 = arith.constant 0 : index
    %c0_304 = arith.constant 0 : index
    %340 = vector.load %arg10[%c0_303, %c0_304] : memref<128x128xbf16, #tpu.memory_space<vmem>>, vector<128x128xbf16>
    %341 = arith.truncf %339 : vector<1x128xf32> to vector<1x128xbf16>
    %cst_305 = arith.constant dense<0.000000e+00> : vector<1x128xf32>
    %342 = tpu.matmul %341, %340, %cst_305 {dimension_numbers = #tpu.dot_dimension_numbers<[1], [0], [0], [1], [0, 0, 1, 1], [], []>} : vector<1x128xbf16>, vector<128x128xbf16>, vector<1x128xf32> -> vector<1x128xf32>
    %c0_306 = arith.constant 0 : index
    %c0_307 = arith.constant 0 : index
    %343 = vector.load %arg11[%c0_306, %c0_307] : memref<1x128xf32, #tpu.memory_space<vmem>>, vector<1x128xf32>
    %344 = arith.addf %342, %343 : vector<1x128xf32>
    %cst_308 = arith.constant 0.000000e+00 : f32
    %345 = vector.broadcast %cst_308 : f32 to vector<1x128xf32>
    %346 = arith.maximumf %344, %345 : vector<1x128xf32>
    %c0_309 = arith.constant 0 : index
    %c0_310 = arith.constant 0 : index
    %347 = vector.load %arg12[%c0_309, %c0_310] : memref<128x128xbf16, #tpu.memory_space<vmem>>, vector<128x128xbf16>
    %348 = arith.truncf %346 : vector<1x128xf32> to vector<1x128xbf16>
    %cst_311 = arith.constant dense<0.000000e+00> : vector<1x128xf32>
    %349 = tpu.matmul %348, %347, %cst_311 {dimension_numbers = #tpu.dot_dimension_numbers<[1], [0], [0], [1], [0, 0, 1, 1], [], []>} : vector<1x128xbf16>, vector<128x128xbf16>, vector<1x128xf32> -> vector<1x128xf32>
    %c0_312 = arith.constant 0 : index
    %c0_313 = arith.constant 0 : index
    %350 = vector.load %arg13[%c0_312, %c0_313] : memref<1x128xf32, #tpu.memory_space<vmem>>, vector<1x128xf32>
    %351 = arith.addf %349, %350 : vector<1x128xf32>
    %c0_314 = arith.constant 0 : index
    %c0_315 = arith.constant 0 : index
    %c0_316 = arith.constant 0 : index
    %352 = vector.load %arg14[%c0_314, %c0_315, %c0_316] : memref<1x1x128xf32, #tpu.memory_space<vmem>>, vector<1x1x128xf32>
    %353 = vector.shape_cast %352 : vector<1x1x128xf32> to vector<1x128xf32>
    %354 = vector.shape_cast %351 : vector<1x128xf32> to vector<1x1x128xf32>
    tpu.vector_store %arg14[%c0_314, %c0_315, %c0_316], %354 {strides = array<i32>} : memref<1x1x128xf32, #tpu.memory_space<vmem>>, vector<1x1x128xf32>,
    return
  }
  func.func @transform_0(%arg0: i32) -> (i32, i32, i32) {
    %c0_i32 = arith.constant 0 : i32
    %c0_i32_0 = arith.constant 0 : i32
    %c0_i32_1 = arith.constant 0 : i32
    return %arg0, %c0_i32, %c0_i32_0 : i32, i32, i32
  }
  func.func @transform_1(%arg0: i32) -> (i32, i32) {
    %c0_i32 = arith.constant 0 : i32
    %c0_i32_0 = arith.constant 0 : i32
    %c0_i32_1 = arith.constant 0 : i32
    return %c0_i32, %c0_i32_0 : i32, i32
  }
  func.func @transform_2(%arg0: i32) -> (i32, i32) {
    %c0_i32 = arith.constant 0 : i32
    %c0_i32_0 = arith.constant 0 : i32
    %c0_i32_1 = arith.constant 0 : i32
    return %c0_i32, %c0_i32_0 : i32, i32
  }
  func.func @transform_3(%arg0: i32) -> (i32, i32) {
    %c0_i32 = arith.constant 0 : i32
    %c0_i32_0 = arith.constant 0 : i32
    %c0_i32_1 = arith.constant 0 : i32
    return %c0_i32, %c0_i32_0 : i32, i32
  }
  func.func @transform_4(%arg0: i32) -> (i32, i32, i32) {
    %c0_i32 = arith.constant 0 : i32
    %c0_i32_0 = arith.constant 0 : i32
    %c0_i32_1 = arith.constant 0 : i32
    %c0_i32_2 = arith.constant 0 : i32
    return %c0_i32, %c0_i32_0, %c0_i32_1 : i32, i32, i32
  }
  func.func @transform_5(%arg0: i32) -> (i32, i32) {
    %c0_i32 = arith.constant 0 : i32
    %c0_i32_0 = arith.constant 0 : i32
    %c0_i32_1 = arith.constant 0 : i32
    return %c0_i32, %c0_i32_0 : i32, i32
  }
  func.func @transform_6(%arg0: i32) -> (i32, i32) {
    %c0_i32 = arith.constant 0 : i32
    %c0_i32_0 = arith.constant 0 : i32
    %c0_i32_1 = arith.constant 0 : i32
    return %c0_i32, %c0_i32_0 : i32, i32
  }
  func.func @transform_7(%arg0: i32) -> (i32, i32, i32) {
    %c0_i32 = arith.constant 0 : i32
    %c0_i32_0 = arith.constant 0 : i32
    %c0_i32_1 = arith.constant 0 : i32
    %c0_i32_2 = arith.constant 0 : i32
    return %c0_i32, %c0_i32_0, %c0_i32_1 : i32, i32, i32
  }
  func.func @transform_8(%arg0: i32) -> (i32, i32) {
    %c0_i32 = arith.constant 0 : i32
    %c0_i32_0 = arith.constant 0 : i32
    %c0_i32_1 = arith.constant 0 : i32
    return %c0_i32, %c0_i32_0 : i32, i32
  }
  func.func @transform_9(%arg0: i32) -> (i32, i32) {
    %c0_i32 = arith.constant 0 : i32
    %c0_i32_0 = arith.constant 0 : i32
    %c0_i32_1 = arith.constant 0 : i32
    return %c0_i32, %c0_i32_0 : i32, i32
  }
  func.func @transform_10(%arg0: i32) -> (i32, i32) {
    %c0_i32 = arith.constant 0 : i32
    %c0_i32_0 = arith.constant 0 : i32
    %c0_i32_1 = arith.constant 0 : i32
    return %c0_i32, %c0_i32_0 : i32, i32
  }
  func.func @transform_11(%arg0: i32) -> (i32, i32) {
    %c0_i32 = arith.constant 0 : i32
    %c0_i32_0 = arith.constant 0 : i32
    %c0_i32_1 = arith.constant 0 : i32
    return %c0_i32, %c0_i32_0 : i32, i32
  }
  func.func @transform_12(%arg0: i32) -> (i32, i32) {
    %c0_i32 = arith.constant 0 : i32
    %c0_i32_0 = arith.constant 0 : i32
    %c0_i32_1 = arith.constant 0 : i32
    return %c0_i32, %c0_i32_0 : i32, i32
  }
  func.func @transform_13(%arg0: i32) -> (i32, i32, i32) {
    %c0_i32 = arith.constant 0 : i32
    %c0_i32_0 = arith.constant 0 : i32
    %c0_i32_1 = arith.constant 0 : i32
    return %arg0, %c0_i32, %c0_i32_0 : i32, i32, i32
  }
}

</mosaic_0001>

<llo_original>
// kernel: lenet_forward.1
$region0: #{lenet_forward.1}
  #allocation0 [shape = 'u32[]', space=smem, size = 0x4, offset = 0x4, fixed_abs, tag = 'smem constant byte address 0x4 - core index']
  #allocation1 [shape = 'u32[144,128]{1,0:T(1,128)}', space=vmem, size = 0x12000, scoped, tag = 'internal scratch']
  #allocation2 [shape = 'f32[892,6]{1,0:T(8,128)}', space=vmem, size = 0x70000, scoped, tag = 'scratch operand']
  #allocation3 [shape = 'f32[200,6]{1,0:T(8,128)}', space=vmem, size = 0x19000, scoped, tag = 'scratch operand']
  #allocation4 [shape = 'f32[140,16]{1,0:T(8,128)}', space=vmem, size = 0x12000, scoped, tag = 'scratch operand']
  #allocation5 [shape = 'f32[25,16]{1,0:T(8,128)}', space=vmem, size = 0x4000, scoped, tag = 'scratch operand']
  %s0 = inlined_call_operand.vmem [shape: bf16[2,1024,32], index: 0, kind: input, shape index: {}]
  %s1 = inlined_call_operand.vmem [shape: bf16[32,6], index: 1, kind: input, shape index: {}]
  %s2 = inlined_call_operand.vmem [shape: f32[1,6], index: 2, kind: input, shape index: {}]
  %s3 = inlined_call_operand.vmem [shape: bf16[200,859], index: 3, kind: input, shape index: {}]
  %s4 = inlined_call_operand.vmem [shape: bf16[25,6,16], index: 4, kind: input, shape index: {}]
  %s5 = inlined_call_operand.vmem [shape: f32[1,16], index: 5, kind: input, shape index: {}]
  %s6 = inlined_call_operand.vmem [shape: bf16[25,125], index: 6, kind: input, shape index: {}]
  %s7 = inlined_call_operand.vmem [shape: bf16[25,16,128], index: 7, kind: input, shape index: {}]
  %s8 = inlined_call_operand.vmem [shape: f32[1,128], index: 8, kind: input, shape index: {}]
  %s9 = inlined_call_operand.vmem [shape: bf16[128,128], index: 9, kind: input, shape index: {}]
  %s10 = inlined_call_operand.vmem [shape: f32[1,128], index: 10, kind: input, shape index: {}]
  %s11 = inlined_call_operand.vmem [shape: bf16[128,128], index: 11, kind: input, shape index: {}]
  %s12 = inlined_call_operand.vmem [shape: f32[1,128], index: 12, kind: input, shape index: {}]
  %s13 = inlined_call_operand.hbm [shape: f32[2,1,128], index: 13, kind: output, shape index: {}]
  %s14 = sld [smem:[#allocation0]]
  $region85: #{lenet_forward.1} parent=0
    _
  %s16 = ssub.s32 1, %s14
  %s17 = scalar_select 0, %s16, %s14
  $region1: #{lenet_forward.1} parent=0
    #allocation6 [shape = 'u8[1024]{0}', space=vmem, size = 0x400, scoped, tag = 'output window, operand 0']
    #allocation7 [shape = 's32[2]{0}', space=sflag, size = 0x8, scoped, tag = 'scoped memory for lenet_forward.1']
    %18 = vsyncpa [#allocation7], 0
    %s19 = scalar_lea.sflag [#allocation7], 1
    %20 = vsyncpa %s19, 0
    loop: start=0, step=1, limit=4
    $region2: #{lenet_forward.1} parent=1 // loop_pre_header
      _
    $region3: #{lenet_forward.1} parent=1 // loop_header
      %s22 = sphi 0, %s26
      %p23 = scmp.ge.s32.totalorder %s22, 4
      %s32 = sphi 0, %s34
      %s35 = sphi 0, %s32
      %s36 = sphi 0, %s35
      %s52 = sphi 0, %s36
      %s56 = sphi 0, %s56
      %s58 = sphi 0, %s56
      %s59 = sphi 0, %s58
      %s73 = sphi 0, %s59
      %s77 = sphi 0, %s77
      %s79 = sphi 0, %s77
      %s80 = sphi 0, %s79
      %s94 = sphi 0, %s80
      %s98 = sphi 0, %s98
      %s100 = sphi 0, %s98
      %s101 = sphi 0, %s100
      %s115 = sphi 0, %s101
      %s119 = sphi 0, %s119
      %s121 = sphi 0, %s119
      %s122 = sphi 0, %s121
      %s136 = sphi 0, %s122
      %s140 = sphi 0, %s140
      %s142 = sphi 0, %s140
      %s143 = sphi 0, %s142
      %s157 = sphi 0, %s143
      %s161 = sphi 0, %s161
      %s163 = sphi 0, %s161
      %s164 = sphi 0, %s163
      %s178 = sphi 0, %s164
      %s182 = sphi 0, %s182
      %s184 = sphi 0, %s182
      %s185 = sphi 0, %s184
      %s199 = sphi 0, %s185
      %s203 = sphi 0, %s203
      %s205 = sphi 0, %s203
      %s206 = sphi 0, %s205
      %s220 = sphi 0, %s206
      %s224 = sphi 0, %s224
      %s226 = sphi 0, %s224
      %s227 = sphi 0, %s226
      %s241 = sphi 0, %s227
      %s245 = sphi 0, %s245
      %s247 = sphi 0, %s245
      %s248 = sphi 0, %s247
      %s262 = sphi 0, %s248
      %s266 = sphi 0, %s266
      %s268 = sphi 0, %s266
      %s269 = sphi 0, %s268
      %s283 = sphi 0, %s269
      %s287 = sphi 0, %s287
      %s289 = sphi 0, %s287
      %s290 = sphi 0, %s289
      %s304 = sphi 0, %s290
      %s310 = sphi 0, %s312
      %s313 = sphi 0, %s310
      %s314 = sphi 0, %s313
      %s330 = sphi 0, %s314
    $region4: #{lenet_forward.1} parent=1 // loop_header_branch
      %25 = sbr.rel (%p23) target = $region8
    $region5: #{lenet_forward.1} parent=1 // loop_body
      %s27 = ssub.s32 %s22, 1
      %s28 = ssub.s32 %s22, 2
      %s29 = sadd.s32 %s22, 1
      %s30 = ssub.s32 %s22, %s29
      %p31 = scmp.eq.s32.totalorder %s30, 0
      %s33 = sadd.s32 %s32, 1
      %s34 = scalar_select %p31, %s32, %s33
      %p37 = pneg %p31
      %p38 = scmp.eq.s32.totalorder %s22, 1
      %p39 = por %p37, %p38
      %p40 = scmp.ne.s32.totalorder %s32, %s35
      %p41 = scmp.eq.s32.totalorder %s22, 0
      %p42 = por %p40, %p41
      %p43 = scmp.ne.s32.totalorder %s32, %s35
      %p44 = scmp.eq.s32.totalorder %s27, 1
      %p45 = por %p43, %p44
      %p46 = scmp.ne.s32.totalorder %s35, %s36
      %p47 = scmp.eq.s32.totalorder %s27, 0
      %p48 = por %p46, %p47
      %p49 = scmp.ne.s32.totalorder %s35, %s36
      %p50 = scmp.eq.s32.totalorder %s28, 1
      %p51 = por %p49, %p50
      %p53 = scmp.ne.s32.totalorder %s36, %s52
      %p54 = scmp.eq.s32.totalorder %s28, 0
      %p55 = por %p53, %p54
      %s57 = sadd.s32 %s56, 1
      %p60 = scmp.eq.s32.totalorder %s22, 1
      %p61 = scmp.ne.s32.totalorder %s56, %s58
      %p62 = scmp.eq.s32.totalorder %s22, 0
      %p63 = por %p61, %p62
      %p64 = scmp.ne.s32.totalorder %s56, %s58
      %p65 = scmp.eq.s32.totalorder %s27, 1
      %p66 = por %p64, %p65
      %p67 = scmp.ne.s32.totalorder %s58, %s59
      %p68 = scmp.eq.s32.totalorder %s27, 0
      %p69 = por %p67, %p68
      %p70 = scmp.ne.s32.totalorder %s58, %s59
      %p71 = scmp.eq.s32.totalorder %s28, 1
      %p72 = por %p70, %p71
      %p74 = scmp.ne.s32.totalorder %s59, %s73
      %p75 = scmp.eq.s32.totalorder %s28, 0
      %p76 = por %p74, %p75
      %s78 = sadd.s32 %s77, 1
      %p81 = scmp.eq.s32.totalorder %s22, 1
      %p82 = scmp.ne.s32.totalorder %s77, %s79
      %p83 = scmp.eq.s32.totalorder %s22, 0
      %p84 = por %p82, %p83
      %p85 = scmp.ne.s32.totalorder %s77, %s79
      %p86 = scmp.eq.s32.totalorder %s27, 1
      %p87 = por %p85, %p86
      %p88 = scmp.ne.s32.totalorder %s79, %s80
      %p89 = scmp.eq.s32.totalorder %s27, 0
      %p90 = por %p88, %p89
      %p91 = scmp.ne.s32.totalorder %s79, %s80
      %p92 = scmp.eq.s32.totalorder %s28, 1
      %p93 = por %p91, %p92
      %p95 = scmp.ne.s32.totalorder %s80, %s94
      %p96 = scmp.eq.s32.totalorder %s28, 0
      %p97 = por %p95, %p96
      %s99 = sadd.s32 %s98, 1
      %p102 = scmp.eq.s32.totalorder %s22, 1
      %p103 = scmp.ne.s32.totalorder %s98, %s100
      %p104 = scmp.eq.s32.totalorder %s22, 0
      %p105 = por %p103, %p104
      %p106 = scmp.ne.s32.totalorder %s98, %s100
      %p107 = scmp.eq.s32.totalorder %s27, 1
      %p108 = por %p106, %p107
      %p109 = scmp.ne.s32.totalorder %s100, %s101
      %p110 = scmp.eq.s32.totalorder %s27, 0
      %p111 = por %p109, %p110
      %p112 = scmp.ne.s32.totalorder %s100, %s101
      %p113 = scmp.eq.s32.totalorder %s28, 1
      %p114 = por %p112, %p113
      %p116 = scmp.ne.s32.totalorder %s101, %s115
      %p117 = scmp.eq.s32.totalorder %s28, 0
      %p118 = por %p116, %p117
      %s120 = sadd.s32 %s119, 1
      %p123 = scmp.eq.s32.totalorder %s22, 1
      %p124 = scmp.ne.s32.totalorder %s119, %s121
      %p125 = scmp.eq.s32.totalorder %s22, 0
      %p126 = por %p124, %p125
      %p127 = scmp.ne.s32.totalorder %s119, %s121
      %p128 = scmp.eq.s32.totalorder %s27, 1
      %p129 = por %p127, %p128
      %p130 = scmp.ne.s32.totalorder %s121, %s122
      %p131 = scmp.eq.s32.totalorder %s27, 0
      %p132 = por %p130, %p131
      %p133 = scmp.ne.s32.totalorder %s121, %s122
      %p134 = scmp.eq.s32.totalorder %s28, 1
      %p135 = por %p133, %p134
      %p137 = scmp.ne.s32.totalorder %s122, %s136
      %p138 = scmp.eq.s32.totalorder %s28, 0
      %p139 = por %p137, %p138
      %s141 = sadd.s32 %s140, 1
      %p144 = scmp.eq.s32.totalorder %s22, 1
      %p145 = scmp.ne.s32.totalorder %s140, %s142
      %p146 = scmp.eq.s32.totalorder %s22, 0
      %p147 = por %p145, %p146
      %p148 = scmp.ne.s32.totalorder %s140, %s142
      %p149 = scmp.eq.s32.totalorder %s27, 1
      %p150 = por %p148, %p149
      %p151 = scmp.ne.s32.totalorder %s142, %s143
      %p152 = scmp.eq.s32.totalorder %s27, 0
      %p153 = por %p151, %p152
      %p154 = scmp.ne.s32.totalorder %s142, %s143
      %p155 = scmp.eq.s32.totalorder %s28, 1
      %p156 = por %p154, %p155
      %p158 = scmp.ne.s32.totalorder %s143, %s157
      %p159 = scmp.eq.s32.totalorder %s28, 0
      %p160 = por %p158, %p159
      %s162 = sadd.s32 %s161, 1
      %p165 = scmp.eq.s32.totalorder %s22, 1
      %p166 = scmp.ne.s32.totalorder %s161, %s163
      %p167 = scmp.eq.s32.totalorder %s22, 0
      %p168 = por %p166, %p167
      %p169 = scmp.ne.s32.totalorder %s161, %s163
      %p170 = scmp.eq.s32.totalorder %s27, 1
      %p171 = por %p169, %p170
      %p172 = scmp.ne.s32.totalorder %s163, %s164
      %p173 = scmp.eq.s32.totalorder %s27, 0
      %p174 = por %p172, %p173
      %p175 = scmp.ne.s32.totalorder %s163, %s164
      %p176 = scmp.eq.s32.totalorder %s28, 1
      %p177 = por %p175, %p176
      %p179 = scmp.ne.s32.totalorder %s164, %s178
      %p180 = scmp.eq.s32.totalorder %s28, 0
      %p181 = por %p179, %p180
      %s183 = sadd.s32 %s182, 1
      %p186 = scmp.eq.s32.totalorder %s22, 1
      %p187 = scmp.ne.s32.totalorder %s182, %s184
      %p188 = scmp.eq.s32.totalorder %s22, 0
      %p189 = por %p187, %p188
      %p190 = scmp.ne.s32.totalorder %s182, %s184
      %p191 = scmp.eq.s32.totalorder %s27, 1
      %p192 = por %p190, %p191
      %p193 = scmp.ne.s32.totalorder %s184, %s185
      %p194 = scmp.eq.s32.totalorder %s27, 0
      %p195 = por %p193, %p194
      %p196 = scmp.ne.s32.totalorder %s184, %s185
      %p197 = scmp.eq.s32.totalorder %s28, 1
      %p198 = por %p196, %p197
      %p200 = scmp.ne.s32.totalorder %s185, %s199
      %p201 = scmp.eq.s32.totalorder %s28, 0
      %p202 = por %p200, %p201
      %s204 = sadd.s32 %s203, 1
      %p207 = scmp.eq.s32.totalorder %s22, 1
      %p208 = scmp.ne.s32.totalorder %s203, %s205
      %p209 = scmp.eq.s32.totalorder %s22, 0
      %p210 = por %p208, %p209
      %p211 = scmp.ne.s32.totalorder %s203, %s205
      %p212 = scmp.eq.s32.totalorder %s27, 1
      %p213 = por %p211, %p212
      %p214 = scmp.ne.s32.totalorder %s205, %s206
      %p215 = scmp.eq.s32.totalorder %s27, 0
      %p216 = por %p214, %p215
      %p217 = scmp.ne.s32.totalorder %s205, %s206
      %p218 = scmp.eq.s32.totalorder %s28, 1
      %p219 = por %p217, %p218
      %p221 = scmp.ne.s32.totalorder %s206, %s220
      %p222 = scmp.eq.s32.totalorder %s28, 0
      %p223 = por %p221, %p222
      %s225 = sadd.s32 %s224, 1
      %p228 = scmp.eq.s32.totalorder %s22, 1
      %p229 = scmp.ne.s32.totalorder %s224, %s226
      %p230 = scmp.eq.s32.totalorder %s22, 0
      %p231 = por %p229, %p230
      %p232 = scmp.ne.s32.totalorder %s224, %s226
      %p233 = scmp.eq.s32.totalorder %s27, 1
      %p234 = por %p232, %p233
      %p235 = scmp.ne.s32.totalorder %s226, %s227
      %p236 = scmp.eq.s32.totalorder %s27, 0
      %p237 = por %p235, %p236
      %p238 = scmp.ne.s32.totalorder %s226, %s227
      %p239 = scmp.eq.s32.totalorder %s28, 1
      %p240 = por %p238, %p239
      %p242 = scmp.ne.s32.totalorder %s227, %s241
      %p243 = scmp.eq.s32.totalorder %s28, 0
      %p244 = por %p242, %p243
      %s246 = sadd.s32 %s245, 1
      %p249 = scmp.eq.s32.totalorder %s22, 1
      %p250 = scmp.ne.s32.totalorder %s245, %s247
      %p251 = scmp.eq.s32.totalorder %s22, 0
      %p252 = por %p250, %p251
      %p253 = scmp.ne.s32.totalorder %s245, %s247
      %p254 = scmp.eq.s32.totalorder %s27, 1
      %p255 = por %p253, %p254
      %p256 = scmp.ne.s32.totalorder %s247, %s248
      %p257 = scmp.eq.s32.totalorder %s27, 0
      %p258 = por %p256, %p257
      %p259 = scmp.ne.s32.totalorder %s247, %s248
      %p260 = scmp.eq.s32.totalorder %s28, 1
      %p261 = por %p259, %p260
      %p263 = scmp.ne.s32.totalorder %s248, %s262
      %p264 = scmp.eq.s32.totalorder %s28, 0
      %p265 = por %p263, %p264
      %s267 = sadd.s32 %s266, 1
      %p270 = scmp.eq.s32.totalorder %s22, 1
      %p271 = scmp.ne.s32.totalorder %s266, %s268
      %p272 = scmp.eq.s32.totalorder %s22, 0
      %p273 = por %p271, %p272
      %p274 = scmp.ne.s32.totalorder %s266, %s268
      %p275 = scmp.eq.s32.totalorder %s27, 1
      %p276 = por %p274, %p275
      %p277 = scmp.ne.s32.totalorder %s268, %s269
      %p278 = scmp.eq.s32.totalorder %s27, 0
      %p279 = por %p277, %p278
      %p280 = scmp.ne.s32.totalorder %s268, %s269
      %p281 = scmp.eq.s32.totalorder %s28, 1
      %p282 = por %p280, %p281
      %p284 = scmp.ne.s32.totalorder %s269, %s283
      %p285 = scmp.eq.s32.totalorder %s28, 0
      %p286 = por %p284, %p285
      %s288 = sadd.s32 %s287, 1
      %p291 = scmp.eq.s32.totalorder %s22, 1
      %p292 = scmp.ne.s32.totalorder %s287, %s289
      %p293 = scmp.eq.s32.totalorder %s22, 0
      %p294 = por %p292, %p293
      %p295 = scmp.ne.s32.totalorder %s287, %s289
      %p296 = scmp.eq.s32.totalorder %s27, 1
      %p297 = por %p295, %p296
      %p298 = scmp.ne.s32.totalorder %s289, %s290
      %p299 = scmp.eq.s32.totalorder %s27, 0
      %p300 = por %p298, %p299
      %p301 = scmp.ne.s32.totalorder %s289, %s290
      %p302 = scmp.eq.s32.totalorder %s28, 1
      %p303 = por %p301, %p302
      %p305 = scmp.ne.s32.totalorder %s290, %s304
      %p306 = scmp.eq.s32.totalorder %s28, 0
      %p307 = por %p305, %p306
      %s308 = ssub.s32 %s22, %s29
      %p309 = scmp.eq.s32.totalorder %s308, 0
      %s311 = sadd.s32 %s310, 1
      %s312 = scalar_select %p309, %s310, %s311
      %p315 = pneg %p309
      %p316 = scmp.eq.s32.totalorder %s22, 1
      %p317 = por %p315, %p316
      %p318 = scmp.ne.s32.totalorder %s310, %s313
      %p319 = scmp.eq.s32.totalorder %s22, 0
      %p320 = por %p318, %p319
      %p321 = scmp.ne.s32.totalorder %s310, %s313
      %p322 = scmp.eq.s32.totalorder %s27, 1
      %p323 = por %p321, %p322
      %p324 = scmp.ne.s32.totalorder %s313, %s314
      %p325 = scmp.eq.s32.totalorder %s27, 0
      %p326 = por %p324, %p325
      %p327 = scmp.ne.s32.totalorder %s313, %s314
      %p328 = scmp.eq.s32.totalorder %s28, 1
      %p329 = por %p327, %p328
      %p331 = scmp.ne.s32.totalorder %s314, %s330
      %p332 = scmp.eq.s32.totalorder %s28, 0
      %p333 = por %p331, %p332
      %p334 = scmp.le.s32.totalorder 1, %s22
      %p335 = scmp.lt.s32.totalorder %s22, 3
      %p336 = pnand %p334, %p335
      %p337 = pneg %p336
      // Predicated region
      $region9: #{lenet_forward.1} parent=5 // pred_check
        _
      $region10: #{lenet_forward.1} parent=5 // pred_check_branch
        %339 = sbr.rel (%p336) target = $region12
      $region11: #{lenet_forward.1} parent=5 // pred_region
        %s340 = ssub.s32 %s22, 1
        // Predicated region
        $region13: #{lenet_forward.1} parent=11 // pred_check
          %p341 = pneg %p69
        $region14: #{lenet_forward.1} parent=11 // pred_check_branch
          %343 = sbr.rel (%p341) target = $region16
        $region15: #{lenet_forward.1} parent=11 // pred_region
          _
        $region16: #{lenet_forward.1} parent=11 // pred_fallthru
          _
        // Predicated region
        $region17: #{lenet_forward.1} parent=11 // pred_check
          %p344 = pneg %p90
        $region18: #{lenet_forward.1} parent=11 // pred_check_branch
          %346 = sbr.rel (%p344) target = $region20
        $region19: #{lenet_forward.1} parent=11 // pred_region
          _
        $region20: #{lenet_forward.1} parent=11 // pred_fallthru
          _
        // Predicated region
        $region21: #{lenet_forward.1} parent=11 // pred_check
          %p347 = pneg %p111
        $region22: #{lenet_forward.1} parent=11 // pred_check_branch
          %349 = sbr.rel (%p347) target = $region24
        $region23: #{lenet_forward.1} parent=11 // pred_region
          _
        $region24: #{lenet_forward.1} parent=11 // pred_fallthru
          _
        // Predicated region
        $region25: #{lenet_forward.1} parent=11 // pred_check
          %p350 = pneg %p132
        $region26: #{lenet_forward.1} parent=11 // pred_check_branch
          %352 = sbr.rel (%p350) target = $region28
        $region27: #{lenet_forward.1} parent=11 // pred_region
          _
        $region28: #{lenet_forward.1} parent=11 // pred_fallthru
          _
        // Predicated region
        $region29: #{lenet_forward.1} parent=11 // pred_check
          %p353 = pneg %p153
        $region30: #{lenet_forward.1} parent=11 // pred_check_branch
          %355 = sbr.rel (%p353) target = $region32
        $region31: #{lenet_forward.1} parent=11 // pred_region
          _
        $region32: #{lenet_forward.1} parent=11 // pred_fallthru
          _
        // Predicated region
        $region33: #{lenet_forward.1} parent=11 // pred_check
          %p356 = pneg %p174
        $region34: #{lenet_forward.1} parent=11 // pred_check_branch
          %358 = sbr.rel (%p356) target = $region36
        $region35: #{lenet_forward.1} parent=11 // pred_region
          _
        $region36: #{lenet_forward.1} parent=11 // pred_fallthru
          _
        // Predicated region
        $region37: #{lenet_forward.1} parent=11 // pred_check
          %p359 = pneg %p195
        $region38: #{lenet_forward.1} parent=11 // pred_check_branch
          %361 = sbr.rel (%p359) target = $region40
        $region39: #{lenet_forward.1} parent=11 // pred_region
          _
        $region40: #{lenet_forward.1} parent=11 // pred_fallthru
          _
        // Predicated region
        $region41: #{lenet_forward.1} parent=11 // pred_check
          %p362 = pneg %p216
        $region42: #{lenet_forward.1} parent=11 // pred_check_branch
          %364 = sbr.rel (%p362) target = $region44
        $region43: #{lenet_forward.1} parent=11 // pred_region
          _
        $region44: #{lenet_forward.1} parent=11 // pred_fallthru
          _
        // Predicated region
        $region45: #{lenet_forward.1} parent=11 // pred_check
          %p365 = pneg %p237
        $region46: #{lenet_forward.1} parent=11 // pred_check_branch
          %367 = sbr.rel (%p365) target = $region48
        $region47: #{lenet_forward.1} parent=11 // pred_region
          _
        $region48: #{lenet_forward.1} parent=11 // pred_fallthru
          _
        // Predicated region
        $region49: #{lenet_forward.1} parent=11 // pred_check
          %p368 = pneg %p258
        $region50: #{lenet_forward.1} parent=11 // pred_check_branch
          %370 = sbr.rel (%p368) target = $region52
        $region51: #{lenet_forward.1} parent=11 // pred_region
          _
        $region52: #{lenet_forward.1} parent=11 // pred_fallthru
          _
        // Predicated region
        $region53: #{lenet_forward.1} parent=11 // pred_check
          %p371 = pneg %p279
        $region54: #{lenet_forward.1} parent=11 // pred_check_branch
          %373 = sbr.rel (%p371) target = $region56
        $region55: #{lenet_forward.1} parent=11 // pred_region
          _
        $region56: #{lenet_forward.1} parent=11 // pred_fallthru
          _
        // Predicated region
        $region57: #{lenet_forward.1} parent=11 // pred_check
          %p374 = pneg %p300
        $region58: #{lenet_forward.1} parent=11 // pred_check_branch
          %376 = sbr.rel (%p374) target = $region60
        $region59: #{lenet_forward.1} parent=11 // pred_region
          _
        $region60: #{lenet_forward.1} parent=11 // pred_fallthru
          _
      $region12: #{lenet_forward.1} parent=5 // pred_fallthru
        _
      %p377 = scmp.lt.s32.totalorder %s22, 2
      // Predicated region
      $region61: #{lenet_forward.1} parent=5 // pred_check
        %p378 = pneg %p377
      $region62: #{lenet_forward.1} parent=5 // pred_check_branch
        %380 = sbr.rel (%p378) target = $region64
      $region63: #{lenet_forward.1} parent=5 // pred_region
        // Predicated region
        $region65: #{lenet_forward.1} parent=63 // pred_check
          %p381 = pneg %p42
        $region66: #{lenet_forward.1} parent=63 // pred_check_branch
          %383 = sbr.rel (%p381) target = $region68
        $region67: #{lenet_forward.1} parent=63 // pred_region
          %p384 = scmp.lt.s32.totalorder %s22, 1
          %s385 = scalar_select %p384, %s22, 1
          %s386 = smul.addr %s385, 128
          %s387 = smul.addr %s386, 4
          %s388 = scalar_lea.vmem %s0, %s387
        $region68: #{lenet_forward.1} parent=63 // pred_fallthru
          _
      $region64: #{lenet_forward.1} parent=5 // pred_fallthru
        _
      %p389 = scmp.le.s32.totalorder 1, %s22
      %p390 = scmp.lt.s32.totalorder %s22, 3
      %p391 = pnand %p389, %p390
      %p392 = pneg %p391
      // Predicated region
      $region69: #{lenet_forward.1} parent=5 // pred_check
        _
      $region70: #{lenet_forward.1} parent=5 // pred_check_branch
        %394 = sbr.rel (%p391) target = $region72
      $region71: #{lenet_forward.1} parent=5 // pred_region
        %s395 = ssub.s32 %s22, 1
        %p396 = scmp.lt.s32.totalorder %s27, 1
        %s397 = scalar_select %p396, %s27, 1
        %s398 = smul.addr %s397, 128
        %s399 = smul.addr %s398, 4
        %s400 = scalar_lea.vmem %s0, %s399
        %p401 = pneg %p48
        %p402 = pneg %p45
        %p403 = pneg %p69
        %p404 = pneg %p66
        %p405 = pneg %p90
        %p406 = pneg %p87
        %p407 = pneg %p111
        %p408 = pneg %p108
        %p409 = pneg %p132
        %p410 = pneg %p129
        %p411 = pneg %p153
        %p412 = pneg %p150
        %p413 = pneg %p174
        %p414 = pneg %p171
        %p415 = pneg %p195
        %p416 = pneg %p192
        %p417 = pneg %p216
        %p418 = pneg %p213
        %p419 = pneg %p237
        %p420 = pneg %p234
        %p421 = pneg %p258
        %p422 = pneg %p255
        %p423 = pneg %p279
        %p424 = pneg %p276
        %p425 = pneg %p300
        %p426 = pneg %p297
        %p427 = pneg %p326
        %p428 = pneg %p323
        %s429 = sand.u32 %s313, 1
        %s430 = scalar_lea.sflag [#allocation7], %s429
        %s431 = sand.u32 %s313, 1
        %s432 = scalar_lea.vmem [#allocation6], %s431
        %p433 = scmp.lt.s32.totalorder %s27, 1
        %s434 = scalar_select %p433, %s27, 1
        %s435 = smul.addr %s434, 128
        %s436 = smul.addr %s435, 4
        %s437 = scalar_lea.vmem %s0, %s436
        %v439 = vld [vmem:[%s437] sm:$0xf]
        %v440 = vld [vmem:[%s437 + $0x4] sm:$0xf]
        %v441 = vld [vmem:[%s437 + $0x8] sm:$0xf]
        %v442 = vld [vmem:[%s437 + $0xc] sm:$0xf]
        %v443 = vld [vmem:[%s437 + $0x10] sm:$0xf]
        %v444 = vld [vmem:[%s437 + $0x14] sm:$0xf]
        %v445 = vld [vmem:[%s437 + $0x18] sm:$0xf]
        %v446 = vld [vmem:[%s437 + $0x1c] sm:$0xf]
        %v447 = vld [vmem:[%s437 + $0x20] sm:$0xf]
        %v448 = vld [vmem:[%s437 + $0x24] sm:$0xf]
        %v449 = vld [vmem:[%s437 + $0x28] sm:$0xf]
        %v450 = vld [vmem:[%s437 + $0x2c] sm:$0xf]
        %v451 = vld [vmem:[%s437 + $0x30] sm:$0xf]
        %v452 = vld [vmem:[%s437 + $0x34] sm:$0xf]
        %v453 = vld [vmem:[%s437 + $0x38] sm:$0xf]
        %v454 = vld [vmem:[%s437 + $0x3c] sm:$0xf]
        %v455 = vld [vmem:[%s437 + $0x40] sm:$0xf]
        %v456 = vld [vmem:[%s437 + $0x44] sm:$0xf]
        %v457 = vld [vmem:[%s437 + $0x48] sm:$0xf]
        %v458 = vld [vmem:[%s437 + $0x4c] sm:$0xf]
        %v459 = vld [vmem:[%s437 + $0x50] sm:$0xf]
        %v460 = vld [vmem:[%s437 + $0x54] sm:$0xf]
        %v461 = vld [vmem:[%s437 + $0x58] sm:$0xf]
        %v462 = vld [vmem:[%s437 + $0x5c] sm:$0xf]
        %v463 = vld [vmem:[%s437 + $0x60] sm:$0xf]
        %v464 = vld [vmem:[%s437 + $0x64] sm:$0xf]
        %v465 = vld [vmem:[%s437 + $0x68] sm:$0xf]
        %v466 = vld [vmem:[%s437 + $0x6c] sm:$0xf]
        %v467 = vld [vmem:[%s437 + $0x70] sm:$0xf]
        %v468 = vld [vmem:[%s437 + $0x74] sm:$0xf]
        %v469 = vld [vmem:[%s437 + $0x78] sm:$0xf]
        %v470 = vld [vmem:[%s437 + $0x7c] sm:$0xf]
        %v471 = vld [vmem:[%s437 + $0x80] sm:$0xf]
        %v472 = vld [vmem:[%s437 + $0x84] sm:$0xf]
        %v473 = vld [vmem:[%s437 + $0x88] sm:$0xf]
        %v474 = vld [vmem:[%s437 + $0x8c] sm:$0xf]
        %v475 = vld [vmem:[%s437 + $0x90] sm:$0xf]
        %v476 = vld [vmem:[%s437 + $0x94] sm:$0xf]
        %v477 = vld [vmem:[%s437 + $0x98] sm:$0xf]
        %v478 = vld [vmem:[%s437 + $0x9c] sm:$0xf]
        %v479 = vld [vmem:[%s437 + $0xa0] sm:$0xf]
        %v480 = vld [vmem:[%s437 + $0xa4] sm:$0xf]
        %v481 = vld [vmem:[%s437 + $0xa8] sm:$0xf]
        %v482 = vld [vmem:[%s437 + $0xac] sm:$0xf]
        %v483 = vld [vmem:[%s437 + $0xb0] sm:$0xf]
        %v484 = vld [vmem:[%s437 + $0xb4] sm:$0xf]
        %v485 = vld [vmem:[%s437 + $0xb8] sm:$0xf]
        %v486 = vld [vmem:[%s437 + $0xbc] sm:$0xf]
        %v487 = vld [vmem:[%s437 + $0xc0] sm:$0xf]
        %v488 = vld [vmem:[%s437 + $0xc4] sm:$0xf]
        %v489 = vld [vmem:[%s437 + $0xc8] sm:$0xf]
        %v490 = vld [vmem:[%s437 + $0xcc] sm:$0xf]
        %v491 = vld [vmem:[%s437 + $0xd0] sm:$0xf]
        %v492 = vld [vmem:[%s437 + $0xd4] sm:$0xf]
        %v493 = vld [vmem:[%s437 + $0xd8] sm:$0xf]
        %v494 = vld [vmem:[%s437 + $0xdc] sm:$0xf]
        %v495 = vld [vmem:[%s437 + $0xe0] sm:$0xf]
        %v496 = vld [vmem:[%s437 + $0xe4] sm:$0xf]
        %v497 = vld [vmem:[%s437 + $0xe8] sm:$0xf]
        %v498 = vld [vmem:[%s437 + $0xec] sm:$0xf]
        %v499 = vld [vmem:[%s437 + $0xf0] sm:$0xf]
        %v500 = vld [vmem:[%s437 + $0xf4] sm:$0xf]
        %v501 = vld [vmem:[%s437 + $0xf8] sm:$0xf]
        %v502 = vld [vmem:[%s437 + $0xfc] sm:$0xf]
        %v503 = vld [vmem:[%s437 + $0x100] sm:$0xf]
        %v504 = vld [vmem:[%s437 + $0x104] sm:$0xf]
        %v505 = vld [vmem:[%s437 + $0x108] sm:$0xf]
        %v506 = vld [vmem:[%s437 + $0x10c] sm:$0xf]
        %v507 = vld [vmem:[%s437 + $0x110] sm:$0xf]
        %v508 = vld [vmem:[%s437 + $0x114] sm:$0xf]
        %v509 = vld [vmem:[%s437 + $0x118] sm:$0xf]
        %v510 = vld [vmem:[%s437 + $0x11c] sm:$0xf]
        %v511 = vld [vmem:[%s437 + $0x120] sm:$0xf]
        %v512 = vld [vmem:[%s437 + $0x124] sm:$0xf]
        %v513 = vld [vmem:[%s437 + $0x128] sm:$0xf]
        %v514 = vld [vmem:[%s437 + $0x12c] sm:$0xf]
        %v515 = vld [vmem:[%s437 + $0x130] sm:$0xf]
        %v516 = vld [vmem:[%s437 + $0x134] sm:$0xf]
        %v517 = vld [vmem:[%s437 + $0x138] sm:$0xf]
        %v518 = vld [vmem:[%s437 + $0x13c] sm:$0xf]
        %v519 = vld [vmem:[%s437 + $0x140] sm:$0xf]
        %v520 = vld [vmem:[%s437 + $0x144] sm:$0xf]
        %v521 = vld [vmem:[%s437 + $0x148] sm:$0xf]
        %v522 = vld [vmem:[%s437 + $0x14c] sm:$0xf]
        %v523 = vld [vmem:[%s437 + $0x150] sm:$0xf]
        %v524 = vld [vmem:[%s437 + $0x154] sm:$0xf]
        %v525 = vld [vmem:[%s437 + $0x158] sm:$0xf]
        %v526 = vld [vmem:[%s437 + $0x15c] sm:$0xf]
        %v527 = vld [vmem:[%s437 + $0x160] sm:$0xf]
        %v528 = vld [vmem:[%s437 + $0x164] sm:$0xf]
        %v529 = vld [vmem:[%s437 + $0x168] sm:$0xf]
        %v530 = vld [vmem:[%s437 + $0x16c] sm:$0xf]
        %v531 = vld [vmem:[%s437 + $0x170] sm:$0xf]
        %v532 = vld [vmem:[%s437 + $0x174] sm:$0xf]
        %v533 = vld [vmem:[%s437 + $0x178] sm:$0xf]
        %v534 = vld [vmem:[%s437 + $0x17c] sm:$0xf]
        %v535 = vld [vmem:[%s437 + $0x180] sm:$0xf]
        %v536 = vld [vmem:[%s437 + $0x184] sm:$0xf]
        %v537 = vld [vmem:[%s437 + $0x188] sm:$0xf]
        %v538 = vld [vmem:[%s437 + $0x18c] sm:$0xf]
        %v539 = vld [vmem:[%s437 + $0x190] sm:$0xf]
        %v540 = vld [vmem:[%s437 + $0x194] sm:$0xf]
        %v541 = vld [vmem:[%s437 + $0x198] sm:$0xf]
        %v542 = vld [vmem:[%s437 + $0x19c] sm:$0xf]
        %v543 = vld [vmem:[%s437 + $0x1a0] sm:$0xf]
        %v544 = vld [vmem:[%s437 + $0x1a4] sm:$0xf]
        %v545 = vld [vmem:[%s437 + $0x1a8] sm:$0xf]
        %v546 = vld [vmem:[%s437 + $0x1ac] sm:$0xf]
        %v547 = vld [vmem:[%s437 + $0x1b0] sm:$0xf]
        %v548 = vld [vmem:[%s437 + $0x1b4] sm:$0xf]
        %v549 = vld [vmem:[%s437 + $0x1b8] sm:$0xf]
        %v550 = vld [vmem:[%s437 + $0x1bc] sm:$0x3]
        %v551 = vld [vmem:[%s1] sm:$0xf]
        %v552 = vld [vmem:[%s1 + $0x4] sm:$0xf]
        %v553 = vld [vmem:[%s1 + $0x8] sm:$0xf]
        %v554 = vld [vmem:[%s1 + $0xc] sm:$0xf]
        %v667 = vunpack.c.l.b16 %v439
        %v668 = vunpack.c.l.b16 %v440
        %v669 = vunpack.c.l.b16 %v441
        %v670 = vunpack.c.l.b16 %v442
        %v671 = vunpack.c.l.b16 %v443
        %v672 = vunpack.c.l.b16 %v444
        %v673 = vunpack.c.l.b16 %v445
        %v674 = vunpack.c.l.b16 %v446
        %v675 = vunpack.c.l.b16 %v447
        %v676 = vunpack.c.l.b16 %v448
        %v677 = vunpack.c.l.b16 %v449
        %v678 = vunpack.c.l.b16 %v450
        %v679 = vunpack.c.l.b16 %v451
        %v680 = vunpack.c.l.b16 %v452
        %v681 = vunpack.c.l.b16 %v453
        %v682 = vunpack.c.l.b16 %v454
        %v683 = vunpack.c.l.b16 %v455
        %v684 = vunpack.c.l.b16 %v456
        %v685 = vunpack.c.l.b16 %v457
        %v686 = vunpack.c.l.b16 %v458
        %v687 = vunpack.c.l.b16 %v459
        %v688 = vunpack.c.l.b16 %v460
        %v689 = vunpack.c.l.b16 %v461
        %v690 = vunpack.c.l.b16 %v462
        %v691 = vunpack.c.l.b16 %v463
        %v692 = vunpack.c.l.b16 %v464
        %v693 = vunpack.c.l.b16 %v465
        %v694 = vunpack.c.l.b16 %v466
        %v695 = vunpack.c.l.b16 %v467
        %v696 = vunpack.c.l.b16 %v468
        %v697 = vunpack.c.l.b16 %v469
        %v698 = vunpack.c.l.b16 %v470
        %v699 = vunpack.c.l.b16 %v471
        %v700 = vunpack.c.l.b16 %v472
        %v701 = vunpack.c.l.b16 %v473
        %v702 = vunpack.c.l.b16 %v474
        %v703 = vunpack.c.l.b16 %v475
        %v704 = vunpack.c.l.b16 %v476
        %v705 = vunpack.c.l.b16 %v477
        %v706 = vunpack.c.l.b16 %v478
        %v707 = vunpack.c.l.b16 %v479
        %v708 = vunpack.c.l.b16 %v480
        %v709 = vunpack.c.l.b16 %v481
        %v710 = vunpack.c.l.b16 %v482
        %v711 = vunpack.c.l.b16 %v483
        %v712 = vunpack.c.l.b16 %v484
        %v713 = vunpack.c.l.b16 %v485
        %v714 = vunpack.c.l.b16 %v486
        %v715 = vunpack.c.l.b16 %v487
        %v716 = vunpack.c.l.b16 %v488
        %v717 = vunpack.c.l.b16 %v489
        %v718 = vunpack.c.l.b16 %v490
        %v719 = vunpack.c.l.b16 %v491
        %v720 = vunpack.c.l.b16 %v492
        %v721 = vunpack.c.l.b16 %v493
        %v722 = vunpack.c.l.b16 %v494
        %v723 = vunpack.c.l.b16 %v495
        %v724 = vunpack.c.l.b16 %v496
        %v725 = vunpack.c.l.b16 %v497
        %v726 = vunpack.c.l.b16 %v498
        %v727 = vunpack.c.l.b16 %v499
        %v728 = vunpack.c.l.b16 %v500
        %v729 = vunpack.c.l.b16 %v501
        %v730 = vunpack.c.l.b16 %v502
        %v731 = vunpack.c.l.b16 %v503
        %v732 = vunpack.c.l.b16 %v504
        %v733 = vunpack.c.l.b16 %v505
        %v734 = vunpack.c.l.b16 %v506
        %v735 = vunpack.c.l.b16 %v507
        %v736 = vunpack.c.l.b16 %v508
        %v737 = vunpack.c.l.b16 %v509
        %v738 = vunpack.c.l.b16 %v510
        %v739 = vunpack.c.l.b16 %v511
        %v740 = vunpack.c.l.b16 %v512
        %v741 = vunpack.c.l.b16 %v513
        %v742 = vunpack.c.l.b16 %v514
        %v743 = vunpack.c.l.b16 %v515
        %v744 = vunpack.c.l.b16 %v516
        %v745 = vunpack.c.l.b16 %v517
        %v746 = vunpack.c.l.b16 %v518
        %v747 = vunpack.c.l.b16 %v519
        %v748 = vunpack.c.l.b16 %v520
        %v749 = vunpack.c.l.b16 %v521
        %v750 = vunpack.c.l.b16 %v522
        %v751 = vunpack.c.l.b16 %v523
        %v752 = vunpack.c.l.b16 %v524
        %v753 = vunpack.c.l.b16 %v525
        %v754 = vunpack.c.l.b16 %v526
        %v755 = vunpack.c.l.b16 %v527
        %v756 = vunpack.c.l.b16 %v528
        %v757 = vunpack.c.l.b16 %v529
        %v758 = vunpack.c.l.b16 %v530
        %v759 = vunpack.c.l.b16 %v531
        %v760 = vunpack.c.l.b16 %v532
        %v761 = vunpack.c.l.b16 %v533
        %v762 = vunpack.c.l.b16 %v534
        %v763 = vunpack.c.l.b16 %v535
        %v764 = vunpack.c.l.b16 %v536
        %v765 = vunpack.c.l.b16 %v537
        %v766 = vunpack.c.l.b16 %v538
        %v767 = vunpack.c.l.b16 %v539
        %v768 = vunpack.c.l.b16 %v540
        %v769 = vunpack.c.l.b16 %v541
        %v770 = vunpack.c.l.b16 %v542
        %v771 = vunpack.c.l.b16 %v543
        %v772 = vunpack.c.l.b16 %v544
        %v773 = vunpack.c.l.b16 %v545
        %v774 = vunpack.c.l.b16 %v546
        %v775 = vunpack.c.l.b16 %v547
        %v776 = vunpack.c.l.b16 %v548
        %v777 = vunpack.c.l.b16 %v549
        %v778 = vunpack.c.l.b16 %v550
        %v779 = vpack.c.b16 %v668, %v667
        %v780 = vpack.c.b16 %v670, %v669
        %v781 = vpack.c.b16 %v672, %v671
        %v782 = vpack.c.b16 %v674, %v673
        %v783 = vpack.c.b16 %v676, %v675
        %v784 = vpack.c.b16 %v678, %v677
        %v785 = vpack.c.b16 %v680, %v679
        %v786 = vpack.c.b16 %v682, %v681
        %v787 = vpack.c.b16 %v684, %v683
        %v788 = vpack.c.b16 %v686, %v685
        %v789 = vpack.c.b16 %v688, %v687
        %v790 = vpack.c.b16 %v690, %v689
        %v791 = vpack.c.b16 %v692, %v691
        %v792 = vpack.c.b16 %v694, %v693
        %v793 = vpack.c.b16 %v696, %v695
        %v794 = vpack.c.b16 %v698, %v697
        %v795 = vpack.c.b16 %v700, %v699
        %v796 = vpack.c.b16 %v702, %v701
        %v797 = vpack.c.b16 %v704, %v703
        %v798 = vpack.c.b16 %v706, %v705
        %v799 = vpack.c.b16 %v708, %v707
        %v800 = vpack.c.b16 %v710, %v709
        %v801 = vpack.c.b16 %v712, %v711
        %v802 = vpack.c.b16 %v714, %v713
        %v803 = vpack.c.b16 %v716, %v715
        %v804 = vpack.c.b16 %v718, %v717
        %v805 = vpack.c.b16 %v720, %v719
        %v806 = vpack.c.b16 %v722, %v721
        %v807 = vpack.c.b16 %v724, %v723
        %v808 = vpack.c.b16 %v726, %v725
        %v809 = vpack.c.b16 %v728, %v727
        %v810 = vpack.c.b16 %v730, %v729
        %v811 = vpack.c.b16 %v732, %v731
        %v812 = vpack.c.b16 %v734, %v733
        %v813 = vpack.c.b16 %v736, %v735
        %v814 = vpack.c.b16 %v738, %v737
        %v815 = vpack.c.b16 %v740, %v739
        %v816 = vpack.c.b16 %v742, %v741
        %v817 = vpack.c.b16 %v744, %v743
        %v818 = vpack.c.b16 %v746, %v745
        %v819 = vpack.c.b16 %v748, %v747
        %v820 = vpack.c.b16 %v750, %v749
        %v821 = vpack.c.b16 %v752, %v751
        %v822 = vpack.c.b16 %v754, %v753
        %v823 = vpack.c.b16 %v756, %v755
        %v824 = vpack.c.b16 %v758, %v757
        %v825 = vpack.c.b16 %v760, %v759
        %v826 = vpack.c.b16 %v762, %v761
        %v827 = vpack.c.b16 %v764, %v763
        %v828 = vpack.c.b16 %v766, %v765
        %v829 = vpack.c.b16 %v768, %v767
        %v830 = vpack.c.b16 %v770, %v769
        %v831 = vpack.c.b16 %v772, %v771
        %v832 = vpack.c.b16 %v774, %v773
        %v833 = vpack.c.b16 %v776, %v775
        %v834 = vpack.c.b16 %v778, %v777
        %v839 = vunpack.c.l.b16 %v551
        %v840 = vunpack.c.l.b16 %v552
        %v841 = vunpack.c.l.b16 %v553
        %v842 = vunpack.c.l.b16 %v554
        %v843 = vpack.c.b16 %v840, %v839
        %v844 = vpack.c.b16 %v842, %v841
        %vm847 = vcmask 261120
        %v849 = vsel %vm847, %v779, 0
        %v852 = vsel %vm847, %v780, 0
        %v855 = vsel %vm847, %v781, 0
        %v858 = vsel %vm847, %v782, 0
        %v861 = vsel %vm847, %v783, 0
        %v864 = vsel %vm847, %v784, 0
        %v867 = vsel %vm847, %v785, 0
        %v870 = vsel %vm847, %v786, 0
        %v873 = vsel %vm847, %v787, 0
        %v876 = vsel %vm847, %v788, 0
        %v879 = vsel %vm847, %v789, 0
        %v882 = vsel %vm847, %v790, 0
        %v885 = vsel %vm847, %v791, 0
        %v888 = vsel %vm847, %v792, 0
        %v891 = vsel %vm847, %v793, 0
        %v894 = vsel %vm847, %v794, 0
        %v897 = vsel %vm847, %v795, 0
        %v900 = vsel %vm847, %v796, 0
        %v903 = vsel %vm847, %v797, 0
        %v906 = vsel %vm847, %v798, 0
        %v909 = vsel %vm847, %v799, 0
        %v912 = vsel %vm847, %v800, 0
        %v915 = vsel %vm847, %v801, 0
        %v918 = vsel %vm847, %v802, 0
        %v921 = vsel %vm847, %v803, 0
        %v924 = vsel %vm847, %v804, 0
        %v927 = vsel %vm847, %v805, 0
        %v930 = vsel %vm847, %v806, 0
        %v933 = vsel %vm847, %v807, 0
        %v936 = vsel %vm847, %v808, 0
        %v939 = vsel %vm847, %v809, 0
        %v942 = vsel %vm847, %v810, 0
        %v945 = vsel %vm847, %v811, 0
        %v948 = vsel %vm847, %v812, 0
        %v951 = vsel %vm847, %v813, 0
        %v954 = vsel %vm847, %v814, 0
        %v957 = vsel %vm847, %v815, 0
        %v960 = vsel %vm847, %v816, 0
        %v963 = vsel %vm847, %v817, 0
        %v966 = vsel %vm847, %v818, 0
        %v969 = vsel %vm847, %v819, 0
        %v972 = vsel %vm847, %v820, 0
        %v975 = vsel %vm847, %v821, 0
        %v978 = vsel %vm847, %v822, 0
        %v981 = vsel %vm847, %v823, 0
        %v984 = vsel %vm847, %v824, 0
        %v987 = vsel %vm847, %v825, 0
        %v990 = vsel %vm847, %v826, 0
        %v993 = vsel %vm847, %v827, 0
        %v996 = vsel %vm847, %v828, 0
        %v999 = vsel %vm847, %v829, 0
        %v1002 = vsel %vm847, %v830, 0
        %v1005 = vsel %vm847, %v831, 0
        %v1008 = vsel %vm847, %v832, 0
        %v1011 = vsel %vm847, %v833, 0
        %v1014 = vsel %vm847, %v834, 0
        %1016 = vmatprep.subr.bf16.mxu0 0
        %1017 = vmatpush1.bf16.msra.mxu0 %v843
        %1018 = vmatprep.subr.bf16.mxu0 0
        %1019 = vmatpush1.bf16.msra.mxu0 %v844
        %1020 = vmatprep.subr.bf16.mxu0 0
        %1021 = vmatpush1.bf16.msra.mxu0 0
        %1022 = vmatprep.subr.bf16.mxu0 0
        %1023 = vmatpush1.bf16.msra.mxu0 0
        %1024 = vmatprep.subr.bf16.mxu0 0
        %1025 = vmatpush1.bf16.msra.mxu0 0
        %1026 = vmatprep.subr.bf16.mxu0 0
        %1027 = vmatpush1.bf16.msra.mxu0 0
        %1028 = vmatprep.subr.bf16.mxu0 0
        %1029 = vmatpush1.bf16.msra.mxu0 0
        %1030 = vmatprep.subr.bf16.mxu0 0
        %1031 = vmatpush1.bf16.msra.mxu0 0
        %1032 = vmatprep.subr.bf16.mxu0 0
        %1033 = vmatpush1.bf16.msra.mxu0 0
        %1034 = vmatprep.subr.bf16.mxu0 0
        %1035 = vmatpush1.bf16.msra.mxu0 0
        %1036 = vmatprep.subr.bf16.mxu0 0
        %1037 = vmatpush1.bf16.msra.mxu0 0
        %1038 = vmatprep.subr.bf16.mxu0 0
        %1039 = vmatpush1.bf16.msra.mxu0 0
        %1040 = vmatprep.subr.bf16.mxu0 0
        %1041 = vmatpush1.bf16.msra.mxu0 0
        %1042 = vmatprep.subr.bf16.mxu0 0
        %1043 = vmatpush1.bf16.msra.mxu0 0
        %1044 = vmatprep.subr.bf16.mxu0 0
        %1045 = vmatpush1.bf16.msra.mxu0 0
        %1046 = vmatprep.subr.bf16.mxu0 0
        %1047 = vmatpush1.bf16.msra.mxu0 0
        %1048 = vmatprep.mubr.bf16.mxu0 0
        %1049 = vmatmul.mubr.bf16.gmra.mrb[0].mxu0 %v849
        %v1050 = vpop.f32.mrb[0].mxu0
        %v1051 = vadd.f32 0.0, %v1050
        %v1052 = vpop.f32.mrb[0].mxu0
        %v1053 = vpop.f32.mrb[0].mxu0
        %v1054 = vadd.f32 0.0, %v1053
        %v1055 = vpop.f32.mrb[0].mxu0
        %1056 = vmatprep.mubr.bf16.mxu0 0
        %1057 = vmatmul.mubr.bf16.gmra.mrb[0].mxu0 %v852
        %v1058 = vpop.f32.mrb[0].mxu0
        %v1059 = vadd.f32 0.0, %v1058
        %v1060 = vpop.f32.mrb[0].mxu0
        %v1061 = vpop.f32.mrb[0].mxu0
        %v1062 = vadd.f32 0.0, %v1061
        %v1063 = vpop.f32.mrb[0].mxu0
        %1064 = vmatprep.mubr.bf16.mxu0 0
        %1065 = vmatmul.mubr.bf16.gmra.mrb[0].mxu0 %v855
        %v1066 = vpop.f32.mrb[0].mxu0
        %v1067 = vadd.f32 0.0, %v1066
        %v1068 = vpop.f32.mrb[0].mxu0
        %v1069 = vpop.f32.mrb[0].mxu0
        %v1070 = vadd.f32 0.0, %v1069
        %v1071 = vpop.f32.mrb[0].mxu0
        %1072 = vmatprep.mubr.bf16.mxu0 0
        %1073 = vmatmul.mubr.bf16.gmra.mrb[0].mxu0 %v858
        %v1074 = vpop.f32.mrb[0].mxu0
        %v1075 = vadd.f32 0.0, %v1074
        %v1076 = vpop.f32.mrb[0].mxu0
        %v1077 = vpop.f32.mrb[0].mxu0
        %v1078 = vadd.f32 0.0, %v1077
        %v1079 = vpop.f32.mrb[0].mxu0
        %1080 = vmatprep.mubr.bf16.mxu0 0
        %1081 = vmatmul.mubr.bf16.gmra.mrb[0].mxu0 %v861
        %v1082 = vpop.f32.mrb[0].mxu0
        %v1083 = vadd.f32 0.0, %v1082
        %v1084 = vpop.f32.mrb[0].mxu0
        %v1085 = vpop.f32.mrb[0].mxu0
        %v1086 = vadd.f32 0.0, %v1085
        %v1087 = vpop.f32.mrb[0].mxu0
        %1088 = vmatprep.mubr.bf16.mxu0 0
        %1089 = vmatmul.mubr.bf16.gmra.mrb[0].mxu0 %v864
        %v1090 = vpop.f32.mrb[0].mxu0
        %v1091 = vadd.f32 0.0, %v1090
        %v1092 = vpop.f32.mrb[0].mxu0
        %v1093 = vpop.f32.mrb[0].mxu0
        %v1094 = vadd.f32 0.0, %v1093
        %v1095 = vpop.f32.mrb[0].mxu0
        %1096 = vmatprep.mubr.bf16.mxu0 0
        %1097 = vmatmul.mubr.bf16.gmra.mrb[0].mxu0 %v867
        %v1098 = vpop.f32.mrb[0].mxu0
        %v1099 = vadd.f32 0.0, %v1098
        %v1100 = vpop.f32.mrb[0].mxu0
        %v1101 = vpop.f32.mrb[0].mxu0
        %v1102 = vadd.f32 0.0, %v1101
        %v1103 = vpop.f32.mrb[0].mxu0
        %1104 = vmatprep.mubr.bf16.mxu0 0
        %1105 = vmatmul.mubr.bf16.gmra.mrb[0].mxu0 %v870
        %v1106 = vpop.f32.mrb[0].mxu0
        %v1107 = vadd.f32 0.0, %v1106
        %v1108 = vpop.f32.mrb[0].mxu0
        %v1109 = vpop.f32.mrb[0].mxu0
        %v1110 = vadd.f32 0.0, %v1109
        %v1111 = vpop.f32.mrb[0].mxu0
        %1112 = vmatprep.mubr.bf16.mxu0 0
        %1113 = vmatmul.mubr.bf16.gmra.mrb[0].mxu0 %v873
        %v1114 = vpop.f32.mrb[0].mxu0
        %v1115 = vadd.f32 0.0, %v1114
        %v1116 = vpop.f32.mrb[0].mxu0
        %v1117 = vpop.f32.mrb[0].mxu0
        %v1118 = vadd.f32 0.0, %v1117
        %v1119 = vpop.f32.mrb[0].mxu0
        %1120 = vmatprep.mubr.bf16.mxu0 0
        %1121 = vmatmul.mubr.bf16.gmra.mrb[0].mxu0 %v876
        %v1122 = vpop.f32.mrb[0].mxu0
        %v1123 = vadd.f32 0.0, %v1122
        %v1124 = vpop.f32.mrb[0].mxu0
        %v1125 = vpop.f32.mrb[0].mxu0
        %v1126 = vadd.f32 0.0, %v1125
        %v1127 = vpop.f32.mrb[0].mxu0
        %1128 = vmatprep.mubr.bf16.mxu0 0
        %1129 = vmatmul.mubr.bf16.gmra.mrb[0].mxu0 %v879
        %v1130 = vpop.f32.mrb[0].mxu0
        %v1131 = vadd.f32 0.0, %v1130
        %v1132 = vpop.f32.mrb[0].mxu0
        %v1133 = vpop.f32.mrb[0].mxu0
        %v1134 = vadd.f32 0.0, %v1133
        %v1135 = vpop.f32.mrb[0].mxu0
        %1136 = vmatprep.mubr.bf16.mxu0 0
        %1137 = vmatmul.mubr.bf16.gmra.mrb[0].mxu0 %v882
        %v1138 = vpop.f32.mrb[0].mxu0
        %v1139 = vadd.f32 0.0, %v1138
        %v1140 = vpop.f32.mrb[0].mxu0
        %v1141 = vpop.f32.mrb[0].mxu0
        %v1142 = vadd.f32 0.0, %v1141
        %v1143 = vpop.f32.mrb[0].mxu0
        %1144 = vmatprep.mubr.bf16.mxu0 0
        %1145 = vmatmul.mubr.bf16.gmra.mrb[0].mxu0 %v885
        %v1146 = vpop.f32.mrb[0].mxu0
        %v1147 = vadd.f32 0.0, %v1146
        %v1148 = vpop.f32.mrb[0].mxu0
        %v1149 = vpop.f32.mrb[0].mxu0
        %v1150 = vadd.f32 0.0, %v1149
        %v1151 = vpop.f32.mrb[0].mxu0
        %1152 = vmatprep.mubr.bf16.mxu0 0
        %1153 = vmatmul.mubr.bf16.gmra.mrb[0].mxu0 %v888
        %v1154 = vpop.f32.mrb[0].mxu0
        %v1155 = vadd.f32 0.0, %v1154
        %v1156 = vpop.f32.mrb[0].mxu0
        %v1157 = vpop.f32.mrb[0].mxu0
        %v1158 = vadd.f32 0.0, %v1157
        %v1159 = vpop.f32.mrb[0].mxu0
        %1160 = vmatprep.mubr.bf16.mxu0 0
        %1161 = vmatmul.mubr.bf16.gmra.mrb[0].mxu0 %v891
        %v1162 = vpop.f32.mrb[0].mxu0
        %v1163 = vadd.f32 0.0, %v1162
        %v1164 = vpop.f32.mrb[0].mxu0
        %v1165 = vpop.f32.mrb[0].mxu0
        %v1166 = vadd.f32 0.0, %v1165
        %v1167 = vpop.f32.mrb[0].mxu0
        %1168 = vmatprep.mubr.bf16.mxu0 0
        %1169 = vmatmul.mubr.bf16.gmra.mrb[0].mxu0 %v894
        %v1170 = vpop.f32.mrb[0].mxu0
        %v1171 = vadd.f32 0.0, %v1170
        %v1172 = vpop.f32.mrb[0].mxu0
        %v1173 = vpop.f32.mrb[0].mxu0
        %v1174 = vadd.f32 0.0, %v1173
        %v1175 = vpop.f32.mrb[0].mxu0
        %1176 = vmatprep.mubr.bf16.mxu0 0
        %1177 = vmatmul.mubr.bf16.gmra.mrb[0].mxu0 %v897
        %v1178 = vpop.f32.mrb[0].mxu0
        %v1179 = vadd.f32 0.0, %v1178
        %v1180 = vpop.f32.mrb[0].mxu0
        %v1181 = vpop.f32.mrb[0].mxu0
        %v1182 = vadd.f32 0.0, %v1181
        %v1183 = vpop.f32.mrb[0].mxu0
        %1184 = vmatprep.mubr.bf16.mxu0 0
        %1185 = vmatmul.mubr.bf16.gmra.mrb[0].mxu0 %v900
        %v1186 = vpop.f32.mrb[0].mxu0
        %v1187 = vadd.f32 0.0, %v1186
        %v1188 = vpop.f32.mrb[0].mxu0
        %v1189 = vpop.f32.mrb[0].mxu0
        %v1190 = vadd.f32 0.0, %v1189
        %v1191 = vpop.f32.mrb[0].mxu0
        %1192 = vmatprep.mubr.bf16.mxu0 0
        %1193 = vmatmul.mubr.bf16.gmra.mrb[0].mxu0 %v903
        %v1194 = vpop.f32.mrb[0].mxu0
        %v1195 = vadd.f32 0.0, %v1194
        %v1196 = vpop.f32.mrb[0].mxu0
        %v1197 = vpop.f32.mrb[0].mxu0
        %v1198 = vadd.f32 0.0, %v1197
        %v1199 = vpop.f32.mrb[0].mxu0
        %1200 = vmatprep.mubr.bf16.mxu0 0
        %1201 = vmatmul.mubr.bf16.gmra.mrb[0].mxu0 %v906
        %v1202 = vpop.f32.mrb[0].mxu0
        %v1203 = vadd.f32 0.0, %v1202
        %v1204 = vpop.f32.mrb[0].mxu0
        %v1205 = vpop.f32.mrb[0].mxu0
        %v1206 = vadd.f32 0.0, %v1205
        %v1207 = vpop.f32.mrb[0].mxu0
        %1208 = vmatprep.mubr.bf16.mxu0 0
        %1209 = vmatmul.mubr.bf16.gmra.mrb[0].mxu0 %v909
        %v1210 = vpop.f32.mrb[0].mxu0
        %v1211 = vadd.f32 0.0, %v1210
        %v1212 = vpop.f32.mrb[0].mxu0
        %v1213 = vpop.f32.mrb[0].mxu0
        %v1214 = vadd.f32 0.0, %v1213
        %v1215 = vpop.f32.mrb[0].mxu0
        %1216 = vmatprep.mubr.bf16.mxu0 0
        %1217 = vmatmul.mubr.bf16.gmra.mrb[0].mxu0 %v912
        %v1218 = vpop.f32.mrb[0].mxu0
        %v1219 = vadd.f32 0.0, %v1218
        %v1220 = vpop.f32.mrb[0].mxu0
        %v1221 = vpop.f32.mrb[0].mxu0
        %v1222 = vadd.f32 0.0, %v1221
        %v1223 = vpop.f32.mrb[0].mxu0
        %1224 = vmatprep.mubr.bf16.mxu0 0
        %1225 = vmatmul.mubr.bf16.gmra.mrb[0].mxu0 %v915
        %v1226 = vpop.f32.mrb[0].mxu0
        %v1227 = vadd.f32 0.0, %v1226
        %v1228 = vpop.f32.mrb[0].mxu0
        %v1229 = vpop.f32.mrb[0].mxu0
        %v1230 = vadd.f32 0.0, %v1229
        %v1231 = vpop.f32.mrb[0].mxu0
        %1232 = vmatprep.mubr.bf16.mxu0 0
        %1233 = vmatmul.mubr.bf16.gmra.mrb[0].mxu0 %v918
        %v1234 = vpop.f32.mrb[0].mxu0
        %v1235 = vadd.f32 0.0, %v1234
        %v1236 = vpop.f32.mrb[0].mxu0
        %v1237 = vpop.f32.mrb[0].mxu0
        %v1238 = vadd.f32 0.0, %v1237
        %v1239 = vpop.f32.mrb[0].mxu0
        %1240 = vmatprep.mubr.bf16.mxu0 0
        %1241 = vmatmul.mubr.bf16.gmra.mrb[0].mxu0 %v921
        %v1242 = vpop.f32.mrb[0].mxu0
        %v1243 = vadd.f32 0.0, %v1242
        %v1244 = vpop.f32.mrb[0].mxu0
        %v1245 = vpop.f32.mrb[0].mxu0
        %v1246 = vadd.f32 0.0, %v1245
        %v1247 = vpop.f32.mrb[0].mxu0
        %1248 = vmatprep.mubr.bf16.mxu0 0
        %1249 = vmatmul.mubr.bf16.gmra.mrb[0].mxu0 %v924
        %v1250 = vpop.f32.mrb[0].mxu0
        %v1251 = vadd.f32 0.0, %v1250
        %v1252 = vpop.f32.mrb[0].mxu0
        %v1253 = vpop.f32.mrb[0].mxu0
        %v1254 = vadd.f32 0.0, %v1253
        %v1255 = vpop.f32.mrb[0].mxu0
        %1256 = vmatprep.mubr.bf16.mxu0 0
        %1257 = vmatmul.mubr.bf16.gmra.mrb[0].mxu0 %v927
        %v1258 = vpop.f32.mrb[0].mxu0
        %v1259 = vadd.f32 0.0, %v1258
        %v1260 = vpop.f32.mrb[0].mxu0
        %v1261 = vpop.f32.mrb[0].mxu0
        %v1262 = vadd.f32 0.0, %v1261
        %v1263 = vpop.f32.mrb[0].mxu0
        %1264 = vmatprep.mubr.bf16.mxu0 0
        %1265 = vmatmul.mubr.bf16.gmra.mrb[0].mxu0 %v930
        %v1266 = vpop.f32.mrb[0].mxu0
        %v1267 = vadd.f32 0.0, %v1266
        %v1268 = vpop.f32.mrb[0].mxu0
        %v1269 = vpop.f32.mrb[0].mxu0
        %v1270 = vadd.f32 0.0, %v1269
        %v1271 = vpop.f32.mrb[0].mxu0
        %1272 = vmatprep.mubr.bf16.mxu0 0
        %1273 = vmatmul.mubr.bf16.gmra.mrb[0].mxu0 %v933
        %v1274 = vpop.f32.mrb[0].mxu0
        %v1275 = vadd.f32 0.0, %v1274
        %v1276 = vpop.f32.mrb[0].mxu0
        %v1277 = vpop.f32.mrb[0].mxu0
        %v1278 = vadd.f32 0.0, %v1277
        %v1279 = vpop.f32.mrb[0].mxu0
        %1280 = vmatprep.mubr.bf16.mxu0 0
        %1281 = vmatmul.mubr.bf16.gmra.mrb[0].mxu0 %v936
        %v1282 = vpop.f32.mrb[0].mxu0
        %v1283 = vadd.f32 0.0, %v1282
        %v1284 = vpop.f32.mrb[0].mxu0
        %v1285 = vpop.f32.mrb[0].mxu0
        %v1286 = vadd.f32 0.0, %v1285
        %v1287 = vpop.f32.mrb[0].mxu0
        %1288 = vmatprep.mubr.bf16.mxu0 0
        %1289 = vmatmul.mubr.bf16.gmra.mrb[0].mxu0 %v939
        %v1290 = vpop.f32.mrb[0].mxu0
        %v1291 = vadd.f32 0.0, %v1290
        %v1292 = vpop.f32.mrb[0].mxu0
        %v1293 = vpop.f32.mrb[0].mxu0
        %v1294 = vadd.f32 0.0, %v1293
        %v1295 = vpop.f32.mrb[0].mxu0
        %1296 = vmatprep.mubr.bf16.mxu0 0
        %1297 = vmatmul.mubr.bf16.gmra.mrb[0].mxu0 %v942
        %v1298 = vpop.f32.mrb[0].mxu0
        %v1299 = vadd.f32 0.0, %v1298
        %v1300 = vpop.f32.mrb[0].mxu0
        %v1301 = vpop.f32.mrb[0].mxu0
        %v1302 = vadd.f32 0.0, %v1301
        %v1303 = vpop.f32.mrb[0].mxu0
        %1304 = vmatprep.mubr.bf16.mxu0 0
        %1305 = vmatmul.mubr.bf16.gmra.mrb[0].mxu0 %v945
        %v1306 = vpop.f32.mrb[0].mxu0
        %v1307 = vadd.f32 0.0, %v1306
        %v1308 = vpop.f32.mrb[0].mxu0
        %v1309 = vpop.f32.mrb[0].mxu0
        %v1310 = vadd.f32 0.0, %v1309
        %v1311 = vpop.f32.mrb[0].mxu0
        %1312 = vmatprep.mubr.bf16.mxu0 0
        %1313 = vmatmul.mubr.bf16.gmra.mrb[0].mxu0 %v948
        %v1314 = vpop.f32.mrb[0].mxu0
        %v1315 = vadd.f32 0.0, %v1314
        %v1316 = vpop.f32.mrb[0].mxu0
        %v1317 = vpop.f32.mrb[0].mxu0
        %v1318 = vadd.f32 0.0, %v1317
        %v1319 = vpop.f32.mrb[0].mxu0
        %1320 = vmatprep.mubr.bf16.mxu0 0
        %1321 = vmatmul.mubr.bf16.gmra.mrb[0].mxu0 %v951
        %v1322 = vpop.f32.mrb[0].mxu0
        %v1323 = vadd.f32 0.0, %v1322
        %v1324 = vpop.f32.mrb[0].mxu0
        %v1325 = vpop.f32.mrb[0].mxu0
        %v1326 = vadd.f32 0.0, %v1325
        %v1327 = vpop.f32.mrb[0].mxu0
        %1328 = vmatprep.mubr.bf16.mxu0 0
        %1329 = vmatmul.mubr.bf16.gmra.mrb[0].mxu0 %v954
        %v1330 = vpop.f32.mrb[0].mxu0
        %v1331 = vadd.f32 0.0, %v1330
        %v1332 = vpop.f32.mrb[0].mxu0
        %v1333 = vpop.f32.mrb[0].mxu0
        %v1334 = vadd.f32 0.0, %v1333
        %v1335 = vpop.f32.mrb[0].mxu0
        %1336 = vmatprep.mubr.bf16.mxu0 0
        %1337 = vmatmul.mubr.bf16.gmra.mrb[0].mxu0 %v957
        %v1338 = vpop.f32.mrb[0].mxu0
        %v1339 = vadd.f32 0.0, %v1338
        %v1340 = vpop.f32.mrb[0].mxu0
        %v1341 = vpop.f32.mrb[0].mxu0
        %v1342 = vadd.f32 0.0, %v1341
        %v1343 = vpop.f32.mrb[0].mxu0
        %1344 = vmatprep.mubr.bf16.mxu0 0
        %1345 = vmatmul.mubr.bf16.gmra.mrb[0].mxu0 %v960
        %v1346 = vpop.f32.mrb[0].mxu0
        %v1347 = vadd.f32 0.0, %v1346
        %v1348 = vpop.f32.mrb[0].mxu0
        %v1349 = vpop.f32.mrb[0].mxu0
        %v1350 = vadd.f32 0.0, %v1349
        %v1351 = vpop.f32.mrb[0].mxu0
        %1352 = vmatprep.mubr.bf16.mxu0 0
        %1353 = vmatmul.mubr.bf16.gmra.mrb[0].mxu0 %v963
        %v1354 = vpop.f32.mrb[0].mxu0
        %v1355 = vadd.f32 0.0, %v1354
        %v1356 = vpop.f32.mrb[0].mxu0
        %v1357 = vpop.f32.mrb[0].mxu0
        %v1358 = vadd.f32 0.0, %v1357
        %v1359 = vpop.f32.mrb[0].mxu0
        %1360 = vmatprep.mubr.bf16.mxu0 0
        %1361 = vmatmul.mubr.bf16.gmra.mrb[0].mxu0 %v966
        %v1362 = vpop.f32.mrb[0].mxu0
        %v1363 = vadd.f32 0.0, %v1362
        %v1364 = vpop.f32.mrb[0].mxu0
        %v1365 = vpop.f32.mrb[0].mxu0
        %v1366 = vadd.f32 0.0, %v1365
        %v1367 = vpop.f32.mrb[0].mxu0
        %1368 = vmatprep.mubr.bf16.mxu0 0
        %1369 = vmatmul.mubr.bf16.gmra.mrb[0].mxu0 %v969
        %v1370 = vpop.f32.mrb[0].mxu0
        %v1371 = vadd.f32 0.0, %v1370
        %v1372 = vpop.f32.mrb[0].mxu0
        %v1373 = vpop.f32.mrb[0].mxu0
        %v1374 = vadd.f32 0.0, %v1373
        %v1375 = vpop.f32.mrb[0].mxu0
        %1376 = vmatprep.mubr.bf16.mxu0 0
        %1377 = vmatmul.mubr.bf16.gmra.mrb[0].mxu0 %v972
        %v1378 = vpop.f32.mrb[0].mxu0
        %v1379 = vadd.f32 0.0, %v1378
        %v1380 = vpop.f32.mrb[0].mxu0
        %v1381 = vpop.f32.mrb[0].mxu0
        %v1382 = vadd.f32 0.0, %v1381
        %v1383 = vpop.f32.mrb[0].mxu0
        %1384 = vmatprep.mubr.bf16.mxu0 0
        %1385 = vmatmul.mubr.bf16.gmra.mrb[0].mxu0 %v975
        %v1386 = vpop.f32.mrb[0].mxu0
        %v1387 = vadd.f32 0.0, %v1386
        %v1388 = vpop.f32.mrb[0].mxu0
        %v1389 = vpop.f32.mrb[0].mxu0
        %v1390 = vadd.f32 0.0, %v1389
        %v1391 = vpop.f32.mrb[0].mxu0
        %1392 = vmatprep.mubr.bf16.mxu0 0
        %1393 = vmatmul.mubr.bf16.gmra.mrb[0].mxu0 %v978
        %v1394 = vpop.f32.mrb[0].mxu0
        %v1395 = vadd.f32 0.0, %v1394
        %v1396 = vpop.f32.mrb[0].mxu0
        %v1397 = vpop.f32.mrb[0].mxu0
        %v1398 = vadd.f32 0.0, %v1397
        %v1399 = vpop.f32.mrb[0].mxu0
        %1400 = vmatprep.mubr.bf16.mxu0 0
        %1401 = vmatmul.mubr.bf16.gmra.mrb[0].mxu0 %v981
        %v1402 = vpop.f32.mrb[0].mxu0
        %v1403 = vadd.f32 0.0, %v1402
        %v1404 = vpop.f32.mrb[0].mxu0
        %v1405 = vpop.f32.mrb[0].mxu0
        %v1406 = vadd.f32 0.0, %v1405
        %v1407 = vpop.f32.mrb[0].mxu0
        %1408 = vmatprep.mubr.bf16.mxu0 0
        %1409 = vmatmul.mubr.bf16.gmra.mrb[0].mxu0 %v984
        %v1410 = vpop.f32.mrb[0].mxu0
        %v1411 = vadd.f32 0.0, %v1410
        %v1412 = vpop.f32.mrb[0].mxu0
        %v1413 = vpop.f32.mrb[0].mxu0
        %v1414 = vadd.f32 0.0, %v1413
        %v1415 = vpop.f32.mrb[0].mxu0
        %1416 = vmatprep.mubr.bf16.mxu0 0
        %1417 = vmatmul.mubr.bf16.gmra.mrb[0].mxu0 %v987
        %v1418 = vpop.f32.mrb[0].mxu0
        %v1419 = vadd.f32 0.0, %v1418
        %v1420 = vpop.f32.mrb[0].mxu0
        %v1421 = vpop.f32.mrb[0].mxu0
        %v1422 = vadd.f32 0.0, %v1421
        %v1423 = vpop.f32.mrb[0].mxu0
        %1424 = vmatprep.mubr.bf16.mxu0 0
        %1425 = vmatmul.mubr.bf16.gmra.mrb[0].mxu0 %v990
        %v1426 = vpop.f32.mrb[0].mxu0
        %v1427 = vadd.f32 0.0, %v1426
        %v1428 = vpop.f32.mrb[0].mxu0
        %v1429 = vpop.f32.mrb[0].mxu0
        %v1430 = vadd.f32 0.0, %v1429
        %v1431 = vpop.f32.mrb[0].mxu0
        %1432 = vmatprep.mubr.bf16.mxu0 0
        %1433 = vmatmul.mubr.bf16.gmra.mrb[0].mxu0 %v993
        %v1434 = vpop.f32.mrb[0].mxu0
        %v1435 = vadd.f32 0.0, %v1434
        %v1436 = vpop.f32.mrb[0].mxu0
        %v1437 = vpop.f32.mrb[0].mxu0
        %v1438 = vadd.f32 0.0, %v1437
        %v1439 = vpop.f32.mrb[0].mxu0
        %1440 = vmatprep.mubr.bf16.mxu0 0
        %1441 = vmatmul.mubr.bf16.gmra.mrb[0].mxu0 %v996
        %v1442 = vpop.f32.mrb[0].mxu0
        %v1443 = vadd.f32 0.0, %v1442
        %v1444 = vpop.f32.mrb[0].mxu0
        %v1445 = vpop.f32.mrb[0].mxu0
        %v1446 = vadd.f32 0.0, %v1445
        %v1447 = vpop.f32.mrb[0].mxu0
        %1448 = vmatprep.mubr.bf16.mxu0 0
        %1449 = vmatmul.mubr.bf16.gmra.mrb[0].mxu0 %v999
        %v1450 = vpop.f32.mrb[0].mxu0
        %v1451 = vadd.f32 0.0, %v1450
        %v1452 = vpop.f32.mrb[0].mxu0
        %v1453 = vpop.f32.mrb[0].mxu0
        %v1454 = vadd.f32 0.0, %v1453
        %v1455 = vpop.f32.mrb[0].mxu0
        %1456 = vmatprep.mubr.bf16.mxu0 0
        %1457 = vmatmul.mubr.bf16.gmra.mrb[0].mxu0 %v1002
        %v1458 = vpop.f32.mrb[0].mxu0
        %v1459 = vadd.f32 0.0, %v1458
        %v1460 = vpop.f32.mrb[0].mxu0
        %v1461 = vpop.f32.mrb[0].mxu0
        %v1462 = vadd.f32 0.0, %v1461
        %v1463 = vpop.f32.mrb[0].mxu0
        %1464 = vmatprep.mubr.bf16.mxu0 0
        %1465 = vmatmul.mubr.bf16.gmra.mrb[0].mxu0 %v1005
        %v1466 = vpop.f32.mrb[0].mxu0
        %v1467 = vadd.f32 0.0, %v1466
        %v1468 = vpop.f32.mrb[0].mxu0
        %v1469 = vpop.f32.mrb[0].mxu0
        %v1470 = vadd.f32 0.0, %v1469
        %v1471 = vpop.f32.mrb[0].mxu0
        %1472 = vmatprep.mubr.bf16.mxu0 0
        %1473 = vmatmul.mubr.bf16.gmra.mrb[0].mxu0 %v1008
        %v1474 = vpop.f32.mrb[0].mxu0
        %v1475 = vadd.f32 0.0, %v1474
        %v1476 = vpop.f32.mrb[0].mxu0
        %v1477 = vpop.f32.mrb[0].mxu0
        %v1478 = vadd.f32 0.0, %v1477
        %v1479 = vpop.f32.mrb[0].mxu0
        %1480 = vmatprep.mubr.bf16.mxu0 0
        %1481 = vmatmul.mubr.bf16.gmra.mrb[0].mxu0 %v1011
        %v1482 = vpop.f32.mrb[0].mxu0
        %v1483 = vadd.f32 0.0, %v1482
        %v1484 = vpop.f32.mrb[0].mxu0
        %v1485 = vpop.f32.mrb[0].mxu0
        %v1486 = vadd.f32 0.0, %v1485
        %v1487 = vpop.f32.mrb[0].mxu0
        %1488 = vmatprep.mubr.bf16.mxu0 0
        %1489 = vmatmul.mubr.bf16.gmra.mrb[0].mxu0 %v1014
        %v1490 = vpop.f32.mrb[0].mxu0
        %v1491 = vadd.f32 0.0, %v1490
        %v1492 = vpop.f32.mrb[0].mxu0
        %v1493 = vpop.f32.mrb[0].mxu0
        %v1494 = vadd.f32 0.0, %v1493
        %v1495 = vpop.f32.mrb[0].mxu0
        %1496 = vdwg.mxu0
        %vm1497 = vcmask 48128
        %1498 = vst.msk [vmem:[#allocation2] sm:$0xff] %vm1497, %v1051
        %1499 = vst.msk [vmem:[#allocation2 + $0x8] sm:$0xff] %vm1497, %v1054
        %1500 = vst.msk [vmem:[#allocation2 + $0x10] sm:$0xff] %vm1497, %v1059
        %1501 = vst.msk [vmem:[#allocation2 + $0x18] sm:$0xff] %vm1497, %v1062
        %1502 = vst.msk [vmem:[#allocation2 + $0x20] sm:$0xff] %vm1497, %v1067
        %1503 = vst.msk [vmem:[#allocation2 + $0x28] sm:$0xff] %vm1497, %v1070
        %1504 = vst.msk [vmem:[#allocation2 + $0x30] sm:$0xff] %vm1497, %v1075
        %1505 = vst.msk [vmem:[#allocation2 + $0x38] sm:$0xff] %vm1497, %v1078
        %1506 = vst.msk [vmem:[#allocation2 + $0x40] sm:$0xff] %vm1497, %v1083
        %1507 = vst.msk [vmem:[#allocation2 + $0x48] sm:$0xff] %vm1497, %v1086
        %1508 = vst.msk [vmem:[#allocation2 + $0x50] sm:$0xff] %vm1497, %v1091
        %1509 = vst.msk [vmem:[#allocation2 + $0x58] sm:$0xff] %vm1497, %v1094
        %1510 = vst.msk [vmem:[#allocation2 + $0x60] sm:$0xff] %vm1497, %v1099
        %1511 = vst.msk [vmem:[#allocation2 + $0x68] sm:$0xff] %vm1497, %v1102
        %1512 = vst.msk [vmem:[#allocation2 + $0x70] sm:$0xff] %vm1497, %v1107
        %1513 = vst.msk [vmem:[#allocation2 + $0x78] sm:$0xff] %vm1497, %v1110
        %1514 = vst.msk [vmem:[#allocation2 + $0x80] sm:$0xff] %vm1497, %v1115
        %1515 = vst.msk [vmem:[#allocation2 + $0x88] sm:$0xff] %vm1497, %v1118
        %1516 = vst.msk [vmem:[#allocation2 + $0x90] sm:$0xff] %vm1497, %v1123
        %1517 = vst.msk [vmem:[#allocation2 + $0x98] sm:$0xff] %vm1497, %v1126
        %1518 = vst.msk [vmem:[#allocation2 + $0xa0] sm:$0xff] %vm1497, %v1131
        %1519 = vst.msk [vmem:[#allocation2 + $0xa8] sm:$0xff] %vm1497, %v1134
        %1520 = vst.msk [vmem:[#allocation2 + $0xb0] sm:$0xff] %vm1497, %v1139
        %1521 = vst.msk [vmem:[#allocation2 + $0xb8] sm:$0xff] %vm1497, %v1142
        %1522 = vst.msk [vmem:[#allocation2 + $0xc0] sm:$0xff] %vm1497, %v1147
        %1523 = vst.msk [vmem:[#allocation2 + $0xc8] sm:$0xff] %vm1497, %v1150
        %1524 = vst.msk [vmem:[#allocation2 + $0xd0] sm:$0xff] %vm1497, %v1155
        %1525 = vst.msk [vmem:[#allocation2 + $0xd8] sm:$0xff] %vm1497, %v1158
        %1526 = vst.msk [vmem:[#allocation2 + $0xe0] sm:$0xff] %vm1497, %v1163
        %1527 = vst.msk [vmem:[#allocation2 + $0xe8] sm:$0xff] %vm1497, %v1166
        %1528 = vst.msk [vmem:[#allocation2 + $0xf0] sm:$0xff] %vm1497, %v1171
        %1529 = vst.msk [vmem:[#allocation2 + $0xf8] sm:$0xff] %vm1497, %v1174
        %1530 = vst.msk [vmem:[#allocation2 + $0x100] sm:$0xff] %vm1497, %v1179
        %1531 = vst.msk [vmem:[#allocation2 + $0x108] sm:$0xff] %vm1497, %v1182
        %1532 = vst.msk [vmem:[#allocation2 + $0x110] sm:$0xff] %vm1497, %v1187
        %1533 = vst.msk [vmem:[#allocation2 + $0x118] sm:$0xff] %vm1497, %v1190
        %1534 = vst.msk [vmem:[#allocation2 + $0x120] sm:$0xff] %vm1497, %v1195
        %1535 = vst.msk [vmem:[#allocation2 + $0x128] sm:$0xff] %vm1497, %v1198
        %1536 = vst.msk [vmem:[#allocation2 + $0x130] sm:$0xff] %vm1497, %v1203
        %1537 = vst.msk [vmem:[#allocation2 + $0x138] sm:$0xff] %vm1497, %v1206
        %1538 = vst.msk [vmem:[#allocation2 + $0x140] sm:$0xff] %vm1497, %v1211
        %1539 = vst.msk [vmem:[#allocation2 + $0x148] sm:$0xff] %vm1497, %v1214
        %1540 = vst.msk [vmem:[#allocation2 + $0x150] sm:$0xff] %vm1497, %v1219
        %1541 = vst.msk [vmem:[#allocation2 + $0x158] sm:$0xff] %vm1497, %v1222
        %1542 = vst.msk [vmem:[#allocation2 + $0x160] sm:$0xff] %vm1497, %v1227
        %1543 = vst.msk [vmem:[#allocation2 + $0x168] sm:$0xff] %vm1497, %v1230
        %1544 = vst.msk [vmem:[#allocation2 + $0x170] sm:$0xff] %vm1497, %v1235
        %1545 = vst.msk [vmem:[#allocation2 + $0x178] sm:$0xff] %vm1497, %v1238
        %1546 = vst.msk [vmem:[#allocation2 + $0x180] sm:$0xff] %vm1497, %v1243
        %1547 = vst.msk [vmem:[#allocation2 + $0x188] sm:$0xff] %vm1497, %v1246
        %1548 = vst.msk [vmem:[#allocation2 + $0x190] sm:$0xff] %vm1497, %v1251
        %1549 = vst.msk [vmem:[#allocation2 + $0x198] sm:$0xff] %vm1497, %v1254
        %1550 = vst.msk [vmem:[#allocation2 + $0x1a0] sm:$0xff] %vm1497, %v1259
        %1551 = vst.msk [vmem:[#allocation2 + $0x1a8] sm:$0xff] %vm1497, %v1262
        %1552 = vst.msk [vmem:[#allocation2 + $0x1b0] sm:$0xff] %vm1497, %v1267
        %1553 = vst.msk [vmem:[#allocation2 + $0x1b8] sm:$0xff] %vm1497, %v1270
        %1554 = vst.msk [vmem:[#allocation2 + $0x1c0] sm:$0xff] %vm1497, %v1275
        %1555 = vst.msk [vmem:[#allocation2 + $0x1c8] sm:$0xff] %vm1497, %v1278
        %1556 = vst.msk [vmem:[#allocation2 + $0x1d0] sm:$0xff] %vm1497, %v1283
        %1557 = vst.msk [vmem:[#allocation2 + $0x1d8] sm:$0xff] %vm1497, %v1286
        %1558 = vst.msk [vmem:[#allocation2 + $0x1e0] sm:$0xff] %vm1497, %v1291
        %1559 = vst.msk [vmem:[#allocation2 + $0x1e8] sm:$0xff] %vm1497, %v1294
        %1560 = vst.msk [vmem:[#allocation2 + $0x1f0] sm:$0xff] %vm1497, %v1299
        %1561 = vst.msk [vmem:[#allocation2 + $0x1f8] sm:$0xff] %vm1497, %v1302
        %1562 = vst.msk [vmem:[#allocation2 + $0x200] sm:$0xff] %vm1497, %v1307
        %1563 = vst.msk [vmem:[#allocation2 + $0x208] sm:$0xff] %vm1497, %v1310
        %1564 = vst.msk [vmem:[#allocation2 + $0x210] sm:$0xff] %vm1497, %v1315
        %1565 = vst.msk [vmem:[#allocation2 + $0x218] sm:$0xff] %vm1497, %v1318
        %1566 = vst.msk [vmem:[#allocation2 + $0x220] sm:$0xff] %vm1497, %v1323
        %1567 = vst.msk [vmem:[#allocation2 + $0x228] sm:$0xff] %vm1497, %v1326
        %1568 = vst.msk [vmem:[#allocation2 + $0x230] sm:$0xff] %vm1497, %v1331
        %1569 = vst.msk [vmem:[#allocation2 + $0x238] sm:$0xff] %vm1497, %v1334
        %1570 = vst.msk [vmem:[#allocation2 + $0x240] sm:$0xff] %vm1497, %v1339
        %1571 = vst.msk [vmem:[#allocation2 + $0x248] sm:$0xff] %vm1497, %v1342
        %1572 = vst.msk [vmem:[#allocation2 + $0x250] sm:$0xff] %vm1497, %v1347
        %1573 = vst.msk [vmem:[#allocation2 + $0x258] sm:$0xff] %vm1497, %v1350
        %1574 = vst.msk [vmem:[#allocation2 + $0x260] sm:$0xff] %vm1497, %v1355
        %1575 = vst.msk [vmem:[#allocation2 + $0x268] sm:$0xff] %vm1497, %v1358
        %1576 = vst.msk [vmem:[#allocation2 + $0x270] sm:$0xff] %vm1497, %v1363
        %1577 = vst.msk [vmem:[#allocation2 + $0x278] sm:$0xff] %vm1497, %v1366
        %1578 = vst.msk [vmem:[#allocation2 + $0x280] sm:$0xff] %vm1497, %v1371
        %1579 = vst.msk [vmem:[#allocation2 + $0x288] sm:$0xff] %vm1497, %v1374
        %1580 = vst.msk [vmem:[#allocation2 + $0x290] sm:$0xff] %vm1497, %v1379
        %1581 = vst.msk [vmem:[#allocation2 + $0x298] sm:$0xff] %vm1497, %v1382
        %1582 = vst.msk [vmem:[#allocation2 + $0x2a0] sm:$0xff] %vm1497, %v1387
        %1583 = vst.msk [vmem:[#allocation2 + $0x2a8] sm:$0xff] %vm1497, %v1390
        %1584 = vst.msk [vmem:[#allocation2 + $0x2b0] sm:$0xff] %vm1497, %v1395
        %1585 = vst.msk [vmem:[#allocation2 + $0x2b8] sm:$0xff] %vm1497, %v1398
        %1586 = vst.msk [vmem:[#allocation2 + $0x2c0] sm:$0xff] %vm1497, %v1403
        %1587 = vst.msk [vmem:[#allocation2 + $0x2c8] sm:$0xff] %vm1497, %v1406
        %1588 = vst.msk [vmem:[#allocation2 + $0x2d0] sm:$0xff] %vm1497, %v1411
        %1589 = vst.msk [vmem:[#allocation2 + $0x2d8] sm:$0xff] %vm1497, %v1414
        %1590 = vst.msk [vmem:[#allocation2 + $0x2e0] sm:$0xff] %vm1497, %v1419
        %1591 = vst.msk [vmem:[#allocation2 + $0x2e8] sm:$0xff] %vm1497, %v1422
        %1592 = vst.msk [vmem:[#allocation2 + $0x2f0] sm:$0xff] %vm1497, %v1427
        %1593 = vst.msk [vmem:[#allocation2 + $0x2f8] sm:$0xff] %vm1497, %v1430
        %1594 = vst.msk [vmem:[#allocation2 + $0x300] sm:$0xff] %vm1497, %v1435
        %1595 = vst.msk [vmem:[#allocation2 + $0x308] sm:$0xff] %vm1497, %v1438
        %1596 = vst.msk [vmem:[#allocation2 + $0x310] sm:$0xff] %vm1497, %v1443
        %1597 = vst.msk [vmem:[#allocation2 + $0x318] sm:$0xff] %vm1497, %v1446
        %1598 = vst.msk [vmem:[#allocation2 + $0x320] sm:$0xff] %vm1497, %v1451
        %1599 = vst.msk [vmem:[#allocation2 + $0x328] sm:$0xff] %vm1497, %v1454
        %1600 = vst.msk [vmem:[#allocation2 + $0x330] sm:$0xff] %vm1497, %v1459
        %1601 = vst.msk [vmem:[#allocation2 + $0x338] sm:$0xff] %vm1497, %v1462
        %1602 = vst.msk [vmem:[#allocation2 + $0x340] sm:$0xff] %vm1497, %v1467
        %1603 = vst.msk [vmem:[#allocation2 + $0x348] sm:$0xff] %vm1497, %v1470
        %1604 = vst.msk [vmem:[#allocation2 + $0x350] sm:$0xff] %vm1497, %v1475
        %1605 = vst.msk [vmem:[#allocation2 + $0x358] sm:$0xff] %vm1497, %v1478
        %1606 = vst.msk [vmem:[#allocation2 + $0x360] sm:$0xff] %vm1497, %v1483
        %1607 = vst.msk [vmem:[#allocation2 + $0x368] sm:$0xff] %vm1497, %v1486
        %1608 = vst.msk [vmem:[#allocation2 + $0x370] sm:$0xff] %vm1497, %v1491
        %vm1609 = vcmask 44032
        %1610 = vst.msk [vmem:[#allocation2 + $0x378] sm:$0xf] %vm1609, %v1494
        %v1611 = vld [vmem:[#allocation2] sm:$0xff]
        %v1612 = vld [vmem:[#allocation2 + $0x8] sm:$0xff]
        %v1613 = vld [vmem:[#allocation2 + $0x10] sm:$0xff]
        %v1614 = vld [vmem:[#allocation2 + $0x18] sm:$0xff]
        %v1615 = vld [vmem:[#allocation2 + $0x20] sm:$0xff]
        %v1616 = vld [vmem:[#allocation2 + $0x28] sm:$0xff]
        %v1617 = vld [vmem:[#allocation2 + $0x30] sm:$0xff]
        %v1618 = vld [vmem:[#allocation2 + $0x38] sm:$0xff]
        %v1619 = vld [vmem:[#allocation2 + $0x40] sm:$0xff]
        %v1620 = vld [vmem:[#allocation2 + $0x48] sm:$0xff]
        %v1621 = vld [vmem:[#allocation2 + $0x50] sm:$0xff]
        %v1622 = vld [vmem:[#allocation2 + $0x58] sm:$0xff]
        %v1623 = vld [vmem:[#allocation2 + $0x60] sm:$0xff]
        %v1624 = vld [vmem:[#allocation2 + $0x68] sm:$0xff]
        %v1625 = vld [vmem:[#allocation2 + $0x70] sm:$0xff]
        %v1626 = vld [vmem:[#allocation2 + $0x78] sm:$0xff]
        %v1627 = vld [vmem:[#allocation2 + $0x80] sm:$0xff]
        %v1628 = vld [vmem:[#allocation2 + $0x88] sm:$0xff]
        %v1629 = vld [vmem:[#allocation2 + $0x90] sm:$0xff]
        %v1630 = vld [vmem:[#allocation2 + $0x98] sm:$0xff]
        %v1631 = vld [vmem:[#allocation2 + $0xa0] sm:$0xff]
        %v1632 = vld [vmem:[#allocation2 + $0xa8] sm:$0xff]
        %v1633 = vld [vmem:[#allocation2 + $0xb0] sm:$0xff]
        %v1634 = vld [vmem:[#allocation2 + $0xb8] sm:$0xff]
        %v1635 = vld [vmem:[#allocation2 + $0xc0] sm:$0xff]
        %v1636 = vld [vmem:[#allocation2 + $0xc8] sm:$0xff]
        %v1637 = vld [vmem:[#allocation2 + $0xd0] sm:$0xff]
        %v1638 = vld [vmem:[#allocation2 + $0xd8] sm:$0xff]
        %v1639 = vld [vmem:[#allocation2 + $0xe0] sm:$0xff]
        %v1640 = vld [vmem:[#allocation2 + $0xe8] sm:$0xff]
        %v1641 = vld [vmem:[#allocation2 + $0xf0] sm:$0xff]
        %v1642 = vld [vmem:[#allocation2 + $0xf8] sm:$0xff]
        %v1643 = vld [vmem:[#allocation2 + $0x100] sm:$0xff]
        %v1644 = vld [vmem:[#allocation2 + $0x108] sm:$0xff]
        %v1645 = vld [vmem:[#allocation2 + $0x110] sm:$0xff]
        %v1646 = vld [vmem:[#allocation2 + $0x118] sm:$0xff]
        %v1647 = vld [vmem:[#allocation2 + $0x120] sm:$0xff]
        %v1648 = vld [vmem:[#allocation2 + $0x128] sm:$0xff]
        %v1649 = vld [vmem:[#allocation2 + $0x130] sm:$0xff]
        %v1650 = vld [vmem:[#allocation2 + $0x138] sm:$0xff]
        %v1651 = vld [vmem:[#allocation2 + $0x140] sm:$0xff]
        %v1652 = vld [vmem:[#allocation2 + $0x148] sm:$0xff]
        %v1653 = vld [vmem:[#allocation2 + $0x150] sm:$0xff]
        %v1654 = vld [vmem:[#allocation2 + $0x158] sm:$0xff]
        %v1655 = vld [vmem:[#allocation2 + $0x160] sm:$0xff]
        %v1656 = vld [vmem:[#allocation2 + $0x168] sm:$0xff]
        %v1657 = vld [vmem:[#allocation2 + $0x170] sm:$0xff]
        %v1658 = vld [vmem:[#allocation2 + $0x178] sm:$0xff]
        %v1659 = vld [vmem:[#allocation2 + $0x180] sm:$0xff]
        %v1660 = vld [vmem:[#allocation2 + $0x188] sm:$0xff]
        %v1661 = vld [vmem:[#allocation2 + $0x190] sm:$0xff]
        %v1662 = vld [vmem:[#allocation2 + $0x198] sm:$0xff]
        %v1663 = vld [vmem:[#allocation2 + $0x1a0] sm:$0xff]
        %v1664 = vld [vmem:[#allocation2 + $0x1a8] sm:$0xff]
        %v1665 = vld [vmem:[#allocation2 + $0x1b0] sm:$0xff]
        %v1666 = vld [vmem:[#allocation2 + $0x1b8] sm:$0xff]
        %v1667 = vld [vmem:[#allocation2 + $0x1c0] sm:$0xff]
        %v1668 = vld [vmem:[#allocation2 + $0x1c8] sm:$0xff]
        %v1669 = vld [vmem:[#allocation2 + $0x1d0] sm:$0xff]
        %v1670 = vld [vmem:[#allocation2 + $0x1d8] sm:$0xff]
        %v1671 = vld [vmem:[#allocation2 + $0x1e0] sm:$0xff]
        %v1672 = vld [vmem:[#allocation2 + $0x1e8] sm:$0xff]
        %v1673 = vld [vmem:[#allocation2 + $0x1f0] sm:$0xff]
        %v1674 = vld [vmem:[#allocation2 + $0x1f8] sm:$0xff]
        %v1675 = vld [vmem:[#allocation2 + $0x200] sm:$0xff]
        %v1676 = vld [vmem:[#allocation2 + $0x208] sm:$0xff]
        %v1677 = vld [vmem:[#allocation2 + $0x210] sm:$0xff]
        %v1678 = vld [vmem:[#allocation2 + $0x218] sm:$0xff]
        %v1679 = vld [vmem:[#allocation2 + $0x220] sm:$0xff]
        %v1680 = vld [vmem:[#allocation2 + $0x228] sm:$0xff]
        %v1681 = vld [vmem:[#allocation2 + $0x230] sm:$0xff]
        %v1682 = vld [vmem:[#allocation2 + $0x238] sm:$0xff]
        %v1683 = vld [vmem:[#allocation2 + $0x240] sm:$0xff]
        %v1684 = vld [vmem:[#allocation2 + $0x248] sm:$0xff]
        %v1685 = vld [vmem:[#allocation2 + $0x250] sm:$0xff]
        %v1686 = vld [vmem:[#allocation2 + $0x258] sm:$0xff]
        %v1687 = vld [vmem:[#allocation2 + $0x260] sm:$0xff]
        %v1688 = vld [vmem:[#allocation2 + $0x268] sm:$0xff]
        %v1689 = vld [vmem:[#allocation2 + $0x270] sm:$0xff]
        %v1690 = vld [vmem:[#allocation2 + $0x278] sm:$0xff]
        %v1691 = vld [vmem:[#allocation2 + $0x280] sm:$0xff]
        %v1692 = vld [vmem:[#allocation2 + $0x288] sm:$0xff]
        %v1693 = vld [vmem:[#allocation2 + $0x290] sm:$0xff]
        %v1694 = vld [vmem:[#allocation2 + $0x298] sm:$0xff]
        %v1695 = vld [vmem:[#allocation2 + $0x2a0] sm:$0xff]
        %v1696 = vld [vmem:[#allocation2 + $0x2a8] sm:$0xff]
        %v1697 = vld [vmem:[#allocation2 + $0x2b0] sm:$0xff]
        %v1698 = vld [vmem:[#allocation2 + $0x2b8] sm:$0xff]
        %v1699 = vld [vmem:[#allocation2 + $0x2c0] sm:$0xff]
        %v1700 = vld [vmem:[#allocation2 + $0x2c8] sm:$0xff]
        %v1701 = vld [vmem:[#allocation2 + $0x2d0] sm:$0xff]
        %v1702 = vld [vmem:[#allocation2 + $0x2d8] sm:$0xff]
        %v1703 = vld [vmem:[#allocation2 + $0x2e0] sm:$0xff]
        %v1704 = vld [vmem:[#allocation2 + $0x2e8] sm:$0xff]
        %v1705 = vld [vmem:[#allocation2 + $0x2f0] sm:$0xff]
        %v1706 = vld [vmem:[#allocation2 + $0x2f8] sm:$0xff]
        %v1707 = vld [vmem:[#allocation2 + $0x300] sm:$0xff]
        %v1708 = vld [vmem:[#allocation2 + $0x308] sm:$0xff]
        %v1709 = vld [vmem:[#allocation2 + $0x310] sm:$0xff]
        %v1710 = vld [vmem:[#allocation2 + $0x318] sm:$0xff]
        %v1711 = vld [vmem:[#allocation2 + $0x320] sm:$0xff]
        %v1712 = vld [vmem:[#allocation2 + $0x328] sm:$0xff]
        %v1713 = vld [vmem:[#allocation2 + $0x330] sm:$0xff]
        %v1714 = vld [vmem:[#allocation2 + $0x338] sm:$0xff]
        %v1715 = vld [vmem:[#allocation2 + $0x340] sm:$0xff]
        %v1716 = vld [vmem:[#allocation2 + $0x348] sm:$0xff]
        %v1717 = vld [vmem:[#allocation2 + $0x350] sm:$0xff]
        %v1718 = vld [vmem:[#allocation2 + $0x358] sm:$0x7]
        %v1719 = vld [vmem:[#allocation2 + $0x1] sm:$0xff]
        %v1720 = vld [vmem:[#allocation2 + $0x9] sm:$0xff]
        %v1721 = vld [vmem:[#allocation2 + $0x11] sm:$0xff]
        %v1722 = vld [vmem:[#allocation2 + $0x19] sm:$0xff]
        %v1723 = vld [vmem:[#allocation2 + $0x21] sm:$0xff]
        %v1724 = vld [vmem:[#allocation2 + $0x29] sm:$0xff]
        %v1725 = vld [vmem:[#allocation2 + $0x31] sm:$0xff]
        %v1726 = vld [vmem:[#allocation2 + $0x39] sm:$0xff]
        %v1727 = vld [vmem:[#allocation2 + $0x41] sm:$0xff]
        %v1728 = vld [vmem:[#allocation2 + $0x49] sm:$0xff]
        %v1729 = vld [vmem:[#allocation2 + $0x51] sm:$0xff]
        %v1730 = vld [vmem:[#allocation2 + $0x59] sm:$0xff]
        %v1731 = vld [vmem:[#allocation2 + $0x61] sm:$0xff]
        %v1732 = vld [vmem:[#allocation2 + $0x69] sm:$0xff]
        %v1733 = vld [vmem:[#allocation2 + $0x71] sm:$0xff]
        %v1734 = vld [vmem:[#allocation2 + $0x79] sm:$0xff]
        %v1735 = vld [vmem:[#allocation2 + $0x81] sm:$0xff]
        %v1736 = vld [vmem:[#allocation2 + $0x89] sm:$0xff]
        %v1737 = vld [vmem:[#allocation2 + $0x91] sm:$0xff]
        %v1738 = vld [vmem:[#allocation2 + $0x99] sm:$0xff]
        %v1739 = vld [vmem:[#allocation2 + $0xa1] sm:$0xff]
        %v1740 = vld [vmem:[#allocation2 + $0xa9] sm:$0xff]
        %v1741 = vld [vmem:[#allocation2 + $0xb1] sm:$0xff]
        %v1742 = vld [vmem:[#allocation2 + $0xb9] sm:$0xff]
        %v1743 = vld [vmem:[#allocation2 + $0xc1] sm:$0xff]
        %v1744 = vld [vmem:[#allocation2 + $0xc9] sm:$0xff]
        %v1745 = vld [vmem:[#allocation2 + $0xd1] sm:$0xff]
        %v1746 = vld [vmem:[#allocation2 + $0xd9] sm:$0xff]
        %v1747 = vld [vmem:[#allocation2 + $0xe1] sm:$0xff]
        %v1748 = vld [vmem:[#allocation2 + $0xe9] sm:$0xff]
        %v1749 = vld [vmem:[#allocation2 + $0xf1] sm:$0xff]
        %v1750 = vld [vmem:[#allocation2 + $0xf9] sm:$0xff]
        %v1751 = vld [vmem:[#allocation2 + $0x101] sm:$0xff]
        %v1752 = vld [vmem:[#allocation2 + $0x109] sm:$0xff]
        %v1753 = vld [vmem:[#allocation2 + $0x111] sm:$0xff]
        %v1754 = vld [vmem:[#allocation2 + $0x119] sm:$0xff]
        %v1755 = vld [vmem:[#allocation2 + $0x121] sm:$0xff]
        %v1756 = vld [vmem:[#allocation2 + $0x129] sm:$0xff]
        %v1757 = vld [vmem:[#allocation2 + $0x131] sm:$0xff]
        %v1758 = vld [vmem:[#allocation2 + $0x139] sm:$0xff]
        %v1759 = vld [vmem:[#allocation2 + $0x141] sm:$0xff]
        %v1760 = vld [vmem:[#allocation2 + $0x149] sm:$0xff]
        %v1761 = vld [vmem:[#allocation2 + $0x151] sm:$0xff]
        %v1762 = vld [vmem:[#allocation2 + $0x159] sm:$0xff]
        %v1763 = vld [vmem:[#allocation2 + $0x161] sm:$0xff]
        %v1764 = vld [vmem:[#allocation2 + $0x169] sm:$0xff]
        %v1765 = vld [vmem:[#allocation2 + $0x171] sm:$0xff]
        %v1766 = vld [vmem:[#allocation2 + $0x179] sm:$0xff]
        %v1767 = vld [vmem:[#allocation2 + $0x181] sm:$0xff]
        %v1768 = vld [vmem:[#allocation2 + $0x189] sm:$0xff]
        %v1769 = vld [vmem:[#allocation2 + $0x191] sm:$0xff]
        %v1770 = vld [vmem:[#allocation2 + $0x199] sm:$0xff]
        %v1771 = vld [vmem:[#allocation2 + $0x1a1] sm:$0xff]
        %v1772 = vld [vmem:[#allocation2 + $0x1a9] sm:$0xff]
        %v1773 = vld [vmem:[#allocation2 + $0x1b1] sm:$0xff]
        %v1774 = vld [vmem:[#allocation2 + $0x1b9] sm:$0xff]
        %v1775 = vld [vmem:[#allocation2 + $0x1c1] sm:$0xff]
        %v1776 = vld [vmem:[#allocation2 + $0x1c9] sm:$0xff]
        %v1777 = vld [vmem:[#allocation2 + $0x1d1] sm:$0xff]
        %v1778 = vld [vmem:[#allocation2 + $0x1d9] sm:$0xff]
        %v1779 = vld [vmem:[#allocation2 + $0x1e1] sm:$0xff]
        %v1780 = vld [vmem:[#allocation2 + $0x1e9] sm:$0xff]
        %v1781 = vld [vmem:[#allocation2 + $0x1f1] sm:$0xff]
        %v1782 = vld [vmem:[#allocation2 + $0x1f9] sm:$0xff]
        %v1783 = vld [vmem:[#allocation2 + $0x201] sm:$0xff]
        %v1784 = vld [vmem:[#allocation2 + $0x209] sm:$0xff]
        %v1785 = vld [vmem:[#allocation2 + $0x211] sm:$0xff]
        %v1786 = vld [vmem:[#allocation2 + $0x219] sm:$0xff]
        %v1787 = vld [vmem:[#allocation2 + $0x221] sm:$0xff]
        %v1788 = vld [vmem:[#allocation2 + $0x229] sm:$0xff]
        %v1789 = vld [vmem:[#allocation2 + $0x231] sm:$0xff]
        %v1790 = vld [vmem:[#allocation2 + $0x239] sm:$0xff]
        %v1791 = vld [vmem:[#allocation2 + $0x241] sm:$0xff]
        %v1792 = vld [vmem:[#allocation2 + $0x249] sm:$0xff]
        %v1793 = vld [vmem:[#allocation2 + $0x251] sm:$0xff]
        %v1794 = vld [vmem:[#allocation2 + $0x259] sm:$0xff]
        %v1795 = vld [vmem:[#allocation2 + $0x261] sm:$0xff]
        %v1796 = vld [vmem:[#allocation2 + $0x269] sm:$0xff]
        %v1797 = vld [vmem:[#allocation2 + $0x271] sm:$0xff]
        %v1798 = vld [vmem:[#allocation2 + $0x279] sm:$0xff]
        %v1799 = vld [vmem:[#allocation2 + $0x281] sm:$0xff]
        %v1800 = vld [vmem:[#allocation2 + $0x289] sm:$0xff]
        %v1801 = vld [vmem:[#allocation2 + $0x291] sm:$0xff]
        %v1802 = vld [vmem:[#allocation2 + $0x299] sm:$0xff]
        %v1803 = vld [vmem:[#allocation2 + $0x2a1] sm:$0xff]
        %v1804 = vld [vmem:[#allocation2 + $0x2a9] sm:$0xff]
        %v1805 = vld [vmem:[#allocation2 + $0x2b1] sm:$0xff]
        %v1806 = vld [vmem:[#allocation2 + $0x2b9] sm:$0xff]
        %v1807 = vld [vmem:[#allocation2 + $0x2c1] sm:$0xff]
        %v1808 = vld [vmem:[#allocation2 + $0x2c9] sm:$0xff]
        %v1809 = vld [vmem:[#allocation2 + $0x2d1] sm:$0xff]
        %v1810 = vld [vmem:[#allocation2 + $0x2d9] sm:$0xff]
        %v1811 = vld [vmem:[#allocation2 + $0x2e1] sm:$0xff]
        %v1812 = vld [vmem:[#allocation2 + $0x2e9] sm:$0xff]
        %v1813 = vld [vmem:[#allocation2 + $0x2f1] sm:$0xff]
        %v1814 = vld [vmem:[#allocation2 + $0x2f9] sm:$0xff]
        %v1815 = vld [vmem:[#allocation2 + $0x301] sm:$0xff]
        %v1816 = vld [vmem:[#allocation2 + $0x309] sm:$0xff]
        %v1817 = vld [vmem:[#allocation2 + $0x311] sm:$0xff]
        %v1818 = vld [vmem:[#allocation2 + $0x319] sm:$0xff]
        %v1819 = vld [vmem:[#allocation2 + $0x321] sm:$0xff]
        %v1820 = vld [vmem:[#allocation2 + $0x329] sm:$0xff]
        %v1821 = vld [vmem:[#allocation2 + $0x331] sm:$0xff]
        %v1822 = vld [vmem:[#allocation2 + $0x339] sm:$0xff]
        %v1823 = vld [vmem:[#allocation2 + $0x341] sm:$0xff]
        %v1824 = vld [vmem:[#allocation2 + $0x349] sm:$0xff]
        %v1825 = vld [vmem:[#allocation2 + $0x351] sm:$0xff]
        %v1826 = vld [vmem:[#allocation2 + $0x359] sm:$0x7]
        %v1827 = vmax.f32 %v1611, %v1719
        %v1828 = vmax.f32 %v1612, %v1720
        %v1829 = vmax.f32 %v1613, %v1721
        %v1830 = vmax.f32 %v1614, %v1722
        %v1831 = vmax.f32 %v1615, %v1723
        %v1832 = vmax.f32 %v1616, %v1724
        %v1833 = vmax.f32 %v1617, %v1725
        %v1834 = vmax.f32 %v1618, %v1726
        %v1835 = vmax.f32 %v1619, %v1727
        %v1836 = vmax.f32 %v1620, %v1728
        %v1837 = vmax.f32 %v1621, %v1729
        %v1838 = vmax.f32 %v1622, %v1730
        %v1839 = vmax.f32 %v1623, %v1731
        %v1840 = vmax.f32 %v1624, %v1732
        %v1841 = vmax.f32 %v1625, %v1733
        %v1842 = vmax.f32 %v1626, %v1734
        %v1843 = vmax.f32 %v1627, %v1735
        %v1844 = vmax.f32 %v1628, %v1736
        %v1845 = vmax.f32 %v1629, %v1737
        %v1846 = vmax.f32 %v1630, %v1738
        %v1847 = vmax.f32 %v1631, %v1739
        %v1848 = vmax.f32 %v1632, %v1740
        %v1849 = vmax.f32 %v1633, %v1741
        %v1850 = vmax.f32 %v1634, %v1742
        %v1851 = vmax.f32 %v1635, %v1743
        %v1852 = vmax.f32 %v1636, %v1744
        %v1853 = vmax.f32 %v1637, %v1745
        %v1854 = vmax.f32 %v1638, %v1746
        %v1855 = vmax.f32 %v1639, %v1747
        %v1856 = vmax.f32 %v1640, %v1748
        %v1857 = vmax.f32 %v1641, %v1749
        %v1858 = vmax.f32 %v1642, %v1750
        %v1859 = vmax.f32 %v1643, %v1751
        %v1860 = vmax.f32 %v1644, %v1752
        %v1861 = vmax.f32 %v1645, %v1753
        %v1862 = vmax.f32 %v1646, %v1754
        %v1863 = vmax.f32 %v1647, %v1755
        %v1864 = vmax.f32 %v1648, %v1756
        %v1865 = vmax.f32 %v1649, %v1757
        %v1866 = vmax.f32 %v1650, %v1758
        %v1867 = vmax.f32 %v1651, %v1759
        %v1868 = vmax.f32 %v1652, %v1760
        %v1869 = vmax.f32 %v1653, %v1761
        %v1870 = vmax.f32 %v1654, %v1762
        %v1871 = vmax.f32 %v1655, %v1763
        %v1872 = vmax.f32 %v1656, %v1764
        %v1873 = vmax.f32 %v1657, %v1765
        %v1874 = vmax.f32 %v1658, %v1766
        %v1875 = vmax.f32 %v1659, %v1767
        %v1876 = vmax.f32 %v1660, %v1768
        %v1877 = vmax.f32 %v1661, %v1769
        %v1878 = vmax.f32 %v1662, %v1770
        %v1879 = vmax.f32 %v1663, %v1771
        %v1880 = vmax.f32 %v1664, %v1772
        %v1881 = vmax.f32 %v1665, %v1773
        %v1882 = vmax.f32 %v1666, %v1774
        %v1883 = vmax.f32 %v1667, %v1775
        %v1884 = vmax.f32 %v1668, %v1776
        %v1885 = vmax.f32 %v1669, %v1777
        %v1886 = vmax.f32 %v1670, %v1778
        %v1887 = vmax.f32 %v1671, %v1779
        %v1888 = vmax.f32 %v1672, %v1780
        %v1889 = vmax.f32 %v1673, %v1781
        %v1890 = vmax.f32 %v1674, %v1782
        %v1891 = vmax.f32 %v1675, %v1783
        %v1892 = vmax.f32 %v1676, %v1784
        %v1893 = vmax.f32 %v1677, %v1785
        %v1894 = vmax.f32 %v1678, %v1786
        %v1895 = vmax.f32 %v1679, %v1787
        %v1896 = vmax.f32 %v1680, %v1788
        %v1897 = vmax.f32 %v1681, %v1789
        %v1898 = vmax.f32 %v1682, %v1790
        %v1899 = vmax.f32 %v1683, %v1791
        %v1900 = vmax.f32 %v1684, %v1792
        %v1901 = vmax.f32 %v1685, %v1793
        %v1902 = vmax.f32 %v1686, %v1794
        %v1903 = vmax.f32 %v1687, %v1795
        %v1904 = vmax.f32 %v1688, %v1796
        %v1905 = vmax.f32 %v1689, %v1797
        %v1906 = vmax.f32 %v1690, %v1798
        %v1907 = vmax.f32 %v1691, %v1799
        %v1908 = vmax.f32 %v1692, %v1800
        %v1909 = vmax.f32 %v1693, %v1801
        %v1910 = vmax.f32 %v1694, %v1802
        %v1911 = vmax.f32 %v1695, %v1803
        %v1912 = vmax.f32 %v1696, %v1804
        %v1913 = vmax.f32 %v1697, %v1805
        %v1914 = vmax.f32 %v1698, %v1806
        %v1915 = vmax.f32 %v1699, %v1807
        %v1916 = vmax.f32 %v1700, %v1808
        %v1917 = vmax.f32 %v1701, %v1809
        %v1918 = vmax.f32 %v1702, %v1810
        %v1919 = vmax.f32 %v1703, %v1811
        %v1920 = vmax.f32 %v1704, %v1812
        %v1921 = vmax.f32 %v1705, %v1813
        %v1922 = vmax.f32 %v1706, %v1814
        %v1923 = vmax.f32 %v1707, %v1815
        %v1924 = vmax.f32 %v1708, %v1816
        %v1925 = vmax.f32 %v1709, %v1817
        %v1926 = vmax.f32 %v1710, %v1818
        %v1927 = vmax.f32 %v1711, %v1819
        %v1928 = vmax.f32 %v1712, %v1820
        %v1929 = vmax.f32 %v1713, %v1821
        %v1930 = vmax.f32 %v1714, %v1822
        %v1931 = vmax.f32 %v1715, %v1823
        %v1932 = vmax.f32 %v1716, %v1824
        %v1933 = vmax.f32 %v1717, %v1825
        %v1934 = vmax.f32 %v1718, %v1826
        %v1935 = vld [vmem:[#allocation2 + $0x358] sm:$0xff]
        %v1936 = vld [vmem:[#allocation2 + $0x360] sm:$0xff]
        %v1937 = vld [vmem:[#allocation2 + $0x368] sm:$0xff]
        %v1938 = vld [vmem:[#allocation2 + $0x370] sm:$0xff]
        %v1939 = vld [vmem:[#allocation2 + $0x378] sm:$0x7]
        %v1940 = vld [vmem:[#allocation2 + $0x359] sm:$0xff]
        %v1941 = vld [vmem:[#allocation2 + $0x361] sm:$0xff]
        %v1942 = vld [vmem:[#allocation2 + $0x369] sm:$0xff]
        %v1943 = vld [vmem:[#allocation2 + $0x371] sm:$0xff]
        %v1944 = vld [vmem:[#allocation2 + $0x379] sm:$0x7]
        %v1945 = vmax.f32 %v1935, %v1940
        %v1946 = vmax.f32 %v1936, %v1941
        %v1947 = vmax.f32 %v1937, %v1942
        %v1948 = vmax.f32 %v1938, %v1943
        %v1949 = vmax.f32 %v1939, %v1944
        %v1950 = vmax.f32 %v1827, %v1831
        %v1951 = vmax.f32 %v1828, %v1832
        %v1952 = vmax.f32 %v1829, %v1833
        %v1953 = vmax.f32 %v1830, %v1834
        %v1954 = vmax.f32 %v1831, %v1835
        %v1955 = vmax.f32 %v1832, %v1836
        %v1956 = vmax.f32 %v1833, %v1837
        %v1957 = vmax.f32 %v1834, %v1838
        %v1958 = vmax.f32 %v1835, %v1839
        %v1959 = vmax.f32 %v1836, %v1840
        %v1960 = vmax.f32 %v1837, %v1841
        %v1961 = vmax.f32 %v1838, %v1842
        %v1962 = vmax.f32 %v1839, %v1843
        %v1963 = vmax.f32 %v1840, %v1844
        %v1964 = vmax.f32 %v1841, %v1845
        %v1965 = vmax.f32 %v1842, %v1846
        %v1966 = vmax.f32 %v1843, %v1847
        %v1967 = vmax.f32 %v1844, %v1848
        %v1968 = vmax.f32 %v1845, %v1849
        %v1969 = vmax.f32 %v1846, %v1850
        %v1970 = vmax.f32 %v1847, %v1851
        %v1971 = vmax.f32 %v1848, %v1852
        %v1972 = vmax.f32 %v1849, %v1853
        %v1973 = vmax.f32 %v1850, %v1854
        %v1974 = vmax.f32 %v1851, %v1855
        %v1975 = vmax.f32 %v1852, %v1856
        %v1976 = vmax.f32 %v1853, %v1857
        %v1977 = vmax.f32 %v1854, %v1858
        %v1978 = vmax.f32 %v1855, %v1859
        %v1979 = vmax.f32 %v1856, %v1860
        %v1980 = vmax.f32 %v1857, %v1861
        %v1981 = vmax.f32 %v1858, %v1862
        %v1982 = vmax.f32 %v1859, %v1863
        %v1983 = vmax.f32 %v1860, %v1864
        %v1984 = vmax.f32 %v1861, %v1865
        %v1985 = vmax.f32 %v1862, %v1866
        %v1986 = vmax.f32 %v1863, %v1867
        %v1987 = vmax.f32 %v1864, %v1868
        %v1988 = vmax.f32 %v1865, %v1869
        %v1989 = vmax.f32 %v1866, %v1870
        %v1990 = vmax.f32 %v1867, %v1871
        %v1991 = vmax.f32 %v1868, %v1872
        %v1992 = vmax.f32 %v1869, %v1873
        %v1993 = vmax.f32 %v1870, %v1874
        %v1994 = vmax.f32 %v1871, %v1875
        %v1995 = vmax.f32 %v1872, %v1876
        %v1996 = vmax.f32 %v1873, %v1877
        %v1997 = vmax.f32 %v1874, %v1878
        %v1998 = vmax.f32 %v1875, %v1879
        %v1999 = vmax.f32 %v1876, %v1880
        %v2000 = vmax.f32 %v1877, %v1881
        %v2001 = vmax.f32 %v1878, %v1882
        %v2002 = vmax.f32 %v1879, %v1883
        %v2003 = vmax.f32 %v1880, %v1884
        %v2004 = vmax.f32 %v1881, %v1885
        %v2005 = vmax.f32 %v1882, %v1886
        %v2006 = vmax.f32 %v1883, %v1887
        %v2007 = vmax.f32 %v1884, %v1888
        %v2008 = vmax.f32 %v1885, %v1889
        %v2009 = vmax.f32 %v1886, %v1890
        %v2010 = vmax.f32 %v1887, %v1891
        %v2011 = vmax.f32 %v1888, %v1892
        %v2012 = vmax.f32 %v1889, %v1893
        %v2013 = vmax.f32 %v1890, %v1894
        %v2014 = vmax.f32 %v1891, %v1895
        %v2015 = vmax.f32 %v1892, %v1896
        %v2016 = vmax.f32 %v1893, %v1897
        %v2017 = vmax.f32 %v1894, %v1898
        %v2018 = vmax.f32 %v1895, %v1899
        %v2019 = vmax.f32 %v1896, %v1900
        %v2020 = vmax.f32 %v1897, %v1901
        %v2021 = vmax.f32 %v1898, %v1902
        %v2022 = vmax.f32 %v1899, %v1903
        %v2023 = vmax.f32 %v1900, %v1904
        %v2024 = vmax.f32 %v1901, %v1905
        %v2025 = vmax.f32 %v1902, %v1906
        %v2026 = vmax.f32 %v1903, %v1907
        %v2027 = vmax.f32 %v1904, %v1908
        %v2028 = vmax.f32 %v1905, %v1909
        %v2029 = vmax.f32 %v1906, %v1910
        %v2030 = vmax.f32 %v1907, %v1911
        %v2031 = vmax.f32 %v1908, %v1912
        %v2032 = vmax.f32 %v1909, %v1913
        %v2033 = vmax.f32 %v1910, %v1914
        %v2034 = vmax.f32 %v1911, %v1915
        %v2035 = vmax.f32 %v1912, %v1916
        %v2036 = vmax.f32 %v1913, %v1917
        %v2037 = vmax.f32 %v1914, %v1918
        %v2038 = vmax.f32 %v1915, %v1919
        %v2039 = vmax.f32 %v1916, %v1920
        %v2040 = vmax.f32 %v1917, %v1921
        %v2041 = vmax.f32 %v1918, %v1922
        %v2042 = vmax.f32 %v1919, %v1923
        %v2043 = vmax.f32 %v1920, %v1924
        %v2044 = vmax.f32 %v1921, %v1925
        %v2045 = vmax.f32 %v1922, %v1926
        %v2046 = vmax.f32 %v1923, %v1927
        %v2047 = vmax.f32 %v1924, %v1928
        %v2048 = vmax.f32 %v1925, %v1929
        %v2049 = vmax.f32 %v1926, %v1930
        %v2050 = vmax.f32 %v1927, %v1931
        %v2051 = vmax.f32 %v1928, %v1932
        %v2052 = vmax.f32 %v1929, %v1933
        %v2053 = vmax.f32 %v1930, %v1945
        %v2054 = vmax.f32 %v1931, %v1946
        %v2055 = vmax.f32 %v1932, %v1947
        %v2056 = vmax.f32 %v1933, %v1948
        %v2057 = vmax.f32 %v1934, %v1949
        %v2058 = vld [vmem:[%s3] sm:$0xff]
        %v2059 = vld [vmem:[%s3 + $0x8] sm:$0xff]
        %v2060 = vld [vmem:[%s3 + $0x10] sm:$0xff]
        %v2061 = vld [vmem:[%s3 + $0x18] sm:$0xf]
        %v2062 = vld [vmem:[%s3 + $0x1c] sm:$0xff]
        %v2063 = vld [vmem:[%s3 + $0x24] sm:$0xff]
        %v2064 = vld [vmem:[%s3 + $0x2c] sm:$0xff]
        %v2065 = vld [vmem:[%s3 + $0x34] sm:$0xf]
        %v2066 = vld [vmem:[%s3 + $0x38] sm:$0xff]
        %v2067 = vld [vmem:[%s3 + $0x40] sm:$0xff]
        %v2068 = vld [vmem:[%s3 + $0x48] sm:$0xff]
        %v2069 = vld [vmem:[%s3 + $0x50] sm:$0xf]
        %v2070 = vld [vmem:[%s3 + $0x54] sm:$0xff]
        %v2071 = vld [vmem:[%s3 + $0x5c] sm:$0xff]
        %v2072 = vld [vmem:[%s3 + $0x64] sm:$0xff]
        %v2073 = vld [vmem:[%s3 + $0x6c] sm:$0xf]
        %v2074 = vld [vmem:[%s3 + $0x70] sm:$0xff]
        %v2075 = vld [vmem:[%s3 + $0x78] sm:$0xff]
        %v2076 = vld [vmem:[%s3 + $0x80] sm:$0xff]
        %v2077 = vld [vmem:[%s3 + $0x88] sm:$0xf]
        %v2078 = vld [vmem:[%s3 + $0x8c] sm:$0xff]
        %v2079 = vld [vmem:[%s3 + $0x94] sm:$0xff]
        %v2080 = vld [vmem:[%s3 + $0x9c] sm:$0xff]
        %v2081 = vld [vmem:[%s3 + $0xa4] sm:$0xf]
        %v2082 = vld [vmem:[%s3 + $0xa8] sm:$0xff]
        %v2083 = vld [vmem:[%s3 + $0xb0] sm:$0xff]
        %v2084 = vld [vmem:[%s3 + $0xb8] sm:$0xff]
        %v2085 = vld [vmem:[%s3 + $0xc0] sm:$0xf]
        %v2086 = vld [vmem:[%s3 + $0xc4] sm:$0xff]
        %v2087 = vld [vmem:[%s3 + $0xcc] sm:$0xff]
        %v2088 = vld [vmem:[%s3 + $0xd4] sm:$0xff]
        %v2089 = vld [vmem:[%s3 + $0xdc] sm:$0xf]
        %v2090 = vld [vmem:[%s3 + $0xe0] sm:$0xff]
        %v2091 = vld [vmem:[%s3 + $0xe8] sm:$0xff]
        %v2092 = vld [vmem:[%s3 + $0xf0] sm:$0xff]
        %v2093 = vld [vmem:[%s3 + $0xf8] sm:$0xf]
        %v2094 = vld [vmem:[%s3 + $0xfc] sm:$0xff]
        %v2095 = vld [vmem:[%s3 + $0x104] sm:$0xff]
        %v2096 = vld [vmem:[%s3 + $0x10c] sm:$0xff]
        %v2097 = vld [vmem:[%s3 + $0x114] sm:$0xf]
        %v2098 = vld [vmem:[%s3 + $0x118] sm:$0xff]
        %v2099 = vld [vmem:[%s3 + $0x120] sm:$0xff]
        %v2100 = vld [vmem:[%s3 + $0x128] sm:$0xff]
        %v2101 = vld [vmem:[%s3 + $0x130] sm:$0xf]
        %v2102 = vld [vmem:[%s3 + $0x134] sm:$0xff]
        %v2103 = vld [vmem:[%s3 + $0x13c] sm:$0xff]
        %v2104 = vld [vmem:[%s3 + $0x144] sm:$0xff]
        %v2105 = vld [vmem:[%s3 + $0x14c] sm:$0xf]
        %v2106 = vld [vmem:[%s3 + $0x150] sm:$0xff]
        %v2107 = vld [vmem:[%s3 + $0x158] sm:$0xff]
        %v2108 = vld [vmem:[%s3 + $0x160] sm:$0xff]
        %v2109 = vld [vmem:[%s3 + $0x168] sm:$0xf]
        %v2110 = vld [vmem:[%s3 + $0x16c] sm:$0xff]
        %v2111 = vld [vmem:[%s3 + $0x174] sm:$0xff]
        %v2112 = vld [vmem:[%s3 + $0x17c] sm:$0xff]
        %v2113 = vld [vmem:[%s3 + $0x184] sm:$0xf]
        %v2114 = vld [vmem:[%s3 + $0x188] sm:$0xff]
        %v2115 = vld [vmem:[%s3 + $0x190] sm:$0xff]
        %v2116 = vld [vmem:[%s3 + $0x198] sm:$0xff]
        %v2117 = vld [vmem:[%s3 + $0x1a0] sm:$0xf]
        %v2118 = vld [vmem:[%s3 + $0x1a4] sm:$0xff]
        %v2119 = vld [vmem:[%s3 + $0x1ac] sm:$0xff]
        %v2120 = vld [vmem:[%s3 + $0x1b4] sm:$0xff]
        %v2121 = vld [vmem:[%s3 + $0x1bc] sm:$0xf]
        %v2122 = vld [vmem:[%s3 + $0x1c0] sm:$0xff]
        %v2123 = vld [vmem:[%s3 + $0x1c8] sm:$0xff]
        %v2124 = vld [vmem:[%s3 + $0x1d0] sm:$0xff]
        %v2125 = vld [vmem:[%s3 + $0x1d8] sm:$0xf]
        %v2126 = vld [vmem:[%s3 + $0x1dc] sm:$0xff]
        %v2127 = vld [vmem:[%s3 + $0x1e4] sm:$0xff]
        %v2128 = vld [vmem:[%s3 + $0x1ec] sm:$0xff]
        %v2129 = vld [vmem:[%s3 + $0x1f4] sm:$0xf]
        %v2130 = vld [vmem:[%s3 + $0x1f8] sm:$0xff]
        %v2131 = vld [vmem:[%s3 + $0x200] sm:$0xff]
        %v2132 = vld [vmem:[%s3 + $0x208] sm:$0xff]
        %v2133 = vld [vmem:[%s3 + $0x210] sm:$0xf]
        %v2134 = vld [vmem:[%s3 + $0x214] sm:$0xff]
        %v2135 = vld [vmem:[%s3 + $0x21c] sm:$0xff]
        %v2136 = vld [vmem:[%s3 + $0x224] sm:$0xff]
        %v2137 = vld [vmem:[%s3 + $0x22c] sm:$0xf]
        %v2138 = vld [vmem:[%s3 + $0x230] sm:$0xff]
        %v2139 = vld [vmem:[%s3 + $0x238] sm:$0xff]
        %v2140 = vld [vmem:[%s3 + $0x240] sm:$0xff]
        %v2141 = vld [vmem:[%s3 + $0x248] sm:$0xf]
        %v2142 = vld [vmem:[%s3 + $0x24c] sm:$0xff]
        %v2143 = vld [vmem:[%s3 + $0x254] sm:$0xff]
        %v2144 = vld [vmem:[%s3 + $0x25c] sm:$0xff]
        %v2145 = vld [vmem:[%s3 + $0x264] sm:$0xf]
        %v2146 = vld [vmem:[%s3 + $0x268] sm:$0xff]
        %v2147 = vld [vmem:[%s3 + $0x270] sm:$0xff]
        %v2148 = vld [vmem:[%s3 + $0x278] sm:$0xff]
        %v2149 = vld [vmem:[%s3 + $0x280] sm:$0xf]
        %v2150 = vld [vmem:[%s3 + $0x284] sm:$0xff]
        %v2151 = vld [vmem:[%s3 + $0x28c] sm:$0xff]
        %v2152 = vld [vmem:[%s3 + $0x294] sm:$0xff]
        %v2153 = vld [vmem:[%s3 + $0x29c] sm:$0xf]
        %v2154 = vld [vmem:[%s3 + $0x2a0] sm:$0xff]
        %v2155 = vld [vmem:[%s3 + $0x2a8] sm:$0xff]
        %v2156 = vld [vmem:[%s3 + $0x2b0] sm:$0xff]
        %v2157 = vld [vmem:[%s3 + $0x2b8] sm:$0xf]
        %v2158 = vpack.c.bf16 %v1951, %v1950
        %v2159 = vpack.c.bf16 %v1953, %v1952
        %v2160 = vpack.c.bf16 %v1955, %v1954
        %v2161 = vpack.c.bf16 %v1957, %v1956
        %v2162 = vpack.c.bf16 %v1959, %v1958
        %v2163 = vpack.c.bf16 %v1961, %v1960
        %v2164 = vpack.c.bf16 %v1963, %v1962
        %v2165 = vpack.c.bf16 %v1965, %v1964
        %v2166 = vpack.c.bf16 %v1967, %v1966
        %v2167 = vpack.c.bf16 %v1969, %v1968
        %v2168 = vpack.c.bf16 %v1971, %v1970
        %v2169 = vpack.c.bf16 %v1973, %v1972
        %v2170 = vpack.c.bf16 %v1975, %v1974
        %v2171 = vpack.c.bf16 %v1977, %v1976
        %v2172 = vpack.c.bf16 %v1979, %v1978
        %v2173 = vpack.c.bf16 %v1981, %v1980
        %v2174 = vpack.c.bf16 %v1983, %v1982
        %v2175 = vpack.c.bf16 %v1985, %v1984
        %v2176 = vpack.c.bf16 %v1987, %v1986
        %v2177 = vpack.c.bf16 %v1989, %v1988
        %v2178 = vpack.c.bf16 %v1991, %v1990
        %v2179 = vpack.c.bf16 %v1993, %v1992
        %v2180 = vpack.c.bf16 %v1995, %v1994
        %v2181 = vpack.c.bf16 %v1997, %v1996
        %v2182 = vpack.c.bf16 %v1999, %v1998
        %v2183 = vpack.c.bf16 %v2001, %v2000
        %v2184 = vpack.c.bf16 %v2003, %v2002
        %v2185 = vpack.c.bf16 %v2005, %v2004
        %v2186 = vpack.c.bf16 %v2007, %v2006
        %v2187 = vpack.c.bf16 %v2009, %v2008
        %v2188 = vpack.c.bf16 %v2011, %v2010
        %v2189 = vpack.c.bf16 %v2013, %v2012
        %v2190 = vpack.c.bf16 %v2015, %v2014
        %v2191 = vpack.c.bf16 %v2017, %v2016
        %v2192 = vpack.c.bf16 %v2019, %v2018
        %v2193 = vpack.c.bf16 %v2021, %v2020
        %v2194 = vpack.c.bf16 %v2023, %v2022
        %v2195 = vpack.c.bf16 %v2025, %v2024
        %v2196 = vpack.c.bf16 %v2027, %v2026
        %v2197 = vpack.c.bf16 %v2029, %v2028
        %v2198 = vpack.c.bf16 %v2031, %v2030
        %v2199 = vpack.c.bf16 %v2033, %v2032
        %v2200 = vpack.c.bf16 %v2035, %v2034
        %v2201 = vpack.c.bf16 %v2037, %v2036
        %v2202 = vpack.c.bf16 %v2039, %v2038
        %v2203 = vpack.c.bf16 %v2041, %v2040
        %v2204 = vpack.c.bf16 %v2043, %v2042
        %v2205 = vpack.c.bf16 %v2045, %v2044
        %v2206 = vpack.c.bf16 %v2047, %v2046
        %v2207 = vpack.c.bf16 %v2049, %v2048
        %v2208 = vpack.c.bf16 %v2051, %v2050
        %v2209 = vpack.c.bf16 %v2053, %v2052
        %v2210 = vpack.c.bf16 %v2055, %v2054
        %v2211 = vpack.c.bf16 %v2057, %v2056
        %v2212 = vld [vmem:[%s2] sm:$0x1]
        %v2214 = vlaneseq
        %v2215 = vshrl.u32 %v2214, 7
        %v2216 = vsub.s32 0, %v2215
        %v2217 = vrot.slane %v2212, %v2216
        %v2319 = vunpack.c.l.b16 %v2058
        %v2320 = vunpack.c.h.b16 %v2058
        %v2321 = vunpack.c.l.b16 %v2059
        %v2322 = vunpack.c.h.b16 %v2059
        %v2323 = vunpack.c.l.b16 %v2060
        %v2324 = vunpack.c.h.b16 %v2060
        %v2325 = vunpack.c.l.b16 %v2061
        %v2326 = vunpack.c.l.b16 %v2062
        %v2327 = vunpack.c.h.b16 %v2062
        %v2328 = vunpack.c.l.b16 %v2063
        %v2329 = vunpack.c.h.b16 %v2063
        %v2330 = vunpack.c.l.b16 %v2064
        %v2331 = vunpack.c.h.b16 %v2064
        %v2332 = vunpack.c.l.b16 %v2065
        %v2333 = vunpack.c.l.b16 %v2066
        %v2334 = vunpack.c.h.b16 %v2066
        %v2335 = vunpack.c.l.b16 %v2067
        %v2336 = vunpack.c.h.b16 %v2067
        %v2337 = vunpack.c.l.b16 %v2068
        %v2338 = vunpack.c.h.b16 %v2068
        %v2339 = vunpack.c.l.b16 %v2069
        %v2340 = vunpack.c.l.b16 %v2070
        %v2341 = vunpack.c.h.b16 %v2070
        %v2342 = vunpack.c.l.b16 %v2071
        %v2343 = vunpack.c.h.b16 %v2071
        %v2344 = vunpack.c.l.b16 %v2072
        %v2345 = vunpack.c.h.b16 %v2072
        %v2346 = vunpack.c.l.b16 %v2073
        %v2347 = vunpack.c.l.b16 %v2074
        %v2348 = vunpack.c.h.b16 %v2074
        %v2349 = vunpack.c.l.b16 %v2075
        %v2350 = vunpack.c.h.b16 %v2075
        %v2351 = vunpack.c.l.b16 %v2076
        %v2352 = vunpack.c.h.b16 %v2076
        %v2353 = vunpack.c.l.b16 %v2077
        %v2354 = vunpack.c.l.b16 %v2078
        %v2355 = vunpack.c.h.b16 %v2078
        %v2356 = vunpack.c.l.b16 %v2079
        %v2357 = vunpack.c.h.b16 %v2079
        %v2358 = vunpack.c.l.b16 %v2080
        %v2359 = vunpack.c.h.b16 %v2080
        %v2360 = vunpack.c.l.b16 %v2081
        %v2361 = vunpack.c.l.b16 %v2082
        %v2362 = vunpack.c.h.b16 %v2082
        %v2363 = vunpack.c.l.b16 %v2083
        %v2364 = vunpack.c.h.b16 %v2083
        %v2365 = vunpack.c.l.b16 %v2084
        %v2366 = vunpack.c.h.b16 %v2084
        %v2367 = vunpack.c.l.b16 %v2085
        %v2368 = vunpack.c.l.b16 %v2086
        %v2369 = vunpack.c.h.b16 %v2086
        %v2370 = vunpack.c.l.b16 %v2087
        %v2371 = vunpack.c.h.b16 %v2087
        %v2372 = vunpack.c.l.b16 %v2088
        %v2373 = vunpack.c.h.b16 %v2088
        %v2374 = vunpack.c.l.b16 %v2089
        %v2375 = vunpack.c.l.b16 %v2090
        %v2376 = vunpack.c.h.b16 %v2090
        %v2377 = vunpack.c.l.b16 %v2091
        %v2378 = vunpack.c.h.b16 %v2091
        %v2379 = vunpack.c.l.b16 %v2092
        %v2380 = vunpack.c.h.b16 %v2092
        %v2381 = vunpack.c.l.b16 %v2093
        %v2382 = vunpack.c.l.b16 %v2094
        %v2383 = vunpack.c.h.b16 %v2094
        %v2384 = vunpack.c.l.b16 %v2095
        %v2385 = vunpack.c.h.b16 %v2095
        %v2386 = vunpack.c.l.b16 %v2096
        %v2387 = vunpack.c.h.b16 %v2096
        %v2388 = vunpack.c.l.b16 %v2097
        %v2389 = vunpack.c.l.b16 %v2098
        %v2390 = vunpack.c.h.b16 %v2098
        %v2391 = vunpack.c.l.b16 %v2099
        %v2392 = vunpack.c.h.b16 %v2099
        %v2393 = vunpack.c.l.b16 %v2100
        %v2394 = vunpack.c.h.b16 %v2100
        %v2395 = vunpack.c.l.b16 %v2101
        %v2396 = vunpack.c.l.b16 %v2102
        %v2397 = vunpack.c.h.b16 %v2102
        %v2398 = vunpack.c.l.b16 %v2103
        %v2399 = vunpack.c.h.b16 %v2103
        %v2400 = vunpack.c.l.b16 %v2104
        %v2401 = vunpack.c.h.b16 %v2104
        %v2402 = vunpack.c.l.b16 %v2105
        %v2403 = vunpack.c.l.b16 %v2106
        %v2404 = vunpack.c.h.b16 %v2106
        %v2405 = vunpack.c.l.b16 %v2107
        %v2406 = vunpack.c.h.b16 %v2107
        %v2407 = vunpack.c.l.b16 %v2108
        %v2408 = vunpack.c.h.b16 %v2108
        %v2409 = vunpack.c.l.b16 %v2109
        %v2410 = vunpack.c.l.b16 %v2110
        %v2411 = vunpack.c.h.b16 %v2110
        %v2412 = vunpack.c.l.b16 %v2111
        %v2413 = vunpack.c.h.b16 %v2111
        %v2414 = vunpack.c.l.b16 %v2112
        %v2415 = vunpack.c.h.b16 %v2112
        %v2416 = vunpack.c.l.b16 %v2113
        %v2417 = vunpack.c.l.b16 %v2114
        %v2418 = vunpack.c.h.b16 %v2114
        %v2419 = vunpack.c.l.b16 %v2115
        %v2420 = vunpack.c.h.b16 %v2115
        %v2421 = vunpack.c.l.b16 %v2116
        %v2422 = vunpack.c.h.b16 %v2116
        %v2423 = vunpack.c.l.b16 %v2117
        %v2424 = vunpack.c.l.b16 %v2118
        %v2425 = vunpack.c.h.b16 %v2118
        %v2426 = vunpack.c.l.b16 %v2119
        %v2427 = vunpack.c.h.b16 %v2119
        %v2428 = vunpack.c.l.b16 %v2120
        %v2429 = vunpack.c.h.b16 %v2120
        %v2430 = vunpack.c.l.b16 %v2121
        %v2431 = vunpack.c.l.b16 %v2122
        %v2432 = vunpack.c.h.b16 %v2122
        %v2433 = vunpack.c.l.b16 %v2123
        %v2434 = vunpack.c.h.b16 %v2123
        %v2435 = vunpack.c.l.b16 %v2124
        %v2436 = vunpack.c.h.b16 %v2124
        %v2437 = vunpack.c.l.b16 %v2125
        %v2438 = vunpack.c.l.b16 %v2126
        %v2439 = vunpack.c.h.b16 %v2126
        %v2440 = vunpack.c.l.b16 %v2127
        %v2441 = vunpack.c.h.b16 %v2127
        %v2442 = vunpack.c.l.b16 %v2128
        %v2443 = vunpack.c.h.b16 %v2128
        %v2444 = vunpack.c.l.b16 %v2129
        %v2445 = vunpack.c.l.b16 %v2130
        %v2446 = vunpack.c.h.b16 %v2130
        %v2447 = vunpack.c.l.b16 %v2131
        %v2448 = vunpack.c.h.b16 %v2131
        %v2449 = vunpack.c.l.b16 %v2132
        %v2450 = vunpack.c.h.b16 %v2132
        %v2451 = vunpack.c.l.b16 %v2133
        %v2452 = vunpack.c.l.b16 %v2134
        %v2453 = vunpack.c.h.b16 %v2134
        %v2454 = vunpack.c.l.b16 %v2135
        %v2455 = vunpack.c.h.b16 %v2135
        %v2456 = vunpack.c.l.b16 %v2136
        %v2457 = vunpack.c.h.b16 %v2136
        %v2458 = vunpack.c.l.b16 %v2137
        %v2459 = vunpack.c.l.b16 %v2138
        %v2460 = vunpack.c.h.b16 %v2138
        %v2461 = vunpack.c.l.b16 %v2139
        %v2462 = vunpack.c.h.b16 %v2139
        %v2463 = vunpack.c.l.b16 %v2140
        %v2464 = vunpack.c.h.b16 %v2140
        %v2465 = vunpack.c.l.b16 %v2141
        %v2466 = vunpack.c.l.b16 %v2142
        %v2467 = vunpack.c.h.b16 %v2142
        %v2468 = vunpack.c.l.b16 %v2143
        %v2469 = vunpack.c.h.b16 %v2143
        %v2470 = vunpack.c.l.b16 %v2144
        %v2471 = vunpack.c.h.b16 %v2144
        %v2472 = vunpack.c.l.b16 %v2145
        %v2473 = vunpack.c.l.b16 %v2146
        %v2474 = vunpack.c.h.b16 %v2146
        %v2475 = vunpack.c.l.b16 %v2147
        %v2476 = vunpack.c.h.b16 %v2147
        %v2477 = vunpack.c.l.b16 %v2148
        %v2478 = vunpack.c.h.b16 %v2148
        %v2479 = vunpack.c.l.b16 %v2149
        %v2480 = vunpack.c.l.b16 %v2150
        %v2481 = vunpack.c.h.b16 %v2150
        %v2482 = vunpack.c.l.b16 %v2151
        %v2483 = vunpack.c.h.b16 %v2151
        %v2484 = vunpack.c.l.b16 %v2152
        %v2485 = vunpack.c.h.b16 %v2152
        %v2486 = vunpack.c.l.b16 %v2153
        %v2487 = vunpack.c.l.b16 %v2154
        %v2488 = vunpack.c.h.b16 %v2154
        %v2489 = vunpack.c.l.b16 %v2155
        %v2490 = vunpack.c.h.b16 %v2155
        %v2491 = vunpack.c.l.b16 %v2156
        %v2492 = vunpack.c.h.b16 %v2156
        %v2493 = vunpack.c.l.b16 %v2157
        %v2494 = vpack.c.b16 %v2326, %v2319
        %v2495 = vpack.c.b16 %v2327, %v2320
        %v2496 = vpack.c.b16 %v2328, %v2321
        %v2497 = vpack.c.b16 %v2329, %v2322
        %v2498 = vpack.c.b16 %v2330, %v2323
        %v2499 = vpack.c.b16 %v2331, %v2324
        %v2500 = vpack.c.b16 %v2332, %v2325
        %v2501 = vpack.c.b16 %v2340, %v2333
        %v2502 = vpack.c.b16 %v2341, %v2334
        %v2503 = vpack.c.b16 %v2342, %v2335
        %v2504 = vpack.c.b16 %v2343, %v2336
        %v2505 = vpack.c.b16 %v2344, %v2337
        %v2506 = vpack.c.b16 %v2345, %v2338
        %v2507 = vpack.c.b16 %v2346, %v2339
        %v2508 = vpack.c.b16 %v2354, %v2347
        %v2509 = vpack.c.b16 %v2355, %v2348
        %v2510 = vpack.c.b16 %v2356, %v2349
        %v2511 = vpack.c.b16 %v2357, %v2350
        %v2512 = vpack.c.b16 %v2358, %v2351
        %v2513 = vpack.c.b16 %v2359, %v2352
        %v2514 = vpack.c.b16 %v2360, %v2353
        %v2515 = vpack.c.b16 %v2368, %v2361
        %v2516 = vpack.c.b16 %v2369, %v2362
        %v2517 = vpack.c.b16 %v2370, %v2363
        %v2518 = vpack.c.b16 %v2371, %v2364
        %v2519 = vpack.c.b16 %v2372, %v2365
        %v2520 = vpack.c.b16 %v2373, %v2366
        %v2521 = vpack.c.b16 %v2374, %v2367
        %v2522 = vpack.c.b16 %v2382, %v2375
        %v2523 = vpack.c.b16 %v2383, %v2376
        %v2524 = vpack.c.b16 %v2384, %v2377
        %v2525 = vpack.c.b16 %v2385, %v2378
        %v2526 = vpack.c.b16 %v2386, %v2379
        %v2527 = vpack.c.b16 %v2387, %v2380
        %v2528 = vpack.c.b16 %v2388, %v2381
        %v2529 = vpack.c.b16 %v2396, %v2389
        %v2530 = vpack.c.b16 %v2397, %v2390
        %v2531 = vpack.c.b16 %v2398, %v2391
        %v2532 = vpack.c.b16 %v2399, %v2392
        %v2533 = vpack.c.b16 %v2400, %v2393
        %v2534 = vpack.c.b16 %v2401, %v2394
        %v2535 = vpack.c.b16 %v2402, %v2395
        %v2536 = vpack.c.b16 %v2410, %v2403
        %v2537 = vpack.c.b16 %v2411, %v2404
        %v2538 = vpack.c.b16 %v2412, %v2405
        %v2539 = vpack.c.b16 %v2413, %v2406
        %v2540 = vpack.c.b16 %v2414, %v2407
        %v2541 = vpack.c.b16 %v2415, %v2408
        %v2542 = vpack.c.b16 %v2416, %v2409
        %v2543 = vpack.c.b16 %v2424, %v2417
        %v2544 = vpack.c.b16 %v2425, %v2418
        %v2545 = vpack.c.b16 %v2426, %v2419
        %v2546 = vpack.c.b16 %v2427, %v2420
        %v2547 = vpack.c.b16 %v2428, %v2421
        %v2548 = vpack.c.b16 %v2429, %v2422
        %v2549 = vpack.c.b16 %v2430, %v2423
        %v2550 = vpack.c.b16 %v2438, %v2431
        %v2551 = vpack.c.b16 %v2439, %v2432
        %v2552 = vpack.c.b16 %v2440, %v2433
        %v2553 = vpack.c.b16 %v2441, %v2434
        %v2554 = vpack.c.b16 %v2442, %v2435
        %v2555 = vpack.c.b16 %v2443, %v2436
        %v2556 = vpack.c.b16 %v2444, %v2437
        %v2557 = vpack.c.b16 %v2452, %v2445
        %v2558 = vpack.c.b16 %v2453, %v2446
        %v2559 = vpack.c.b16 %v2454, %v2447
        %v2560 = vpack.c.b16 %v2455, %v2448
        %v2561 = vpack.c.b16 %v2456, %v2449
        %v2562 = vpack.c.b16 %v2457, %v2450
        %v2563 = vpack.c.b16 %v2458, %v2451
        %v2564 = vpack.c.b16 %v2466, %v2459
        %v2565 = vpack.c.b16 %v2467, %v2460
        %v2566 = vpack.c.b16 %v2468, %v2461
        %v2567 = vpack.c.b16 %v2469, %v2462
        %v2568 = vpack.c.b16 %v2470, %v2463
        %v2569 = vpack.c.b16 %v2471, %v2464
        %v2570 = vpack.c.b16 %v2472, %v2465
        %v2571 = vpack.c.b16 %v2480, %v2473
        %v2572 = vpack.c.b16 %v2481, %v2474
        %v2573 = vpack.c.b16 %v2482, %v2475
        %v2574 = vpack.c.b16 %v2483, %v2476
        %v2575 = vpack.c.b16 %v2484, %v2477
        %v2576 = vpack.c.b16 %v2485, %v2478
        %v2577 = vpack.c.b16 %v2486, %v2479
        %v2578 = vpack.c.b16 %v2487, %v2487
        %v2579 = vpack.c.b16 %v2488, %v2488
        %v2580 = vpack.c.b16 %v2489, %v2489
        %v2581 = vpack.c.b16 %v2490, %v2490
        %v2582 = vpack.c.b16 %v2491, %v2491
        %v2583 = vpack.c.b16 %v2492, %v2492
        %v2584 = vpack.c.b16 %v2493, %v2493
        %vm2663 = vcmask 744448
        %v2665 = vsel %vm2663, %v2500, 0
        %v2668 = vsel %vm2663, %v2507, 0
        %v2671 = vsel %vm2663, %v2514, 0
        %v2674 = vsel %vm2663, %v2521, 0
        %v2677 = vsel %vm2663, %v2528, 0
        %v2680 = vsel %vm2663, %v2535, 0
        %v2683 = vsel %vm2663, %v2542, 0
        %v2686 = vsel %vm2663, %v2549, 0
        %v2689 = vsel %vm2663, %v2556, 0
        %v2692 = vsel %vm2663, %v2563, 0
        %v2695 = vsel %vm2663, %v2570, 0
        %v2698 = vsel %vm2663, %v2577, 0
        %v2701 = vsel %vm2663, %v2584, 0
        %vm2703 = vcmask 1044480
        %vm2704 = vcmask 1045504
        %v2705 = vsel %vm2703, 4294967295, 65535
        %v2706 = vsel %vm2704, %v2705, 0
        %v2708 = vand.u32 %v2211, %v2706
        %2710 = vmatprep.subr.bf16.mxu0 0
        %2711 = vmatpush1.bf16.msra.mxu0 %v2158
        %2712 = vmatprep.subr.bf16.mxu0 0
        %2713 = vmatpush1.bf16.msra.mxu0 %v2159
        %2714 = vmatprep.subr.bf16.mxu0 0
        %2715 = vmatpush1.bf16.msra.mxu0 %v2160
        %2716 = vmatprep.subr.bf16.mxu0 0
        %2717 = vmatpush1.bf16.msra.mxu0 %v2161
        %2718 = vmatprep.subr.bf16.mxu0 0
        %2719 = vmatpush1.bf16.msra.mxu0 %v2162
        %2720 = vmatprep.subr.bf16.mxu0 0
        %2721 = vmatpush1.bf16.msra.mxu0 %v2163
        %2722 = vmatprep.subr.bf16.mxu0 0
        %2723 = vmatpush1.bf16.msra.mxu0 %v2164
        %2724 = vmatprep.subr.bf16.mxu0 0
        %2725 = vmatpush1.bf16.msra.mxu0 %v2165
        %2726 = vmatprep.subr.bf16.mxu0 0
        %2727 = vmatpush1.bf16.msra.mxu0 %v2166
        %2728 = vmatprep.subr.bf16.mxu0 0
        %2729 = vmatpush1.bf16.msra.mxu0 %v2167
        %2730 = vmatprep.subr.bf16.mxu0 0
        %2731 = vmatpush1.bf16.msra.mxu0 %v2168
        %2732 = vmatprep.subr.bf16.mxu0 0
        %2733 = vmatpush1.bf16.msra.mxu0 %v2169
        %2734 = vmatprep.subr.bf16.mxu0 0
        %2735 = vmatpush1.bf16.msra.mxu0 %v2170
        %2736 = vmatprep.subr.bf16.mxu0 0
        %2737 = vmatpush1.bf16.msra.mxu0 %v2171
        %2738 = vmatprep.subr.bf16.mxu0 0
        %2739 = vmatpush1.bf16.msra.mxu0 %v2172
        %2740 = vmatprep.subr.bf16.mxu0 0
        %2741 = vmatpush1.bf16.msra.mxu0 %v2173
        %2742 = vmatprep.mubr.bf16.mxu0 %v2495
        %2743 = vmatmul.mubr.bf16.gmra.mrb[0].mxu0 %v2494
        %v2744 = vpop.f32.mrb[0].mxu0
        %v2745 = vadd.f32 %v2217, %v2744
        %v2746 = vpop.f32.mrb[0].mxu0
        %v2747 = vpop.f32.mrb[0].mxu0
        %v2748 = vadd.f32 %v2217, %v2747
        %v2749 = vpop.f32.mrb[0].mxu0
        %2750 = vmatprep.mubr.bf16.mxu0 %v2502
        %2751 = vmatmul.mubr.bf16.gmra.mrb[0].mxu0 %v2501
        %v2752 = vpop.f32.mrb[0].mxu0
        %v2753 = vadd.f32 %v2217, %v2752
        %v2754 = vpop.f32.mrb[0].mxu0
        %v2755 = vpop.f32.mrb[0].mxu0
        %v2756 = vadd.f32 %v2217, %v2755
        %v2757 = vpop.f32.mrb[0].mxu0
        %2758 = vmatprep.mubr.bf16.mxu0 %v2509
        %2759 = vmatmul.mubr.bf16.gmra.mrb[0].mxu0 %v2508
        %v2760 = vpop.f32.mrb[0].mxu0
        %v2761 = vadd.f32 %v2217, %v2760
        %v2762 = vpop.f32.mrb[0].mxu0
        %v2763 = vpop.f32.mrb[0].mxu0
        %v2764 = vadd.f32 %v2217, %v2763
        %v2765 = vpop.f32.mrb[0].mxu0
        %2766 = vmatprep.mubr.bf16.mxu0 %v2516
        %2767 = vmatmul.mubr.bf16.gmra.mrb[0].mxu0 %v2515
        %v2768 = vpop.f32.mrb[0].mxu0
        %v2769 = vadd.f32 %v2217, %v2768
        %v2770 = vpop.f32.mrb[0].mxu0
        %v2771 = vpop.f32.mrb[0].mxu0
        %v2772 = vadd.f32 %v2217, %v2771
        %v2773 = vpop.f32.mrb[0].mxu0
        %2774 = vmatprep.mubr.bf16.mxu0 %v2523
        %2775 = vmatmul.mubr.bf16.gmra.mrb[0].mxu0 %v2522
        %v2776 = vpop.f32.mrb[0].mxu0
        %v2777 = vadd.f32 %v2217, %v2776
        %v2778 = vpop.f32.mrb[0].mxu0
        %v2779 = vpop.f32.mrb[0].mxu0
        %v2780 = vadd.f32 %v2217, %v2779
        %v2781 = vpop.f32.mrb[0].mxu0
        %2782 = vmatprep.mubr.bf16.mxu0 %v2530
        %2783 = vmatmul.mubr.bf16.gmra.mrb[0].mxu0 %v2529
        %v2784 = vpop.f32.mrb[0].mxu0
        %v2785 = vadd.f32 %v2217, %v2784
        %v2786 = vpop.f32.mrb[0].mxu0
        %v2787 = vpop.f32.mrb[0].mxu0
        %v2788 = vadd.f32 %v2217, %v2787
        %v2789 = vpop.f32.mrb[0].mxu0
        %2790 = vmatprep.mubr.bf16.mxu0 %v2537
        %2791 = vmatmul.mubr.bf16.gmra.mrb[0].mxu0 %v2536
        %v2792 = vpop.f32.mrb[0].mxu0
        %v2793 = vadd.f32 %v2217, %v2792
        %v2794 = vpop.f32.mrb[0].mxu0
        %v2795 = vpop.f32.mrb[0].mxu0
        %v2796 = vadd.f32 %v2217, %v2795
        %v2797 = vpop.f32.mrb[0].mxu0
        %2798 = vmatprep.mubr.bf16.mxu0 %v2544
        %2799 = vmatmul.mubr.bf16.gmra.mrb[0].mxu0 %v2543
        %v2800 = vpop.f32.mrb[0].mxu0
        %v2801 = vadd.f32 %v2217, %v2800
        %v2802 = vpop.f32.mrb[0].mxu0
        %v2803 = vpop.f32.mrb[0].mxu0
        %v2804 = vadd.f32 %v2217, %v2803
        %v2805 = vpop.f32.mrb[0].mxu0
        %2806 = vmatprep.mubr.bf16.mxu0 %v2551
        %2807 = vmatmul.mubr.bf16.gmra.mrb[0].mxu0 %v2550
        %v2808 = vpop.f32.mrb[0].mxu0
        %v2809 = vadd.f32 %v2217, %v2808
        %v2810 = vpop.f32.mrb[0].mxu0
        %v2811 = vpop.f32.mrb[0].mxu0
        %v2812 = vadd.f32 %v2217, %v2811
        %v2813 = vpop.f32.mrb[0].mxu0
        %2814 = vmatprep.mubr.bf16.mxu0 %v2558
        %2815 = vmatmul.mubr.bf16.gmra.mrb[0].mxu0 %v2557
        %v2816 = vpop.f32.mrb[0].mxu0
        %v2817 = vadd.f32 %v2217, %v2816
        %v2818 = vpop.f32.mrb[0].mxu0
        %v2819 = vpop.f32.mrb[0].mxu0
        %v2820 = vadd.f32 %v2217, %v2819
        %v2821 = vpop.f32.mrb[0].mxu0
        %2822 = vmatprep.mubr.bf16.mxu0 %v2565
        %2823 = vmatmul.mubr.bf16.gmra.mrb[0].mxu0 %v2564
        %v2824 = vpop.f32.mrb[0].mxu0
        %v2825 = vadd.f32 %v2217, %v2824
        %v2826 = vpop.f32.mrb[0].mxu0
        %v2827 = vpop.f32.mrb[0].mxu0
        %v2828 = vadd.f32 %v2217, %v2827
        %v2829 = vpop.f32.mrb[0].mxu0
        %2830 = vmatprep.mubr.bf16.mxu0 %v2572
        %2831 = vmatmul.mubr.bf16.gmra.mrb[0].mxu0 %v2571
        %v2832 = vpop.f32.mrb[0].mxu0
        %v2833 = vadd.f32 %v2217, %v2832
        %v2834 = vpop.f32.mrb[0].mxu0
        %v2835 = vpop.f32.mrb[0].mxu0
        %v2836 = vadd.f32 %v2217, %v2835
        %v2837 = vpop.f32.mrb[0].mxu0
        %2838 = vmatprep.mubr.bf16.mxu0 %v2579
        %2839 = vmatmul.mubr.bf16.gmra.mrb[0].mxu0 %v2578
        %v2840 = vpop.f32.mrb[0].mxu0
        %v2841 = vadd.f32 %v2217, %v2840
        %v2842 = vpop.f32.mrb[0].mxu0
        %v2843 = vpop.f32.mrb[0].mxu0
        %v2844 = vpop.f32.mrb[0].mxu0
        %2845 = vdwg.mxu0
        %2846 = vmatprep.subr.bf16.mxu0 0
        %2847 = vmatpush1.bf16.msra.mxu0 %v2174
        %2848 = vmatprep.subr.bf16.mxu0 0
        %2849 = vmatpush1.bf16.msra.mxu0 %v2175
        %2850 = vmatprep.subr.bf16.mxu0 0
        %2851 = vmatpush1.bf16.msra.mxu0 %v2176
        %2852 = vmatprep.subr.bf16.mxu0 0
        %2853 = vmatpush1.bf16.msra.mxu0 %v2177
        %2854 = vmatprep.subr.bf16.mxu0 0
        %2855 = vmatpush1.bf16.msra.mxu0 %v2178
        %2856 = vmatprep.subr.bf16.mxu0 0
        %2857 = vmatpush1.bf16.msra.mxu0 %v2179
        %2858 = vmatprep.subr.bf16.mxu0 0
        %2859 = vmatpush1.bf16.msra.mxu0 %v2180
        %2860 = vmatprep.subr.bf16.mxu0 0
        %2861 = vmatpush1.bf16.msra.mxu0 %v2181
        %2862 = vmatprep.subr.bf16.mxu0 0
        %2863 = vmatpush1.bf16.msra.mxu0 %v2182
        %2864 = vmatprep.subr.bf16.mxu0 0
        %2865 = vmatpush1.bf16.msra.mxu0 %v2183
        %2866 = vmatprep.subr.bf16.mxu0 0
        %2867 = vmatpush1.bf16.msra.mxu0 %v2184
        %2868 = vmatprep.subr.bf16.mxu0 0
        %2869 = vmatpush1.bf16.msra.mxu0 %v2185
        %2870 = vmatprep.subr.bf16.mxu0 0
        %2871 = vmatpush1.bf16.msra.mxu0 %v2186
        %2872 = vmatprep.subr.bf16.mxu0 0
        %2873 = vmatpush1.bf16.msra.mxu0 %v2187
        %2874 = vmatprep.subr.bf16.mxu0 0
        %2875 = vmatpush1.bf16.msra.mxu0 %v2188
        %2876 = vmatprep.subr.bf16.mxu0 0
        %2877 = vmatpush1.bf16.msra.mxu0 %v2189
        %2878 = vmatprep.mubr.bf16.mxu0 %v2497
        %2879 = vmatmul.mubr.bf16.gmra.mrb[0].mxu0 %v2496
        %v2880 = vpop.f32.mrb[0].mxu0
        %v2881 = vadd.f32 %v2745, %v2880
        %v2882 = vpop.f32.mrb[0].mxu0
        %v2883 = vpop.f32.mrb[0].mxu0
        %v2884 = vadd.f32 %v2748, %v2883
        %v2885 = vpop.f32.mrb[0].mxu0
        %2886 = vmatprep.mubr.bf16.mxu0 %v2504
        %2887 = vmatmul.mubr.bf16.gmra.mrb[0].mxu0 %v2503
        %v2888 = vpop.f32.mrb[0].mxu0
        %v2889 = vadd.f32 %v2753, %v2888
        %v2890 = vpop.f32.mrb[0].mxu0
        %v2891 = vpop.f32.mrb[0].mxu0
        %v2892 = vadd.f32 %v2756, %v2891
        %v2893 = vpop.f32.mrb[0].mxu0
        %2894 = vmatprep.mubr.bf16.mxu0 %v2511
        %2895 = vmatmul.mubr.bf16.gmra.mrb[0].mxu0 %v2510
        %v2896 = vpop.f32.mrb[0].mxu0
        %v2897 = vadd.f32 %v2761, %v2896
        %v2898 = vpop.f32.mrb[0].mxu0
        %v2899 = vpop.f32.mrb[0].mxu0
        %v2900 = vadd.f32 %v2764, %v2899
        %v2901 = vpop.f32.mrb[0].mxu0
        %2902 = vmatprep.mubr.bf16.mxu0 %v2518
        %2903 = vmatmul.mubr.bf16.gmra.mrb[0].mxu0 %v2517
        %v2904 = vpop.f32.mrb[0].mxu0
        %v2905 = vadd.f32 %v2769, %v2904
        %v2906 = vpop.f32.mrb[0].mxu0
        %v2907 = vpop.f32.mrb[0].mxu0
        %v2908 = vadd.f32 %v2772, %v2907
        %v2909 = vpop.f32.mrb[0].mxu0
        %2910 = vmatprep.mubr.bf16.mxu0 %v2525
        %2911 = vmatmul.mubr.bf16.gmra.mrb[0].mxu0 %v2524
        %v2912 = vpop.f32.mrb[0].mxu0
        %v2913 = vadd.f32 %v2777, %v2912
        %v2914 = vpop.f32.mrb[0].mxu0
        %v2915 = vpop.f32.mrb[0].mxu0
        %v2916 = vadd.f32 %v2780, %v2915
        %v2917 = vpop.f32.mrb[0].mxu0
        %2918 = vmatprep.mubr.bf16.mxu0 %v2532
        %2919 = vmatmul.mubr.bf16.gmra.mrb[0].mxu0 %v2531
        %v2920 = vpop.f32.mrb[0].mxu0
        %v2921 = vadd.f32 %v2785, %v2920
        %v2922 = vpop.f32.mrb[0].mxu0
        %v2923 = vpop.f32.mrb[0].mxu0
        %v2924 = vadd.f32 %v2788, %v2923
        %v2925 = vpop.f32.mrb[0].mxu0
        %2926 = vmatprep.mubr.bf16.mxu0 %v2539
        %2927 = vmatmul.mubr.bf16.gmra.mrb[0].mxu0 %v2538
        %v2928 = vpop.f32.mrb[0].mxu0
        %v2929 = vadd.f32 %v2793, %v2928
        %v2930 = vpop.f32.mrb[0].mxu0
        %v2931 = vpop.f32.mrb[0].mxu0
        %v2932 = vadd.f32 %v2796, %v2931
        %v2933 = vpop.f32.mrb[0].mxu0
        %2934 = vmatprep.mubr.bf16.mxu0 %v2546
        %2935 = vmatmul.mubr.bf16.gmra.mrb[0].mxu0 %v2545
        %v2936 = vpop.f32.mrb[0].mxu0
        %v2937 = vadd.f32 %v2801, %v2936
        %v2938 = vpop.f32.mrb[0].mxu0
        %v2939 = vpop.f32.mrb[0].mxu0
        %v2940 = vadd.f32 %v2804, %v2939
        %v2941 = vpop.f32.mrb[0].mxu0
        %2942 = vmatprep.mubr.bf16.mxu0 %v2553
        %2943 = vmatmul.mubr.bf16.gmra.mrb[0].mxu0 %v2552
        %v2944 = vpop.f32.mrb[0].mxu0
        %v2945 = vadd.f32 %v2809, %v2944
        %v2946 = vpop.f32.mrb[0].mxu0
        %v2947 = vpop.f32.mrb[0].mxu0
        %v2948 = vadd.f32 %v2812, %v2947
        %v2949 = vpop.f32.mrb[0].mxu0
        %2950 = vmatprep.mubr.bf16.mxu0 %v2560
        %2951 = vmatmul.mubr.bf16.gmra.mrb[0].mxu0 %v2559
        %v2952 = vpop.f32.mrb[0].mxu0
        %v2953 = vadd.f32 %v2817, %v2952
        %v2954 = vpop.f32.mrb[0].mxu0
        %v2955 = vpop.f32.mrb[0].mxu0
        %v2956 = vadd.f32 %v2820, %v2955
        %v2957 = vpop.f32.mrb[0].mxu0
        %2958 = vmatprep.mubr.bf16.mxu0 %v2567
        %2959 = vmatmul.mubr.bf16.gmra.mrb[0].mxu0 %v2566
        %v2960 = vpop.f32.mrb[0].mxu0
        %v2961 = vadd.f32 %v2825, %v2960
        %v2962 = vpop.f32.mrb[0].mxu0
        %v2963 = vpop.f32.mrb[0].mxu0
        %v2964 = vadd.f32 %v2828, %v2963
        %v2965 = vpop.f32.mrb[0].mxu0
        %2966 = vmatprep.mubr.bf16.mxu0 %v2574
        %2967 = vmatmul.mubr.bf16.gmra.mrb[0].mxu0 %v2573
        %v2968 = vpop.f32.mrb[0].mxu0
        %v2969 = vadd.f32 %v2833, %v2968
        %v2970 = vpop.f32.mrb[0].mxu0
        %v2971 = vpop.f32.mrb[0].mxu0
        %v2972 = vadd.f32 %v2836, %v2971
        %v2973 = vpop.f32.mrb[0].mxu0
        %2974 = vmatprep.mubr.bf16.mxu0 %v2581
        %2975 = vmatmul.mubr.bf16.gmra.mrb[0].mxu0 %v2580
        %v2976 = vpop.f32.mrb[0].mxu0
        %v2977 = vadd.f32 %v2841, %v2976
        %v2978 = vpop.f32.mrb[0].mxu0
        %v2979 = vpop.f32.mrb[0].mxu0
        %v2980 = vpop.f32.mrb[0].mxu0
        %2981 = vdwg.mxu0
        %2982 = vmatprep.subr.bf16.mxu0 0
        %2983 = vmatpush1.bf16.msra.mxu0 %v2190
        %2984 = vmatprep.subr.bf16.mxu0 0
        %2985 = vmatpush1.bf16.msra.mxu0 %v2191
        %2986 = vmatprep.subr.bf16.mxu0 0
        %2987 = vmatpush1.bf16.msra.mxu0 %v2192
        %2988 = vmatprep.subr.bf16.mxu0 0
        %2989 = vmatpush1.bf16.msra.mxu0 %v2193
        %2990 = vmatprep.subr.bf16.mxu0 0
        %2991 = vmatpush1.bf16.msra.mxu0 %v2194
        %2992 = vmatprep.subr.bf16.mxu0 0
        %2993 = vmatpush1.bf16.msra.mxu0 %v2195
        %2994 = vmatprep.subr.bf16.mxu0 0
        %2995 = vmatpush1.bf16.msra.mxu0 %v2196
        %2996 = vmatprep.subr.bf16.mxu0 0
        %2997 = vmatpush1.bf16.msra.mxu0 %v2197
        %2998 = vmatprep.subr.bf16.mxu0 0
        %2999 = vmatpush1.bf16.msra.mxu0 %v2198
        %3000 = vmatprep.subr.bf16.mxu0 0
        %3001 = vmatpush1.bf16.msra.mxu0 %v2199
        %3002 = vmatprep.subr.bf16.mxu0 0
        %3003 = vmatpush1.bf16.msra.mxu0 %v2200
        %3004 = vmatprep.subr.bf16.mxu0 0
        %3005 = vmatpush1.bf16.msra.mxu0 %v2201
        %3006 = vmatprep.subr.bf16.mxu0 0
        %3007 = vmatpush1.bf16.msra.mxu0 %v2202
        %3008 = vmatprep.subr.bf16.mxu0 0
        %3009 = vmatpush1.bf16.msra.mxu0 %v2203
        %3010 = vmatprep.subr.bf16.mxu0 0
        %3011 = vmatpush1.bf16.msra.mxu0 %v2204
        %3012 = vmatprep.subr.bf16.mxu0 0
        %3013 = vmatpush1.bf16.msra.mxu0 %v2205
        %3014 = vmatprep.mubr.bf16.mxu0 %v2499
        %3015 = vmatmul.mubr.bf16.gmra.mrb[0].mxu0 %v2498
        %v3016 = vpop.f32.mrb[0].mxu0
        %v3017 = vadd.f32 %v2881, %v3016
        %v3018 = vpop.f32.mrb[0].mxu0
        %v3019 = vpop.f32.mrb[0].mxu0
        %v3020 = vadd.f32 %v2884, %v3019
        %v3021 = vpop.f32.mrb[0].mxu0
        %3022 = vmatprep.mubr.bf16.mxu0 %v2506
        %3023 = vmatmul.mubr.bf16.gmra.mrb[0].mxu0 %v2505
        %v3024 = vpop.f32.mrb[0].mxu0
        %v3025 = vadd.f32 %v2889, %v3024
        %v3026 = vpop.f32.mrb[0].mxu0
        %v3027 = vpop.f32.mrb[0].mxu0
        %v3028 = vadd.f32 %v2892, %v3027
        %v3029 = vpop.f32.mrb[0].mxu0
        %3030 = vmatprep.mubr.bf16.mxu0 %v2513
        %3031 = vmatmul.mubr.bf16.gmra.mrb[0].mxu0 %v2512
        %v3032 = vpop.f32.mrb[0].mxu0
        %v3033 = vadd.f32 %v2897, %v3032
        %v3034 = vpop.f32.mrb[0].mxu0
        %v3035 = vpop.f32.mrb[0].mxu0
        %v3036 = vadd.f32 %v2900, %v3035
        %v3037 = vpop.f32.mrb[0].mxu0
        %3038 = vmatprep.mubr.bf16.mxu0 %v2520
        %3039 = vmatmul.mubr.bf16.gmra.mrb[0].mxu0 %v2519
        %v3040 = vpop.f32.mrb[0].mxu0
        %v3041 = vadd.f32 %v2905, %v3040
        %v3042 = vpop.f32.mrb[0].mxu0
        %v3043 = vpop.f32.mrb[0].mxu0
        %v3044 = vadd.f32 %v2908, %v3043
        %v3045 = vpop.f32.mrb[0].mxu0
        %3046 = vmatprep.mubr.bf16.mxu0 %v2527
        %3047 = vmatmul.mubr.bf16.gmra.mrb[0].mxu0 %v2526
        %v3048 = vpop.f32.mrb[0].mxu0
        %v3049 = vadd.f32 %v2913, %v3048
        %v3050 = vpop.f32.mrb[0].mxu0
        %v3051 = vpop.f32.mrb[0].mxu0
        %v3052 = vadd.f32 %v2916, %v3051
        %v3053 = vpop.f32.mrb[0].mxu0
        %3054 = vmatprep.mubr.bf16.mxu0 %v2534
        %3055 = vmatmul.mubr.bf16.gmra.mrb[0].mxu0 %v2533
        %v3056 = vpop.f32.mrb[0].mxu0
        %v3057 = vadd.f32 %v2921, %v3056
        %v3058 = vpop.f32.mrb[0].mxu0
        %v3059 = vpop.f32.mrb[0].mxu0
        %v3060 = vadd.f32 %v2924, %v3059
        %v3061 = vpop.f32.mrb[0].mxu0
        %3062 = vmatprep.mubr.bf16.mxu0 %v2541
        %3063 = vmatmul.mubr.bf16.gmra.mrb[0].mxu0 %v2540
        %v3064 = vpop.f32.mrb[0].mxu0
        %v3065 = vadd.f32 %v2929, %v3064
        %v3066 = vpop.f32.mrb[0].mxu0
        %v3067 = vpop.f32.mrb[0].mxu0
        %v3068 = vadd.f32 %v2932, %v3067
        %v3069 = vpop.f32.mrb[0].mxu0
        %3070 = vmatprep.mubr.bf16.mxu0 %v2548
        %3071 = vmatmul.mubr.bf16.gmra.mrb[0].mxu0 %v2547
        %v3072 = vpop.f32.mrb[0].mxu0
        %v3073 = vadd.f32 %v2937, %v3072
        %v3074 = vpop.f32.mrb[0].mxu0
        %v3075 = vpop.f32.mrb[0].mxu0
        %v3076 = vadd.f32 %v2940, %v3075
        %v3077 = vpop.f32.mrb[0].mxu0
        %3078 = vmatprep.mubr.bf16.mxu0 %v2555
        %3079 = vmatmul.mubr.bf16.gmra.mrb[0].mxu0 %v2554
        %v3080 = vpop.f32.mrb[0].mxu0
        %v3081 = vadd.f32 %v2945, %v3080
        %v3082 = vpop.f32.mrb[0].mxu0
        %v3083 = vpop.f32.mrb[0].mxu0
        %v3084 = vadd.f32 %v2948, %v3083
        %v3085 = vpop.f32.mrb[0].mxu0
        %3086 = vmatprep.mubr.bf16.mxu0 %v2562
        %3087 = vmatmul.mubr.bf16.gmra.mrb[0].mxu0 %v2561
        %v3088 = vpop.f32.mrb[0].mxu0
        %v3089 = vadd.f32 %v2953, %v3088
        %v3090 = vpop.f32.mrb[0].mxu0
        %v3091 = vpop.f32.mrb[0].mxu0
        %v3092 = vadd.f32 %v2956, %v3091
        %v3093 = vpop.f32.mrb[0].mxu0
        %3094 = vmatprep.mubr.bf16.mxu0 %v2569
        %3095 = vmatmul.mubr.bf16.gmra.mrb[0].mxu0 %v2568
        %v3096 = vpop.f32.mrb[0].mxu0
        %v3097 = vadd.f32 %v2961, %v3096
        %v3098 = vpop.f32.mrb[0].mxu0
        %v3099 = vpop.f32.mrb[0].mxu0
        %v3100 = vadd.f32 %v2964, %v3099
        %v3101 = vpop.f32.mrb[0].mxu0
        %3102 = vmatprep.mubr.bf16.mxu0 %v2576
        %3103 = vmatmul.mubr.bf16.gmra.mrb[0].mxu0 %v2575
        %v3104 = vpop.f32.mrb[0].mxu0
        %v3105 = vadd.f32 %v2969, %v3104
        %v3106 = vpop.f32.mrb[0].mxu0
        %v3107 = vpop.f32.mrb[0].mxu0
        %v3108 = vadd.f32 %v2972, %v3107
        %v3109 = vpop.f32.mrb[0].mxu0
        %3110 = vmatprep.mubr.bf16.mxu0 %v2583
        %3111 = vmatmul.mubr.bf16.gmra.mrb[0].mxu0 %v2582
        %v3112 = vpop.f32.mrb[0].mxu0
        %v3113 = vadd.f32 %v2977, %v3112
        %v3114 = vpop.f32.mrb[0].mxu0
        %v3115 = vpop.f32.mrb[0].mxu0
        %v3116 = vpop.f32.mrb[0].mxu0
        %3117 = vdwg.mxu0
        %3118 = vmatprep.subr.bf16.mxu0 0
        %3119 = vmatpush1.bf16.msra.mxu0 %v2206
        %3120 = vmatprep.subr.bf16.mxu0 0
        %3121 = vmatpush1.bf16.msra.mxu0 %v2207
        %3122 = vmatprep.subr.bf16.mxu0 0
        %3123 = vmatpush1.bf16.msra.mxu0 %v2208
        %3124 = vmatprep.subr.bf16.mxu0 0
        %3125 = vmatpush1.bf16.msra.mxu0 %v2209
        %3126 = vmatprep.subr.bf16.mxu0 0
        %3127 = vmatpush1.bf16.msra.mxu0 %v2210
        %3128 = vmatprep.subr.bf16.mxu0 0
        %3129 = vmatpush1.bf16.msra.mxu0 %v2708
        %3130 = vmatprep.subr.bf16.mxu0 0
        %3131 = vmatpush1.bf16.msra.mxu0 0
        %3132 = vmatprep.subr.bf16.mxu0 0
        %3133 = vmatpush1.bf16.msra.mxu0 0
        %3134 = vmatprep.subr.bf16.mxu0 0
        %3135 = vmatpush1.bf16.msra.mxu0 0
        %3136 = vmatprep.subr.bf16.mxu0 0
        %3137 = vmatpush1.bf16.msra.mxu0 0
        %3138 = vmatprep.subr.bf16.mxu0 0
        %3139 = vmatpush1.bf16.msra.mxu0 0
        %3140 = vmatprep.subr.bf16.mxu0 0
        %3141 = vmatpush1.bf16.msra.mxu0 0
        %3142 = vmatprep.subr.bf16.mxu0 0
        %3143 = vmatpush1.bf16.msra.mxu0 0
        %3144 = vmatprep.subr.bf16.mxu0 0
        %3145 = vmatpush1.bf16.msra.mxu0 0
        %3146 = vmatprep.subr.bf16.mxu0 0
        %3147 = vmatpush1.bf16.msra.mxu0 0
        %3148 = vmatprep.subr.bf16.mxu0 0
        %3149 = vmatpush1.bf16.msra.mxu0 0
        %3150 = vmatprep.mubr.bf16.mxu0 0
        %3151 = vmatmul.mubr.bf16.gmra.mrb[0].mxu0 %v2665
        %v3152 = vpop.f32.mrb[0].mxu0
        %v3153 = vadd.f32 %v3017, %v3152
        %v3154 = vpop.f32.mrb[0].mxu0
        %v3155 = vpop.f32.mrb[0].mxu0
        %v3156 = vadd.f32 %v3020, %v3155
        %v3157 = vpop.f32.mrb[0].mxu0
        %3158 = vmatprep.mubr.bf16.mxu0 0
        %3159 = vmatmul.mubr.bf16.gmra.mrb[0].mxu0 %v2668
        %v3160 = vpop.f32.mrb[0].mxu0
        %v3161 = vadd.f32 %v3025, %v3160
        %v3162 = vpop.f32.mrb[0].mxu0
        %v3163 = vpop.f32.mrb[0].mxu0
        %v3164 = vadd.f32 %v3028, %v3163
        %v3165 = vpop.f32.mrb[0].mxu0
        %3166 = vmatprep.mubr.bf16.mxu0 0
        %3167 = vmatmul.mubr.bf16.gmra.mrb[0].mxu0 %v2671
        %v3168 = vpop.f32.mrb[0].mxu0
        %v3169 = vadd.f32 %v3033, %v3168
        %v3170 = vpop.f32.mrb[0].mxu0
        %v3171 = vpop.f32.mrb[0].mxu0
        %v3172 = vadd.f32 %v3036, %v3171
        %v3173 = vpop.f32.mrb[0].mxu0
        %3174 = vmatprep.mubr.bf16.mxu0 0
        %3175 = vmatmul.mubr.bf16.gmra.mrb[0].mxu0 %v2674
        %v3176 = vpop.f32.mrb[0].mxu0
        %v3177 = vadd.f32 %v3041, %v3176
        %v3178 = vpop.f32.mrb[0].mxu0
        %v3179 = vpop.f32.mrb[0].mxu0
        %v3180 = vadd.f32 %v3044, %v3179
        %v3181 = vpop.f32.mrb[0].mxu0
        %3182 = vmatprep.mubr.bf16.mxu0 0
        %3183 = vmatmul.mubr.bf16.gmra.mrb[0].mxu0 %v2677
        %v3184 = vpop.f32.mrb[0].mxu0
        %v3185 = vadd.f32 %v3049, %v3184
        %v3186 = vpop.f32.mrb[0].mxu0
        %v3187 = vpop.f32.mrb[0].mxu0
        %v3188 = vadd.f32 %v3052, %v3187
        %v3189 = vpop.f32.mrb[0].mxu0
        %3190 = vmatprep.mubr.bf16.mxu0 0
        %3191 = vmatmul.mubr.bf16.gmra.mrb[0].mxu0 %v2680
        %v3192 = vpop.f32.mrb[0].mxu0
        %v3193 = vadd.f32 %v3057, %v3192
        %v3194 = vpop.f32.mrb[0].mxu0
        %v3195 = vpop.f32.mrb[0].mxu0
        %v3196 = vadd.f32 %v3060, %v3195
        %v3197 = vpop.f32.mrb[0].mxu0
        %3198 = vmatprep.mubr.bf16.mxu0 0
        %3199 = vmatmul.mubr.bf16.gmra.mrb[0].mxu0 %v2683
        %v3200 = vpop.f32.mrb[0].mxu0
        %v3201 = vadd.f32 %v3065, %v3200
        %v3202 = vpop.f32.mrb[0].mxu0
        %v3203 = vpop.f32.mrb[0].mxu0
        %v3204 = vadd.f32 %v3068, %v3203
        %v3205 = vpop.f32.mrb[0].mxu0
        %3206 = vmatprep.mubr.bf16.mxu0 0
        %3207 = vmatmul.mubr.bf16.gmra.mrb[0].mxu0 %v2686
        %v3208 = vpop.f32.mrb[0].mxu0
        %v3209 = vadd.f32 %v3073, %v3208
        %v3210 = vpop.f32.mrb[0].mxu0
        %v3211 = vpop.f32.mrb[0].mxu0
        %v3212 = vadd.f32 %v3076, %v3211
        %v3213 = vpop.f32.mrb[0].mxu0
        %3214 = vmatprep.mubr.bf16.mxu0 0
        %3215 = vmatmul.mubr.bf16.gmra.mrb[0].mxu0 %v2689
        %v3216 = vpop.f32.mrb[0].mxu0
        %v3217 = vadd.f32 %v3081, %v3216
        %v3218 = vpop.f32.mrb[0].mxu0
        %v3219 = vpop.f32.mrb[0].mxu0
        %v3220 = vadd.f32 %v3084, %v3219
        %v3221 = vpop.f32.mrb[0].mxu0
        %3222 = vmatprep.mubr.bf16.mxu0 0
        %3223 = vmatmul.mubr.bf16.gmra.mrb[0].mxu0 %v2692
        %v3224 = vpop.f32.mrb[0].mxu0
        %v3225 = vadd.f32 %v3089, %v3224
        %v3226 = vpop.f32.mrb[0].mxu0
        %v3227 = vpop.f32.mrb[0].mxu0
        %v3228 = vadd.f32 %v3092, %v3227
        %v3229 = vpop.f32.mrb[0].mxu0
        %3230 = vmatprep.mubr.bf16.mxu0 0
        %3231 = vmatmul.mubr.bf16.gmra.mrb[0].mxu0 %v2695
        %v3232 = vpop.f32.mrb[0].mxu0
        %v3233 = vadd.f32 %v3097, %v3232
        %v3234 = vpop.f32.mrb[0].mxu0
        %v3235 = vpop.f32.mrb[0].mxu0
        %v3236 = vadd.f32 %v3100, %v3235
        %v3237 = vpop.f32.mrb[0].mxu0
        %3238 = vmatprep.mubr.bf16.mxu0 0
        %3239 = vmatmul.mubr.bf16.gmra.mrb[0].mxu0 %v2698
        %v3240 = vpop.f32.mrb[0].mxu0
        %v3241 = vadd.f32 %v3105, %v3240
        %v3242 = vpop.f32.mrb[0].mxu0
        %v3243 = vpop.f32.mrb[0].mxu0
        %v3244 = vadd.f32 %v3108, %v3243
        %v3245 = vpop.f32.mrb[0].mxu0
        %3246 = vmatprep.mubr.bf16.mxu0 0
        %3247 = vmatmul.mubr.bf16.gmra.mrb[0].mxu0 %v2701
        %v3248 = vpop.f32.mrb[0].mxu0
        %v3249 = vadd.f32 %v3113, %v3248
        %v3250 = vpop.f32.mrb[0].mxu0
        %v3251 = vpop.f32.mrb[0].mxu0
        %v3252 = vpop.f32.mrb[0].mxu0
        %3253 = vdwg.mxu0
        %v3254 = vmax.f32 %v3153, 0.0
        %v3255 = vmax.f32 %v3156, 0.0
        %v3256 = vmax.f32 %v3161, 0.0
        %v3257 = vmax.f32 %v3164, 0.0
        %v3258 = vmax.f32 %v3169, 0.0
        %v3259 = vmax.f32 %v3172, 0.0
        %v3260 = vmax.f32 %v3177, 0.0
        %v3261 = vmax.f32 %v3180, 0.0
        %v3262 = vmax.f32 %v3185, 0.0
        %v3263 = vmax.f32 %v3188, 0.0
        %v3264 = vmax.f32 %v3193, 0.0
        %v3265 = vmax.f32 %v3196, 0.0
        %v3266 = vmax.f32 %v3201, 0.0
        %v3267 = vmax.f32 %v3204, 0.0
        %v3268 = vmax.f32 %v3209, 0.0
        %v3269 = vmax.f32 %v3212, 0.0
        %v3270 = vmax.f32 %v3217, 0.0
        %v3271 = vmax.f32 %v3220, 0.0
        %v3272 = vmax.f32 %v3225, 0.0
        %v3273 = vmax.f32 %v3228, 0.0
        %v3274 = vmax.f32 %v3233, 0.0
        %v3275 = vmax.f32 %v3236, 0.0
        %v3276 = vmax.f32 %v3241, 0.0
        %v3277 = vmax.f32 %v3244, 0.0
        %v3278 = vmax.f32 %v3249, 0.0
        %3279 = vst.msk [vmem:[#allocation3] sm:$0xff] %vm1497, %v3254
        %3280 = vst.msk [vmem:[#allocation3 + $0x8] sm:$0xff] %vm1497, %v3255
        %3281 = vst.msk [vmem:[#allocation3 + $0x10] sm:$0xff] %vm1497, %v3256
        %3282 = vst.msk [vmem:[#allocation3 + $0x18] sm:$0xff] %vm1497, %v3257
        %3283 = vst.msk [vmem:[#allocation3 + $0x20] sm:$0xff] %vm1497, %v3258
        %3284 = vst.msk [vmem:[#allocation3 + $0x28] sm:$0xff] %vm1497, %v3259
        %3285 = vst.msk [vmem:[#allocation3 + $0x30] sm:$0xff] %vm1497, %v3260
        %3286 = vst.msk [vmem:[#allocation3 + $0x38] sm:$0xff] %vm1497, %v3261
        %3287 = vst.msk [vmem:[#allocation3 + $0x40] sm:$0xff] %vm1497, %v3262
        %3288 = vst.msk [vmem:[#allocation3 + $0x48] sm:$0xff] %vm1497, %v3263
        %3289 = vst.msk [vmem:[#allocation3 + $0x50] sm:$0xff] %vm1497, %v3264
        %3290 = vst.msk [vmem:[#allocation3 + $0x58] sm:$0xff] %vm1497, %v3265
        %3291 = vst.msk [vmem:[#allocation3 + $0x60] sm:$0xff] %vm1497, %v3266
        %3292 = vst.msk [vmem:[#allocation3 + $0x68] sm:$0xff] %vm1497, %v3267
        %3293 = vst.msk [vmem:[#allocation3 + $0x70] sm:$0xff] %vm1497, %v3268
        %3294 = vst.msk [vmem:[#allocation3 + $0x78] sm:$0xff] %vm1497, %v3269
        %3295 = vst.msk [vmem:[#allocation3 + $0x80] sm:$0xff] %vm1497, %v3270
        %3296 = vst.msk [vmem:[#allocation3 + $0x88] sm:$0xff] %vm1497, %v3271
        %3297 = vst.msk [vmem:[#allocation3 + $0x90] sm:$0xff] %vm1497, %v3272
        %3298 = vst.msk [vmem:[#allocation3 + $0x98] sm:$0xff] %vm1497, %v3273
        %3299 = vst.msk [vmem:[#allocation3 + $0xa0] sm:$0xff] %vm1497, %v3274
        %3300 = vst.msk [vmem:[#allocation3 + $0xa8] sm:$0xff] %vm1497, %v3275
        %3301 = vst.msk [vmem:[#allocation3 + $0xb0] sm:$0xff] %vm1497, %v3276
        %3302 = vst.msk [vmem:[#allocation3 + $0xb8] sm:$0xff] %vm1497, %v3277
        %3303 = vst.msk [vmem:[#allocation3 + $0xc0] sm:$0xff] %vm1497, %v3278
        %v3304 = vld [vmem:[#allocation3] sm:$0xff]
        %v3305 = vld [vmem:[#allocation3 + $0x8] sm:$0xff]
        %v3306 = vld [vmem:[#allocation3 + $0x10] sm:$0xff]
        %v3307 = vld [vmem:[#allocation3 + $0x18] sm:$0xff]
        %v3308 = vld [vmem:[#allocation3 + $0x20] sm:$0xff]
        %v3309 = vld [vmem:[#allocation3 + $0x28] sm:$0xff]
        %v3310 = vld [vmem:[#allocation3 + $0x30] sm:$0xff]
        %v3311 = vld [vmem:[#allocation3 + $0x38] sm:$0xff]
        %v3312 = vld [vmem:[#allocation3 + $0x40] sm:$0xff]
        %v3313 = vld [vmem:[#allocation3 + $0x48] sm:$0xff]
        %v3314 = vld [vmem:[#allocation3 + $0x50] sm:$0xff]
        %v3315 = vld [vmem:[#allocation3 + $0x58] sm:$0xff]
        %v3316 = vld [vmem:[#allocation3 + $0x60] sm:$0xff]
        %v3317 = vld [vmem:[#allocation3 + $0x68] sm:$0xff]
        %v3318 = vld [vmem:[#allocation3 + $0x70] sm:$0xff]
        %v3319 = vld [vmem:[#allocation3 + $0x78] sm:$0xff]
        %v3320 = vld [vmem:[#allocation3 + $0x80] sm:$0xff]
        %v3321 = vld [vmem:[#allocation3 + $0x88] sm:$0xf]
        %v3322 = vld [vmem:[%s4] sm:$0x7]
        %v3323 = vpack.c.bf16 %v3305, %v3304
        %v3324 = vpack.c.bf16 %v3307, %v3306
        %v3325 = vpack.c.bf16 %v3309, %v3308
        %v3326 = vpack.c.bf16 %v3311, %v3310
        %v3327 = vpack.c.bf16 %v3313, %v3312
        %v3328 = vpack.c.bf16 %v3315, %v3314
        %v3329 = vpack.c.bf16 %v3317, %v3316
        %v3330 = vpack.c.bf16 %v3319, %v3318
        %v3331 = vpack.c.bf16 %v3321, %v3320
        %v3332 = vld [vmem:[#allocation3 + $0x1] sm:$0xff]
        %v3333 = vld [vmem:[#allocation3 + $0x9] sm:$0xff]
        %v3334 = vld [vmem:[#allocation3 + $0x11] sm:$0xff]
        %v3335 = vld [vmem:[#allocation3 + $0x19] sm:$0xff]
        %v3336 = vld [vmem:[#allocation3 + $0x21] sm:$0xff]
        %v3337 = vld [vmem:[#allocation3 + $0x29] sm:$0xff]
        %v3338 = vld [vmem:[#allocation3 + $0x31] sm:$0xff]
        %v3339 = vld [vmem:[#allocation3 + $0x39] sm:$0xff]
        %v3340 = vld [vmem:[#allocation3 + $0x41] sm:$0xff]
        %v3341 = vld [vmem:[#allocation3 + $0x49] sm:$0xff]
        %v3342 = vld [vmem:[#allocation3 + $0x51] sm:$0xff]
        %v3343 = vld [vmem:[#allocation3 + $0x59] sm:$0xff]
        %v3344 = vld [vmem:[#allocation3 + $0x61] sm:$0xff]
        %v3345 = vld [vmem:[#allocation3 + $0x69] sm:$0xff]
        %v3346 = vld [vmem:[#allocation3 + $0x71] sm:$0xff]
        %v3347 = vld [vmem:[#allocation3 + $0x79] sm:$0xff]
        %v3348 = vld [vmem:[#allocation3 + $0x81] sm:$0xff]
        %v3349 = vld [vmem:[#allocation3 + $0x89] sm:$0xf]
        %s3350 = scalar_lea.vmem %s4, 4
        %v3351 = vld [vmem:[%s3350] sm:$0x7]
        %v3352 = vpack.c.bf16 %v3333, %v3332
        %v3353 = vpack.c.bf16 %v3335, %v3334
        %v3354 = vpack.c.bf16 %v3337, %v3336
        %v3355 = vpack.c.bf16 %v3339, %v3338
        %v3356 = vpack.c.bf16 %v3341, %v3340
        %v3357 = vpack.c.bf16 %v3343, %v3342
        %v3358 = vpack.c.bf16 %v3345, %v3344
        %v3359 = vpack.c.bf16 %v3347, %v3346
        %v3360 = vpack.c.bf16 %v3349, %v3348
        %v3362 = vsel %vm1497, %v3352, 0
        %v3365 = vsel %vm1497, %v3353, 0
        %v3368 = vsel %vm1497, %v3354, 0
        %v3371 = vsel %vm1497, %v3355, 0
        %v3374 = vsel %vm1497, %v3356, 0
        %v3377 = vsel %vm1497, %v3357, 0
        %v3380 = vsel %vm1497, %v3358, 0
        %v3383 = vsel %vm1497, %v3359, 0
        %v3386 = vsel %vm1497, %v3360, 0
        %vm3388 = vcmask 1042432
        %v3390 = vsel %vm3388, %v3351, 0
        %3392 = vmatprep.subr.bf16.mxu0 0
        %3393 = vmatpush1.bf16.msra.mxu0 %v3390
        %3394 = vmatprep.subr.bf16.mxu0 0
        %3395 = vmatpush1.bf16.msra.mxu0 0
        %3396 = vmatprep.subr.bf16.mxu0 0
        %3397 = vmatpush1.bf16.msra.mxu0 0
        %3398 = vmatprep.subr.bf16.mxu0 0
        %3399 = vmatpush1.bf16.msra.mxu0 0
        %3400 = vmatprep.subr.bf16.mxu0 0
        %3401 = vmatpush1.bf16.msra.mxu0 0
        %3402 = vmatprep.subr.bf16.mxu0 0
        %3403 = vmatpush1.bf16.msra.mxu0 0
        %3404 = vmatprep.subr.bf16.mxu0 0
        %3405 = vmatpush1.bf16.msra.mxu0 0
        %3406 = vmatprep.subr.bf16.mxu0 0
        %3407 = vmatpush1.bf16.msra.mxu0 0
        %3408 = vmatprep.subr.bf16.mxu0 0
        %3409 = vmatpush1.bf16.msra.mxu0 0
        %3410 = vmatprep.subr.bf16.mxu0 0
        %3411 = vmatpush1.bf16.msra.mxu0 0
        %3412 = vmatprep.subr.bf16.mxu0 0
        %3413 = vmatpush1.bf16.msra.mxu0 0
        %3414 = vmatprep.subr.bf16.mxu0 0
        %3415 = vmatpush1.bf16.msra.mxu0 0
        %3416 = vmatprep.subr.bf16.mxu0 0
        %3417 = vmatpush1.bf16.msra.mxu0 0
        %3418 = vmatprep.subr.bf16.mxu0 0
        %3419 = vmatpush1.bf16.msra.mxu0 0
        %3420 = vmatprep.subr.bf16.mxu0 0
        %3421 = vmatpush1.bf16.msra.mxu0 0
        %3422 = vmatprep.subr.bf16.mxu0 0
        %3423 = vmatpush1.bf16.msra.mxu0 0
        %3424 = vmatprep.mubr.bf16.mxu0 0
        %3425 = vmatmul.mubr.bf16.gmra.mrb[0].mxu0 %v3362
        %v3426 = vpop.f32.mrb[0].mxu0
        %v3427 = vadd.f32 0.0, %v3426
        %v3428 = vpop.f32.mrb[0].mxu0
        %v3429 = vpop.f32.mrb[0].mxu0
        %v3430 = vadd.f32 0.0, %v3429
        %v3431 = vpop.f32.mrb[0].mxu0
        %3432 = vmatprep.mubr.bf16.mxu0 0
        %3433 = vmatmul.mubr.bf16.gmra.mrb[0].mxu0 %v3365
        %v3434 = vpop.f32.mrb[0].mxu0
        %v3435 = vadd.f32 0.0, %v3434
        %v3436 = vpop.f32.mrb[0].mxu0
        %v3437 = vpop.f32.mrb[0].mxu0
        %v3438 = vadd.f32 0.0, %v3437
        %v3439 = vpop.f32.mrb[0].mxu0
        %3440 = vmatprep.mubr.bf16.mxu0 0
        %3441 = vmatmul.mubr.bf16.gmra.mrb[0].mxu0 %v3368
        %v3442 = vpop.f32.mrb[0].mxu0
        %v3443 = vadd.f32 0.0, %v3442
        %v3444 = vpop.f32.mrb[0].mxu0
        %v3445 = vpop.f32.mrb[0].mxu0
        %v3446 = vadd.f32 0.0, %v3445
        %v3447 = vpop.f32.mrb[0].mxu0
        %3448 = vmatprep.mubr.bf16.mxu0 0
        %3449 = vmatmul.mubr.bf16.gmra.mrb[0].mxu0 %v3371
        %v3450 = vpop.f32.mrb[0].mxu0
        %v3451 = vadd.f32 0.0, %v3450
        %v3452 = vpop.f32.mrb[0].mxu0
        %v3453 = vpop.f32.mrb[0].mxu0
        %v3454 = vadd.f32 0.0, %v3453
        %v3455 = vpop.f32.mrb[0].mxu0
        %3456 = vmatprep.mubr.bf16.mxu0 0
        %3457 = vmatmul.mubr.bf16.gmra.mrb[0].mxu0 %v3374
        %v3458 = vpop.f32.mrb[0].mxu0
        %v3459 = vadd.f32 0.0, %v3458
        %v3460 = vpop.f32.mrb[0].mxu0
        %v3461 = vpop.f32.mrb[0].mxu0
        %v3462 = vadd.f32 0.0, %v3461
        %v3463 = vpop.f32.mrb[0].mxu0
        %3464 = vmatprep.mubr.bf16.mxu0 0
        %3465 = vmatmul.mubr.bf16.gmra.mrb[0].mxu0 %v3377
        %v3466 = vpop.f32.mrb[0].mxu0
        %v3467 = vadd.f32 0.0, %v3466
        %v3468 = vpop.f32.mrb[0].mxu0
        %v3469 = vpop.f32.mrb[0].mxu0
        %v3470 = vadd.f32 0.0, %v3469
        %v3471 = vpop.f32.mrb[0].mxu0
        %3472 = vmatprep.mubr.bf16.mxu0 0
        %3473 = vmatmul.mubr.bf16.gmra.mrb[0].mxu0 %v3380
        %v3474 = vpop.f32.mrb[0].mxu0
        %v3475 = vadd.f32 0.0, %v3474
        %v3476 = vpop.f32.mrb[0].mxu0
        %v3477 = vpop.f32.mrb[0].mxu0
        %v3478 = vadd.f32 0.0, %v3477
        %v3479 = vpop.f32.mrb[0].mxu0
        %3480 = vmatprep.mubr.bf16.mxu0 0
        %3481 = vmatmul.mubr.bf16.gmra.mrb[0].mxu0 %v3383
        %v3482 = vpop.f32.mrb[0].mxu0
        %v3483 = vadd.f32 0.0, %v3482
        %v3484 = vpop.f32.mrb[0].mxu0
        %v3485 = vpop.f32.mrb[0].mxu0
        %v3486 = vadd.f32 0.0, %v3485
        %v3487 = vpop.f32.mrb[0].mxu0
        %3488 = vmatprep.mubr.bf16.mxu0 0
        %3489 = vmatmul.mubr.bf16.gmra.mrb[0].mxu0 %v3386
        %v3490 = vpop.f32.mrb[0].mxu0
        %v3491 = vadd.f32 0.0, %v3490
        %v3492 = vpop.f32.mrb[0].mxu0
        %v3493 = vpop.f32.mrb[0].mxu0
        %v3494 = vadd.f32 0.0, %v3493
        %v3495 = vpop.f32.mrb[0].mxu0
        %3496 = vdwg.mxu0
        %v3498 = vsel %vm1497, %v3323, 0
        %v3501 = vsel %vm1497, %v3324, 0
        %v3504 = vsel %vm1497, %v3325, 0
        %v3507 = vsel %vm1497, %v3326, 0
        %v3510 = vsel %vm1497, %v3327, 0
        %v3513 = vsel %vm1497, %v3328, 0
        %v3516 = vsel %vm1497, %v3329, 0
        %v3519 = vsel %vm1497, %v3330, 0
        %v3522 = vsel %vm1497, %v3331, 0
        %v3525 = vsel %vm3388, %v3322, 0
        %3527 = vmatprep.subr.bf16.mxu0 0
        %3528 = vmatpush1.bf16.msra.mxu0 %v3525
        %3529 = vmatprep.subr.bf16.mxu0 0
        %3530 = vmatpush1.bf16.msra.mxu0 0
        %3531 = vmatprep.subr.bf16.mxu0 0
        %3532 = vmatpush1.bf16.msra.mxu0 0
        %3533 = vmatprep.subr.bf16.mxu0 0
        %3534 = vmatpush1.bf16.msra.mxu0 0
        %3535 = vmatprep.subr.bf16.mxu0 0
        %3536 = vmatpush1.bf16.msra.mxu0 0
        %3537 = vmatprep.subr.bf16.mxu0 0
        %3538 = vmatpush1.bf16.msra.mxu0 0
        %3539 = vmatprep.subr.bf16.mxu0 0
        %3540 = vmatpush1.bf16.msra.mxu0 0
        %3541 = vmatprep.subr.bf16.mxu0 0
        %3542 = vmatpush1.bf16.msra.mxu0 0
        %3543 = vmatprep.subr.bf16.mxu0 0
        %3544 = vmatpush1.bf16.msra.mxu0 0
        %3545 = vmatprep.subr.bf16.mxu0 0
        %3546 = vmatpush1.bf16.msra.mxu0 0
        %3547 = vmatprep.subr.bf16.mxu0 0
        %3548 = vmatpush1.bf16.msra.mxu0 0
        %3549 = vmatprep.subr.bf16.mxu0 0
        %3550 = vmatpush1.bf16.msra.mxu0 0
        %3551 = vmatprep.subr.bf16.mxu0 0
        %3552 = vmatpush1.bf16.msra.mxu0 0
        %3553 = vmatprep.subr.bf16.mxu0 0
        %3554 = vmatpush1.bf16.msra.mxu0 0
        %3555 = vmatprep.subr.bf16.mxu0 0
        %3556 = vmatpush1.bf16.msra.mxu0 0
        %3557 = vmatprep.subr.bf16.mxu0 0
        %3558 = vmatpush1.bf16.msra.mxu0 0
        %3559 = vmatprep.mubr.bf16.mxu0 0
        %3560 = vmatmul.mubr.bf16.gmra.mrb[0].mxu0 %v3498
        %v3561 = vpop.f32.mrb[0].mxu0
        %v3562 = vadd.f32 %v3427, %v3561
        %v3563 = vpop.f32.mrb[0].mxu0
        %v3564 = vpop.f32.mrb[0].mxu0
        %v3565 = vadd.f32 %v3430, %v3564
        %v3566 = vpop.f32.mrb[0].mxu0
        %3567 = vmatprep.mubr.bf16.mxu0 0
        %3568 = vmatmul.mubr.bf16.gmra.mrb[0].mxu0 %v3501
        %v3569 = vpop.f32.mrb[0].mxu0
        %v3570 = vadd.f32 %v3435, %v3569
        %v3571 = vpop.f32.mrb[0].mxu0
        %v3572 = vpop.f32.mrb[0].mxu0
        %v3573 = vadd.f32 %v3438, %v3572
        %v3574 = vpop.f32.mrb[0].mxu0
        %3575 = vmatprep.mubr.bf16.mxu0 0
        %3576 = vmatmul.mubr.bf16.gmra.mrb[0].mxu0 %v3504
        %v3577 = vpop.f32.mrb[0].mxu0
        %v3578 = vadd.f32 %v3443, %v3577
        %v3579 = vpop.f32.mrb[0].mxu0
        %v3580 = vpop.f32.mrb[0].mxu0
        %v3581 = vadd.f32 %v3446, %v3580
        %v3582 = vpop.f32.mrb[0].mxu0
        %3583 = vmatprep.mubr.bf16.mxu0 0
        %3584 = vmatmul.mubr.bf16.gmra.mrb[0].mxu0 %v3507
        %v3585 = vpop.f32.mrb[0].mxu0
        %v3586 = vadd.f32 %v3451, %v3585
        %v3587 = vpop.f32.mrb[0].mxu0
        %v3588 = vpop.f32.mrb[0].mxu0
        %v3589 = vadd.f32 %v3454, %v3588
        %v3590 = vpop.f32.mrb[0].mxu0
        %3591 = vmatprep.mubr.bf16.mxu0 0
        %3592 = vmatmul.mubr.bf16.gmra.mrb[0].mxu0 %v3510
        %v3593 = vpop.f32.mrb[0].mxu0
        %v3594 = vadd.f32 %v3459, %v3593
        %v3595 = vpop.f32.mrb[0].mxu0
        %v3596 = vpop.f32.mrb[0].mxu0
        %v3597 = vadd.f32 %v3462, %v3596
        %v3598 = vpop.f32.mrb[0].mxu0
        %3599 = vmatprep.mubr.bf16.mxu0 0
        %3600 = vmatmul.mubr.bf16.gmra.mrb[0].mxu0 %v3513
        %v3601 = vpop.f32.mrb[0].mxu0
        %v3602 = vadd.f32 %v3467, %v3601
        %v3603 = vpop.f32.mrb[0].mxu0
        %v3604 = vpop.f32.mrb[0].mxu0
        %v3605 = vadd.f32 %v3470, %v3604
        %v3606 = vpop.f32.mrb[0].mxu0
        %3607 = vmatprep.mubr.bf16.mxu0 0
        %3608 = vmatmul.mubr.bf16.gmra.mrb[0].mxu0 %v3516
        %v3609 = vpop.f32.mrb[0].mxu0
        %v3610 = vadd.f32 %v3475, %v3609
        %v3611 = vpop.f32.mrb[0].mxu0
        %v3612 = vpop.f32.mrb[0].mxu0
        %v3613 = vadd.f32 %v3478, %v3612
        %v3614 = vpop.f32.mrb[0].mxu0
        %3615 = vmatprep.mubr.bf16.mxu0 0
        %3616 = vmatmul.mubr.bf16.gmra.mrb[0].mxu0 %v3519
        %v3617 = vpop.f32.mrb[0].mxu0
        %v3618 = vadd.f32 %v3483, %v3617
        %v3619 = vpop.f32.mrb[0].mxu0
        %v3620 = vpop.f32.mrb[0].mxu0
        %v3621 = vadd.f32 %v3486, %v3620
        %v3622 = vpop.f32.mrb[0].mxu0
        %3623 = vmatprep.mubr.bf16.mxu0 0
        %3624 = vmatmul.mubr.bf16.gmra.mrb[0].mxu0 %v3522
        %v3625 = vpop.f32.mrb[0].mxu0
        %v3626 = vadd.f32 %v3491, %v3625
        %v3627 = vpop.f32.mrb[0].mxu0
        %v3628 = vpop.f32.mrb[0].mxu0
        %v3629 = vadd.f32 %v3494, %v3628
        %v3630 = vpop.f32.mrb[0].mxu0
        %3631 = vdwg.mxu0
        %v3632 = vld [vmem:[#allocation3 + $0x2] sm:$0xff]
        %v3633 = vld [vmem:[#allocation3 + $0xa] sm:$0xff]
        %v3634 = vld [vmem:[#allocation3 + $0x12] sm:$0xff]
        %v3635 = vld [vmem:[#allocation3 + $0x1a] sm:$0xff]
        %v3636 = vld [vmem:[#allocation3 + $0x22] sm:$0xff]
        %v3637 = vld [vmem:[#allocation3 + $0x2a] sm:$0xff]
        %v3638 = vld [vmem:[#allocation3 + $0x32] sm:$0xff]
        %v3639 = vld [vmem:[#allocation3 + $0x3a] sm:$0xff]
        %v3640 = vld [vmem:[#allocation3 + $0x42] sm:$0xff]
        %v3641 = vld [vmem:[#allocation3 + $0x4a] sm:$0xff]
        %v3642 = vld [vmem:[#allocation3 + $0x52] sm:$0xff]
        %v3643 = vld [vmem:[#allocation3 + $0x5a] sm:$0xff]
        %v3644 = vld [vmem:[#allocation3 + $0x62] sm:$0xff]
        %v3645 = vld [vmem:[#allocation3 + $0x6a] sm:$0xff]
        %v3646 = vld [vmem:[#allocation3 + $0x72] sm:$0xff]
        %v3647 = vld [vmem:[#allocation3 + $0x7a] sm:$0xff]
        %v3648 = vld [vmem:[#allocation3 + $0x82] sm:$0xff]
        %v3649 = vld [vmem:[#allocation3 + $0x8a] sm:$0xf]
        %s3650 = scalar_lea.vmem %s4, 8
        %v3651 = vld [vmem:[%s3650] sm:$0x7]
        %v3652 = vpack.c.bf16 %v3633, %v3632
        %v3653 = vpack.c.bf16 %v3635, %v3634
        %v3654 = vpack.c.bf16 %v3637, %v3636
        %v3655 = vpack.c.bf16 %v3639, %v3638
        %v3656 = vpack.c.bf16 %v3641, %v3640
        %v3657 = vpack.c.bf16 %v3643, %v3642
        %v3658 = vpack.c.bf16 %v3645, %v3644
        %v3659 = vpack.c.bf16 %v3647, %v3646
        %v3660 = vpack.c.bf16 %v3649, %v3648
        %v3662 = vsel %vm1497, %v3652, 0
        %v3665 = vsel %vm1497, %v3653, 0
        %v3668 = vsel %vm1497, %v3654, 0
        %v3671 = vsel %vm1497, %v3655, 0
        %v3674 = vsel %vm1497, %v3656, 0
        %v3677 = vsel %vm1497, %v3657, 0
        %v3680 = vsel %vm1497, %v3658, 0
        %v3683 = vsel %vm1497, %v3659, 0
        %v3686 = vsel %vm1497, %v3660, 0
        %v3689 = vsel %vm3388, %v3651, 0
        %3691 = vmatprep.subr.bf16.mxu0 0
        %3692 = vmatpush1.bf16.msra.mxu0 %v3689
        %3693 = vmatprep.subr.bf16.mxu0 0
        %3694 = vmatpush1.bf16.msra.mxu0 0
        %3695 = vmatprep.subr.bf16.mxu0 0
        %3696 = vmatpush1.bf16.msra.mxu0 0
        %3697 = vmatprep.subr.bf16.mxu0 0
        %3698 = vmatpush1.bf16.msra.mxu0 0
        %3699 = vmatprep.subr.bf16.mxu0 0
        %3700 = vmatpush1.bf16.msra.mxu0 0
        %3701 = vmatprep.subr.bf16.mxu0 0
        %3702 = vmatpush1.bf16.msra.mxu0 0
        %3703 = vmatprep.subr.bf16.mxu0 0
        %3704 = vmatpush1.bf16.msra.mxu0 0
        %3705 = vmatprep.subr.bf16.mxu0 0
        %3706 = vmatpush1.bf16.msra.mxu0 0
        %3707 = vmatprep.subr.bf16.mxu0 0
        %3708 = vmatpush1.bf16.msra.mxu0 0
        %3709 = vmatprep.subr.bf16.mxu0 0
        %3710 = vmatpush1.bf16.msra.mxu0 0
        %3711 = vmatprep.subr.bf16.mxu0 0
        %3712 = vmatpush1.bf16.msra.mxu0 0
        %3713 = vmatprep.subr.bf16.mxu0 0
        %3714 = vmatpush1.bf16.msra.mxu0 0
        %3715 = vmatprep.subr.bf16.mxu0 0
        %3716 = vmatpush1.bf16.msra.mxu0 0
        %3717 = vmatprep.subr.bf16.mxu0 0
        %3718 = vmatpush1.bf16.msra.mxu0 0
        %3719 = vmatprep.subr.bf16.mxu0 0
        %3720 = vmatpush1.bf16.msra.mxu0 0
        %3721 = vmatprep.subr.bf16.mxu0 0
        %3722 = vmatpush1.bf16.msra.mxu0 0
        %3723 = vmatprep.mubr.bf16.mxu0 0
        %3724 = vmatmul.mubr.bf16.gmra.mrb[0].mxu0 %v3662
        %v3725 = vpop.f32.mrb[0].mxu0
        %v3726 = vadd.f32 0.0, %v3725
        %v3727 = vpop.f32.mrb[0].mxu0
        %v3728 = vpop.f32.mrb[0].mxu0
        %v3729 = vadd.f32 0.0, %v3728
        %v3730 = vpop.f32.mrb[0].mxu0
        %3731 = vmatprep.mubr.bf16.mxu0 0
        %3732 = vmatmul.mubr.bf16.gmra.mrb[0].mxu0 %v3665
        %v3733 = vpop.f32.mrb[0].mxu0
        %v3734 = vadd.f32 0.0, %v3733
        %v3735 = vpop.f32.mrb[0].mxu0
        %v3736 = vpop.f32.mrb[0].mxu0
        %v3737 = vadd.f32 0.0, %v3736
        %v3738 = vpop.f32.mrb[0].mxu0
        %3739 = vmatprep.mubr.bf16.mxu0 0
        %3740 = vmatmul.mubr.bf16.gmra.mrb[0].mxu0 %v3668
        %v3741 = vpop.f32.mrb[0].mxu0
        %v3742 = vadd.f32 0.0, %v3741
        %v3743 = vpop.f32.mrb[0].mxu0
        %v3744 = vpop.f32.mrb[0].mxu0
        %v3745 = vadd.f32 0.0, %v3744
        %v3746 = vpop.f32.mrb[0].mxu0
        %3747 = vmatprep.mubr.bf16.mxu0 0
        %3748 = vmatmul.mubr.bf16.gmra.mrb[0].mxu0 %v3671
        %v3749 = vpop.f32.mrb[0].mxu0
        %v3750 = vadd.f32 0.0, %v3749
        %v3751 = vpop.f32.mrb[0].mxu0
        %v3752 = vpop.f32.mrb[0].mxu0
        %v3753 = vadd.f32 0.0, %v3752
        %v3754 = vpop.f32.mrb[0].mxu0
        %3755 = vmatprep.mubr.bf16.mxu0 0
        %3756 = vmatmul.mubr.bf16.gmra.mrb[0].mxu0 %v3674
        %v3757 = vpop.f32.mrb[0].mxu0
        %v3758 = vadd.f32 0.0, %v3757
        %v3759 = vpop.f32.mrb[0].mxu0
        %v3760 = vpop.f32.mrb[0].mxu0
        %v3761 = vadd.f32 0.0, %v3760
        %v3762 = vpop.f32.mrb[0].mxu0
        %3763 = vmatprep.mubr.bf16.mxu0 0
        %3764 = vmatmul.mubr.bf16.gmra.mrb[0].mxu0 %v3677
        %v3765 = vpop.f32.mrb[0].mxu0
        %v3766 = vadd.f32 0.0, %v3765
        %v3767 = vpop.f32.mrb[0].mxu0
        %v3768 = vpop.f32.mrb[0].mxu0
        %v3769 = vadd.f32 0.0, %v3768
        %v3770 = vpop.f32.mrb[0].mxu0
        %3771 = vmatprep.mubr.bf16.mxu0 0
        %3772 = vmatmul.mubr.bf16.gmra.mrb[0].mxu0 %v3680
        %v3773 = vpop.f32.mrb[0].mxu0
        %v3774 = vadd.f32 0.0, %v3773
        %v3775 = vpop.f32.mrb[0].mxu0
        %v3776 = vpop.f32.mrb[0].mxu0
        %v3777 = vadd.f32 0.0, %v3776
        %v3778 = vpop.f32.mrb[0].mxu0
        %3779 = vmatprep.mubr.bf16.mxu0 0
        %3780 = vmatmul.mubr.bf16.gmra.mrb[0].mxu0 %v3683
        %v3781 = vpop.f32.mrb[0].mxu0
        %v3782 = vadd.f32 0.0, %v3781
        %v3783 = vpop.f32.mrb[0].mxu0
        %v3784 = vpop.f32.mrb[0].mxu0
        %v3785 = vadd.f32 0.0, %v3784
        %v3786 = vpop.f32.mrb[0].mxu0
        %3787 = vmatprep.mubr.bf16.mxu0 0
        %3788 = vmatmul.mubr.bf16.gmra.mrb[0].mxu0 %v3686
        %v3789 = vpop.f32.mrb[0].mxu0
        %v3790 = vadd.f32 0.0, %v3789
        %v3791 = vpop.f32.mrb[0].mxu0
        %v3792 = vpop.f32.mrb[0].mxu0
        %v3793 = vadd.f32 0.0, %v3792
        %v3794 = vpop.f32.mrb[0].mxu0
        %3795 = vdwg.mxu0
        %v3796 = vadd.f32 %v3562, %v3726
        %v3797 = vadd.f32 %v3565, %v3729
        %v3798 = vadd.f32 %v3570, %v3734
        %v3799 = vadd.f32 %v3573, %v3737
        %v3800 = vadd.f32 %v3578, %v3742
        %v3801 = vadd.f32 %v3581, %v3745
        %v3802 = vadd.f32 %v3586, %v3750
        %v3803 = vadd.f32 %v3589, %v3753
        %v3804 = vadd.f32 %v3594, %v3758
        %v3805 = vadd.f32 %v3597, %v3761
        %v3806 = vadd.f32 %v3602, %v3766
        %v3807 = vadd.f32 %v3605, %v3769
        %v3808 = vadd.f32 %v3610, %v3774
        %v3809 = vadd.f32 %v3613, %v3777
        %v3810 = vadd.f32 %v3618, %v3782
        %v3811 = vadd.f32 %v3621, %v3785
        %v3812 = vadd.f32 %v3626, %v3790
        %v3813 = vadd.f32 %v3629, %v3793
        %v3814 = vld [vmem:[#allocation3 + $0x3] sm:$0xff]
        %v3815 = vld [vmem:[#allocation3 + $0xb] sm:$0xff]
        %v3816 = vld [vmem:[#allocation3 + $0x13] sm:$0xff]
        %v3817 = vld [vmem:[#allocation3 + $0x1b] sm:$0xff]
        %v3818 = vld [vmem:[#allocation3 + $0x23] sm:$0xff]
        %v3819 = vld [vmem:[#allocation3 + $0x2b] sm:$0xff]
        %v3820 = vld [vmem:[#allocation3 + $0x33] sm:$0xff]
        %v3821 = vld [vmem:[#allocation3 + $0x3b] sm:$0xff]
        %v3822 = vld [vmem:[#allocation3 + $0x43] sm:$0xff]
        %v3823 = vld [vmem:[#allocation3 + $0x4b] sm:$0xff]
        %v3824 = vld [vmem:[#allocation3 + $0x53] sm:$0xff]
        %v3825 = vld [vmem:[#allocation3 + $0x5b] sm:$0xff]
        %v3826 = vld [vmem:[#allocation3 + $0x63] sm:$0xff]
        %v3827 = vld [vmem:[#allocation3 + $0x6b] sm:$0xff]
        %v3828 = vld [vmem:[#allocation3 + $0x73] sm:$0xff]
        %v3829 = vld [vmem:[#allocation3 + $0x7b] sm:$0xff]
        %v3830 = vld [vmem:[#allocation3 + $0x83] sm:$0xff]
        %v3831 = vld [vmem:[#allocation3 + $0x8b] sm:$0xf]
        %s3832 = scalar_lea.vmem %s4, 12
        %v3833 = vld [vmem:[%s3832] sm:$0x7]
        %v3834 = vpack.c.bf16 %v3815, %v3814
        %v3835 = vpack.c.bf16 %v3817, %v3816
        %v3836 = vpack.c.bf16 %v3819, %v3818
        %v3837 = vpack.c.bf16 %v3821, %v3820
        %v3838 = vpack.c.bf16 %v3823, %v3822
        %v3839 = vpack.c.bf16 %v3825, %v3824
        %v3840 = vpack.c.bf16 %v3827, %v3826
        %v3841 = vpack.c.bf16 %v3829, %v3828
        %v3842 = vpack.c.bf16 %v3831, %v3830
        %v3844 = vsel %vm1497, %v3834, 0
        %v3847 = vsel %vm1497, %v3835, 0
        %v3850 = vsel %vm1497, %v3836, 0
        %v3853 = vsel %vm1497, %v3837, 0
        %v3856 = vsel %vm1497, %v3838, 0
        %v3859 = vsel %vm1497, %v3839, 0
        %v3862 = vsel %vm1497, %v3840, 0
        %v3865 = vsel %vm1497, %v3841, 0
        %v3868 = vsel %vm1497, %v3842, 0
        %v3871 = vsel %vm3388, %v3833, 0
        %3873 = vmatprep.subr.bf16.mxu0 0
        %3874 = vmatpush1.bf16.msra.mxu0 %v3871
        %3875 = vmatprep.subr.bf16.mxu0 0
        %3876 = vmatpush1.bf16.msra.mxu0 0
        %3877 = vmatprep.subr.bf16.mxu0 0
        %3878 = vmatpush1.bf16.msra.mxu0 0
        %3879 = vmatprep.subr.bf16.mxu0 0
        %3880 = vmatpush1.bf16.msra.mxu0 0
        %3881 = vmatprep.subr.bf16.mxu0 0
        %3882 = vmatpush1.bf16.msra.mxu0 0
        %3883 = vmatprep.subr.bf16.mxu0 0
        %3884 = vmatpush1.bf16.msra.mxu0 0
        %3885 = vmatprep.subr.bf16.mxu0 0
        %3886 = vmatpush1.bf16.msra.mxu0 0
        %3887 = vmatprep.subr.bf16.mxu0 0
        %3888 = vmatpush1.bf16.msra.mxu0 0
        %3889 = vmatprep.subr.bf16.mxu0 0
        %3890 = vmatpush1.bf16.msra.mxu0 0
        %3891 = vmatprep.subr.bf16.mxu0 0
        %3892 = vmatpush1.bf16.msra.mxu0 0
        %3893 = vmatprep.subr.bf16.mxu0 0
        %3894 = vmatpush1.bf16.msra.mxu0 0
        %3895 = vmatprep.subr.bf16.mxu0 0
        %3896 = vmatpush1.bf16.msra.mxu0 0
        %3897 = vmatprep.subr.bf16.mxu0 0
        %3898 = vmatpush1.bf16.msra.mxu0 0
        %3899 = vmatprep.subr.bf16.mxu0 0
        %3900 = vmatpush1.bf16.msra.mxu0 0
        %3901 = vmatprep.subr.bf16.mxu0 0
        %3902 = vmatpush1.bf16.msra.mxu0 0
        %3903 = vmatprep.subr.bf16.mxu0 0
        %3904 = vmatpush1.bf16.msra.mxu0 0
        %3905 = vmatprep.mubr.bf16.mxu0 0
        %3906 = vmatmul.mubr.bf16.gmra.mrb[0].mxu0 %v3844
        %v3907 = vpop.f32.mrb[0].mxu0
        %v3908 = vadd.f32 0.0, %v3907
        %v3909 = vpop.f32.mrb[0].mxu0
        %v3910 = vpop.f32.mrb[0].mxu0
        %v3911 = vadd.f32 0.0, %v3910
        %v3912 = vpop.f32.mrb[0].mxu0
        %3913 = vmatprep.mubr.bf16.mxu0 0
        %3914 = vmatmul.mubr.bf16.gmra.mrb[0].mxu0 %v3847
        %v3915 = vpop.f32.mrb[0].mxu0
        %v3916 = vadd.f32 0.0, %v3915
        %v3917 = vpop.f32.mrb[0].mxu0
        %v3918 = vpop.f32.mrb[0].mxu0
        %v3919 = vadd.f32 0.0, %v3918
        %v3920 = vpop.f32.mrb[0].mxu0
        %3921 = vmatprep.mubr.bf16.mxu0 0
        %3922 = vmatmul.mubr.bf16.gmra.mrb[0].mxu0 %v3850
        %v3923 = vpop.f32.mrb[0].mxu0
        %v3924 = vadd.f32 0.0, %v3923
        %v3925 = vpop.f32.mrb[0].mxu0
        %v3926 = vpop.f32.mrb[0].mxu0
        %v3927 = vadd.f32 0.0, %v3926
        %v3928 = vpop.f32.mrb[0].mxu0
        %3929 = vmatprep.mubr.bf16.mxu0 0
        %3930 = vmatmul.mubr.bf16.gmra.mrb[0].mxu0 %v3853
        %v3931 = vpop.f32.mrb[0].mxu0
        %v3932 = vadd.f32 0.0, %v3931
        %v3933 = vpop.f32.mrb[0].mxu0
        %v3934 = vpop.f32.mrb[0].mxu0
        %v3935 = vadd.f32 0.0, %v3934
        %v3936 = vpop.f32.mrb[0].mxu0
        %3937 = vmatprep.mubr.bf16.mxu0 0
        %3938 = vmatmul.mubr.bf16.gmra.mrb[0].mxu0 %v3856
        %v3939 = vpop.f32.mrb[0].mxu0
        %v3940 = vadd.f32 0.0, %v3939
        %v3941 = vpop.f32.mrb[0].mxu0
        %v3942 = vpop.f32.mrb[0].mxu0
        %v3943 = vadd.f32 0.0, %v3942
        %v3944 = vpop.f32.mrb[0].mxu0
        %3945 = vmatprep.mubr.bf16.mxu0 0
        %3946 = vmatmul.mubr.bf16.gmra.mrb[0].mxu0 %v3859
        %v3947 = vpop.f32.mrb[0].mxu0
        %v3948 = vadd.f32 0.0, %v3947
        %v3949 = vpop.f32.mrb[0].mxu0
        %v3950 = vpop.f32.mrb[0].mxu0
        %v3951 = vadd.f32 0.0, %v3950
        %v3952 = vpop.f32.mrb[0].mxu0
        %3953 = vmatprep.mubr.bf16.mxu0 0
        %3954 = vmatmul.mubr.bf16.gmra.mrb[0].mxu0 %v3862
        %v3955 = vpop.f32.mrb[0].mxu0
        %v3956 = vadd.f32 0.0, %v3955
        %v3957 = vpop.f32.mrb[0].mxu0
        %v3958 = vpop.f32.mrb[0].mxu0
        %v3959 = vadd.f32 0.0, %v3958
        %v3960 = vpop.f32.mrb[0].mxu0
        %3961 = vmatprep.mubr.bf16.mxu0 0
        %3962 = vmatmul.mubr.bf16.gmra.mrb[0].mxu0 %v3865
        %v3963 = vpop.f32.mrb[0].mxu0
        %v3964 = vadd.f32 0.0, %v3963
        %v3965 = vpop.f32.mrb[0].mxu0
        %v3966 = vpop.f32.mrb[0].mxu0
        %v3967 = vadd.f32 0.0, %v3966
        %v3968 = vpop.f32.mrb[0].mxu0
        %3969 = vmatprep.mubr.bf16.mxu0 0
        %3970 = vmatmul.mubr.bf16.gmra.mrb[0].mxu0 %v3868
        %v3971 = vpop.f32.mrb[0].mxu0
        %v3972 = vadd.f32 0.0, %v3971
        %v3973 = vpop.f32.mrb[0].mxu0
        %v3974 = vpop.f32.mrb[0].mxu0
        %v3975 = vadd.f32 0.0, %v3974
        %v3976 = vpop.f32.mrb[0].mxu0
        %3977 = vdwg.mxu0
        %v3978 = vadd.f32 %v3796, %v3908
        %v3979 = vadd.f32 %v3797, %v3911
        %v3980 = vadd.f32 %v3798, %v3916
        %v3981 = vadd.f32 %v3799, %v3919
        %v3982 = vadd.f32 %v3800, %v3924
        %v3983 = vadd.f32 %v3801, %v3927
        %v3984 = vadd.f32 %v3802, %v3932
        %v3985 = vadd.f32 %v3803, %v3935
        %v3986 = vadd.f32 %v3804, %v3940
        %v3987 = vadd.f32 %v3805, %v3943
        %v3988 = vadd.f32 %v3806, %v3948
        %v3989 = vadd.f32 %v3807, %v3951
        %v3990 = vadd.f32 %v3808, %v3956
        %v3991 = vadd.f32 %v3809, %v3959
        %v3992 = vadd.f32 %v3810, %v3964
        %v3993 = vadd.f32 %v3811, %v3967
        %v3994 = vadd.f32 %v3812, %v3972
        %v3995 = vadd.f32 %v3813, %v3975
        %v3996 = vld [vmem:[#allocation3 + $0x4] sm:$0xff]
        %v3997 = vld [vmem:[#allocation3 + $0xc] sm:$0xff]
        %v3998 = vld [vmem:[#allocation3 + $0x14] sm:$0xff]
        %v3999 = vld [vmem:[#allocation3 + $0x1c] sm:$0xff]
        %v4000 = vld [vmem:[#allocation3 + $0x24] sm:$0xff]
        %v4001 = vld [vmem:[#allocation3 + $0x2c] sm:$0xff]
        %v4002 = vld [vmem:[#allocation3 + $0x34] sm:$0xff]
        %v4003 = vld [vmem:[#allocation3 + $0x3c] sm:$0xff]
        %v4004 = vld [vmem:[#allocation3 + $0x44] sm:$0xff]
        %v4005 = vld [vmem:[#allocation3 + $0x4c] sm:$0xff]
        %v4006 = vld [vmem:[#allocation3 + $0x54] sm:$0xff]
        %v4007 = vld [vmem:[#allocation3 + $0x5c] sm:$0xff]
        %v4008 = vld [vmem:[#allocation3 + $0x64] sm:$0xff]
        %v4009 = vld [vmem:[#allocation3 + $0x6c] sm:$0xff]
        %v4010 = vld [vmem:[#allocation3 + $0x74] sm:$0xff]
        %v4011 = vld [vmem:[#allocation3 + $0x7c] sm:$0xff]
        %v4012 = vld [vmem:[#allocation3 + $0x84] sm:$0xff]
        %v4013 = vld [vmem:[#allocation3 + $0x8c] sm:$0xf]
        %s4014 = scalar_lea.vmem %s4, 16
        %v4015 = vld [vmem:[%s4014] sm:$0x7]
        %v4016 = vpack.c.bf16 %v3997, %v3996
        %v4017 = vpack.c.bf16 %v3999, %v3998
        %v4018 = vpack.c.bf16 %v4001, %v4000
        %v4019 = vpack.c.bf16 %v4003, %v4002
        %v4020 = vpack.c.bf16 %v4005, %v4004
        %v4021 = vpack.c.bf16 %v4007, %v4006
        %v4022 = vpack.c.bf16 %v4009, %v4008
        %v4023 = vpack.c.bf16 %v4011, %v4010
        %v4024 = vpack.c.bf16 %v4013, %v4012
        %v4026 = vsel %vm1497, %v4016, 0
        %v4029 = vsel %vm1497, %v4017, 0
        %v4032 = vsel %vm1497, %v4018, 0
        %v4035 = vsel %vm1497, %v4019, 0
        %v4038 = vsel %vm1497, %v4020, 0
        %v4041 = vsel %vm1497, %v4021, 0
        %v4044 = vsel %vm1497, %v4022, 0
        %v4047 = vsel %vm1497, %v4023, 0
        %v4050 = vsel %vm1497, %v4024, 0
        %v4053 = vsel %vm3388, %v4015, 0
        %4055 = vmatprep.subr.bf16.mxu0 0
        %4056 = vmatpush1.bf16.msra.mxu0 %v4053
        %4057 = vmatprep.subr.bf16.mxu0 0
        %4058 = vmatpush1.bf16.msra.mxu0 0
        %4059 = vmatprep.subr.bf16.mxu0 0
        %4060 = vmatpush1.bf16.msra.mxu0 0
        %4061 = vmatprep.subr.bf16.mxu0 0
        %4062 = vmatpush1.bf16.msra.mxu0 0
        %4063 = vmatprep.subr.bf16.mxu0 0
        %4064 = vmatpush1.bf16.msra.mxu0 0
        %4065 = vmatprep.subr.bf16.mxu0 0
        %4066 = vmatpush1.bf16.msra.mxu0 0
        %4067 = vmatprep.subr.bf16.mxu0 0
        %4068 = vmatpush1.bf16.msra.mxu0 0
        %4069 = vmatprep.subr.bf16.mxu0 0
        %4070 = vmatpush1.bf16.msra.mxu0 0
        %4071 = vmatprep.subr.bf16.mxu0 0
        %4072 = vmatpush1.bf16.msra.mxu0 0
        %4073 = vmatprep.subr.bf16.mxu0 0
        %4074 = vmatpush1.bf16.msra.mxu0 0
        %4075 = vmatprep.subr.bf16.mxu0 0
        %4076 = vmatpush1.bf16.msra.mxu0 0
        %4077 = vmatprep.subr.bf16.mxu0 0
        %4078 = vmatpush1.bf16.msra.mxu0 0
        %4079 = vmatprep.subr.bf16.mxu0 0
        %4080 = vmatpush1.bf16.msra.mxu0 0
        %4081 = vmatprep.subr.bf16.mxu0 0
        %4082 = vmatpush1.bf16.msra.mxu0 0
        %4083 = vmatprep.subr.bf16.mxu0 0
        %4084 = vmatpush1.bf16.msra.mxu0 0
        %4085 = vmatprep.subr.bf16.mxu0 0
        %4086 = vmatpush1.bf16.msra.mxu0 0
        %4087 = vmatprep.mubr.bf16.mxu0 0
        %4088 = vmatmul.mubr.bf16.gmra.mrb[0].mxu0 %v4026
        %v4089 = vpop.f32.mrb[0].mxu0
        %v4090 = vadd.f32 0.0, %v4089
        %v4091 = vpop.f32.mrb[0].mxu0
        %v4092 = vpop.f32.mrb[0].mxu0
        %v4093 = vadd.f32 0.0, %v4092
        %v4094 = vpop.f32.mrb[0].mxu0
        %4095 = vmatprep.mubr.bf16.mxu0 0
        %4096 = vmatmul.mubr.bf16.gmra.mrb[0].mxu0 %v4029
        %v4097 = vpop.f32.mrb[0].mxu0
        %v4098 = vadd.f32 0.0, %v4097
        %v4099 = vpop.f32.mrb[0].mxu0
        %v4100 = vpop.f32.mrb[0].mxu0
        %v4101 = vadd.f32 0.0, %v4100
        %v4102 = vpop.f32.mrb[0].mxu0
        %4103 = vmatprep.mubr.bf16.mxu0 0
        %4104 = vmatmul.mubr.bf16.gmra.mrb[0].mxu0 %v4032
        %v4105 = vpop.f32.mrb[0].mxu0
        %v4106 = vadd.f32 0.0, %v4105
        %v4107 = vpop.f32.mrb[0].mxu0
        %v4108 = vpop.f32.mrb[0].mxu0
        %v4109 = vadd.f32 0.0, %v4108
        %v4110 = vpop.f32.mrb[0].mxu0
        %4111 = vmatprep.mubr.bf16.mxu0 0
        %4112 = vmatmul.mubr.bf16.gmra.mrb[0].mxu0 %v4035
        %v4113 = vpop.f32.mrb[0].mxu0
        %v4114 = vadd.f32 0.0, %v4113
        %v4115 = vpop.f32.mrb[0].mxu0
        %v4116 = vpop.f32.mrb[0].mxu0
        %v4117 = vadd.f32 0.0, %v4116
        %v4118 = vpop.f32.mrb[0].mxu0
        %4119 = vmatprep.mubr.bf16.mxu0 0
        %4120 = vmatmul.mubr.bf16.gmra.mrb[0].mxu0 %v4038
        %v4121 = vpop.f32.mrb[0].mxu0
        %v4122 = vadd.f32 0.0, %v4121
        %v4123 = vpop.f32.mrb[0].mxu0
        %v4124 = vpop.f32.mrb[0].mxu0
        %v4125 = vadd.f32 0.0, %v4124
        %v4126 = vpop.f32.mrb[0].mxu0
        %4127 = vmatprep.mubr.bf16.mxu0 0
        %4128 = vmatmul.mubr.bf16.gmra.mrb[0].mxu0 %v4041
        %v4129 = vpop.f32.mrb[0].mxu0
        %v4130 = vadd.f32 0.0, %v4129
        %v4131 = vpop.f32.mrb[0].mxu0
        %v4132 = vpop.f32.mrb[0].mxu0
        %v4133 = vadd.f32 0.0, %v4132
        %v4134 = vpop.f32.mrb[0].mxu0
        %4135 = vmatprep.mubr.bf16.mxu0 0
        %4136 = vmatmul.mubr.bf16.gmra.mrb[0].mxu0 %v4044
        %v4137 = vpop.f32.mrb[0].mxu0
        %v4138 = vadd.f32 0.0, %v4137
        %v4139 = vpop.f32.mrb[0].mxu0
        %v4140 = vpop.f32.mrb[0].mxu0
        %v4141 = vadd.f32 0.0, %v4140
        %v4142 = vpop.f32.mrb[0].mxu0
        %4143 = vmatprep.mubr.bf16.mxu0 0
        %4144 = vmatmul.mubr.bf16.gmra.mrb[0].mxu0 %v4047
        %v4145 = vpop.f32.mrb[0].mxu0
        %v4146 = vadd.f32 0.0, %v4145
        %v4147 = vpop.f32.mrb[0].mxu0
        %v4148 = vpop.f32.mrb[0].mxu0
        %v4149 = vadd.f32 0.0, %v4148
        %v4150 = vpop.f32.mrb[0].mxu0
        %4151 = vmatprep.mubr.bf16.mxu0 0
        %4152 = vmatmul.mubr.bf16.gmra.mrb[0].mxu0 %v4050
        %v4153 = vpop.f32.mrb[0].mxu0
        %v4154 = vadd.f32 0.0, %v4153
        %v4155 = vpop.f32.mrb[0].mxu0
        %v4156 = vpop.f32.mrb[0].mxu0
        %v4157 = vadd.f32 0.0, %v4156
        %v4158 = vpop.f32.mrb[0].mxu0
        %4159 = vdwg.mxu0
        %v4160 = vadd.f32 %v3978, %v4090
        %v4161 = vadd.f32 %v3979, %v4093
        %v4162 = vadd.f32 %v3980, %v4098
        %v4163 = vadd.f32 %v3981, %v4101
        %v4164 = vadd.f32 %v3982, %v4106
        %v4165 = vadd.f32 %v3983, %v4109
        %v4166 = vadd.f32 %v3984, %v4114
        %v4167 = vadd.f32 %v3985, %v4117
        %v4168 = vadd.f32 %v3986, %v4122
        %v4169 = vadd.f32 %v3987, %v4125
        %v4170 = vadd.f32 %v3988, %v4130
        %v4171 = vadd.f32 %v3989, %v4133
        %v4172 = vadd.f32 %v3990, %v4138
        %v4173 = vadd.f32 %v3991, %v4141
        %v4174 = vadd.f32 %v3992, %v4146
        %v4175 = vadd.f32 %v3993, %v4149
        %v4176 = vadd.f32 %v3994, %v4154
        %v4177 = vadd.f32 %v3995, %v4157
        %v4178 = vld [vmem:[#allocation3 + $0xe] sm:$0xff]
        %v4179 = vld [vmem:[#allocation3 + $0x16] sm:$0xff]
        %v4180 = vld [vmem:[#allocation3 + $0x1e] sm:$0xff]
        %v4181 = vld [vmem:[#allocation3 + $0x26] sm:$0xff]
        %v4182 = vld [vmem:[#allocation3 + $0x2e] sm:$0xff]
        %v4183 = vld [vmem:[#allocation3 + $0x36] sm:$0xff]
        %v4184 = vld [vmem:[#allocation3 + $0x3e] sm:$0xff]
        %v4185 = vld [vmem:[#allocation3 + $0x46] sm:$0xff]
        %v4186 = vld [vmem:[#allocation3 + $0x4e] sm:$0xff]
        %v4187 = vld [vmem:[#allocation3 + $0x56] sm:$0xff]
        %v4188 = vld [vmem:[#allocation3 + $0x5e] sm:$0xff]
        %v4189 = vld [vmem:[#allocation3 + $0x66] sm:$0xff]
        %v4190 = vld [vmem:[#allocation3 + $0x6e] sm:$0xff]
        %v4191 = vld [vmem:[#allocation3 + $0x76] sm:$0xff]
        %v4192 = vld [vmem:[#allocation3 + $0x7e] sm:$0xff]
        %v4193 = vld [vmem:[#allocation3 + $0x86] sm:$0xff]
        %v4194 = vld [vmem:[#allocation3 + $0x8e] sm:$0xff]
        %v4195 = vld [vmem:[#allocation3 + $0x96] sm:$0xf]
        %s4196 = scalar_lea.vmem %s4, 20
        %v4197 = vld [vmem:[%s4196] sm:$0x7]
        %v4198 = vpack.c.bf16 %v4179, %v4178
        %v4199 = vpack.c.bf16 %v4181, %v4180
        %v4200 = vpack.c.bf16 %v4183, %v4182
        %v4201 = vpack.c.bf16 %v4185, %v4184
        %v4202 = vpack.c.bf16 %v4187, %v4186
        %v4203 = vpack.c.bf16 %v4189, %v4188
        %v4204 = vpack.c.bf16 %v4191, %v4190
        %v4205 = vpack.c.bf16 %v4193, %v4192
        %v4206 = vpack.c.bf16 %v4195, %v4194
        %v4208 = vsel %vm1497, %v4198, 0
        %v4211 = vsel %vm1497, %v4199, 0
        %v4214 = vsel %vm1497, %v4200, 0
        %v4217 = vsel %vm1497, %v4201, 0
        %v4220 = vsel %vm1497, %v4202, 0
        %v4223 = vsel %vm1497, %v4203, 0
        %v4226 = vsel %vm1497, %v4204, 0
        %v4229 = vsel %vm1497, %v4205, 0
        %v4232 = vsel %vm1497, %v4206, 0
        %v4235 = vsel %vm3388, %v4197, 0
        %4237 = vmatprep.subr.bf16.mxu0 0
        %4238 = vmatpush1.bf16.msra.mxu0 %v4235
        %4239 = vmatprep.subr.bf16.mxu0 0
        %4240 = vmatpush1.bf16.msra.mxu0 0
        %4241 = vmatprep.subr.bf16.mxu0 0
        %4242 = vmatpush1.bf16.msra.mxu0 0
        %4243 = vmatprep.subr.bf16.mxu0 0
        %4244 = vmatpush1.bf16.msra.mxu0 0
        %4245 = vmatprep.subr.bf16.mxu0 0
        %4246 = vmatpush1.bf16.msra.mxu0 0
        %4247 = vmatprep.subr.bf16.mxu0 0
        %4248 = vmatpush1.bf16.msra.mxu0 0
        %4249 = vmatprep.subr.bf16.mxu0 0
        %4250 = vmatpush1.bf16.msra.mxu0 0
        %4251 = vmatprep.subr.bf16.mxu0 0
        %4252 = vmatpush1.bf16.msra.mxu0 0
        %4253 = vmatprep.subr.bf16.mxu0 0
        %4254 = vmatpush1.bf16.msra.mxu0 0
        %4255 = vmatprep.subr.bf16.mxu0 0
        %4256 = vmatpush1.bf16.msra.mxu0 0
        %4257 = vmatprep.subr.bf16.mxu0 0
        %4258 = vmatpush1.bf16.msra.mxu0 0
        %4259 = vmatprep.subr.bf16.mxu0 0
        %4260 = vmatpush1.bf16.msra.mxu0 0
        %4261 = vmatprep.subr.bf16.mxu0 0
        %4262 = vmatpush1.bf16.msra.mxu0 0
        %4263 = vmatprep.subr.bf16.mxu0 0
        %4264 = vmatpush1.bf16.msra.mxu0 0
        %4265 = vmatprep.subr.bf16.mxu0 0
        %4266 = vmatpush1.bf16.msra.mxu0 0
        %4267 = vmatprep.subr.bf16.mxu0 0
        %4268 = vmatpush1.bf16.msra.mxu0 0
        %4269 = vmatprep.mubr.bf16.mxu0 0
        %4270 = vmatmul.mubr.bf16.gmra.mrb[0].mxu0 %v4208
        %v4271 = vpop.f32.mrb[0].mxu0
        %v4272 = vadd.f32 0.0, %v4271
        %v4273 = vpop.f32.mrb[0].mxu0
        %v4274 = vpop.f32.mrb[0].mxu0
        %v4275 = vadd.f32 0.0, %v4274
        %v4276 = vpop.f32.mrb[0].mxu0
        %4277 = vmatprep.mubr.bf16.mxu0 0
        %4278 = vmatmul.mubr.bf16.gmra.mrb[0].mxu0 %v4211
        %v4279 = vpop.f32.mrb[0].mxu0
        %v4280 = vadd.f32 0.0, %v4279
        %v4281 = vpop.f32.mrb[0].mxu0
        %v4282 = vpop.f32.mrb[0].mxu0
        %v4283 = vadd.f32 0.0, %v4282
        %v4284 = vpop.f32.mrb[0].mxu0
        %4285 = vmatprep.mubr.bf16.mxu0 0
        %4286 = vmatmul.mubr.bf16.gmra.mrb[0].mxu0 %v4214
        %v4287 = vpop.f32.mrb[0].mxu0
        %v4288 = vadd.f32 0.0, %v4287
        %v4289 = vpop.f32.mrb[0].mxu0
        %v4290 = vpop.f32.mrb[0].mxu0
        %v4291 = vadd.f32 0.0, %v4290
        %v4292 = vpop.f32.mrb[0].mxu0
        %4293 = vmatprep.mubr.bf16.mxu0 0
        %4294 = vmatmul.mubr.bf16.gmra.mrb[0].mxu0 %v4217
        %v4295 = vpop.f32.mrb[0].mxu0
        %v4296 = vadd.f32 0.0, %v4295
        %v4297 = vpop.f32.mrb[0].mxu0
        %v4298 = vpop.f32.mrb[0].mxu0
        %v4299 = vadd.f32 0.0, %v4298
        %v4300 = vpop.f32.mrb[0].mxu0
        %4301 = vmatprep.mubr.bf16.mxu0 0
        %4302 = vmatmul.mubr.bf16.gmra.mrb[0].mxu0 %v4220
        %v4303 = vpop.f32.mrb[0].mxu0
        %v4304 = vadd.f32 0.0, %v4303
        %v4305 = vpop.f32.mrb[0].mxu0
        %v4306 = vpop.f32.mrb[0].mxu0
        %v4307 = vadd.f32 0.0, %v4306
        %v4308 = vpop.f32.mrb[0].mxu0
        %4309 = vmatprep.mubr.bf16.mxu0 0
        %4310 = vmatmul.mubr.bf16.gmra.mrb[0].mxu0 %v4223
        %v4311 = vpop.f32.mrb[0].mxu0
        %v4312 = vadd.f32 0.0, %v4311
        %v4313 = vpop.f32.mrb[0].mxu0
        %v4314 = vpop.f32.mrb[0].mxu0
        %v4315 = vadd.f32 0.0, %v4314
        %v4316 = vpop.f32.mrb[0].mxu0
        %4317 = vmatprep.mubr.bf16.mxu0 0
        %4318 = vmatmul.mubr.bf16.gmra.mrb[0].mxu0 %v4226
        %v4319 = vpop.f32.mrb[0].mxu0
        %v4320 = vadd.f32 0.0, %v4319
        %v4321 = vpop.f32.mrb[0].mxu0
        %v4322 = vpop.f32.mrb[0].mxu0
        %v4323 = vadd.f32 0.0, %v4322
        %v4324 = vpop.f32.mrb[0].mxu0
        %4325 = vmatprep.mubr.bf16.mxu0 0
        %4326 = vmatmul.mubr.bf16.gmra.mrb[0].mxu0 %v4229
        %v4327 = vpop.f32.mrb[0].mxu0
        %v4328 = vadd.f32 0.0, %v4327
        %v4329 = vpop.f32.mrb[0].mxu0
        %v4330 = vpop.f32.mrb[0].mxu0
        %v4331 = vadd.f32 0.0, %v4330
        %v4332 = vpop.f32.mrb[0].mxu0
        %4333 = vmatprep.mubr.bf16.mxu0 0
        %4334 = vmatmul.mubr.bf16.gmra.mrb[0].mxu0 %v4232
        %v4335 = vpop.f32.mrb[0].mxu0
        %v4336 = vadd.f32 0.0, %v4335
        %v4337 = vpop.f32.mrb[0].mxu0
        %v4338 = vpop.f32.mrb[0].mxu0
        %v4339 = vadd.f32 0.0, %v4338
        %v4340 = vpop.f32.mrb[0].mxu0
        %4341 = vdwg.mxu0
        %v4342 = vadd.f32 %v4160, %v4272
        %v4343 = vadd.f32 %v4161, %v4275
        %v4344 = vadd.f32 %v4162, %v4280
        %v4345 = vadd.f32 %v4163, %v4283
        %v4346 = vadd.f32 %v4164, %v4288
        %v4347 = vadd.f32 %v4165, %v4291
        %v4348 = vadd.f32 %v4166, %v4296
        %v4349 = vadd.f32 %v4167, %v4299
        %v4350 = vadd.f32 %v4168, %v4304
        %v4351 = vadd.f32 %v4169, %v4307
        %v4352 = vadd.f32 %v4170, %v4312
        %v4353 = vadd.f32 %v4171, %v4315
        %v4354 = vadd.f32 %v4172, %v4320
        %v4355 = vadd.f32 %v4173, %v4323
        %v4356 = vadd.f32 %v4174, %v4328
        %v4357 = vadd.f32 %v4175, %v4331
        %v4358 = vadd.f32 %v4176, %v4336
        %v4359 = vadd.f32 %v4177, %v4339
        %v4360 = vld [vmem:[#allocation3 + $0xf] sm:$0xff]
        %v4361 = vld [vmem:[#allocation3 + $0x17] sm:$0xff]
        %v4362 = vld [vmem:[#allocation3 + $0x1f] sm:$0xff]
        %v4363 = vld [vmem:[#allocation3 + $0x27] sm:$0xff]
        %v4364 = vld [vmem:[#allocation3 + $0x2f] sm:$0xff]
        %v4365 = vld [vmem:[#allocation3 + $0x37] sm:$0xff]
        %v4366 = vld [vmem:[#allocation3 + $0x3f] sm:$0xff]
        %v4367 = vld [vmem:[#allocation3 + $0x47] sm:$0xff]
        %v4368 = vld [vmem:[#allocation3 + $0x4f] sm:$0xff]
        %v4369 = vld [vmem:[#allocation3 + $0x57] sm:$0xff]
        %v4370 = vld [vmem:[#allocation3 + $0x5f] sm:$0xff]
        %v4371 = vld [vmem:[#allocation3 + $0x67] sm:$0xff]
        %v4372 = vld [vmem:[#allocation3 + $0x6f] sm:$0xff]
        %v4373 = vld [vmem:[#allocation3 + $0x77] sm:$0xff]
        %v4374 = vld [vmem:[#allocation3 + $0x7f] sm:$0xff]
        %v4375 = vld [vmem:[#allocation3 + $0x87] sm:$0xff]
        %v4376 = vld [vmem:[#allocation3 + $0x8f] sm:$0xff]
        %v4377 = vld [vmem:[#allocation3 + $0x97] sm:$0xf]
        %s4378 = scalar_lea.vmem %s4, 24
        %v4379 = vld [vmem:[%s4378] sm:$0x7]
        %v4380 = vpack.c.bf16 %v4361, %v4360
        %v4381 = vpack.c.bf16 %v4363, %v4362
        %v4382 = vpack.c.bf16 %v4365, %v4364
        %v4383 = vpack.c.bf16 %v4367, %v4366
        %v4384 = vpack.c.bf16 %v4369, %v4368
        %v4385 = vpack.c.bf16 %v4371, %v4370
        %v4386 = vpack.c.bf16 %v4373, %v4372
        %v4387 = vpack.c.bf16 %v4375, %v4374
        %v4388 = vpack.c.bf16 %v4377, %v4376
        %v4390 = vsel %vm1497, %v4380, 0
        %v4393 = vsel %vm1497, %v4381, 0
        %v4396 = vsel %vm1497, %v4382, 0
        %v4399 = vsel %vm1497, %v4383, 0
        %v4402 = vsel %vm1497, %v4384, 0
        %v4405 = vsel %vm1497, %v4385, 0
        %v4408 = vsel %vm1497, %v4386, 0
        %v4411 = vsel %vm1497, %v4387, 0
        %v4414 = vsel %vm1497, %v4388, 0
        %v4417 = vsel %vm3388, %v4379, 0
        %4419 = vmatprep.subr.bf16.mxu0 0
        %4420 = vmatpush1.bf16.msra.mxu0 %v4417
        %4421 = vmatprep.subr.bf16.mxu0 0
        %4422 = vmatpush1.bf16.msra.mxu0 0
        %4423 = vmatprep.subr.bf16.mxu0 0
        %4424 = vmatpush1.bf16.msra.mxu0 0
        %4425 = vmatprep.subr.bf16.mxu0 0
        %4426 = vmatpush1.bf16.msra.mxu0 0
        %4427 = vmatprep.subr.bf16.mxu0 0
        %4428 = vmatpush1.bf16.msra.mxu0 0
        %4429 = vmatprep.subr.bf16.mxu0 0
        %4430 = vmatpush1.bf16.msra.mxu0 0
        %4431 = vmatprep.subr.bf16.mxu0 0
        %4432 = vmatpush1.bf16.msra.mxu0 0
        %4433 = vmatprep.subr.bf16.mxu0 0
        %4434 = vmatpush1.bf16.msra.mxu0 0
        %4435 = vmatprep.subr.bf16.mxu0 0
        %4436 = vmatpush1.bf16.msra.mxu0 0
        %4437 = vmatprep.subr.bf16.mxu0 0
        %4438 = vmatpush1.bf16.msra.mxu0 0
        %4439 = vmatprep.subr.bf16.mxu0 0
        %4440 = vmatpush1.bf16.msra.mxu0 0
        %4441 = vmatprep.subr.bf16.mxu0 0
        %4442 = vmatpush1.bf16.msra.mxu0 0
        %4443 = vmatprep.subr.bf16.mxu0 0
        %4444 = vmatpush1.bf16.msra.mxu0 0
        %4445 = vmatprep.subr.bf16.mxu0 0
        %4446 = vmatpush1.bf16.msra.mxu0 0
        %4447 = vmatprep.subr.bf16.mxu0 0
        %4448 = vmatpush1.bf16.msra.mxu0 0
        %4449 = vmatprep.subr.bf16.mxu0 0
        %4450 = vmatpush1.bf16.msra.mxu0 0
        %4451 = vmatprep.mubr.bf16.mxu0 0
        %4452 = vmatmul.mubr.bf16.gmra.mrb[0].mxu0 %v4390
        %v4453 = vpop.f32.mrb[0].mxu0
        %v4454 = vadd.f32 0.0, %v4453
        %v4455 = vpop.f32.mrb[0].mxu0
        %v4456 = vpop.f32.mrb[0].mxu0
        %v4457 = vadd.f32 0.0, %v4456
        %v4458 = vpop.f32.mrb[0].mxu0
        %4459 = vmatprep.mubr.bf16.mxu0 0
        %4460 = vmatmul.mubr.bf16.gmra.mrb[0].mxu0 %v4393
        %v4461 = vpop.f32.mrb[0].mxu0
        %v4462 = vadd.f32 0.0, %v4461
        %v4463 = vpop.f32.mrb[0].mxu0
        %v4464 = vpop.f32.mrb[0].mxu0
        %v4465 = vadd.f32 0.0, %v4464
        %v4466 = vpop.f32.mrb[0].mxu0
        %4467 = vmatprep.mubr.bf16.mxu0 0
        %4468 = vmatmul.mubr.bf16.gmra.mrb[0].mxu0 %v4396
        %v4469 = vpop.f32.mrb[0].mxu0
        %v4470 = vadd.f32 0.0, %v4469
        %v4471 = vpop.f32.mrb[0].mxu0
        %v4472 = vpop.f32.mrb[0].mxu0
        %v4473 = vadd.f32 0.0, %v4472
        %v4474 = vpop.f32.mrb[0].mxu0
        %4475 = vmatprep.mubr.bf16.mxu0 0
        %4476 = vmatmul.mubr.bf16.gmra.mrb[0].mxu0 %v4399
        %v4477 = vpop.f32.mrb[0].mxu0
        %v4478 = vadd.f32 0.0, %v4477
        %v4479 = vpop.f32.mrb[0].mxu0
        %v4480 = vpop.f32.mrb[0].mxu0
        %v4481 = vadd.f32 0.0, %v4480
        %v4482 = vpop.f32.mrb[0].mxu0
        %4483 = vmatprep.mubr.bf16.mxu0 0
        %4484 = vmatmul.mubr.bf16.gmra.mrb[0].mxu0 %v4402
        %v4485 = vpop.f32.mrb[0].mxu0
        %v4486 = vadd.f32 0.0, %v4485
        %v4487 = vpop.f32.mrb[0].mxu0
        %v4488 = vpop.f32.mrb[0].mxu0
        %v4489 = vadd.f32 0.0, %v4488
        %v4490 = vpop.f32.mrb[0].mxu0
        %4491 = vmatprep.mubr.bf16.mxu0 0
        %4492 = vmatmul.mubr.bf16.gmra.mrb[0].mxu0 %v4405
        %v4493 = vpop.f32.mrb[0].mxu0
        %v4494 = vadd.f32 0.0, %v4493
        %v4495 = vpop.f32.mrb[0].mxu0
        %v4496 = vpop.f32.mrb[0].mxu0
        %v4497 = vadd.f32 0.0, %v4496
        %v4498 = vpop.f32.mrb[0].mxu0
        %4499 = vmatprep.mubr.bf16.mxu0 0
        %4500 = vmatmul.mubr.bf16.gmra.mrb[0].mxu0 %v4408
        %v4501 = vpop.f32.mrb[0].mxu0
        %v4502 = vadd.f32 0.0, %v4501
        %v4503 = vpop.f32.mrb[0].mxu0
        %v4504 = vpop.f32.mrb[0].mxu0
        %v4505 = vadd.f32 0.0, %v4504
        %v4506 = vpop.f32.mrb[0].mxu0
        %4507 = vmatprep.mubr.bf16.mxu0 0
        %4508 = vmatmul.mubr.bf16.gmra.mrb[0].mxu0 %v4411
        %v4509 = vpop.f32.mrb[0].mxu0
        %v4510 = vadd.f32 0.0, %v4509
        %v4511 = vpop.f32.mrb[0].mxu0
        %v4512 = vpop.f32.mrb[0].mxu0
        %v4513 = vadd.f32 0.0, %v4512
        %v4514 = vpop.f32.mrb[0].mxu0
        %4515 = vmatprep.mubr.bf16.mxu0 0
        %4516 = vmatmul.mubr.bf16.gmra.mrb[0].mxu0 %v4414
        %v4517 = vpop.f32.mrb[0].mxu0
        %v4518 = vadd.f32 0.0, %v4517
        %v4519 = vpop.f32.mrb[0].mxu0
        %v4520 = vpop.f32.mrb[0].mxu0
        %v4521 = vadd.f32 0.0, %v4520
        %v4522 = vpop.f32.mrb[0].mxu0
        %4523 = vdwg.mxu0
        %v4524 = vadd.f32 %v4342, %v4454
        %v4525 = vadd.f32 %v4343, %v4457
        %v4526 = vadd.f32 %v4344, %v4462
        %v4527 = vadd.f32 %v4345, %v4465
        %v4528 = vadd.f32 %v4346, %v4470
        %v4529 = vadd.f32 %v4347, %v4473
        %v4530 = vadd.f32 %v4348, %v4478
        %v4531 = vadd.f32 %v4349, %v4481
        %v4532 = vadd.f32 %v4350, %v4486
        %v4533 = vadd.f32 %v4351, %v4489
        %v4534 = vadd.f32 %v4352, %v4494
        %v4535 = vadd.f32 %v4353, %v4497
        %v4536 = vadd.f32 %v4354, %v4502
        %v4537 = vadd.f32 %v4355, %v4505
        %v4538 = vadd.f32 %v4356, %v4510
        %v4539 = vadd.f32 %v4357, %v4513
        %v4540 = vadd.f32 %v4358, %v4518
        %v4541 = vadd.f32 %v4359, %v4521
        %v4542 = vld [vmem:[#allocation3 + $0x10] sm:$0xff]
        %v4543 = vld [vmem:[#allocation3 + $0x18] sm:$0xff]
        %v4544 = vld [vmem:[#allocation3 + $0x20] sm:$0xff]
        %v4545 = vld [vmem:[#allocation3 + $0x28] sm:$0xff]
        %v4546 = vld [vmem:[#allocation3 + $0x30] sm:$0xff]
        %v4547 = vld [vmem:[#allocation3 + $0x38] sm:$0xff]
        %v4548 = vld [vmem:[#allocation3 + $0x40] sm:$0xff]
        %v4549 = vld [vmem:[#allocation3 + $0x48] sm:$0xff]
        %v4550 = vld [vmem:[#allocation3 + $0x50] sm:$0xff]
        %v4551 = vld [vmem:[#allocation3 + $0x58] sm:$0xff]
        %v4552 = vld [vmem:[#allocation3 + $0x60] sm:$0xff]
        %v4553 = vld [vmem:[#allocation3 + $0x68] sm:$0xff]
        %v4554 = vld [vmem:[#allocation3 + $0x70] sm:$0xff]
        %v4555 = vld [vmem:[#allocation3 + $0x78] sm:$0xff]
        %v4556 = vld [vmem:[#allocation3 + $0x80] sm:$0xff]
        %v4557 = vld [vmem:[#allocation3 + $0x88] sm:$0xff]
        %v4558 = vld [vmem:[#allocation3 + $0x90] sm:$0xff]
        %v4559 = vld [vmem:[#allocation3 + $0x98] sm:$0xf]
        %s4560 = scalar_lea.vmem %s4, 28
        %v4561 = vld [vmem:[%s4560] sm:$0x7]
        %v4562 = vpack.c.bf16 %v4543, %v4542
        %v4563 = vpack.c.bf16 %v4545, %v4544
        %v4564 = vpack.c.bf16 %v4547, %v4546
        %v4565 = vpack.c.bf16 %v4549, %v4548
        %v4566 = vpack.c.bf16 %v4551, %v4550
        %v4567 = vpack.c.bf16 %v4553, %v4552
        %v4568 = vpack.c.bf16 %v4555, %v4554
        %v4569 = vpack.c.bf16 %v4557, %v4556
        %v4570 = vpack.c.bf16 %v4559, %v4558
        %v4572 = vsel %vm1497, %v4562, 0
        %v4575 = vsel %vm1497, %v4563, 0
        %v4578 = vsel %vm1497, %v4564, 0
        %v4581 = vsel %vm1497, %v4565, 0
        %v4584 = vsel %vm1497, %v4566, 0
        %v4587 = vsel %vm1497, %v4567, 0
        %v4590 = vsel %vm1497, %v4568, 0
        %v4593 = vsel %vm1497, %v4569, 0
        %v4596 = vsel %vm1497, %v4570, 0
        %v4599 = vsel %vm3388, %v4561, 0
        %4601 = vmatprep.subr.bf16.mxu0 0
        %4602 = vmatpush1.bf16.msra.mxu0 %v4599
        %4603 = vmatprep.subr.bf16.mxu0 0
        %4604 = vmatpush1.bf16.msra.mxu0 0
        %4605 = vmatprep.subr.bf16.mxu0 0
        %4606 = vmatpush1.bf16.msra.mxu0 0
        %4607 = vmatprep.subr.bf16.mxu0 0
        %4608 = vmatpush1.bf16.msra.mxu0 0
        %4609 = vmatprep.subr.bf16.mxu0 0
        %4610 = vmatpush1.bf16.msra.mxu0 0
        %4611 = vmatprep.subr.bf16.mxu0 0
        %4612 = vmatpush1.bf16.msra.mxu0 0
        %4613 = vmatprep.subr.bf16.mxu0 0
        %4614 = vmatpush1.bf16.msra.mxu0 0
        %4615 = vmatprep.subr.bf16.mxu0 0
        %4616 = vmatpush1.bf16.msra.mxu0 0
        %4617 = vmatprep.subr.bf16.mxu0 0
        %4618 = vmatpush1.bf16.msra.mxu0 0
        %4619 = vmatprep.subr.bf16.mxu0 0
        %4620 = vmatpush1.bf16.msra.mxu0 0
        %4621 = vmatprep.subr.bf16.mxu0 0
        %4622 = vmatpush1.bf16.msra.mxu0 0
        %4623 = vmatprep.subr.bf16.mxu0 0
        %4624 = vmatpush1.bf16.msra.mxu0 0
        %4625 = vmatprep.subr.bf16.mxu0 0
        %4626 = vmatpush1.bf16.msra.mxu0 0
        %4627 = vmatprep.subr.bf16.mxu0 0
        %4628 = vmatpush1.bf16.msra.mxu0 0
        %4629 = vmatprep.subr.bf16.mxu0 0
        %4630 = vmatpush1.bf16.msra.mxu0 0
        %4631 = vmatprep.subr.bf16.mxu0 0
        %4632 = vmatpush1.bf16.msra.mxu0 0
        %4633 = vmatprep.mubr.bf16.mxu0 0
        %4634 = vmatmul.mubr.bf16.gmra.mrb[0].mxu0 %v4572
        %v4635 = vpop.f32.mrb[0].mxu0
        %v4636 = vadd.f32 0.0, %v4635
        %v4637 = vpop.f32.mrb[0].mxu0
        %v4638 = vpop.f32.mrb[0].mxu0
        %v4639 = vadd.f32 0.0, %v4638
        %v4640 = vpop.f32.mrb[0].mxu0
        %4641 = vmatprep.mubr.bf16.mxu0 0
        %4642 = vmatmul.mubr.bf16.gmra.mrb[0].mxu0 %v4575
        %v4643 = vpop.f32.mrb[0].mxu0
        %v4644 = vadd.f32 0.0, %v4643
        %v4645 = vpop.f32.mrb[0].mxu0
        %v4646 = vpop.f32.mrb[0].mxu0
        %v4647 = vadd.f32 0.0, %v4646
        %v4648 = vpop.f32.mrb[0].mxu0
        %4649 = vmatprep.mubr.bf16.mxu0 0
        %4650 = vmatmul.mubr.bf16.gmra.mrb[0].mxu0 %v4578
        %v4651 = vpop.f32.mrb[0].mxu0
        %v4652 = vadd.f32 0.0, %v4651
        %v4653 = vpop.f32.mrb[0].mxu0
        %v4654 = vpop.f32.mrb[0].mxu0
        %v4655 = vadd.f32 0.0, %v4654
        %v4656 = vpop.f32.mrb[0].mxu0
        %4657 = vmatprep.mubr.bf16.mxu0 0
        %4658 = vmatmul.mubr.bf16.gmra.mrb[0].mxu0 %v4581
        %v4659 = vpop.f32.mrb[0].mxu0
        %v4660 = vadd.f32 0.0, %v4659
        %v4661 = vpop.f32.mrb[0].mxu0
        %v4662 = vpop.f32.mrb[0].mxu0
        %v4663 = vadd.f32 0.0, %v4662
        %v4664 = vpop.f32.mrb[0].mxu0
        %4665 = vmatprep.mubr.bf16.mxu0 0
        %4666 = vmatmul.mubr.bf16.gmra.mrb[0].mxu0 %v4584
        %v4667 = vpop.f32.mrb[0].mxu0
        %v4668 = vadd.f32 0.0, %v4667
        %v4669 = vpop.f32.mrb[0].mxu0
        %v4670 = vpop.f32.mrb[0].mxu0
        %v4671 = vadd.f32 0.0, %v4670
        %v4672 = vpop.f32.mrb[0].mxu0
        %4673 = vmatprep.mubr.bf16.mxu0 0
        %4674 = vmatmul.mubr.bf16.gmra.mrb[0].mxu0 %v4587
        %v4675 = vpop.f32.mrb[0].mxu0
        %v4676 = vadd.f32 0.0, %v4675
        %v4677 = vpop.f32.mrb[0].mxu0
        %v4678 = vpop.f32.mrb[0].mxu0
        %v4679 = vadd.f32 0.0, %v4678
        %v4680 = vpop.f32.mrb[0].mxu0
        %4681 = vmatprep.mubr.bf16.mxu0 0
        %4682 = vmatmul.mubr.bf16.gmra.mrb[0].mxu0 %v4590
        %v4683 = vpop.f32.mrb[0].mxu0
        %v4684 = vadd.f32 0.0, %v4683
        %v4685 = vpop.f32.mrb[0].mxu0
        %v4686 = vpop.f32.mrb[0].mxu0
        %v4687 = vadd.f32 0.0, %v4686
        %v4688 = vpop.f32.mrb[0].mxu0
        %4689 = vmatprep.mubr.bf16.mxu0 0
        %4690 = vmatmul.mubr.bf16.gmra.mrb[0].mxu0 %v4593
        %v4691 = vpop.f32.mrb[0].mxu0
        %v4692 = vadd.f32 0.0, %v4691
        %v4693 = vpop.f32.mrb[0].mxu0
        %v4694 = vpop.f32.mrb[0].mxu0
        %v4695 = vadd.f32 0.0, %v4694
        %v4696 = vpop.f32.mrb[0].mxu0
        %4697 = vmatprep.mubr.bf16.mxu0 0
        %4698 = vmatmul.mubr.bf16.gmra.mrb[0].mxu0 %v4596
        %v4699 = vpop.f32.mrb[0].mxu0
        %v4700 = vadd.f32 0.0, %v4699
        %v4701 = vpop.f32.mrb[0].mxu0
        %v4702 = vpop.f32.mrb[0].mxu0
        %v4703 = vadd.f32 0.0, %v4702
        %v4704 = vpop.f32.mrb[0].mxu0
        %4705 = vdwg.mxu0
        %v4706 = vadd.f32 %v4524, %v4636
        %v4707 = vadd.f32 %v4525, %v4639
        %v4708 = vadd.f32 %v4526, %v4644
        %v4709 = vadd.f32 %v4527, %v4647
        %v4710 = vadd.f32 %v4528, %v4652
        %v4711 = vadd.f32 %v4529, %v4655
        %v4712 = vadd.f32 %v4530, %v4660
        %v4713 = vadd.f32 %v4531, %v4663
        %v4714 = vadd.f32 %v4532, %v4668
        %v4715 = vadd.f32 %v4533, %v4671
        %v4716 = vadd.f32 %v4534, %v4676
        %v4717 = vadd.f32 %v4535, %v4679
        %v4718 = vadd.f32 %v4536, %v4684
        %v4719 = vadd.f32 %v4537, %v4687
        %v4720 = vadd.f32 %v4538, %v4692
        %v4721 = vadd.f32 %v4539, %v4695
        %v4722 = vadd.f32 %v4540, %v4700
        %v4723 = vadd.f32 %v4541, %v4703
        %v4724 = vld [vmem:[#allocation3 + $0x11] sm:$0xff]
        %v4725 = vld [vmem:[#allocation3 + $0x19] sm:$0xff]
        %v4726 = vld [vmem:[#allocation3 + $0x21] sm:$0xff]
        %v4727 = vld [vmem:[#allocation3 + $0x29] sm:$0xff]
        %v4728 = vld [vmem:[#allocation3 + $0x31] sm:$0xff]
        %v4729 = vld [vmem:[#allocation3 + $0x39] sm:$0xff]
        %v4730 = vld [vmem:[#allocation3 + $0x41] sm:$0xff]
        %v4731 = vld [vmem:[#allocation3 + $0x49] sm:$0xff]
        %v4732 = vld [vmem:[#allocation3 + $0x51] sm:$0xff]
        %v4733 = vld [vmem:[#allocation3 + $0x59] sm:$0xff]
        %v4734 = vld [vmem:[#allocation3 + $0x61] sm:$0xff]
        %v4735 = vld [vmem:[#allocation3 + $0x69] sm:$0xff]
        %v4736 = vld [vmem:[#allocation3 + $0x71] sm:$0xff]
        %v4737 = vld [vmem:[#allocation3 + $0x79] sm:$0xff]
        %v4738 = vld [vmem:[#allocation3 + $0x81] sm:$0xff]
        %v4739 = vld [vmem:[#allocation3 + $0x89] sm:$0xff]
        %v4740 = vld [vmem:[#allocation3 + $0x91] sm:$0xff]
        %v4741 = vld [vmem:[#allocation3 + $0x99] sm:$0xf]
        %s4742 = scalar_lea.vmem %s4, 32
        %v4743 = vld [vmem:[%s4742] sm:$0x7]
        %v4744 = vpack.c.bf16 %v4725, %v4724
        %v4745 = vpack.c.bf16 %v4727, %v4726
        %v4746 = vpack.c.bf16 %v4729, %v4728
        %v4747 = vpack.c.bf16 %v4731, %v4730
        %v4748 = vpack.c.bf16 %v4733, %v4732
        %v4749 = vpack.c.bf16 %v4735, %v4734
        %v4750 = vpack.c.bf16 %v4737, %v4736
        %v4751 = vpack.c.bf16 %v4739, %v4738
        %v4752 = vpack.c.bf16 %v4741, %v4740
        %v4754 = vsel %vm1497, %v4744, 0
        %v4757 = vsel %vm1497, %v4745, 0
        %v4760 = vsel %vm1497, %v4746, 0
        %v4763 = vsel %vm1497, %v4747, 0
        %v4766 = vsel %vm1497, %v4748, 0
        %v4769 = vsel %vm1497, %v4749, 0
        %v4772 = vsel %vm1497, %v4750, 0
        %v4775 = vsel %vm1497, %v4751, 0
        %v4778 = vsel %vm1497, %v4752, 0
        %v4781 = vsel %vm3388, %v4743, 0
        %4783 = vmatprep.subr.bf16.mxu0 0
        %4784 = vmatpush1.bf16.msra.mxu0 %v4781
        %4785 = vmatprep.subr.bf16.mxu0 0
        %4786 = vmatpush1.bf16.msra.mxu0 0
        %4787 = vmatprep.subr.bf16.mxu0 0
        %4788 = vmatpush1.bf16.msra.mxu0 0
        %4789 = vmatprep.subr.bf16.mxu0 0
        %4790 = vmatpush1.bf16.msra.mxu0 0
        %4791 = vmatprep.subr.bf16.mxu0 0
        %4792 = vmatpush1.bf16.msra.mxu0 0
        %4793 = vmatprep.subr.bf16.mxu0 0
        %4794 = vmatpush1.bf16.msra.mxu0 0
        %4795 = vmatprep.subr.bf16.mxu0 0
        %4796 = vmatpush1.bf16.msra.mxu0 0
        %4797 = vmatprep.subr.bf16.mxu0 0
        %4798 = vmatpush1.bf16.msra.mxu0 0
        %4799 = vmatprep.subr.bf16.mxu0 0
        %4800 = vmatpush1.bf16.msra.mxu0 0
        %4801 = vmatprep.subr.bf16.mxu0 0
        %4802 = vmatpush1.bf16.msra.mxu0 0
        %4803 = vmatprep.subr.bf16.mxu0 0
        %4804 = vmatpush1.bf16.msra.mxu0 0
        %4805 = vmatprep.subr.bf16.mxu0 0
        %4806 = vmatpush1.bf16.msra.mxu0 0
        %4807 = vmatprep.subr.bf16.mxu0 0
        %4808 = vmatpush1.bf16.msra.mxu0 0
        %4809 = vmatprep.subr.bf16.mxu0 0
        %4810 = vmatpush1.bf16.msra.mxu0 0
        %4811 = vmatprep.subr.bf16.mxu0 0
        %4812 = vmatpush1.bf16.msra.mxu0 0
        %4813 = vmatprep.subr.bf16.mxu0 0
        %4814 = vmatpush1.bf16.msra.mxu0 0
        %4815 = vmatprep.mubr.bf16.mxu0 0
        %4816 = vmatmul.mubr.bf16.gmra.mrb[0].mxu0 %v4754
        %v4817 = vpop.f32.mrb[0].mxu0
        %v4818 = vadd.f32 0.0, %v4817
        %v4819 = vpop.f32.mrb[0].mxu0
        %v4820 = vpop.f32.mrb[0].mxu0
        %v4821 = vadd.f32 0.0, %v4820
        %v4822 = vpop.f32.mrb[0].mxu0
        %4823 = vmatprep.mubr.bf16.mxu0 0
        %4824 = vmatmul.mubr.bf16.gmra.mrb[0].mxu0 %v4757
        %v4825 = vpop.f32.mrb[0].mxu0
        %v4826 = vadd.f32 0.0, %v4825
        %v4827 = vpop.f32.mrb[0].mxu0
        %v4828 = vpop.f32.mrb[0].mxu0
        %v4829 = vadd.f32 0.0, %v4828
        %v4830 = vpop.f32.mrb[0].mxu0
        %4831 = vmatprep.mubr.bf16.mxu0 0
        %4832 = vmatmul.mubr.bf16.gmra.mrb[0].mxu0 %v4760
        %v4833 = vpop.f32.mrb[0].mxu0
        %v4834 = vadd.f32 0.0, %v4833
        %v4835 = vpop.f32.mrb[0].mxu0
        %v4836 = vpop.f32.mrb[0].mxu0
        %v4837 = vadd.f32 0.0, %v4836
        %v4838 = vpop.f32.mrb[0].mxu0
        %4839 = vmatprep.mubr.bf16.mxu0 0
        %4840 = vmatmul.mubr.bf16.gmra.mrb[0].mxu0 %v4763
        %v4841 = vpop.f32.mrb[0].mxu0
        %v4842 = vadd.f32 0.0, %v4841
        %v4843 = vpop.f32.mrb[0].mxu0
        %v4844 = vpop.f32.mrb[0].mxu0
        %v4845 = vadd.f32 0.0, %v4844
        %v4846 = vpop.f32.mrb[0].mxu0
        %4847 = vmatprep.mubr.bf16.mxu0 0
        %4848 = vmatmul.mubr.bf16.gmra.mrb[0].mxu0 %v4766
        %v4849 = vpop.f32.mrb[0].mxu0
        %v4850 = vadd.f32 0.0, %v4849
        %v4851 = vpop.f32.mrb[0].mxu0
        %v4852 = vpop.f32.mrb[0].mxu0
        %v4853 = vadd.f32 0.0, %v4852
        %v4854 = vpop.f32.mrb[0].mxu0
        %4855 = vmatprep.mubr.bf16.mxu0 0
        %4856 = vmatmul.mubr.bf16.gmra.mrb[0].mxu0 %v4769
        %v4857 = vpop.f32.mrb[0].mxu0
        %v4858 = vadd.f32 0.0, %v4857
        %v4859 = vpop.f32.mrb[0].mxu0
        %v4860 = vpop.f32.mrb[0].mxu0
        %v4861 = vadd.f32 0.0, %v4860
        %v4862 = vpop.f32.mrb[0].mxu0
        %4863 = vmatprep.mubr.bf16.mxu0 0
        %4864 = vmatmul.mubr.bf16.gmra.mrb[0].mxu0 %v4772
        %v4865 = vpop.f32.mrb[0].mxu0
        %v4866 = vadd.f32 0.0, %v4865
        %v4867 = vpop.f32.mrb[0].mxu0
        %v4868 = vpop.f32.mrb[0].mxu0
        %v4869 = vadd.f32 0.0, %v4868
        %v4870 = vpop.f32.mrb[0].mxu0
        %4871 = vmatprep.mubr.bf16.mxu0 0
        %4872 = vmatmul.mubr.bf16.gmra.mrb[0].mxu0 %v4775
        %v4873 = vpop.f32.mrb[0].mxu0
        %v4874 = vadd.f32 0.0, %v4873
        %v4875 = vpop.f32.mrb[0].mxu0
        %v4876 = vpop.f32.mrb[0].mxu0
        %v4877 = vadd.f32 0.0, %v4876
        %v4878 = vpop.f32.mrb[0].mxu0
        %4879 = vmatprep.mubr.bf16.mxu0 0
        %4880 = vmatmul.mubr.bf16.gmra.mrb[0].mxu0 %v4778
        %v4881 = vpop.f32.mrb[0].mxu0
        %v4882 = vadd.f32 0.0, %v4881
        %v4883 = vpop.f32.mrb[0].mxu0
        %v4884 = vpop.f32.mrb[0].mxu0
        %v4885 = vadd.f32 0.0, %v4884
        %v4886 = vpop.f32.mrb[0].mxu0
        %4887 = vdwg.mxu0
        %v4888 = vadd.f32 %v4706, %v4818
        %v4889 = vadd.f32 %v4707, %v4821
        %v4890 = vadd.f32 %v4708, %v4826
        %v4891 = vadd.f32 %v4709, %v4829
        %v4892 = vadd.f32 %v4710, %v4834
        %v4893 = vadd.f32 %v4711, %v4837
        %v4894 = vadd.f32 %v4712, %v4842
        %v4895 = vadd.f32 %v4713, %v4845
        %v4896 = vadd.f32 %v4714, %v4850
        %v4897 = vadd.f32 %v4715, %v4853
        %v4898 = vadd.f32 %v4716, %v4858
        %v4899 = vadd.f32 %v4717, %v4861
        %v4900 = vadd.f32 %v4718, %v4866
        %v4901 = vadd.f32 %v4719, %v4869
        %v4902 = vadd.f32 %v4720, %v4874
        %v4903 = vadd.f32 %v4721, %v4877
        %v4904 = vadd.f32 %v4722, %v4882
        %v4905 = vadd.f32 %v4723, %v4885
        %v4906 = vld [vmem:[#allocation3 + $0x12] sm:$0xff]
        %v4907 = vld [vmem:[#allocation3 + $0x1a] sm:$0xff]
        %v4908 = vld [vmem:[#allocation3 + $0x22] sm:$0xff]
        %v4909 = vld [vmem:[#allocation3 + $0x2a] sm:$0xff]
        %v4910 = vld [vmem:[#allocation3 + $0x32] sm:$0xff]
        %v4911 = vld [vmem:[#allocation3 + $0x3a] sm:$0xff]
        %v4912 = vld [vmem:[#allocation3 + $0x42] sm:$0xff]
        %v4913 = vld [vmem:[#allocation3 + $0x4a] sm:$0xff]
        %v4914 = vld [vmem:[#allocation3 + $0x52] sm:$0xff]
        %v4915 = vld [vmem:[#allocation3 + $0x5a] sm:$0xff]
        %v4916 = vld [vmem:[#allocation3 + $0x62] sm:$0xff]
        %v4917 = vld [vmem:[#allocation3 + $0x6a] sm:$0xff]
        %v4918 = vld [vmem:[#allocation3 + $0x72] sm:$0xff]
        %v4919 = vld [vmem:[#allocation3 + $0x7a] sm:$0xff]
        %v4920 = vld [vmem:[#allocation3 + $0x82] sm:$0xff]
        %v4921 = vld [vmem:[#allocation3 + $0x8a] sm:$0xff]
        %v4922 = vld [vmem:[#allocation3 + $0x92] sm:$0xff]
        %v4923 = vld [vmem:[#allocation3 + $0x9a] sm:$0xf]
        %s4924 = scalar_lea.vmem %s4, 36
        %v4925 = vld [vmem:[%s4924] sm:$0x7]
        %v4926 = vpack.c.bf16 %v4907, %v4906
        %v4927 = vpack.c.bf16 %v4909, %v4908
        %v4928 = vpack.c.bf16 %v4911, %v4910
        %v4929 = vpack.c.bf16 %v4913, %v4912
        %v4930 = vpack.c.bf16 %v4915, %v4914
        %v4931 = vpack.c.bf16 %v4917, %v4916
        %v4932 = vpack.c.bf16 %v4919, %v4918
        %v4933 = vpack.c.bf16 %v4921, %v4920
        %v4934 = vpack.c.bf16 %v4923, %v4922
        %v4936 = vsel %vm1497, %v4926, 0
        %v4939 = vsel %vm1497, %v4927, 0
        %v4942 = vsel %vm1497, %v4928, 0
        %v4945 = vsel %vm1497, %v4929, 0
        %v4948 = vsel %vm1497, %v4930, 0
        %v4951 = vsel %vm1497, %v4931, 0
        %v4954 = vsel %vm1497, %v4932, 0
        %v4957 = vsel %vm1497, %v4933, 0
        %v4960 = vsel %vm1497, %v4934, 0
        %v4963 = vsel %vm3388, %v4925, 0
        %4965 = vmatprep.subr.bf16.mxu0 0
        %4966 = vmatpush1.bf16.msra.mxu0 %v4963
        %4967 = vmatprep.subr.bf16.mxu0 0
        %4968 = vmatpush1.bf16.msra.mxu0 0
        %4969 = vmatprep.subr.bf16.mxu0 0
        %4970 = vmatpush1.bf16.msra.mxu0 0
        %4971 = vmatprep.subr.bf16.mxu0 0
        %4972 = vmatpush1.bf16.msra.mxu0 0
        %4973 = vmatprep.subr.bf16.mxu0 0
        %4974 = vmatpush1.bf16.msra.mxu0 0
        %4975 = vmatprep.subr.bf16.mxu0 0
        %4976 = vmatpush1.bf16.msra.mxu0 0
        %4977 = vmatprep.subr.bf16.mxu0 0
        %4978 = vmatpush1.bf16.msra.mxu0 0
        %4979 = vmatprep.subr.bf16.mxu0 0
        %4980 = vmatpush1.bf16.msra.mxu0 0
        %4981 = vmatprep.subr.bf16.mxu0 0
        %4982 = vmatpush1.bf16.msra.mxu0 0
        %4983 = vmatprep.subr.bf16.mxu0 0
        %4984 = vmatpush1.bf16.msra.mxu0 0
        %4985 = vmatprep.subr.bf16.mxu0 0
        %4986 = vmatpush1.bf16.msra.mxu0 0
        %4987 = vmatprep.subr.bf16.mxu0 0
        %4988 = vmatpush1.bf16.msra.mxu0 0
        %4989 = vmatprep.subr.bf16.mxu0 0
        %4990 = vmatpush1.bf16.msra.mxu0 0
        %4991 = vmatprep.subr.bf16.mxu0 0
        %4992 = vmatpush1.bf16.msra.mxu0 0
        %4993 = vmatprep.subr.bf16.mxu0 0
        %4994 = vmatpush1.bf16.msra.mxu0 0
        %4995 = vmatprep.subr.bf16.mxu0 0
        %4996 = vmatpush1.bf16.msra.mxu0 0
        %4997 = vmatprep.mubr.bf16.mxu0 0
        %4998 = vmatmul.mubr.bf16.gmra.mrb[0].mxu0 %v4936
        %v4999 = vpop.f32.mrb[0].mxu0
        %v5000 = vadd.f32 0.0, %v4999
        %v5001 = vpop.f32.mrb[0].mxu0
        %v5002 = vpop.f32.mrb[0].mxu0
        %v5003 = vadd.f32 0.0, %v5002
        %v5004 = vpop.f32.mrb[0].mxu0
        %5005 = vmatprep.mubr.bf16.mxu0 0
        %5006 = vmatmul.mubr.bf16.gmra.mrb[0].mxu0 %v4939
        %v5007 = vpop.f32.mrb[0].mxu0
        %v5008 = vadd.f32 0.0, %v5007
        %v5009 = vpop.f32.mrb[0].mxu0
        %v5010 = vpop.f32.mrb[0].mxu0
        %v5011 = vadd.f32 0.0, %v5010
        %v5012 = vpop.f32.mrb[0].mxu0
        %5013 = vmatprep.mubr.bf16.mxu0 0
        %5014 = vmatmul.mubr.bf16.gmra.mrb[0].mxu0 %v4942
        %v5015 = vpop.f32.mrb[0].mxu0
        %v5016 = vadd.f32 0.0, %v5015
        %v5017 = vpop.f32.mrb[0].mxu0
        %v5018 = vpop.f32.mrb[0].mxu0
        %v5019 = vadd.f32 0.0, %v5018
        %v5020 = vpop.f32.mrb[0].mxu0
        %5021 = vmatprep.mubr.bf16.mxu0 0
        %5022 = vmatmul.mubr.bf16.gmra.mrb[0].mxu0 %v4945
        %v5023 = vpop.f32.mrb[0].mxu0
        %v5024 = vadd.f32 0.0, %v5023
        %v5025 = vpop.f32.mrb[0].mxu0
        %v5026 = vpop.f32.mrb[0].mxu0
        %v5027 = vadd.f32 0.0, %v5026
        %v5028 = vpop.f32.mrb[0].mxu0
        %5029 = vmatprep.mubr.bf16.mxu0 0
        %5030 = vmatmul.mubr.bf16.gmra.mrb[0].mxu0 %v4948
        %v5031 = vpop.f32.mrb[0].mxu0
        %v5032 = vadd.f32 0.0, %v5031
        %v5033 = vpop.f32.mrb[0].mxu0
        %v5034 = vpop.f32.mrb[0].mxu0
        %v5035 = vadd.f32 0.0, %v5034
        %v5036 = vpop.f32.mrb[0].mxu0
        %5037 = vmatprep.mubr.bf16.mxu0 0
        %5038 = vmatmul.mubr.bf16.gmra.mrb[0].mxu0 %v4951
        %v5039 = vpop.f32.mrb[0].mxu0
        %v5040 = vadd.f32 0.0, %v5039
        %v5041 = vpop.f32.mrb[0].mxu0
        %v5042 = vpop.f32.mrb[0].mxu0
        %v5043 = vadd.f32 0.0, %v5042
        %v5044 = vpop.f32.mrb[0].mxu0
        %5045 = vmatprep.mubr.bf16.mxu0 0
        %5046 = vmatmul.mubr.bf16.gmra.mrb[0].mxu0 %v4954
        %v5047 = vpop.f32.mrb[0].mxu0
        %v5048 = vadd.f32 0.0, %v5047
        %v5049 = vpop.f32.mrb[0].mxu0
        %v5050 = vpop.f32.mrb[0].mxu0
        %v5051 = vadd.f32 0.0, %v5050
        %v5052 = vpop.f32.mrb[0].mxu0
        %5053 = vmatprep.mubr.bf16.mxu0 0
        %5054 = vmatmul.mubr.bf16.gmra.mrb[0].mxu0 %v4957
        %v5055 = vpop.f32.mrb[0].mxu0
        %v5056 = vadd.f32 0.0, %v5055
        %v5057 = vpop.f32.mrb[0].mxu0
        %v5058 = vpop.f32.mrb[0].mxu0
        %v5059 = vadd.f32 0.0, %v5058
        %v5060 = vpop.f32.mrb[0].mxu0
        %5061 = vmatprep.mubr.bf16.mxu0 0
        %5062 = vmatmul.mubr.bf16.gmra.mrb[0].mxu0 %v4960
        %v5063 = vpop.f32.mrb[0].mxu0
        %v5064 = vadd.f32 0.0, %v5063
        %v5065 = vpop.f32.mrb[0].mxu0
        %v5066 = vpop.f32.mrb[0].mxu0
        %v5067 = vadd.f32 0.0, %v5066
        %v5068 = vpop.f32.mrb[0].mxu0
        %5069 = vdwg.mxu0
        %v5070 = vadd.f32 %v4888, %v5000
        %v5071 = vadd.f32 %v4889, %v5003
        %v5072 = vadd.f32 %v4890, %v5008
        %v5073 = vadd.f32 %v4891, %v5011
        %v5074 = vadd.f32 %v4892, %v5016
        %v5075 = vadd.f32 %v4893, %v5019
        %v5076 = vadd.f32 %v4894, %v5024
        %v5077 = vadd.f32 %v4895, %v5027
        %v5078 = vadd.f32 %v4896, %v5032
        %v5079 = vadd.f32 %v4897, %v5035
        %v5080 = vadd.f32 %v4898, %v5040
        %v5081 = vadd.f32 %v4899, %v5043
        %v5082 = vadd.f32 %v4900, %v5048
        %v5083 = vadd.f32 %v4901, %v5051
        %v5084 = vadd.f32 %v4902, %v5056
        %v5085 = vadd.f32 %v4903, %v5059
        %v5086 = vadd.f32 %v4904, %v5064
        %v5087 = vadd.f32 %v4905, %v5067
        %v5088 = vld [vmem:[#allocation3 + $0x1c] sm:$0xff]
        %v5089 = vld [vmem:[#allocation3 + $0x24] sm:$0xff]
        %v5090 = vld [vmem:[#allocation3 + $0x2c] sm:$0xff]
        %v5091 = vld [vmem:[#allocation3 + $0x34] sm:$0xff]
        %v5092 = vld [vmem:[#allocation3 + $0x3c] sm:$0xff]
        %v5093 = vld [vmem:[#allocation3 + $0x44] sm:$0xff]
        %v5094 = vld [vmem:[#allocation3 + $0x4c] sm:$0xff]
        %v5095 = vld [vmem:[#allocation3 + $0x54] sm:$0xff]
        %v5096 = vld [vmem:[#allocation3 + $0x5c] sm:$0xff]
        %v5097 = vld [vmem:[#allocation3 + $0x64] sm:$0xff]
        %v5098 = vld [vmem:[#allocation3 + $0x6c] sm:$0xff]
        %v5099 = vld [vmem:[#allocation3 + $0x74] sm:$0xff]
        %v5100 = vld [vmem:[#allocation3 + $0x7c] sm:$0xff]
        %v5101 = vld [vmem:[#allocation3 + $0x84] sm:$0xff]
        %v5102 = vld [vmem:[#allocation3 + $0x8c] sm:$0xff]
        %v5103 = vld [vmem:[#allocation3 + $0x94] sm:$0xff]
        %v5104 = vld [vmem:[#allocation3 + $0x9c] sm:$0xff]
        %v5105 = vld [vmem:[#allocation3 + $0xa4] sm:$0xf]
        %s5106 = scalar_lea.vmem %s4, 40
        %v5107 = vld [vmem:[%s5106] sm:$0x7]
        %v5108 = vpack.c.bf16 %v5089, %v5088
        %v5109 = vpack.c.bf16 %v5091, %v5090
        %v5110 = vpack.c.bf16 %v5093, %v5092
        %v5111 = vpack.c.bf16 %v5095, %v5094
        %v5112 = vpack.c.bf16 %v5097, %v5096
        %v5113 = vpack.c.bf16 %v5099, %v5098
        %v5114 = vpack.c.bf16 %v5101, %v5100
        %v5115 = vpack.c.bf16 %v5103, %v5102
        %v5116 = vpack.c.bf16 %v5105, %v5104
        %v5118 = vsel %vm1497, %v5108, 0
        %v5121 = vsel %vm1497, %v5109, 0
        %v5124 = vsel %vm1497, %v5110, 0
        %v5127 = vsel %vm1497, %v5111, 0
        %v5130 = vsel %vm1497, %v5112, 0
        %v5133 = vsel %vm1497, %v5113, 0
        %v5136 = vsel %vm1497, %v5114, 0
        %v5139 = vsel %vm1497, %v5115, 0
        %v5142 = vsel %vm1497, %v5116, 0
        %v5145 = vsel %vm3388, %v5107, 0
        %5147 = vmatprep.subr.bf16.mxu0 0
        %5148 = vmatpush1.bf16.msra.mxu0 %v5145
        %5149 = vmatprep.subr.bf16.mxu0 0
        %5150 = vmatpush1.bf16.msra.mxu0 0
        %5151 = vmatprep.subr.bf16.mxu0 0
        %5152 = vmatpush1.bf16.msra.mxu0 0
        %5153 = vmatprep.subr.bf16.mxu0 0
        %5154 = vmatpush1.bf16.msra.mxu0 0
        %5155 = vmatprep.subr.bf16.mxu0 0
        %5156 = vmatpush1.bf16.msra.mxu0 0
        %5157 = vmatprep.subr.bf16.mxu0 0
        %5158 = vmatpush1.bf16.msra.mxu0 0
        %5159 = vmatprep.subr.bf16.mxu0 0
        %5160 = vmatpush1.bf16.msra.mxu0 0
        %5161 = vmatprep.subr.bf16.mxu0 0
        %5162 = vmatpush1.bf16.msra.mxu0 0
        %5163 = vmatprep.subr.bf16.mxu0 0
        %5164 = vmatpush1.bf16.msra.mxu0 0
        %5165 = vmatprep.subr.bf16.mxu0 0
        %5166 = vmatpush1.bf16.msra.mxu0 0
        %5167 = vmatprep.subr.bf16.mxu0 0
        %5168 = vmatpush1.bf16.msra.mxu0 0
        %5169 = vmatprep.subr.bf16.mxu0 0
        %5170 = vmatpush1.bf16.msra.mxu0 0
        %5171 = vmatprep.subr.bf16.mxu0 0
        %5172 = vmatpush1.bf16.msra.mxu0 0
        %5173 = vmatprep.subr.bf16.mxu0 0
        %5174 = vmatpush1.bf16.msra.mxu0 0
        %5175 = vmatprep.subr.bf16.mxu0 0
        %5176 = vmatpush1.bf16.msra.mxu0 0
        %5177 = vmatprep.subr.bf16.mxu0 0
        %5178 = vmatpush1.bf16.msra.mxu0 0
        %5179 = vmatprep.mubr.bf16.mxu0 0
        %5180 = vmatmul.mubr.bf16.gmra.mrb[0].mxu0 %v5118
        %v5181 = vpop.f32.mrb[0].mxu0
        %v5182 = vadd.f32 0.0, %v5181
        %v5183 = vpop.f32.mrb[0].mxu0
        %v5184 = vpop.f32.mrb[0].mxu0
        %v5185 = vadd.f32 0.0, %v5184
        %v5186 = vpop.f32.mrb[0].mxu0
        %5187 = vmatprep.mubr.bf16.mxu0 0
        %5188 = vmatmul.mubr.bf16.gmra.mrb[0].mxu0 %v5121
        %v5189 = vpop.f32.mrb[0].mxu0
        %v5190 = vadd.f32 0.0, %v5189
        %v5191 = vpop.f32.mrb[0].mxu0
        %v5192 = vpop.f32.mrb[0].mxu0
        %v5193 = vadd.f32 0.0, %v5192
        %v5194 = vpop.f32.mrb[0].mxu0
        %5195 = vmatprep.mubr.bf16.mxu0 0
        %5196 = vmatmul.mubr.bf16.gmra.mrb[0].mxu0 %v5124
        %v5197 = vpop.f32.mrb[0].mxu0
        %v5198 = vadd.f32 0.0, %v5197
        %v5199 = vpop.f32.mrb[0].mxu0
        %v5200 = vpop.f32.mrb[0].mxu0
        %v5201 = vadd.f32 0.0, %v5200
        %v5202 = vpop.f32.mrb[0].mxu0
        %5203 = vmatprep.mubr.bf16.mxu0 0
        %5204 = vmatmul.mubr.bf16.gmra.mrb[0].mxu0 %v5127
        %v5205 = vpop.f32.mrb[0].mxu0
        %v5206 = vadd.f32 0.0, %v5205
        %v5207 = vpop.f32.mrb[0].mxu0
        %v5208 = vpop.f32.mrb[0].mxu0
        %v5209 = vadd.f32 0.0, %v5208
        %v5210 = vpop.f32.mrb[0].mxu0
        %5211 = vmatprep.mubr.bf16.mxu0 0
        %5212 = vmatmul.mubr.bf16.gmra.mrb[0].mxu0 %v5130
        %v5213 = vpop.f32.mrb[0].mxu0
        %v5214 = vadd.f32 0.0, %v5213
        %v5215 = vpop.f32.mrb[0].mxu0
        %v5216 = vpop.f32.mrb[0].mxu0
        %v5217 = vadd.f32 0.0, %v5216
        %v5218 = vpop.f32.mrb[0].mxu0
        %5219 = vmatprep.mubr.bf16.mxu0 0
        %5220 = vmatmul.mubr.bf16.gmra.mrb[0].mxu0 %v5133
        %v5221 = vpop.f32.mrb[0].mxu0
        %v5222 = vadd.f32 0.0, %v5221
        %v5223 = vpop.f32.mrb[0].mxu0
        %v5224 = vpop.f32.mrb[0].mxu0
        %v5225 = vadd.f32 0.0, %v5224
        %v5226 = vpop.f32.mrb[0].mxu0
        %5227 = vmatprep.mubr.bf16.mxu0 0
        %5228 = vmatmul.mubr.bf16.gmra.mrb[0].mxu0 %v5136
        %v5229 = vpop.f32.mrb[0].mxu0
        %v5230 = vadd.f32 0.0, %v5229
        %v5231 = vpop.f32.mrb[0].mxu0
        %v5232 = vpop.f32.mrb[0].mxu0
        %v5233 = vadd.f32 0.0, %v5232
        %v5234 = vpop.f32.mrb[0].mxu0
        %5235 = vmatprep.mubr.bf16.mxu0 0
        %5236 = vmatmul.mubr.bf16.gmra.mrb[0].mxu0 %v5139
        %v5237 = vpop.f32.mrb[0].mxu0
        %v5238 = vadd.f32 0.0, %v5237
        %v5239 = vpop.f32.mrb[0].mxu0
        %v5240 = vpop.f32.mrb[0].mxu0
        %v5241 = vadd.f32 0.0, %v5240
        %v5242 = vpop.f32.mrb[0].mxu0
        %5243 = vmatprep.mubr.bf16.mxu0 0
        %5244 = vmatmul.mubr.bf16.gmra.mrb[0].mxu0 %v5142
        %v5245 = vpop.f32.mrb[0].mxu0
        %v5246 = vadd.f32 0.0, %v5245
        %v5247 = vpop.f32.mrb[0].mxu0
        %v5248 = vpop.f32.mrb[0].mxu0
        %v5249 = vadd.f32 0.0, %v5248
        %v5250 = vpop.f32.mrb[0].mxu0
        %5251 = vdwg.mxu0
        %v5252 = vadd.f32 %v5070, %v5182
        %v5253 = vadd.f32 %v5071, %v5185
        %v5254 = vadd.f32 %v5072, %v5190
        %v5255 = vadd.f32 %v5073, %v5193
        %v5256 = vadd.f32 %v5074, %v5198
        %v5257 = vadd.f32 %v5075, %v5201
        %v5258 = vadd.f32 %v5076, %v5206
        %v5259 = vadd.f32 %v5077, %v5209
        %v5260 = vadd.f32 %v5078, %v5214
        %v5261 = vadd.f32 %v5079, %v5217
        %v5262 = vadd.f32 %v5080, %v5222
        %v5263 = vadd.f32 %v5081, %v5225
        %v5264 = vadd.f32 %v5082, %v5230
        %v5265 = vadd.f32 %v5083, %v5233
        %v5266 = vadd.f32 %v5084, %v5238
        %v5267 = vadd.f32 %v5085, %v5241
        %v5268 = vadd.f32 %v5086, %v5246
        %v5269 = vadd.f32 %v5087, %v5249
        %v5270 = vld [vmem:[#allocation3 + $0x1d] sm:$0xff]
        %v5271 = vld [vmem:[#allocation3 + $0x25] sm:$0xff]
        %v5272 = vld [vmem:[#allocation3 + $0x2d] sm:$0xff]
        %v5273 = vld [vmem:[#allocation3 + $0x35] sm:$0xff]
        %v5274 = vld [vmem:[#allocation3 + $0x3d] sm:$0xff]
        %v5275 = vld [vmem:[#allocation3 + $0x45] sm:$0xff]
        %v5276 = vld [vmem:[#allocation3 + $0x4d] sm:$0xff]
        %v5277 = vld [vmem:[#allocation3 + $0x55] sm:$0xff]
        %v5278 = vld [vmem:[#allocation3 + $0x5d] sm:$0xff]
        %v5279 = vld [vmem:[#allocation3 + $0x65] sm:$0xff]
        %v5280 = vld [vmem:[#allocation3 + $0x6d] sm:$0xff]
        %v5281 = vld [vmem:[#allocation3 + $0x75] sm:$0xff]
        %v5282 = vld [vmem:[#allocation3 + $0x7d] sm:$0xff]
        %v5283 = vld [vmem:[#allocation3 + $0x85] sm:$0xff]
        %v5284 = vld [vmem:[#allocation3 + $0x8d] sm:$0xff]
        %v5285 = vld [vmem:[#allocation3 + $0x95] sm:$0xff]
        %v5286 = vld [vmem:[#allocation3 + $0x9d] sm:$0xff]
        %v5287 = vld [vmem:[#allocation3 + $0xa5] sm:$0xf]
        %s5288 = scalar_lea.vmem %s4, 44
        %v5289 = vld [vmem:[%s5288] sm:$0x7]
        %v5290 = vpack.c.bf16 %v5271, %v5270
        %v5291 = vpack.c.bf16 %v5273, %v5272
        %v5292 = vpack.c.bf16 %v5275, %v5274
        %v5293 = vpack.c.bf16 %v5277, %v5276
        %v5294 = vpack.c.bf16 %v5279, %v5278
        %v5295 = vpack.c.bf16 %v5281, %v5280
        %v5296 = vpack.c.bf16 %v5283, %v5282
        %v5297 = vpack.c.bf16 %v5285, %v5284
        %v5298 = vpack.c.bf16 %v5287, %v5286
        %v5300 = vsel %vm1497, %v5290, 0
        %v5303 = vsel %vm1497, %v5291, 0
        %v5306 = vsel %vm1497, %v5292, 0
        %v5309 = vsel %vm1497, %v5293, 0
        %v5312 = vsel %vm1497, %v5294, 0
        %v5315 = vsel %vm1497, %v5295, 0
        %v5318 = vsel %vm1497, %v5296, 0
        %v5321 = vsel %vm1497, %v5297, 0
        %v5324 = vsel %vm1497, %v5298, 0
        %v5327 = vsel %vm3388, %v5289, 0
        %5329 = vmatprep.subr.bf16.mxu0 0
        %5330 = vmatpush1.bf16.msra.mxu0 %v5327
        %5331 = vmatprep.subr.bf16.mxu0 0
        %5332 = vmatpush1.bf16.msra.mxu0 0
        %5333 = vmatprep.subr.bf16.mxu0 0
        %5334 = vmatpush1.bf16.msra.mxu0 0
        %5335 = vmatprep.subr.bf16.mxu0 0
        %5336 = vmatpush1.bf16.msra.mxu0 0
        %5337 = vmatprep.subr.bf16.mxu0 0
        %5338 = vmatpush1.bf16.msra.mxu0 0
        %5339 = vmatprep.subr.bf16.mxu0 0
        %5340 = vmatpush1.bf16.msra.mxu0 0
        %5341 = vmatprep.subr.bf16.mxu0 0
        %5342 = vmatpush1.bf16.msra.mxu0 0
        %5343 = vmatprep.subr.bf16.mxu0 0
        %5344 = vmatpush1.bf16.msra.mxu0 0
        %5345 = vmatprep.subr.bf16.mxu0 0
        %5346 = vmatpush1.bf16.msra.mxu0 0
        %5347 = vmatprep.subr.bf16.mxu0 0
        %5348 = vmatpush1.bf16.msra.mxu0 0
        %5349 = vmatprep.subr.bf16.mxu0 0
        %5350 = vmatpush1.bf16.msra.mxu0 0
        %5351 = vmatprep.subr.bf16.mxu0 0
        %5352 = vmatpush1.bf16.msra.mxu0 0
        %5353 = vmatprep.subr.bf16.mxu0 0
        %5354 = vmatpush1.bf16.msra.mxu0 0
        %5355 = vmatprep.subr.bf16.mxu0 0
        %5356 = vmatpush1.bf16.msra.mxu0 0
        %5357 = vmatprep.subr.bf16.mxu0 0
        %5358 = vmatpush1.bf16.msra.mxu0 0
        %5359 = vmatprep.subr.bf16.mxu0 0
        %5360 = vmatpush1.bf16.msra.mxu0 0
        %5361 = vmatprep.mubr.bf16.mxu0 0
        %5362 = vmatmul.mubr.bf16.gmra.mrb[0].mxu0 %v5300
        %v5363 = vpop.f32.mrb[0].mxu0
        %v5364 = vadd.f32 0.0, %v5363
        %v5365 = vpop.f32.mrb[0].mxu0
        %v5366 = vpop.f32.mrb[0].mxu0
        %v5367 = vadd.f32 0.0, %v5366
        %v5368 = vpop.f32.mrb[0].mxu0
        %5369 = vmatprep.mubr.bf16.mxu0 0
        %5370 = vmatmul.mubr.bf16.gmra.mrb[0].mxu0 %v5303
        %v5371 = vpop.f32.mrb[0].mxu0
        %v5372 = vadd.f32 0.0, %v5371
        %v5373 = vpop.f32.mrb[0].mxu0
        %v5374 = vpop.f32.mrb[0].mxu0
        %v5375 = vadd.f32 0.0, %v5374
        %v5376 = vpop.f32.mrb[0].mxu0
        %5377 = vmatprep.mubr.bf16.mxu0 0
        %5378 = vmatmul.mubr.bf16.gmra.mrb[0].mxu0 %v5306
        %v5379 = vpop.f32.mrb[0].mxu0
        %v5380 = vadd.f32 0.0, %v5379
        %v5381 = vpop.f32.mrb[0].mxu0
        %v5382 = vpop.f32.mrb[0].mxu0
        %v5383 = vadd.f32 0.0, %v5382
        %v5384 = vpop.f32.mrb[0].mxu0
        %5385 = vmatprep.mubr.bf16.mxu0 0
        %5386 = vmatmul.mubr.bf16.gmra.mrb[0].mxu0 %v5309
        %v5387 = vpop.f32.mrb[0].mxu0
        %v5388 = vadd.f32 0.0, %v5387
        %v5389 = vpop.f32.mrb[0].mxu0
        %v5390 = vpop.f32.mrb[0].mxu0
        %v5391 = vadd.f32 0.0, %v5390
        %v5392 = vpop.f32.mrb[0].mxu0
        %5393 = vmatprep.mubr.bf16.mxu0 0
        %5394 = vmatmul.mubr.bf16.gmra.mrb[0].mxu0 %v5312
        %v5395 = vpop.f32.mrb[0].mxu0
        %v5396 = vadd.f32 0.0, %v5395
        %v5397 = vpop.f32.mrb[0].mxu0
        %v5398 = vpop.f32.mrb[0].mxu0
        %v5399 = vadd.f32 0.0, %v5398
        %v5400 = vpop.f32.mrb[0].mxu0
        %5401 = vmatprep.mubr.bf16.mxu0 0
        %5402 = vmatmul.mubr.bf16.gmra.mrb[0].mxu0 %v5315
        %v5403 = vpop.f32.mrb[0].mxu0
        %v5404 = vadd.f32 0.0, %v5403
        %v5405 = vpop.f32.mrb[0].mxu0
        %v5406 = vpop.f32.mrb[0].mxu0
        %v5407 = vadd.f32 0.0, %v5406
        %v5408 = vpop.f32.mrb[0].mxu0
        %5409 = vmatprep.mubr.bf16.mxu0 0
        %5410 = vmatmul.mubr.bf16.gmra.mrb[0].mxu0 %v5318
        %v5411 = vpop.f32.mrb[0].mxu0
        %v5412 = vadd.f32 0.0, %v5411
        %v5413 = vpop.f32.mrb[0].mxu0
        %v5414 = vpop.f32.mrb[0].mxu0
        %v5415 = vadd.f32 0.0, %v5414
        %v5416 = vpop.f32.mrb[0].mxu0
        %5417 = vmatprep.mubr.bf16.mxu0 0
        %5418 = vmatmul.mubr.bf16.gmra.mrb[0].mxu0 %v5321
        %v5419 = vpop.f32.mrb[0].mxu0
        %v5420 = vadd.f32 0.0, %v5419
        %v5421 = vpop.f32.mrb[0].mxu0
        %v5422 = vpop.f32.mrb[0].mxu0
        %v5423 = vadd.f32 0.0, %v5422
        %v5424 = vpop.f32.mrb[0].mxu0
        %5425 = vmatprep.mubr.bf16.mxu0 0
        %5426 = vmatmul.mubr.bf16.gmra.mrb[0].mxu0 %v5324
        %v5427 = vpop.f32.mrb[0].mxu0
        %v5428 = vadd.f32 0.0, %v5427
        %v5429 = vpop.f32.mrb[0].mxu0
        %v5430 = vpop.f32.mrb[0].mxu0
        %v5431 = vadd.f32 0.0, %v5430
        %v5432 = vpop.f32.mrb[0].mxu0
        %5433 = vdwg.mxu0
        %v5434 = vadd.f32 %v5252, %v5364
        %v5435 = vadd.f32 %v5253, %v5367
        %v5436 = vadd.f32 %v5254, %v5372
        %v5437 = vadd.f32 %v5255, %v5375
        %v5438 = vadd.f32 %v5256, %v5380
        %v5439 = vadd.f32 %v5257, %v5383
        %v5440 = vadd.f32 %v5258, %v5388
        %v5441 = vadd.f32 %v5259, %v5391
        %v5442 = vadd.f32 %v5260, %v5396
        %v5443 = vadd.f32 %v5261, %v5399
        %v5444 = vadd.f32 %v5262, %v5404
        %v5445 = vadd.f32 %v5263, %v5407
        %v5446 = vadd.f32 %v5264, %v5412
        %v5447 = vadd.f32 %v5265, %v5415
        %v5448 = vadd.f32 %v5266, %v5420
        %v5449 = vadd.f32 %v5267, %v5423
        %v5450 = vadd.f32 %v5268, %v5428
        %v5451 = vadd.f32 %v5269, %v5431
        %v5452 = vld [vmem:[#allocation3 + $0x1e] sm:$0xff]
        %v5453 = vld [vmem:[#allocation3 + $0x26] sm:$0xff]
        %v5454 = vld [vmem:[#allocation3 + $0x2e] sm:$0xff]
        %v5455 = vld [vmem:[#allocation3 + $0x36] sm:$0xff]
        %v5456 = vld [vmem:[#allocation3 + $0x3e] sm:$0xff]
        %v5457 = vld [vmem:[#allocation3 + $0x46] sm:$0xff]
        %v5458 = vld [vmem:[#allocation3 + $0x4e] sm:$0xff]
        %v5459 = vld [vmem:[#allocation3 + $0x56] sm:$0xff]
        %v5460 = vld [vmem:[#allocation3 + $0x5e] sm:$0xff]
        %v5461 = vld [vmem:[#allocation3 + $0x66] sm:$0xff]
        %v5462 = vld [vmem:[#allocation3 + $0x6e] sm:$0xff]
        %v5463 = vld [vmem:[#allocation3 + $0x76] sm:$0xff]
        %v5464 = vld [vmem:[#allocation3 + $0x7e] sm:$0xff]
        %v5465 = vld [vmem:[#allocation3 + $0x86] sm:$0xff]
        %v5466 = vld [vmem:[#allocation3 + $0x8e] sm:$0xff]
        %v5467 = vld [vmem:[#allocation3 + $0x96] sm:$0xff]
        %v5468 = vld [vmem:[#allocation3 + $0x9e] sm:$0xff]
        %v5469 = vld [vmem:[#allocation3 + $0xa6] sm:$0xf]
        %s5470 = scalar_lea.vmem %s4, 48
        %v5471 = vld [vmem:[%s5470] sm:$0x7]
        %v5472 = vpack.c.bf16 %v5453, %v5452
        %v5473 = vpack.c.bf16 %v5455, %v5454
        %v5474 = vpack.c.bf16 %v5457, %v5456
        %v5475 = vpack.c.bf16 %v5459, %v5458
        %v5476 = vpack.c.bf16 %v5461, %v5460
        %v5477 = vpack.c.bf16 %v5463, %v5462
        %v5478 = vpack.c.bf16 %v5465, %v5464
        %v5479 = vpack.c.bf16 %v5467, %v5466
        %v5480 = vpack.c.bf16 %v5469, %v5468
        %v5482 = vsel %vm1497, %v5472, 0
        %v5485 = vsel %vm1497, %v5473, 0
        %v5488 = vsel %vm1497, %v5474, 0
        %v5491 = vsel %vm1497, %v5475, 0
        %v5494 = vsel %vm1497, %v5476, 0
        %v5497 = vsel %vm1497, %v5477, 0
        %v5500 = vsel %vm1497, %v5478, 0
        %v5503 = vsel %vm1497, %v5479, 0
        %v5506 = vsel %vm1497, %v5480, 0
        %v5509 = vsel %vm3388, %v5471, 0
        %5511 = vmatprep.subr.bf16.mxu0 0
        %5512 = vmatpush1.bf16.msra.mxu0 %v5509
        %5513 = vmatprep.subr.bf16.mxu0 0
        %5514 = vmatpush1.bf16.msra.mxu0 0
        %5515 = vmatprep.subr.bf16.mxu0 0
        %5516 = vmatpush1.bf16.msra.mxu0 0
        %5517 = vmatprep.subr.bf16.mxu0 0
        %5518 = vmatpush1.bf16.msra.mxu0 0
        %5519 = vmatprep.subr.bf16.mxu0 0
        %5520 = vmatpush1.bf16.msra.mxu0 0
        %5521 = vmatprep.subr.bf16.mxu0 0
        %5522 = vmatpush1.bf16.msra.mxu0 0
        %5523 = vmatprep.subr.bf16.mxu0 0
        %5524 = vmatpush1.bf16.msra.mxu0 0
        %5525 = vmatprep.subr.bf16.mxu0 0
        %5526 = vmatpush1.bf16.msra.mxu0 0
        %5527 = vmatprep.subr.bf16.mxu0 0
        %5528 = vmatpush1.bf16.msra.mxu0 0
        %5529 = vmatprep.subr.bf16.mxu0 0
        %5530 = vmatpush1.bf16.msra.mxu0 0
        %5531 = vmatprep.subr.bf16.mxu0 0
        %5532 = vmatpush1.bf16.msra.mxu0 0
        %5533 = vmatprep.subr.bf16.mxu0 0
        %5534 = vmatpush1.bf16.msra.mxu0 0
        %5535 = vmatprep.subr.bf16.mxu0 0
        %5536 = vmatpush1.bf16.msra.mxu0 0
        %5537 = vmatprep.subr.bf16.mxu0 0
        %5538 = vmatpush1.bf16.msra.mxu0 0
        %5539 = vmatprep.subr.bf16.mxu0 0
        %5540 = vmatpush1.bf16.msra.mxu0 0
        %5541 = vmatprep.subr.bf16.mxu0 0
        %5542 = vmatpush1.bf16.msra.mxu0 0
        %5543 = vmatprep.mubr.bf16.mxu0 0
        %5544 = vmatmul.mubr.bf16.gmra.mrb[0].mxu0 %v5482
        %v5545 = vpop.f32.mrb[0].mxu0
        %v5546 = vadd.f32 0.0, %v5545
        %v5547 = vpop.f32.mrb[0].mxu0
        %v5548 = vpop.f32.mrb[0].mxu0
        %v5549 = vadd.f32 0.0, %v5548
        %v5550 = vpop.f32.mrb[0].mxu0
        %5551 = vmatprep.mubr.bf16.mxu0 0
        %5552 = vmatmul.mubr.bf16.gmra.mrb[0].mxu0 %v5485
        %v5553 = vpop.f32.mrb[0].mxu0
        %v5554 = vadd.f32 0.0, %v5553
        %v5555 = vpop.f32.mrb[0].mxu0
        %v5556 = vpop.f32.mrb[0].mxu0
        %v5557 = vadd.f32 0.0, %v5556
        %v5558 = vpop.f32.mrb[0].mxu0
        %5559 = vmatprep.mubr.bf16.mxu0 0
        %5560 = vmatmul.mubr.bf16.gmra.mrb[0].mxu0 %v5488
        %v5561 = vpop.f32.mrb[0].mxu0
        %v5562 = vadd.f32 0.0, %v5561
        %v5563 = vpop.f32.mrb[0].mxu0
        %v5564 = vpop.f32.mrb[0].mxu0
        %v5565 = vadd.f32 0.0, %v5564
        %v5566 = vpop.f32.mrb[0].mxu0
        %5567 = vmatprep.mubr.bf16.mxu0 0
        %5568 = vmatmul.mubr.bf16.gmra.mrb[0].mxu0 %v5491
        %v5569 = vpop.f32.mrb[0].mxu0
        %v5570 = vadd.f32 0.0, %v5569
        %v5571 = vpop.f32.mrb[0].mxu0
        %v5572 = vpop.f32.mrb[0].mxu0
        %v5573 = vadd.f32 0.0, %v5572
        %v5574 = vpop.f32.mrb[0].mxu0
        %5575 = vmatprep.mubr.bf16.mxu0 0
        %5576 = vmatmul.mubr.bf16.gmra.mrb[0].mxu0 %v5494
        %v5577 = vpop.f32.mrb[0].mxu0
        %v5578 = vadd.f32 0.0, %v5577
        %v5579 = vpop.f32.mrb[0].mxu0
        %v5580 = vpop.f32.mrb[0].mxu0
        %v5581 = vadd.f32 0.0, %v5580
        %v5582 = vpop.f32.mrb[0].mxu0
        %5583 = vmatprep.mubr.bf16.mxu0 0
        %5584 = vmatmul.mubr.bf16.gmra.mrb[0].mxu0 %v5497
        %v5585 = vpop.f32.mrb[0].mxu0
        %v5586 = vadd.f32 0.0, %v5585
        %v5587 = vpop.f32.mrb[0].mxu0
        %v5588 = vpop.f32.mrb[0].mxu0
        %v5589 = vadd.f32 0.0, %v5588
        %v5590 = vpop.f32.mrb[0].mxu0
        %5591 = vmatprep.mubr.bf16.mxu0 0
        %5592 = vmatmul.mubr.bf16.gmra.mrb[0].mxu0 %v5500
        %v5593 = vpop.f32.mrb[0].mxu0
        %v5594 = vadd.f32 0.0, %v5593
        %v5595 = vpop.f32.mrb[0].mxu0
        %v5596 = vpop.f32.mrb[0].mxu0
        %v5597 = vadd.f32 0.0, %v5596
        %v5598 = vpop.f32.mrb[0].mxu0
        %5599 = vmatprep.mubr.bf16.mxu0 0
        %5600 = vmatmul.mubr.bf16.gmra.mrb[0].mxu0 %v5503
        %v5601 = vpop.f32.mrb[0].mxu0
        %v5602 = vadd.f32 0.0, %v5601
        %v5603 = vpop.f32.mrb[0].mxu0
        %v5604 = vpop.f32.mrb[0].mxu0
        %v5605 = vadd.f32 0.0, %v5604
        %v5606 = vpop.f32.mrb[0].mxu0
        %5607 = vmatprep.mubr.bf16.mxu0 0
        %5608 = vmatmul.mubr.bf16.gmra.mrb[0].mxu0 %v5506
        %v5609 = vpop.f32.mrb[0].mxu0
        %v5610 = vadd.f32 0.0, %v5609
        %v5611 = vpop.f32.mrb[0].mxu0
        %v5612 = vpop.f32.mrb[0].mxu0
        %v5613 = vadd.f32 0.0, %v5612
        %v5614 = vpop.f32.mrb[0].mxu0
        %5615 = vdwg.mxu0
        %v5616 = vadd.f32 %v5434, %v5546
        %v5617 = vadd.f32 %v5435, %v5549
        %v5618 = vadd.f32 %v5436, %v5554
        %v5619 = vadd.f32 %v5437, %v5557
        %v5620 = vadd.f32 %v5438, %v5562
        %v5621 = vadd.f32 %v5439, %v5565
        %v5622 = vadd.f32 %v5440, %v5570
        %v5623 = vadd.f32 %v5441, %v5573
        %v5624 = vadd.f32 %v5442, %v5578
        %v5625 = vadd.f32 %v5443, %v5581
        %v5626 = vadd.f32 %v5444, %v5586
        %v5627 = vadd.f32 %v5445, %v5589
        %v5628 = vadd.f32 %v5446, %v5594
        %v5629 = vadd.f32 %v5447, %v5597
        %v5630 = vadd.f32 %v5448, %v5602
        %v5631 = vadd.f32 %v5449, %v5605
        %v5632 = vadd.f32 %v5450, %v5610
        %v5633 = vadd.f32 %v5451, %v5613
        %v5634 = vld [vmem:[#allocation3 + $0x1f] sm:$0xff]
        %v5635 = vld [vmem:[#allocation3 + $0x27] sm:$0xff]
        %v5636 = vld [vmem:[#allocation3 + $0x2f] sm:$0xff]
        %v5637 = vld [vmem:[#allocation3 + $0x37] sm:$0xff]
        %v5638 = vld [vmem:[#allocation3 + $0x3f] sm:$0xff]
        %v5639 = vld [vmem:[#allocation3 + $0x47] sm:$0xff]
        %v5640 = vld [vmem:[#allocation3 + $0x4f] sm:$0xff]
        %v5641 = vld [vmem:[#allocation3 + $0x57] sm:$0xff]
        %v5642 = vld [vmem:[#allocation3 + $0x5f] sm:$0xff]
        %v5643 = vld [vmem:[#allocation3 + $0x67] sm:$0xff]
        %v5644 = vld [vmem:[#allocation3 + $0x6f] sm:$0xff]
        %v5645 = vld [vmem:[#allocation3 + $0x77] sm:$0xff]
        %v5646 = vld [vmem:[#allocation3 + $0x7f] sm:$0xff]
        %v5647 = vld [vmem:[#allocation3 + $0x87] sm:$0xff]
        %v5648 = vld [vmem:[#allocation3 + $0x8f] sm:$0xff]
        %v5649 = vld [vmem:[#allocation3 + $0x97] sm:$0xff]
        %v5650 = vld [vmem:[#allocation3 + $0x9f] sm:$0xff]
        %v5651 = vld [vmem:[#allocation3 + $0xa7] sm:$0xf]
        %s5652 = scalar_lea.vmem %s4, 52
        %v5653 = vld [vmem:[%s5652] sm:$0x7]
        %v5654 = vpack.c.bf16 %v5635, %v5634
        %v5655 = vpack.c.bf16 %v5637, %v5636
        %v5656 = vpack.c.bf16 %v5639, %v5638
        %v5657 = vpack.c.bf16 %v5641, %v5640
        %v5658 = vpack.c.bf16 %v5643, %v5642
        %v5659 = vpack.c.bf16 %v5645, %v5644
        %v5660 = vpack.c.bf16 %v5647, %v5646
        %v5661 = vpack.c.bf16 %v5649, %v5648
        %v5662 = vpack.c.bf16 %v5651, %v5650
        %v5664 = vsel %vm1497, %v5654, 0
        %v5667 = vsel %vm1497, %v5655, 0
        %v5670 = vsel %vm1497, %v5656, 0
        %v5673 = vsel %vm1497, %v5657, 0
        %v5676 = vsel %vm1497, %v5658, 0
        %v5679 = vsel %vm1497, %v5659, 0
        %v5682 = vsel %vm1497, %v5660, 0
        %v5685 = vsel %vm1497, %v5661, 0
        %v5688 = vsel %vm1497, %v5662, 0
        %v5691 = vsel %vm3388, %v5653, 0
        %5693 = vmatprep.subr.bf16.mxu0 0
        %5694 = vmatpush1.bf16.msra.mxu0 %v5691
        %5695 = vmatprep.subr.bf16.mxu0 0
        %5696 = vmatpush1.bf16.msra.mxu0 0
        %5697 = vmatprep.subr.bf16.mxu0 0
        %5698 = vmatpush1.bf16.msra.mxu0 0
        %5699 = vmatprep.subr.bf16.mxu0 0
        %5700 = vmatpush1.bf16.msra.mxu0 0
        %5701 = vmatprep.subr.bf16.mxu0 0
        %5702 = vmatpush1.bf16.msra.mxu0 0
        %5703 = vmatprep.subr.bf16.mxu0 0
        %5704 = vmatpush1.bf16.msra.mxu0 0
        %5705 = vmatprep.subr.bf16.mxu0 0
        %5706 = vmatpush1.bf16.msra.mxu0 0
        %5707 = vmatprep.subr.bf16.mxu0 0
        %5708 = vmatpush1.bf16.msra.mxu0 0
        %5709 = vmatprep.subr.bf16.mxu0 0
        %5710 = vmatpush1.bf16.msra.mxu0 0
        %5711 = vmatprep.subr.bf16.mxu0 0
        %5712 = vmatpush1.bf16.msra.mxu0 0
        %5713 = vmatprep.subr.bf16.mxu0 0
        %5714 = vmatpush1.bf16.msra.mxu0 0
        %5715 = vmatprep.subr.bf16.mxu0 0
        %5716 = vmatpush1.bf16.msra.mxu0 0
        %5717 = vmatprep.subr.bf16.mxu0 0
        %5718 = vmatpush1.bf16.msra.mxu0 0
        %5719 = vmatprep.subr.bf16.mxu0 0
        %5720 = vmatpush1.bf16.msra.mxu0 0
        %5721 = vmatprep.subr.bf16.mxu0 0
        %5722 = vmatpush1.bf16.msra.mxu0 0
        %5723 = vmatprep.subr.bf16.mxu0 0
        %5724 = vmatpush1.bf16.msra.mxu0 0
        %5725 = vmatprep.mubr.bf16.mxu0 0
        %5726 = vmatmul.mubr.bf16.gmra.mrb[0].mxu0 %v5664
        %v5727 = vpop.f32.mrb[0].mxu0
        %v5728 = vadd.f32 0.0, %v5727
        %v5729 = vpop.f32.mrb[0].mxu0
        %v5730 = vpop.f32.mrb[0].mxu0
        %v5731 = vadd.f32 0.0, %v5730
        %v5732 = vpop.f32.mrb[0].mxu0
        %5733 = vmatprep.mubr.bf16.mxu0 0
        %5734 = vmatmul.mubr.bf16.gmra.mrb[0].mxu0 %v5667
        %v5735 = vpop.f32.mrb[0].mxu0
        %v5736 = vadd.f32 0.0, %v5735
        %v5737 = vpop.f32.mrb[0].mxu0
        %v5738 = vpop.f32.mrb[0].mxu0
        %v5739 = vadd.f32 0.0, %v5738
        %v5740 = vpop.f32.mrb[0].mxu0
        %5741 = vmatprep.mubr.bf16.mxu0 0
        %5742 = vmatmul.mubr.bf16.gmra.mrb[0].mxu0 %v5670
        %v5743 = vpop.f32.mrb[0].mxu0
        %v5744 = vadd.f32 0.0, %v5743
        %v5745 = vpop.f32.mrb[0].mxu0
        %v5746 = vpop.f32.mrb[0].mxu0
        %v5747 = vadd.f32 0.0, %v5746
        %v5748 = vpop.f32.mrb[0].mxu0
        %5749 = vmatprep.mubr.bf16.mxu0 0
        %5750 = vmatmul.mubr.bf16.gmra.mrb[0].mxu0 %v5673
        %v5751 = vpop.f32.mrb[0].mxu0
        %v5752 = vadd.f32 0.0, %v5751
        %v5753 = vpop.f32.mrb[0].mxu0
        %v5754 = vpop.f32.mrb[0].mxu0
        %v5755 = vadd.f32 0.0, %v5754
        %v5756 = vpop.f32.mrb[0].mxu0
        %5757 = vmatprep.mubr.bf16.mxu0 0
        %5758 = vmatmul.mubr.bf16.gmra.mrb[0].mxu0 %v5676
        %v5759 = vpop.f32.mrb[0].mxu0
        %v5760 = vadd.f32 0.0, %v5759
        %v5761 = vpop.f32.mrb[0].mxu0
        %v5762 = vpop.f32.mrb[0].mxu0
        %v5763 = vadd.f32 0.0, %v5762
        %v5764 = vpop.f32.mrb[0].mxu0
        %5765 = vmatprep.mubr.bf16.mxu0 0
        %5766 = vmatmul.mubr.bf16.gmra.mrb[0].mxu0 %v5679
        %v5767 = vpop.f32.mrb[0].mxu0
        %v5768 = vadd.f32 0.0, %v5767
        %v5769 = vpop.f32.mrb[0].mxu0
        %v5770 = vpop.f32.mrb[0].mxu0
        %v5771 = vadd.f32 0.0, %v5770
        %v5772 = vpop.f32.mrb[0].mxu0
        %5773 = vmatprep.mubr.bf16.mxu0 0
        %5774 = vmatmul.mubr.bf16.gmra.mrb[0].mxu0 %v5682
        %v5775 = vpop.f32.mrb[0].mxu0
        %v5776 = vadd.f32 0.0, %v5775
        %v5777 = vpop.f32.mrb[0].mxu0
        %v5778 = vpop.f32.mrb[0].mxu0
        %v5779 = vadd.f32 0.0, %v5778
        %v5780 = vpop.f32.mrb[0].mxu0
        %5781 = vmatprep.mubr.bf16.mxu0 0
        %5782 = vmatmul.mubr.bf16.gmra.mrb[0].mxu0 %v5685
        %v5783 = vpop.f32.mrb[0].mxu0
        %v5784 = vadd.f32 0.0, %v5783
        %v5785 = vpop.f32.mrb[0].mxu0
        %v5786 = vpop.f32.mrb[0].mxu0
        %v5787 = vadd.f32 0.0, %v5786
        %v5788 = vpop.f32.mrb[0].mxu0
        %5789 = vmatprep.mubr.bf16.mxu0 0
        %5790 = vmatmul.mubr.bf16.gmra.mrb[0].mxu0 %v5688
        %v5791 = vpop.f32.mrb[0].mxu0
        %v5792 = vadd.f32 0.0, %v5791
        %v5793 = vpop.f32.mrb[0].mxu0
        %v5794 = vpop.f32.mrb[0].mxu0
        %v5795 = vadd.f32 0.0, %v5794
        %v5796 = vpop.f32.mrb[0].mxu0
        %5797 = vdwg.mxu0
        %v5798 = vadd.f32 %v5616, %v5728
        %v5799 = vadd.f32 %v5617, %v5731
        %v5800 = vadd.f32 %v5618, %v5736
        %v5801 = vadd.f32 %v5619, %v5739
        %v5802 = vadd.f32 %v5620, %v5744
        %v5803 = vadd.f32 %v5621, %v5747
        %v5804 = vadd.f32 %v5622, %v5752
        %v5805 = vadd.f32 %v5623, %v5755
        %v5806 = vadd.f32 %v5624, %v5760
        %v5807 = vadd.f32 %v5625, %v5763
        %v5808 = vadd.f32 %v5626, %v5768
        %v5809 = vadd.f32 %v5627, %v5771
        %v5810 = vadd.f32 %v5628, %v5776
        %v5811 = vadd.f32 %v5629, %v5779
        %v5812 = vadd.f32 %v5630, %v5784
        %v5813 = vadd.f32 %v5631, %v5787
        %v5814 = vadd.f32 %v5632, %v5792
        %v5815 = vadd.f32 %v5633, %v5795
        %v5816 = vld [vmem:[#allocation3 + $0x20] sm:$0xff]
        %v5817 = vld [vmem:[#allocation3 + $0x28] sm:$0xff]
        %v5818 = vld [vmem:[#allocation3 + $0x30] sm:$0xff]
        %v5819 = vld [vmem:[#allocation3 + $0x38] sm:$0xff]
        %v5820 = vld [vmem:[#allocation3 + $0x40] sm:$0xff]
        %v5821 = vld [vmem:[#allocation3 + $0x48] sm:$0xff]
        %v5822 = vld [vmem:[#allocation3 + $0x50] sm:$0xff]
        %v5823 = vld [vmem:[#allocation3 + $0x58] sm:$0xff]
        %v5824 = vld [vmem:[#allocation3 + $0x60] sm:$0xff]
        %v5825 = vld [vmem:[#allocation3 + $0x68] sm:$0xff]
        %v5826 = vld [vmem:[#allocation3 + $0x70] sm:$0xff]
        %v5827 = vld [vmem:[#allocation3 + $0x78] sm:$0xff]
        %v5828 = vld [vmem:[#allocation3 + $0x80] sm:$0xff]
        %v5829 = vld [vmem:[#allocation3 + $0x88] sm:$0xff]
        %v5830 = vld [vmem:[#allocation3 + $0x90] sm:$0xff]
        %v5831 = vld [vmem:[#allocation3 + $0x98] sm:$0xff]
        %v5832 = vld [vmem:[#allocation3 + $0xa0] sm:$0xff]
        %v5833 = vld [vmem:[#allocation3 + $0xa8] sm:$0xf]
        %s5834 = scalar_lea.vmem %s4, 56
        %v5835 = vld [vmem:[%s5834] sm:$0x7]
        %v5836 = vpack.c.bf16 %v5817, %v5816
        %v5837 = vpack.c.bf16 %v5819, %v5818
        %v5838 = vpack.c.bf16 %v5821, %v5820
        %v5839 = vpack.c.bf16 %v5823, %v5822
        %v5840 = vpack.c.bf16 %v5825, %v5824
        %v5841 = vpack.c.bf16 %v5827, %v5826
        %v5842 = vpack.c.bf16 %v5829, %v5828
        %v5843 = vpack.c.bf16 %v5831, %v5830
        %v5844 = vpack.c.bf16 %v5833, %v5832
        %v5846 = vsel %vm1497, %v5836, 0
        %v5849 = vsel %vm1497, %v5837, 0
        %v5852 = vsel %vm1497, %v5838, 0
        %v5855 = vsel %vm1497, %v5839, 0
        %v5858 = vsel %vm1497, %v5840, 0
        %v5861 = vsel %vm1497, %v5841, 0
        %v5864 = vsel %vm1497, %v5842, 0
        %v5867 = vsel %vm1497, %v5843, 0
        %v5870 = vsel %vm1497, %v5844, 0
        %v5873 = vsel %vm3388, %v5835, 0
        %5875 = vmatprep.subr.bf16.mxu0 0
        %5876 = vmatpush1.bf16.msra.mxu0 %v5873
        %5877 = vmatprep.subr.bf16.mxu0 0
        %5878 = vmatpush1.bf16.msra.mxu0 0
        %5879 = vmatprep.subr.bf16.mxu0 0
        %5880 = vmatpush1.bf16.msra.mxu0 0
        %5881 = vmatprep.subr.bf16.mxu0 0
        %5882 = vmatpush1.bf16.msra.mxu0 0
        %5883 = vmatprep.subr.bf16.mxu0 0
        %5884 = vmatpush1.bf16.msra.mxu0 0
        %5885 = vmatprep.subr.bf16.mxu0 0
        %5886 = vmatpush1.bf16.msra.mxu0 0
        %5887 = vmatprep.subr.bf16.mxu0 0
        %5888 = vmatpush1.bf16.msra.mxu0 0
        %5889 = vmatprep.subr.bf16.mxu0 0
        %5890 = vmatpush1.bf16.msra.mxu0 0
        %5891 = vmatprep.subr.bf16.mxu0 0
        %5892 = vmatpush1.bf16.msra.mxu0 0
        %5893 = vmatprep.subr.bf16.mxu0 0
        %5894 = vmatpush1.bf16.msra.mxu0 0
        %5895 = vmatprep.subr.bf16.mxu0 0
        %5896 = vmatpush1.bf16.msra.mxu0 0
        %5897 = vmatprep.subr.bf16.mxu0 0
        %5898 = vmatpush1.bf16.msra.mxu0 0
        %5899 = vmatprep.subr.bf16.mxu0 0
        %5900 = vmatpush1.bf16.msra.mxu0 0
        %5901 = vmatprep.subr.bf16.mxu0 0
        %5902 = vmatpush1.bf16.msra.mxu0 0
        %5903 = vmatprep.subr.bf16.mxu0 0
        %5904 = vmatpush1.bf16.msra.mxu0 0
        %5905 = vmatprep.subr.bf16.mxu0 0
        %5906 = vmatpush1.bf16.msra.mxu0 0
        %5907 = vmatprep.mubr.bf16.mxu0 0
        %5908 = vmatmul.mubr.bf16.gmra.mrb[0].mxu0 %v5846
        %v5909 = vpop.f32.mrb[0].mxu0
        %v5910 = vadd.f32 0.0, %v5909
        %v5911 = vpop.f32.mrb[0].mxu0
        %v5912 = vpop.f32.mrb[0].mxu0
        %v5913 = vadd.f32 0.0, %v5912
        %v5914 = vpop.f32.mrb[0].mxu0
        %5915 = vmatprep.mubr.bf16.mxu0 0
        %5916 = vmatmul.mubr.bf16.gmra.mrb[0].mxu0 %v5849
        %v5917 = vpop.f32.mrb[0].mxu0
        %v5918 = vadd.f32 0.0, %v5917
        %v5919 = vpop.f32.mrb[0].mxu0
        %v5920 = vpop.f32.mrb[0].mxu0
        %v5921 = vadd.f32 0.0, %v5920
        %v5922 = vpop.f32.mrb[0].mxu0
        %5923 = vmatprep.mubr.bf16.mxu0 0
        %5924 = vmatmul.mubr.bf16.gmra.mrb[0].mxu0 %v5852
        %v5925 = vpop.f32.mrb[0].mxu0
        %v5926 = vadd.f32 0.0, %v5925
        %v5927 = vpop.f32.mrb[0].mxu0
        %v5928 = vpop.f32.mrb[0].mxu0
        %v5929 = vadd.f32 0.0, %v5928
        %v5930 = vpop.f32.mrb[0].mxu0
        %5931 = vmatprep.mubr.bf16.mxu0 0
        %5932 = vmatmul.mubr.bf16.gmra.mrb[0].mxu0 %v5855
        %v5933 = vpop.f32.mrb[0].mxu0
        %v5934 = vadd.f32 0.0, %v5933
        %v5935 = vpop.f32.mrb[0].mxu0
        %v5936 = vpop.f32.mrb[0].mxu0
        %v5937 = vadd.f32 0.0, %v5936
        %v5938 = vpop.f32.mrb[0].mxu0
        %5939 = vmatprep.mubr.bf16.mxu0 0
        %5940 = vmatmul.mubr.bf16.gmra.mrb[0].mxu0 %v5858
        %v5941 = vpop.f32.mrb[0].mxu0
        %v5942 = vadd.f32 0.0, %v5941
        %v5943 = vpop.f32.mrb[0].mxu0
        %v5944 = vpop.f32.mrb[0].mxu0
        %v5945 = vadd.f32 0.0, %v5944
        %v5946 = vpop.f32.mrb[0].mxu0
        %5947 = vmatprep.mubr.bf16.mxu0 0
        %5948 = vmatmul.mubr.bf16.gmra.mrb[0].mxu0 %v5861
        %v5949 = vpop.f32.mrb[0].mxu0
        %v5950 = vadd.f32 0.0, %v5949
        %v5951 = vpop.f32.mrb[0].mxu0
        %v5952 = vpop.f32.mrb[0].mxu0
        %v5953 = vadd.f32 0.0, %v5952
        %v5954 = vpop.f32.mrb[0].mxu0
        %5955 = vmatprep.mubr.bf16.mxu0 0
        %5956 = vmatmul.mubr.bf16.gmra.mrb[0].mxu0 %v5864
        %v5957 = vpop.f32.mrb[0].mxu0
        %v5958 = vadd.f32 0.0, %v5957
        %v5959 = vpop.f32.mrb[0].mxu0
        %v5960 = vpop.f32.mrb[0].mxu0
        %v5961 = vadd.f32 0.0, %v5960
        %v5962 = vpop.f32.mrb[0].mxu0
        %5963 = vmatprep.mubr.bf16.mxu0 0
        %5964 = vmatmul.mubr.bf16.gmra.mrb[0].mxu0 %v5867
        %v5965 = vpop.f32.mrb[0].mxu0
        %v5966 = vadd.f32 0.0, %v5965
        %v5967 = vpop.f32.mrb[0].mxu0
        %v5968 = vpop.f32.mrb[0].mxu0
        %v5969 = vadd.f32 0.0, %v5968
        %v5970 = vpop.f32.mrb[0].mxu0
        %5971 = vmatprep.mubr.bf16.mxu0 0
        %5972 = vmatmul.mubr.bf16.gmra.mrb[0].mxu0 %v5870
        %v5973 = vpop.f32.mrb[0].mxu0
        %v5974 = vadd.f32 0.0, %v5973
        %v5975 = vpop.f32.mrb[0].mxu0
        %v5976 = vpop.f32.mrb[0].mxu0
        %v5977 = vadd.f32 0.0, %v5976
        %v5978 = vpop.f32.mrb[0].mxu0
        %5979 = vdwg.mxu0
        %v5980 = vadd.f32 %v5798, %v5910
        %v5981 = vadd.f32 %v5799, %v5913
        %v5982 = vadd.f32 %v5800, %v5918
        %v5983 = vadd.f32 %v5801, %v5921
        %v5984 = vadd.f32 %v5802, %v5926
        %v5985 = vadd.f32 %v5803, %v5929
        %v5986 = vadd.f32 %v5804, %v5934
        %v5987 = vadd.f32 %v5805, %v5937
        %v5988 = vadd.f32 %v5806, %v5942
        %v5989 = vadd.f32 %v5807, %v5945
        %v5990 = vadd.f32 %v5808, %v5950
        %v5991 = vadd.f32 %v5809, %v5953
        %v5992 = vadd.f32 %v5810, %v5958
        %v5993 = vadd.f32 %v5811, %v5961
        %v5994 = vadd.f32 %v5812, %v5966
        %v5995 = vadd.f32 %v5813, %v5969
        %v5996 = vadd.f32 %v5814, %v5974
        %v5997 = vadd.f32 %v5815, %v5977
        %v5998 = vld [vmem:[#allocation3 + $0x2a] sm:$0xff]
        %v5999 = vld [vmem:[#allocation3 + $0x32] sm:$0xff]
        %v6000 = vld [vmem:[#allocation3 + $0x3a] sm:$0xff]
        %v6001 = vld [vmem:[#allocation3 + $0x42] sm:$0xff]
        %v6002 = vld [vmem:[#allocation3 + $0x4a] sm:$0xff]
        %v6003 = vld [vmem:[#allocation3 + $0x52] sm:$0xff]
        %v6004 = vld [vmem:[#allocation3 + $0x5a] sm:$0xff]
        %v6005 = vld [vmem:[#allocation3 + $0x62] sm:$0xff]
        %v6006 = vld [vmem:[#allocation3 + $0x6a] sm:$0xff]
        %v6007 = vld [vmem:[#allocation3 + $0x72] sm:$0xff]
        %v6008 = vld [vmem:[#allocation3 + $0x7a] sm:$0xff]
        %v6009 = vld [vmem:[#allocation3 + $0x82] sm:$0xff]
        %v6010 = vld [vmem:[#allocation3 + $0x8a] sm:$0xff]
        %v6011 = vld [vmem:[#allocation3 + $0x92] sm:$0xff]
        %v6012 = vld [vmem:[#allocation3 + $0x9a] sm:$0xff]
        %v6013 = vld [vmem:[#allocation3 + $0xa2] sm:$0xff]
        %v6014 = vld [vmem:[#allocation3 + $0xaa] sm:$0xff]
        %v6015 = vld [vmem:[#allocation3 + $0xb2] sm:$0xf]
        %s6016 = scalar_lea.vmem %s4, 60
        %v6017 = vld [vmem:[%s6016] sm:$0x7]
        %v6018 = vpack.c.bf16 %v5999, %v5998
        %v6019 = vpack.c.bf16 %v6001, %v6000
        %v6020 = vpack.c.bf16 %v6003, %v6002
        %v6021 = vpack.c.bf16 %v6005, %v6004
        %v6022 = vpack.c.bf16 %v6007, %v6006
        %v6023 = vpack.c.bf16 %v6009, %v6008
        %v6024 = vpack.c.bf16 %v6011, %v6010
        %v6025 = vpack.c.bf16 %v6013, %v6012
        %v6026 = vpack.c.bf16 %v6015, %v6014
        %v6028 = vsel %vm1497, %v6018, 0
        %v6031 = vsel %vm1497, %v6019, 0
        %v6034 = vsel %vm1497, %v6020, 0
        %v6037 = vsel %vm1497, %v6021, 0
        %v6040 = vsel %vm1497, %v6022, 0
        %v6043 = vsel %vm1497, %v6023, 0
        %v6046 = vsel %vm1497, %v6024, 0
        %v6049 = vsel %vm1497, %v6025, 0
        %v6052 = vsel %vm1497, %v6026, 0
        %v6055 = vsel %vm3388, %v6017, 0
        %6057 = vmatprep.subr.bf16.mxu0 0
        %6058 = vmatpush1.bf16.msra.mxu0 %v6055
        %6059 = vmatprep.subr.bf16.mxu0 0
        %6060 = vmatpush1.bf16.msra.mxu0 0
        %6061 = vmatprep.subr.bf16.mxu0 0
        %6062 = vmatpush1.bf16.msra.mxu0 0
        %6063 = vmatprep.subr.bf16.mxu0 0
        %6064 = vmatpush1.bf16.msra.mxu0 0
        %6065 = vmatprep.subr.bf16.mxu0 0
        %6066 = vmatpush1.bf16.msra.mxu0 0
        %6067 = vmatprep.subr.bf16.mxu0 0
        %6068 = vmatpush1.bf16.msra.mxu0 0
        %6069 = vmatprep.subr.bf16.mxu0 0
        %6070 = vmatpush1.bf16.msra.mxu0 0
        %6071 = vmatprep.subr.bf16.mxu0 0
        %6072 = vmatpush1.bf16.msra.mxu0 0
        %6073 = vmatprep.subr.bf16.mxu0 0
        %6074 = vmatpush1.bf16.msra.mxu0 0
        %6075 = vmatprep.subr.bf16.mxu0 0
        %6076 = vmatpush1.bf16.msra.mxu0 0
        %6077 = vmatprep.subr.bf16.mxu0 0
        %6078 = vmatpush1.bf16.msra.mxu0 0
        %6079 = vmatprep.subr.bf16.mxu0 0
        %6080 = vmatpush1.bf16.msra.mxu0 0
        %6081 = vmatprep.subr.bf16.mxu0 0
        %6082 = vmatpush1.bf16.msra.mxu0 0
        %6083 = vmatprep.subr.bf16.mxu0 0
        %6084 = vmatpush1.bf16.msra.mxu0 0
        %6085 = vmatprep.subr.bf16.mxu0 0
        %6086 = vmatpush1.bf16.msra.mxu0 0
        %6087 = vmatprep.subr.bf16.mxu0 0
        %6088 = vmatpush1.bf16.msra.mxu0 0
        %6089 = vmatprep.mubr.bf16.mxu0 0
        %6090 = vmatmul.mubr.bf16.gmra.mrb[0].mxu0 %v6028
        %v6091 = vpop.f32.mrb[0].mxu0
        %v6092 = vadd.f32 0.0, %v6091
        %v6093 = vpop.f32.mrb[0].mxu0
        %v6094 = vpop.f32.mrb[0].mxu0
        %v6095 = vadd.f32 0.0, %v6094
        %v6096 = vpop.f32.mrb[0].mxu0
        %6097 = vmatprep.mubr.bf16.mxu0 0
        %6098 = vmatmul.mubr.bf16.gmra.mrb[0].mxu0 %v6031
        %v6099 = vpop.f32.mrb[0].mxu0
        %v6100 = vadd.f32 0.0, %v6099
        %v6101 = vpop.f32.mrb[0].mxu0
        %v6102 = vpop.f32.mrb[0].mxu0
        %v6103 = vadd.f32 0.0, %v6102
        %v6104 = vpop.f32.mrb[0].mxu0
        %6105 = vmatprep.mubr.bf16.mxu0 0
        %6106 = vmatmul.mubr.bf16.gmra.mrb[0].mxu0 %v6034
        %v6107 = vpop.f32.mrb[0].mxu0
        %v6108 = vadd.f32 0.0, %v6107
        %v6109 = vpop.f32.mrb[0].mxu0
        %v6110 = vpop.f32.mrb[0].mxu0
        %v6111 = vadd.f32 0.0, %v6110
        %v6112 = vpop.f32.mrb[0].mxu0
        %6113 = vmatprep.mubr.bf16.mxu0 0
        %6114 = vmatmul.mubr.bf16.gmra.mrb[0].mxu0 %v6037
        %v6115 = vpop.f32.mrb[0].mxu0
        %v6116 = vadd.f32 0.0, %v6115
        %v6117 = vpop.f32.mrb[0].mxu0
        %v6118 = vpop.f32.mrb[0].mxu0
        %v6119 = vadd.f32 0.0, %v6118
        %v6120 = vpop.f32.mrb[0].mxu0
        %6121 = vmatprep.mubr.bf16.mxu0 0
        %6122 = vmatmul.mubr.bf16.gmra.mrb[0].mxu0 %v6040
        %v6123 = vpop.f32.mrb[0].mxu0
        %v6124 = vadd.f32 0.0, %v6123
        %v6125 = vpop.f32.mrb[0].mxu0
        %v6126 = vpop.f32.mrb[0].mxu0
        %v6127 = vadd.f32 0.0, %v6126
        %v6128 = vpop.f32.mrb[0].mxu0
        %6129 = vmatprep.mubr.bf16.mxu0 0
        %6130 = vmatmul.mubr.bf16.gmra.mrb[0].mxu0 %v6043
        %v6131 = vpop.f32.mrb[0].mxu0
        %v6132 = vadd.f32 0.0, %v6131
        %v6133 = vpop.f32.mrb[0].mxu0
        %v6134 = vpop.f32.mrb[0].mxu0
        %v6135 = vadd.f32 0.0, %v6134
        %v6136 = vpop.f32.mrb[0].mxu0
        %6137 = vmatprep.mubr.bf16.mxu0 0
        %6138 = vmatmul.mubr.bf16.gmra.mrb[0].mxu0 %v6046
        %v6139 = vpop.f32.mrb[0].mxu0
        %v6140 = vadd.f32 0.0, %v6139
        %v6141 = vpop.f32.mrb[0].mxu0
        %v6142 = vpop.f32.mrb[0].mxu0
        %v6143 = vadd.f32 0.0, %v6142
        %v6144 = vpop.f32.mrb[0].mxu0
        %6145 = vmatprep.mubr.bf16.mxu0 0
        %6146 = vmatmul.mubr.bf16.gmra.mrb[0].mxu0 %v6049
        %v6147 = vpop.f32.mrb[0].mxu0
        %v6148 = vadd.f32 0.0, %v6147
        %v6149 = vpop.f32.mrb[0].mxu0
        %v6150 = vpop.f32.mrb[0].mxu0
        %v6151 = vadd.f32 0.0, %v6150
        %v6152 = vpop.f32.mrb[0].mxu0
        %6153 = vmatprep.mubr.bf16.mxu0 0
        %6154 = vmatmul.mubr.bf16.gmra.mrb[0].mxu0 %v6052
        %v6155 = vpop.f32.mrb[0].mxu0
        %v6156 = vadd.f32 0.0, %v6155
        %v6157 = vpop.f32.mrb[0].mxu0
        %v6158 = vpop.f32.mrb[0].mxu0
        %v6159 = vadd.f32 0.0, %v6158
        %v6160 = vpop.f32.mrb[0].mxu0
        %6161 = vdwg.mxu0
        %v6162 = vadd.f32 %v5980, %v6092
        %v6163 = vadd.f32 %v5981, %v6095
        %v6164 = vadd.f32 %v5982, %v6100
        %v6165 = vadd.f32 %v5983, %v6103
        %v6166 = vadd.f32 %v5984, %v6108
        %v6167 = vadd.f32 %v5985, %v6111
        %v6168 = vadd.f32 %v5986, %v6116
        %v6169 = vadd.f32 %v5987, %v6119
        %v6170 = vadd.f32 %v5988, %v6124
        %v6171 = vadd.f32 %v5989, %v6127
        %v6172 = vadd.f32 %v5990, %v6132
        %v6173 = vadd.f32 %v5991, %v6135
        %v6174 = vadd.f32 %v5992, %v6140
        %v6175 = vadd.f32 %v5993, %v6143
        %v6176 = vadd.f32 %v5994, %v6148
        %v6177 = vadd.f32 %v5995, %v6151
        %v6178 = vadd.f32 %v5996, %v6156
        %v6179 = vadd.f32 %v5997, %v6159
        %v6180 = vld [vmem:[#allocation3 + $0x2b] sm:$0xff]
        %v6181 = vld [vmem:[#allocation3 + $0x33] sm:$0xff]
        %v6182 = vld [vmem:[#allocation3 + $0x3b] sm:$0xff]
        %v6183 = vld [vmem:[#allocation3 + $0x43] sm:$0xff]
        %v6184 = vld [vmem:[#allocation3 + $0x4b] sm:$0xff]
        %v6185 = vld [vmem:[#allocation3 + $0x53] sm:$0xff]
        %v6186 = vld [vmem:[#allocation3 + $0x5b] sm:$0xff]
        %v6187 = vld [vmem:[#allocation3 + $0x63] sm:$0xff]
        %v6188 = vld [vmem:[#allocation3 + $0x6b] sm:$0xff]
        %v6189 = vld [vmem:[#allocation3 + $0x73] sm:$0xff]
        %v6190 = vld [vmem:[#allocation3 + $0x7b] sm:$0xff]
        %v6191 = vld [vmem:[#allocation3 + $0x83] sm:$0xff]
        %v6192 = vld [vmem:[#allocation3 + $0x8b] sm:$0xff]
        %v6193 = vld [vmem:[#allocation3 + $0x93] sm:$0xff]
        %v6194 = vld [vmem:[#allocation3 + $0x9b] sm:$0xff]
        %v6195 = vld [vmem:[#allocation3 + $0xa3] sm:$0xff]
        %v6196 = vld [vmem:[#allocation3 + $0xab] sm:$0xff]
        %v6197 = vld [vmem:[#allocation3 + $0xb3] sm:$0xf]
        %s6198 = scalar_lea.vmem %s4, 64
        %v6199 = vld [vmem:[%s6198] sm:$0x7]
        %v6200 = vpack.c.bf16 %v6181, %v6180
        %v6201 = vpack.c.bf16 %v6183, %v6182
        %v6202 = vpack.c.bf16 %v6185, %v6184
        %v6203 = vpack.c.bf16 %v6187, %v6186
        %v6204 = vpack.c.bf16 %v6189, %v6188
        %v6205 = vpack.c.bf16 %v6191, %v6190
        %v6206 = vpack.c.bf16 %v6193, %v6192
        %v6207 = vpack.c.bf16 %v6195, %v6194
        %v6208 = vpack.c.bf16 %v6197, %v6196
        %v6210 = vsel %vm1497, %v6200, 0
        %v6213 = vsel %vm1497, %v6201, 0
        %v6216 = vsel %vm1497, %v6202, 0
        %v6219 = vsel %vm1497, %v6203, 0
        %v6222 = vsel %vm1497, %v6204, 0
        %v6225 = vsel %vm1497, %v6205, 0
        %v6228 = vsel %vm1497, %v6206, 0
        %v6231 = vsel %vm1497, %v6207, 0
        %v6234 = vsel %vm1497, %v6208, 0
        %v6237 = vsel %vm3388, %v6199, 0
        %6239 = vmatprep.subr.bf16.mxu0 0
        %6240 = vmatpush1.bf16.msra.mxu0 %v6237
        %6241 = vmatprep.subr.bf16.mxu0 0
        %6242 = vmatpush1.bf16.msra.mxu0 0
        %6243 = vmatprep.subr.bf16.mxu0 0
        %6244 = vmatpush1.bf16.msra.mxu0 0
        %6245 = vmatprep.subr.bf16.mxu0 0
        %6246 = vmatpush1.bf16.msra.mxu0 0
        %6247 = vmatprep.subr.bf16.mxu0 0
        %6248 = vmatpush1.bf16.msra.mxu0 0
        %6249 = vmatprep.subr.bf16.mxu0 0
        %6250 = vmatpush1.bf16.msra.mxu0 0
        %6251 = vmatprep.subr.bf16.mxu0 0
        %6252 = vmatpush1.bf16.msra.mxu0 0
        %6253 = vmatprep.subr.bf16.mxu0 0
        %6254 = vmatpush1.bf16.msra.mxu0 0
        %6255 = vmatprep.subr.bf16.mxu0 0
        %6256 = vmatpush1.bf16.msra.mxu0 0
        %6257 = vmatprep.subr.bf16.mxu0 0
        %6258 = vmatpush1.bf16.msra.mxu0 0
        %6259 = vmatprep.subr.bf16.mxu0 0
        %6260 = vmatpush1.bf16.msra.mxu0 0
        %6261 = vmatprep.subr.bf16.mxu0 0
        %6262 = vmatpush1.bf16.msra.mxu0 0
        %6263 = vmatprep.subr.bf16.mxu0 0
        %6264 = vmatpush1.bf16.msra.mxu0 0
        %6265 = vmatprep.subr.bf16.mxu0 0
        %6266 = vmatpush1.bf16.msra.mxu0 0
        %6267 = vmatprep.subr.bf16.mxu0 0
        %6268 = vmatpush1.bf16.msra.mxu0 0
        %6269 = vmatprep.subr.bf16.mxu0 0
        %6270 = vmatpush1.bf16.msra.mxu0 0
        %6271 = vmatprep.mubr.bf16.mxu0 0
        %6272 = vmatmul.mubr.bf16.gmra.mrb[0].mxu0 %v6210
        %v6273 = vpop.f32.mrb[0].mxu0
        %v6274 = vadd.f32 0.0, %v6273
        %v6275 = vpop.f32.mrb[0].mxu0
        %v6276 = vpop.f32.mrb[0].mxu0
        %v6277 = vadd.f32 0.0, %v6276
        %v6278 = vpop.f32.mrb[0].mxu0
        %6279 = vmatprep.mubr.bf16.mxu0 0
        %6280 = vmatmul.mubr.bf16.gmra.mrb[0].mxu0 %v6213
        %v6281 = vpop.f32.mrb[0].mxu0
        %v6282 = vadd.f32 0.0, %v6281
        %v6283 = vpop.f32.mrb[0].mxu0
        %v6284 = vpop.f32.mrb[0].mxu0
        %v6285 = vadd.f32 0.0, %v6284
        %v6286 = vpop.f32.mrb[0].mxu0
        %6287 = vmatprep.mubr.bf16.mxu0 0
        %6288 = vmatmul.mubr.bf16.gmra.mrb[0].mxu0 %v6216
        %v6289 = vpop.f32.mrb[0].mxu0
        %v6290 = vadd.f32 0.0, %v6289
        %v6291 = vpop.f32.mrb[0].mxu0
        %v6292 = vpop.f32.mrb[0].mxu0
        %v6293 = vadd.f32 0.0, %v6292
        %v6294 = vpop.f32.mrb[0].mxu0
        %6295 = vmatprep.mubr.bf16.mxu0 0
        %6296 = vmatmul.mubr.bf16.gmra.mrb[0].mxu0 %v6219
        %v6297 = vpop.f32.mrb[0].mxu0
        %v6298 = vadd.f32 0.0, %v6297
        %v6299 = vpop.f32.mrb[0].mxu0
        %v6300 = vpop.f32.mrb[0].mxu0
        %v6301 = vadd.f32 0.0, %v6300
        %v6302 = vpop.f32.mrb[0].mxu0
        %6303 = vmatprep.mubr.bf16.mxu0 0
        %6304 = vmatmul.mubr.bf16.gmra.mrb[0].mxu0 %v6222
        %v6305 = vpop.f32.mrb[0].mxu0
        %v6306 = vadd.f32 0.0, %v6305
        %v6307 = vpop.f32.mrb[0].mxu0
        %v6308 = vpop.f32.mrb[0].mxu0
        %v6309 = vadd.f32 0.0, %v6308
        %v6310 = vpop.f32.mrb[0].mxu0
        %6311 = vmatprep.mubr.bf16.mxu0 0
        %6312 = vmatmul.mubr.bf16.gmra.mrb[0].mxu0 %v6225
        %v6313 = vpop.f32.mrb[0].mxu0
        %v6314 = vadd.f32 0.0, %v6313
        %v6315 = vpop.f32.mrb[0].mxu0
        %v6316 = vpop.f32.mrb[0].mxu0
        %v6317 = vadd.f32 0.0, %v6316
        %v6318 = vpop.f32.mrb[0].mxu0
        %6319 = vmatprep.mubr.bf16.mxu0 0
        %6320 = vmatmul.mubr.bf16.gmra.mrb[0].mxu0 %v6228
        %v6321 = vpop.f32.mrb[0].mxu0
        %v6322 = vadd.f32 0.0, %v6321
        %v6323 = vpop.f32.mrb[0].mxu0
        %v6324 = vpop.f32.mrb[0].mxu0
        %v6325 = vadd.f32 0.0, %v6324
        %v6326 = vpop.f32.mrb[0].mxu0
        %6327 = vmatprep.mubr.bf16.mxu0 0
        %6328 = vmatmul.mubr.bf16.gmra.mrb[0].mxu0 %v6231
        %v6329 = vpop.f32.mrb[0].mxu0
        %v6330 = vadd.f32 0.0, %v6329
        %v6331 = vpop.f32.mrb[0].mxu0
        %v6332 = vpop.f32.mrb[0].mxu0
        %v6333 = vadd.f32 0.0, %v6332
        %v6334 = vpop.f32.mrb[0].mxu0
        %6335 = vmatprep.mubr.bf16.mxu0 0
        %6336 = vmatmul.mubr.bf16.gmra.mrb[0].mxu0 %v6234
        %v6337 = vpop.f32.mrb[0].mxu0
        %v6338 = vadd.f32 0.0, %v6337
        %v6339 = vpop.f32.mrb[0].mxu0
        %v6340 = vpop.f32.mrb[0].mxu0
        %v6341 = vadd.f32 0.0, %v6340
        %v6342 = vpop.f32.mrb[0].mxu0
        %6343 = vdwg.mxu0
        %v6344 = vadd.f32 %v6162, %v6274
        %v6345 = vadd.f32 %v6163, %v6277
        %v6346 = vadd.f32 %v6164, %v6282
        %v6347 = vadd.f32 %v6165, %v6285
        %v6348 = vadd.f32 %v6166, %v6290
        %v6349 = vadd.f32 %v6167, %v6293
        %v6350 = vadd.f32 %v6168, %v6298
        %v6351 = vadd.f32 %v6169, %v6301
        %v6352 = vadd.f32 %v6170, %v6306
        %v6353 = vadd.f32 %v6171, %v6309
        %v6354 = vadd.f32 %v6172, %v6314
        %v6355 = vadd.f32 %v6173, %v6317
        %v6356 = vadd.f32 %v6174, %v6322
        %v6357 = vadd.f32 %v6175, %v6325
        %v6358 = vadd.f32 %v6176, %v6330
        %v6359 = vadd.f32 %v6177, %v6333
        %v6360 = vadd.f32 %v6178, %v6338
        %v6361 = vadd.f32 %v6179, %v6341
        %v6362 = vld [vmem:[#allocation3 + $0x2c] sm:$0xff]
        %v6363 = vld [vmem:[#allocation3 + $0x34] sm:$0xff]
        %v6364 = vld [vmem:[#allocation3 + $0x3c] sm:$0xff]
        %v6365 = vld [vmem:[#allocation3 + $0x44] sm:$0xff]
        %v6366 = vld [vmem:[#allocation3 + $0x4c] sm:$0xff]
        %v6367 = vld [vmem:[#allocation3 + $0x54] sm:$0xff]
        %v6368 = vld [vmem:[#allocation3 + $0x5c] sm:$0xff]
        %v6369 = vld [vmem:[#allocation3 + $0x64] sm:$0xff]
        %v6370 = vld [vmem:[#allocation3 + $0x6c] sm:$0xff]
        %v6371 = vld [vmem:[#allocation3 + $0x74] sm:$0xff]
        %v6372 = vld [vmem:[#allocation3 + $0x7c] sm:$0xff]
        %v6373 = vld [vmem:[#allocation3 + $0x84] sm:$0xff]
        %v6374 = vld [vmem:[#allocation3 + $0x8c] sm:$0xff]
        %v6375 = vld [vmem:[#allocation3 + $0x94] sm:$0xff]
        %v6376 = vld [vmem:[#allocation3 + $0x9c] sm:$0xff]
        %v6377 = vld [vmem:[#allocation3 + $0xa4] sm:$0xff]
        %v6378 = vld [vmem:[#allocation3 + $0xac] sm:$0xff]
        %v6379 = vld [vmem:[#allocation3 + $0xb4] sm:$0xf]
        %s6380 = scalar_lea.vmem %s4, 68
        %v6381 = vld [vmem:[%s6380] sm:$0x7]
        %v6382 = vpack.c.bf16 %v6363, %v6362
        %v6383 = vpack.c.bf16 %v6365, %v6364
        %v6384 = vpack.c.bf16 %v6367, %v6366
        %v6385 = vpack.c.bf16 %v6369, %v6368
        %v6386 = vpack.c.bf16 %v6371, %v6370
        %v6387 = vpack.c.bf16 %v6373, %v6372
        %v6388 = vpack.c.bf16 %v6375, %v6374
        %v6389 = vpack.c.bf16 %v6377, %v6376
        %v6390 = vpack.c.bf16 %v6379, %v6378
        %v6392 = vsel %vm1497, %v6382, 0
        %v6395 = vsel %vm1497, %v6383, 0
        %v6398 = vsel %vm1497, %v6384, 0
        %v6401 = vsel %vm1497, %v6385, 0
        %v6404 = vsel %vm1497, %v6386, 0
        %v6407 = vsel %vm1497, %v6387, 0
        %v6410 = vsel %vm1497, %v6388, 0
        %v6413 = vsel %vm1497, %v6389, 0
        %v6416 = vsel %vm1497, %v6390, 0
        %v6419 = vsel %vm3388, %v6381, 0
        %6421 = vmatprep.subr.bf16.mxu0 0
        %6422 = vmatpush1.bf16.msra.mxu0 %v6419
        %6423 = vmatprep.subr.bf16.mxu0 0
        %6424 = vmatpush1.bf16.msra.mxu0 0
        %6425 = vmatprep.subr.bf16.mxu0 0
        %6426 = vmatpush1.bf16.msra.mxu0 0
        %6427 = vmatprep.subr.bf16.mxu0 0
        %6428 = vmatpush1.bf16.msra.mxu0 0
        %6429 = vmatprep.subr.bf16.mxu0 0
        %6430 = vmatpush1.bf16.msra.mxu0 0
        %6431 = vmatprep.subr.bf16.mxu0 0
        %6432 = vmatpush1.bf16.msra.mxu0 0
        %6433 = vmatprep.subr.bf16.mxu0 0
        %6434 = vmatpush1.bf16.msra.mxu0 0
        %6435 = vmatprep.subr.bf16.mxu0 0
        %6436 = vmatpush1.bf16.msra.mxu0 0
        %6437 = vmatprep.subr.bf16.mxu0 0
        %6438 = vmatpush1.bf16.msra.mxu0 0
        %6439 = vmatprep.subr.bf16.mxu0 0
        %6440 = vmatpush1.bf16.msra.mxu0 0
        %6441 = vmatprep.subr.bf16.mxu0 0
        %6442 = vmatpush1.bf16.msra.mxu0 0
        %6443 = vmatprep.subr.bf16.mxu0 0
        %6444 = vmatpush1.bf16.msra.mxu0 0
        %6445 = vmatprep.subr.bf16.mxu0 0
        %6446 = vmatpush1.bf16.msra.mxu0 0
        %6447 = vmatprep.subr.bf16.mxu0 0
        %6448 = vmatpush1.bf16.msra.mxu0 0
        %6449 = vmatprep.subr.bf16.mxu0 0
        %6450 = vmatpush1.bf16.msra.mxu0 0
        %6451 = vmatprep.subr.bf16.mxu0 0
        %6452 = vmatpush1.bf16.msra.mxu0 0
        %6453 = vmatprep.mubr.bf16.mxu0 0
        %6454 = vmatmul.mubr.bf16.gmra.mrb[0].mxu0 %v6392
        %v6455 = vpop.f32.mrb[0].mxu0
        %v6456 = vadd.f32 0.0, %v6455
        %v6457 = vpop.f32.mrb[0].mxu0
        %v6458 = vpop.f32.mrb[0].mxu0
        %v6459 = vadd.f32 0.0, %v6458
        %v6460 = vpop.f32.mrb[0].mxu0
        %6461 = vmatprep.mubr.bf16.mxu0 0
        %6462 = vmatmul.mubr.bf16.gmra.mrb[0].mxu0 %v6395
        %v6463 = vpop.f32.mrb[0].mxu0
        %v6464 = vadd.f32 0.0, %v6463
        %v6465 = vpop.f32.mrb[0].mxu0
        %v6466 = vpop.f32.mrb[0].mxu0
        %v6467 = vadd.f32 0.0, %v6466
        %v6468 = vpop.f32.mrb[0].mxu0
        %6469 = vmatprep.mubr.bf16.mxu0 0
        %6470 = vmatmul.mubr.bf16.gmra.mrb[0].mxu0 %v6398
        %v6471 = vpop.f32.mrb[0].mxu0
        %v6472 = vadd.f32 0.0, %v6471
        %v6473 = vpop.f32.mrb[0].mxu0
        %v6474 = vpop.f32.mrb[0].mxu0
        %v6475 = vadd.f32 0.0, %v6474
        %v6476 = vpop.f32.mrb[0].mxu0
        %6477 = vmatprep.mubr.bf16.mxu0 0
        %6478 = vmatmul.mubr.bf16.gmra.mrb[0].mxu0 %v6401
        %v6479 = vpop.f32.mrb[0].mxu0
        %v6480 = vadd.f32 0.0, %v6479
        %v6481 = vpop.f32.mrb[0].mxu0
        %v6482 = vpop.f32.mrb[0].mxu0
        %v6483 = vadd.f32 0.0, %v6482
        %v6484 = vpop.f32.mrb[0].mxu0
        %6485 = vmatprep.mubr.bf16.mxu0 0
        %6486 = vmatmul.mubr.bf16.gmra.mrb[0].mxu0 %v6404
        %v6487 = vpop.f32.mrb[0].mxu0
        %v6488 = vadd.f32 0.0, %v6487
        %v6489 = vpop.f32.mrb[0].mxu0
        %v6490 = vpop.f32.mrb[0].mxu0
        %v6491 = vadd.f32 0.0, %v6490
        %v6492 = vpop.f32.mrb[0].mxu0
        %6493 = vmatprep.mubr.bf16.mxu0 0
        %6494 = vmatmul.mubr.bf16.gmra.mrb[0].mxu0 %v6407
        %v6495 = vpop.f32.mrb[0].mxu0
        %v6496 = vadd.f32 0.0, %v6495
        %v6497 = vpop.f32.mrb[0].mxu0
        %v6498 = vpop.f32.mrb[0].mxu0
        %v6499 = vadd.f32 0.0, %v6498
        %v6500 = vpop.f32.mrb[0].mxu0
        %6501 = vmatprep.mubr.bf16.mxu0 0
        %6502 = vmatmul.mubr.bf16.gmra.mrb[0].mxu0 %v6410
        %v6503 = vpop.f32.mrb[0].mxu0
        %v6504 = vadd.f32 0.0, %v6503
        %v6505 = vpop.f32.mrb[0].mxu0
        %v6506 = vpop.f32.mrb[0].mxu0
        %v6507 = vadd.f32 0.0, %v6506
        %v6508 = vpop.f32.mrb[0].mxu0
        %6509 = vmatprep.mubr.bf16.mxu0 0
        %6510 = vmatmul.mubr.bf16.gmra.mrb[0].mxu0 %v6413
        %v6511 = vpop.f32.mrb[0].mxu0
        %v6512 = vadd.f32 0.0, %v6511
        %v6513 = vpop.f32.mrb[0].mxu0
        %v6514 = vpop.f32.mrb[0].mxu0
        %v6515 = vadd.f32 0.0, %v6514
        %v6516 = vpop.f32.mrb[0].mxu0
        %6517 = vmatprep.mubr.bf16.mxu0 0
        %6518 = vmatmul.mubr.bf16.gmra.mrb[0].mxu0 %v6416
        %v6519 = vpop.f32.mrb[0].mxu0
        %v6520 = vadd.f32 0.0, %v6519
        %v6521 = vpop.f32.mrb[0].mxu0
        %v6522 = vpop.f32.mrb[0].mxu0
        %v6523 = vadd.f32 0.0, %v6522
        %v6524 = vpop.f32.mrb[0].mxu0
        %6525 = vdwg.mxu0
        %v6526 = vadd.f32 %v6344, %v6456
        %v6527 = vadd.f32 %v6345, %v6459
        %v6528 = vadd.f32 %v6346, %v6464
        %v6529 = vadd.f32 %v6347, %v6467
        %v6530 = vadd.f32 %v6348, %v6472
        %v6531 = vadd.f32 %v6349, %v6475
        %v6532 = vadd.f32 %v6350, %v6480
        %v6533 = vadd.f32 %v6351, %v6483
        %v6534 = vadd.f32 %v6352, %v6488
        %v6535 = vadd.f32 %v6353, %v6491
        %v6536 = vadd.f32 %v6354, %v6496
        %v6537 = vadd.f32 %v6355, %v6499
        %v6538 = vadd.f32 %v6356, %v6504
        %v6539 = vadd.f32 %v6357, %v6507
        %v6540 = vadd.f32 %v6358, %v6512
        %v6541 = vadd.f32 %v6359, %v6515
        %v6542 = vadd.f32 %v6360, %v6520
        %v6543 = vadd.f32 %v6361, %v6523
        %v6544 = vld [vmem:[#allocation3 + $0x2d] sm:$0xff]
        %v6545 = vld [vmem:[#allocation3 + $0x35] sm:$0xff]
        %v6546 = vld [vmem:[#allocation3 + $0x3d] sm:$0xff]
        %v6547 = vld [vmem:[#allocation3 + $0x45] sm:$0xff]
        %v6548 = vld [vmem:[#allocation3 + $0x4d] sm:$0xff]
        %v6549 = vld [vmem:[#allocation3 + $0x55] sm:$0xff]
        %v6550 = vld [vmem:[#allocation3 + $0x5d] sm:$0xff]
        %v6551 = vld [vmem:[#allocation3 + $0x65] sm:$0xff]
        %v6552 = vld [vmem:[#allocation3 + $0x6d] sm:$0xff]
        %v6553 = vld [vmem:[#allocation3 + $0x75] sm:$0xff]
        %v6554 = vld [vmem:[#allocation3 + $0x7d] sm:$0xff]
        %v6555 = vld [vmem:[#allocation3 + $0x85] sm:$0xff]
        %v6556 = vld [vmem:[#allocation3 + $0x8d] sm:$0xff]
        %v6557 = vld [vmem:[#allocation3 + $0x95] sm:$0xff]
        %v6558 = vld [vmem:[#allocation3 + $0x9d] sm:$0xff]
        %v6559 = vld [vmem:[#allocation3 + $0xa5] sm:$0xff]
        %v6560 = vld [vmem:[#allocation3 + $0xad] sm:$0xff]
        %v6561 = vld [vmem:[#allocation3 + $0xb5] sm:$0xf]
        %s6562 = scalar_lea.vmem %s4, 72
        %v6563 = vld [vmem:[%s6562] sm:$0x7]
        %v6564 = vpack.c.bf16 %v6545, %v6544
        %v6565 = vpack.c.bf16 %v6547, %v6546
        %v6566 = vpack.c.bf16 %v6549, %v6548
        %v6567 = vpack.c.bf16 %v6551, %v6550
        %v6568 = vpack.c.bf16 %v6553, %v6552
        %v6569 = vpack.c.bf16 %v6555, %v6554
        %v6570 = vpack.c.bf16 %v6557, %v6556
        %v6571 = vpack.c.bf16 %v6559, %v6558
        %v6572 = vpack.c.bf16 %v6561, %v6560
        %v6574 = vsel %vm1497, %v6564, 0
        %v6577 = vsel %vm1497, %v6565, 0
        %v6580 = vsel %vm1497, %v6566, 0
        %v6583 = vsel %vm1497, %v6567, 0
        %v6586 = vsel %vm1497, %v6568, 0
        %v6589 = vsel %vm1497, %v6569, 0
        %v6592 = vsel %vm1497, %v6570, 0
        %v6595 = vsel %vm1497, %v6571, 0
        %v6598 = vsel %vm1497, %v6572, 0
        %v6601 = vsel %vm3388, %v6563, 0
        %6603 = vmatprep.subr.bf16.mxu0 0
        %6604 = vmatpush1.bf16.msra.mxu0 %v6601
        %6605 = vmatprep.subr.bf16.mxu0 0
        %6606 = vmatpush1.bf16.msra.mxu0 0
        %6607 = vmatprep.subr.bf16.mxu0 0
        %6608 = vmatpush1.bf16.msra.mxu0 0
        %6609 = vmatprep.subr.bf16.mxu0 0
        %6610 = vmatpush1.bf16.msra.mxu0 0
        %6611 = vmatprep.subr.bf16.mxu0 0
        %6612 = vmatpush1.bf16.msra.mxu0 0
        %6613 = vmatprep.subr.bf16.mxu0 0
        %6614 = vmatpush1.bf16.msra.mxu0 0
        %6615 = vmatprep.subr.bf16.mxu0 0
        %6616 = vmatpush1.bf16.msra.mxu0 0
        %6617 = vmatprep.subr.bf16.mxu0 0
        %6618 = vmatpush1.bf16.msra.mxu0 0
        %6619 = vmatprep.subr.bf16.mxu0 0
        %6620 = vmatpush1.bf16.msra.mxu0 0
        %6621 = vmatprep.subr.bf16.mxu0 0
        %6622 = vmatpush1.bf16.msra.mxu0 0
        %6623 = vmatprep.subr.bf16.mxu0 0
        %6624 = vmatpush1.bf16.msra.mxu0 0
        %6625 = vmatprep.subr.bf16.mxu0 0
        %6626 = vmatpush1.bf16.msra.mxu0 0
        %6627 = vmatprep.subr.bf16.mxu0 0
        %6628 = vmatpush1.bf16.msra.mxu0 0
        %6629 = vmatprep.subr.bf16.mxu0 0
        %6630 = vmatpush1.bf16.msra.mxu0 0
        %6631 = vmatprep.subr.bf16.mxu0 0
        %6632 = vmatpush1.bf16.msra.mxu0 0
        %6633 = vmatprep.subr.bf16.mxu0 0
        %6634 = vmatpush1.bf16.msra.mxu0 0
        %6635 = vmatprep.mubr.bf16.mxu0 0
        %6636 = vmatmul.mubr.bf16.gmra.mrb[0].mxu0 %v6574
        %v6637 = vpop.f32.mrb[0].mxu0
        %v6638 = vadd.f32 0.0, %v6637
        %v6639 = vpop.f32.mrb[0].mxu0
        %v6640 = vpop.f32.mrb[0].mxu0
        %v6641 = vadd.f32 0.0, %v6640
        %v6642 = vpop.f32.mrb[0].mxu0
        %6643 = vmatprep.mubr.bf16.mxu0 0
        %6644 = vmatmul.mubr.bf16.gmra.mrb[0].mxu0 %v6577
        %v6645 = vpop.f32.mrb[0].mxu0
        %v6646 = vadd.f32 0.0, %v6645
        %v6647 = vpop.f32.mrb[0].mxu0
        %v6648 = vpop.f32.mrb[0].mxu0
        %v6649 = vadd.f32 0.0, %v6648
        %v6650 = vpop.f32.mrb[0].mxu0
        %6651 = vmatprep.mubr.bf16.mxu0 0
        %6652 = vmatmul.mubr.bf16.gmra.mrb[0].mxu0 %v6580
        %v6653 = vpop.f32.mrb[0].mxu0
        %v6654 = vadd.f32 0.0, %v6653
        %v6655 = vpop.f32.mrb[0].mxu0
        %v6656 = vpop.f32.mrb[0].mxu0
        %v6657 = vadd.f32 0.0, %v6656
        %v6658 = vpop.f32.mrb[0].mxu0
        %6659 = vmatprep.mubr.bf16.mxu0 0
        %6660 = vmatmul.mubr.bf16.gmra.mrb[0].mxu0 %v6583
        %v6661 = vpop.f32.mrb[0].mxu0
        %v6662 = vadd.f32 0.0, %v6661
        %v6663 = vpop.f32.mrb[0].mxu0
        %v6664 = vpop.f32.mrb[0].mxu0
        %v6665 = vadd.f32 0.0, %v6664
        %v6666 = vpop.f32.mrb[0].mxu0
        %6667 = vmatprep.mubr.bf16.mxu0 0
        %6668 = vmatmul.mubr.bf16.gmra.mrb[0].mxu0 %v6586
        %v6669 = vpop.f32.mrb[0].mxu0
        %v6670 = vadd.f32 0.0, %v6669
        %v6671 = vpop.f32.mrb[0].mxu0
        %v6672 = vpop.f32.mrb[0].mxu0
        %v6673 = vadd.f32 0.0, %v6672
        %v6674 = vpop.f32.mrb[0].mxu0
        %6675 = vmatprep.mubr.bf16.mxu0 0
        %6676 = vmatmul.mubr.bf16.gmra.mrb[0].mxu0 %v6589
        %v6677 = vpop.f32.mrb[0].mxu0
        %v6678 = vadd.f32 0.0, %v6677
        %v6679 = vpop.f32.mrb[0].mxu0
        %v6680 = vpop.f32.mrb[0].mxu0
        %v6681 = vadd.f32 0.0, %v6680
        %v6682 = vpop.f32.mrb[0].mxu0
        %6683 = vmatprep.mubr.bf16.mxu0 0
        %6684 = vmatmul.mubr.bf16.gmra.mrb[0].mxu0 %v6592
        %v6685 = vpop.f32.mrb[0].mxu0
        %v6686 = vadd.f32 0.0, %v6685
        %v6687 = vpop.f32.mrb[0].mxu0
        %v6688 = vpop.f32.mrb[0].mxu0
        %v6689 = vadd.f32 0.0, %v6688
        %v6690 = vpop.f32.mrb[0].mxu0
        %6691 = vmatprep.mubr.bf16.mxu0 0
        %6692 = vmatmul.mubr.bf16.gmra.mrb[0].mxu0 %v6595
        %v6693 = vpop.f32.mrb[0].mxu0
        %v6694 = vadd.f32 0.0, %v6693
        %v6695 = vpop.f32.mrb[0].mxu0
        %v6696 = vpop.f32.mrb[0].mxu0
        %v6697 = vadd.f32 0.0, %v6696
        %v6698 = vpop.f32.mrb[0].mxu0
        %6699 = vmatprep.mubr.bf16.mxu0 0
        %6700 = vmatmul.mubr.bf16.gmra.mrb[0].mxu0 %v6598
        %v6701 = vpop.f32.mrb[0].mxu0
        %v6702 = vadd.f32 0.0, %v6701
        %v6703 = vpop.f32.mrb[0].mxu0
        %v6704 = vpop.f32.mrb[0].mxu0
        %v6705 = vadd.f32 0.0, %v6704
        %v6706 = vpop.f32.mrb[0].mxu0
        %6707 = vdwg.mxu0
        %v6708 = vadd.f32 %v6526, %v6638
        %v6709 = vadd.f32 %v6527, %v6641
        %v6710 = vadd.f32 %v6528, %v6646
        %v6711 = vadd.f32 %v6529, %v6649
        %v6712 = vadd.f32 %v6530, %v6654
        %v6713 = vadd.f32 %v6531, %v6657
        %v6714 = vadd.f32 %v6532, %v6662
        %v6715 = vadd.f32 %v6533, %v6665
        %v6716 = vadd.f32 %v6534, %v6670
        %v6717 = vadd.f32 %v6535, %v6673
        %v6718 = vadd.f32 %v6536, %v6678
        %v6719 = vadd.f32 %v6537, %v6681
        %v6720 = vadd.f32 %v6538, %v6686
        %v6721 = vadd.f32 %v6539, %v6689
        %v6722 = vadd.f32 %v6540, %v6694
        %v6723 = vadd.f32 %v6541, %v6697
        %v6724 = vadd.f32 %v6542, %v6702
        %v6725 = vadd.f32 %v6543, %v6705
        %v6726 = vld [vmem:[#allocation3 + $0x2e] sm:$0xff]
        %v6727 = vld [vmem:[#allocation3 + $0x36] sm:$0xff]
        %v6728 = vld [vmem:[#allocation3 + $0x3e] sm:$0xff]
        %v6729 = vld [vmem:[#allocation3 + $0x46] sm:$0xff]
        %v6730 = vld [vmem:[#allocation3 + $0x4e] sm:$0xff]
        %v6731 = vld [vmem:[#allocation3 + $0x56] sm:$0xff]
        %v6732 = vld [vmem:[#allocation3 + $0x5e] sm:$0xff]
        %v6733 = vld [vmem:[#allocation3 + $0x66] sm:$0xff]
        %v6734 = vld [vmem:[#allocation3 + $0x6e] sm:$0xff]
        %v6735 = vld [vmem:[#allocation3 + $0x76] sm:$0xff]
        %v6736 = vld [vmem:[#allocation3 + $0x7e] sm:$0xff]
        %v6737 = vld [vmem:[#allocation3 + $0x86] sm:$0xff]
        %v6738 = vld [vmem:[#allocation3 + $0x8e] sm:$0xff]
        %v6739 = vld [vmem:[#allocation3 + $0x96] sm:$0xff]
        %v6740 = vld [vmem:[#allocation3 + $0x9e] sm:$0xff]
        %v6741 = vld [vmem:[#allocation3 + $0xa6] sm:$0xff]
        %v6742 = vld [vmem:[#allocation3 + $0xae] sm:$0xff]
        %v6743 = vld [vmem:[#allocation3 + $0xb6] sm:$0xf]
        %s6744 = scalar_lea.vmem %s4, 76
        %v6745 = vld [vmem:[%s6744] sm:$0x7]
        %v6746 = vpack.c.bf16 %v6727, %v6726
        %v6747 = vpack.c.bf16 %v6729, %v6728
        %v6748 = vpack.c.bf16 %v6731, %v6730
        %v6749 = vpack.c.bf16 %v6733, %v6732
        %v6750 = vpack.c.bf16 %v6735, %v6734
        %v6751 = vpack.c.bf16 %v6737, %v6736
        %v6752 = vpack.c.bf16 %v6739, %v6738
        %v6753 = vpack.c.bf16 %v6741, %v6740
        %v6754 = vpack.c.bf16 %v6743, %v6742
        %v6756 = vsel %vm1497, %v6746, 0
        %v6759 = vsel %vm1497, %v6747, 0
        %v6762 = vsel %vm1497, %v6748, 0
        %v6765 = vsel %vm1497, %v6749, 0
        %v6768 = vsel %vm1497, %v6750, 0
        %v6771 = vsel %vm1497, %v6751, 0
        %v6774 = vsel %vm1497, %v6752, 0
        %v6777 = vsel %vm1497, %v6753, 0
        %v6780 = vsel %vm1497, %v6754, 0
        %v6783 = vsel %vm3388, %v6745, 0
        %6785 = vmatprep.subr.bf16.mxu0 0
        %6786 = vmatpush1.bf16.msra.mxu0 %v6783
        %6787 = vmatprep.subr.bf16.mxu0 0
        %6788 = vmatpush1.bf16.msra.mxu0 0
        %6789 = vmatprep.subr.bf16.mxu0 0
        %6790 = vmatpush1.bf16.msra.mxu0 0
        %6791 = vmatprep.subr.bf16.mxu0 0
        %6792 = vmatpush1.bf16.msra.mxu0 0
        %6793 = vmatprep.subr.bf16.mxu0 0
        %6794 = vmatpush1.bf16.msra.mxu0 0
        %6795 = vmatprep.subr.bf16.mxu0 0
        %6796 = vmatpush1.bf16.msra.mxu0 0
        %6797 = vmatprep.subr.bf16.mxu0 0
        %6798 = vmatpush1.bf16.msra.mxu0 0
        %6799 = vmatprep.subr.bf16.mxu0 0
        %6800 = vmatpush1.bf16.msra.mxu0 0
        %6801 = vmatprep.subr.bf16.mxu0 0
        %6802 = vmatpush1.bf16.msra.mxu0 0
        %6803 = vmatprep.subr.bf16.mxu0 0
        %6804 = vmatpush1.bf16.msra.mxu0 0
        %6805 = vmatprep.subr.bf16.mxu0 0
        %6806 = vmatpush1.bf16.msra.mxu0 0
        %6807 = vmatprep.subr.bf16.mxu0 0
        %6808 = vmatpush1.bf16.msra.mxu0 0
        %6809 = vmatprep.subr.bf16.mxu0 0
        %6810 = vmatpush1.bf16.msra.mxu0 0
        %6811 = vmatprep.subr.bf16.mxu0 0
        %6812 = vmatpush1.bf16.msra.mxu0 0
        %6813 = vmatprep.subr.bf16.mxu0 0
        %6814 = vmatpush1.bf16.msra.mxu0 0
        %6815 = vmatprep.subr.bf16.mxu0 0
        %6816 = vmatpush1.bf16.msra.mxu0 0
        %6817 = vmatprep.mubr.bf16.mxu0 0
        %6818 = vmatmul.mubr.bf16.gmra.mrb[0].mxu0 %v6756
        %v6819 = vpop.f32.mrb[0].mxu0
        %v6820 = vadd.f32 0.0, %v6819
        %v6821 = vpop.f32.mrb[0].mxu0
        %v6822 = vpop.f32.mrb[0].mxu0
        %v6823 = vadd.f32 0.0, %v6822
        %v6824 = vpop.f32.mrb[0].mxu0
        %6825 = vmatprep.mubr.bf16.mxu0 0
        %6826 = vmatmul.mubr.bf16.gmra.mrb[0].mxu0 %v6759
        %v6827 = vpop.f32.mrb[0].mxu0
        %v6828 = vadd.f32 0.0, %v6827
        %v6829 = vpop.f32.mrb[0].mxu0
        %v6830 = vpop.f32.mrb[0].mxu0
        %v6831 = vadd.f32 0.0, %v6830
        %v6832 = vpop.f32.mrb[0].mxu0
        %6833 = vmatprep.mubr.bf16.mxu0 0
        %6834 = vmatmul.mubr.bf16.gmra.mrb[0].mxu0 %v6762
        %v6835 = vpop.f32.mrb[0].mxu0
        %v6836 = vadd.f32 0.0, %v6835
        %v6837 = vpop.f32.mrb[0].mxu0
        %v6838 = vpop.f32.mrb[0].mxu0
        %v6839 = vadd.f32 0.0, %v6838
        %v6840 = vpop.f32.mrb[0].mxu0
        %6841 = vmatprep.mubr.bf16.mxu0 0
        %6842 = vmatmul.mubr.bf16.gmra.mrb[0].mxu0 %v6765
        %v6843 = vpop.f32.mrb[0].mxu0
        %v6844 = vadd.f32 0.0, %v6843
        %v6845 = vpop.f32.mrb[0].mxu0
        %v6846 = vpop.f32.mrb[0].mxu0
        %v6847 = vadd.f32 0.0, %v6846
        %v6848 = vpop.f32.mrb[0].mxu0
        %6849 = vmatprep.mubr.bf16.mxu0 0
        %6850 = vmatmul.mubr.bf16.gmra.mrb[0].mxu0 %v6768
        %v6851 = vpop.f32.mrb[0].mxu0
        %v6852 = vadd.f32 0.0, %v6851
        %v6853 = vpop.f32.mrb[0].mxu0
        %v6854 = vpop.f32.mrb[0].mxu0
        %v6855 = vadd.f32 0.0, %v6854
        %v6856 = vpop.f32.mrb[0].mxu0
        %6857 = vmatprep.mubr.bf16.mxu0 0
        %6858 = vmatmul.mubr.bf16.gmra.mrb[0].mxu0 %v6771
        %v6859 = vpop.f32.mrb[0].mxu0
        %v6860 = vadd.f32 0.0, %v6859
        %v6861 = vpop.f32.mrb[0].mxu0
        %v6862 = vpop.f32.mrb[0].mxu0
        %v6863 = vadd.f32 0.0, %v6862
        %v6864 = vpop.f32.mrb[0].mxu0
        %6865 = vmatprep.mubr.bf16.mxu0 0
        %6866 = vmatmul.mubr.bf16.gmra.mrb[0].mxu0 %v6774
        %v6867 = vpop.f32.mrb[0].mxu0
        %v6868 = vadd.f32 0.0, %v6867
        %v6869 = vpop.f32.mrb[0].mxu0
        %v6870 = vpop.f32.mrb[0].mxu0
        %v6871 = vadd.f32 0.0, %v6870
        %v6872 = vpop.f32.mrb[0].mxu0
        %6873 = vmatprep.mubr.bf16.mxu0 0
        %6874 = vmatmul.mubr.bf16.gmra.mrb[0].mxu0 %v6777
        %v6875 = vpop.f32.mrb[0].mxu0
        %v6876 = vadd.f32 0.0, %v6875
        %v6877 = vpop.f32.mrb[0].mxu0
        %v6878 = vpop.f32.mrb[0].mxu0
        %v6879 = vadd.f32 0.0, %v6878
        %v6880 = vpop.f32.mrb[0].mxu0
        %6881 = vmatprep.mubr.bf16.mxu0 0
        %6882 = vmatmul.mubr.bf16.gmra.mrb[0].mxu0 %v6780
        %v6883 = vpop.f32.mrb[0].mxu0
        %v6884 = vadd.f32 0.0, %v6883
        %v6885 = vpop.f32.mrb[0].mxu0
        %v6886 = vpop.f32.mrb[0].mxu0
        %v6887 = vadd.f32 0.0, %v6886
        %v6888 = vpop.f32.mrb[0].mxu0
        %6889 = vdwg.mxu0
        %v6890 = vadd.f32 %v6708, %v6820
        %v6891 = vadd.f32 %v6709, %v6823
        %v6892 = vadd.f32 %v6710, %v6828
        %v6893 = vadd.f32 %v6711, %v6831
        %v6894 = vadd.f32 %v6712, %v6836
        %v6895 = vadd.f32 %v6713, %v6839
        %v6896 = vadd.f32 %v6714, %v6844
        %v6897 = vadd.f32 %v6715, %v6847
        %v6898 = vadd.f32 %v6716, %v6852
        %v6899 = vadd.f32 %v6717, %v6855
        %v6900 = vadd.f32 %v6718, %v6860
        %v6901 = vadd.f32 %v6719, %v6863
        %v6902 = vadd.f32 %v6720, %v6868
        %v6903 = vadd.f32 %v6721, %v6871
        %v6904 = vadd.f32 %v6722, %v6876
        %v6905 = vadd.f32 %v6723, %v6879
        %v6906 = vadd.f32 %v6724, %v6884
        %v6907 = vadd.f32 %v6725, %v6887
        %v6908 = vld [vmem:[#allocation3 + $0x38] sm:$0xff]
        %v6909 = vld [vmem:[#allocation3 + $0x40] sm:$0xff]
        %v6910 = vld [vmem:[#allocation3 + $0x48] sm:$0xff]
        %v6911 = vld [vmem:[#allocation3 + $0x50] sm:$0xff]
        %v6912 = vld [vmem:[#allocation3 + $0x58] sm:$0xff]
        %v6913 = vld [vmem:[#allocation3 + $0x60] sm:$0xff]
        %v6914 = vld [vmem:[#allocation3 + $0x68] sm:$0xff]
        %v6915 = vld [vmem:[#allocation3 + $0x70] sm:$0xff]
        %v6916 = vld [vmem:[#allocation3 + $0x78] sm:$0xff]
        %v6917 = vld [vmem:[#allocation3 + $0x80] sm:$0xff]
        %v6918 = vld [vmem:[#allocation3 + $0x88] sm:$0xff]
        %v6919 = vld [vmem:[#allocation3 + $0x90] sm:$0xff]
        %v6920 = vld [vmem:[#allocation3 + $0x98] sm:$0xff]
        %v6921 = vld [vmem:[#allocation3 + $0xa0] sm:$0xff]
        %v6922 = vld [vmem:[#allocation3 + $0xa8] sm:$0xff]
        %v6923 = vld [vmem:[#allocation3 + $0xb0] sm:$0xff]
        %v6924 = vld [vmem:[#allocation3 + $0xb8] sm:$0xff]
        %v6925 = vld [vmem:[#allocation3 + $0xc0] sm:$0xf]
        %s6926 = scalar_lea.vmem %s4, 80
        %v6927 = vld [vmem:[%s6926] sm:$0x7]
        %v6928 = vpack.c.bf16 %v6909, %v6908
        %v6929 = vpack.c.bf16 %v6911, %v6910
        %v6930 = vpack.c.bf16 %v6913, %v6912
        %v6931 = vpack.c.bf16 %v6915, %v6914
        %v6932 = vpack.c.bf16 %v6917, %v6916
        %v6933 = vpack.c.bf16 %v6919, %v6918
        %v6934 = vpack.c.bf16 %v6921, %v6920
        %v6935 = vpack.c.bf16 %v6923, %v6922
        %v6936 = vpack.c.bf16 %v6925, %v6924
        %v6938 = vsel %vm1497, %v6928, 0
        %v6941 = vsel %vm1497, %v6929, 0
        %v6944 = vsel %vm1497, %v6930, 0
        %v6947 = vsel %vm1497, %v6931, 0
        %v6950 = vsel %vm1497, %v6932, 0
        %v6953 = vsel %vm1497, %v6933, 0
        %v6956 = vsel %vm1497, %v6934, 0
        %v6959 = vsel %vm1497, %v6935, 0
        %v6962 = vsel %vm1497, %v6936, 0
        %v6965 = vsel %vm3388, %v6927, 0
        %6967 = vmatprep.subr.bf16.mxu0 0
        %6968 = vmatpush1.bf16.msra.mxu0 %v6965
        %6969 = vmatprep.subr.bf16.mxu0 0
        %6970 = vmatpush1.bf16.msra.mxu0 0
        %6971 = vmatprep.subr.bf16.mxu0 0
        %6972 = vmatpush1.bf16.msra.mxu0 0
        %6973 = vmatprep.subr.bf16.mxu0 0
        %6974 = vmatpush1.bf16.msra.mxu0 0
        %6975 = vmatprep.subr.bf16.mxu0 0
        %6976 = vmatpush1.bf16.msra.mxu0 0
        %6977 = vmatprep.subr.bf16.mxu0 0
        %6978 = vmatpush1.bf16.msra.mxu0 0
        %6979 = vmatprep.subr.bf16.mxu0 0
        %6980 = vmatpush1.bf16.msra.mxu0 0
        %6981 = vmatprep.subr.bf16.mxu0 0
        %6982 = vmatpush1.bf16.msra.mxu0 0
        %6983 = vmatprep.subr.bf16.mxu0 0
        %6984 = vmatpush1.bf16.msra.mxu0 0
        %6985 = vmatprep.subr.bf16.mxu0 0
        %6986 = vmatpush1.bf16.msra.mxu0 0
        %6987 = vmatprep.subr.bf16.mxu0 0
        %6988 = vmatpush1.bf16.msra.mxu0 0
        %6989 = vmatprep.subr.bf16.mxu0 0
        %6990 = vmatpush1.bf16.msra.mxu0 0
        %6991 = vmatprep.subr.bf16.mxu0 0
        %6992 = vmatpush1.bf16.msra.mxu0 0
        %6993 = vmatprep.subr.bf16.mxu0 0
        %6994 = vmatpush1.bf16.msra.mxu0 0
        %6995 = vmatprep.subr.bf16.mxu0 0
        %6996 = vmatpush1.bf16.msra.mxu0 0
        %6997 = vmatprep.subr.bf16.mxu0 0
        %6998 = vmatpush1.bf16.msra.mxu0 0
        %6999 = vmatprep.mubr.bf16.mxu0 0
        %7000 = vmatmul.mubr.bf16.gmra.mrb[0].mxu0 %v6938
        %v7001 = vpop.f32.mrb[0].mxu0
        %v7002 = vadd.f32 0.0, %v7001
        %v7003 = vpop.f32.mrb[0].mxu0
        %v7004 = vpop.f32.mrb[0].mxu0
        %v7005 = vadd.f32 0.0, %v7004
        %v7006 = vpop.f32.mrb[0].mxu0
        %7007 = vmatprep.mubr.bf16.mxu0 0
        %7008 = vmatmul.mubr.bf16.gmra.mrb[0].mxu0 %v6941
        %v7009 = vpop.f32.mrb[0].mxu0
        %v7010 = vadd.f32 0.0, %v7009
        %v7011 = vpop.f32.mrb[0].mxu0
        %v7012 = vpop.f32.mrb[0].mxu0
        %v7013 = vadd.f32 0.0, %v7012
        %v7014 = vpop.f32.mrb[0].mxu0
        %7015 = vmatprep.mubr.bf16.mxu0 0
        %7016 = vmatmul.mubr.bf16.gmra.mrb[0].mxu0 %v6944
        %v7017 = vpop.f32.mrb[0].mxu0
        %v7018 = vadd.f32 0.0, %v7017
        %v7019 = vpop.f32.mrb[0].mxu0
        %v7020 = vpop.f32.mrb[0].mxu0
        %v7021 = vadd.f32 0.0, %v7020
        %v7022 = vpop.f32.mrb[0].mxu0
        %7023 = vmatprep.mubr.bf16.mxu0 0
        %7024 = vmatmul.mubr.bf16.gmra.mrb[0].mxu0 %v6947
        %v7025 = vpop.f32.mrb[0].mxu0
        %v7026 = vadd.f32 0.0, %v7025
        %v7027 = vpop.f32.mrb[0].mxu0
        %v7028 = vpop.f32.mrb[0].mxu0
        %v7029 = vadd.f32 0.0, %v7028
        %v7030 = vpop.f32.mrb[0].mxu0
        %7031 = vmatprep.mubr.bf16.mxu0 0
        %7032 = vmatmul.mubr.bf16.gmra.mrb[0].mxu0 %v6950
        %v7033 = vpop.f32.mrb[0].mxu0
        %v7034 = vadd.f32 0.0, %v7033
        %v7035 = vpop.f32.mrb[0].mxu0
        %v7036 = vpop.f32.mrb[0].mxu0
        %v7037 = vadd.f32 0.0, %v7036
        %v7038 = vpop.f32.mrb[0].mxu0
        %7039 = vmatprep.mubr.bf16.mxu0 0
        %7040 = vmatmul.mubr.bf16.gmra.mrb[0].mxu0 %v6953
        %v7041 = vpop.f32.mrb[0].mxu0
        %v7042 = vadd.f32 0.0, %v7041
        %v7043 = vpop.f32.mrb[0].mxu0
        %v7044 = vpop.f32.mrb[0].mxu0
        %v7045 = vadd.f32 0.0, %v7044
        %v7046 = vpop.f32.mrb[0].mxu0
        %7047 = vmatprep.mubr.bf16.mxu0 0
        %7048 = vmatmul.mubr.bf16.gmra.mrb[0].mxu0 %v6956
        %v7049 = vpop.f32.mrb[0].mxu0
        %v7050 = vadd.f32 0.0, %v7049
        %v7051 = vpop.f32.mrb[0].mxu0
        %v7052 = vpop.f32.mrb[0].mxu0
        %v7053 = vadd.f32 0.0, %v7052
        %v7054 = vpop.f32.mrb[0].mxu0
        %7055 = vmatprep.mubr.bf16.mxu0 0
        %7056 = vmatmul.mubr.bf16.gmra.mrb[0].mxu0 %v6959
        %v7057 = vpop.f32.mrb[0].mxu0
        %v7058 = vadd.f32 0.0, %v7057
        %v7059 = vpop.f32.mrb[0].mxu0
        %v7060 = vpop.f32.mrb[0].mxu0
        %v7061 = vadd.f32 0.0, %v7060
        %v7062 = vpop.f32.mrb[0].mxu0
        %7063 = vmatprep.mubr.bf16.mxu0 0
        %7064 = vmatmul.mubr.bf16.gmra.mrb[0].mxu0 %v6962
        %v7065 = vpop.f32.mrb[0].mxu0
        %v7066 = vadd.f32 0.0, %v7065
        %v7067 = vpop.f32.mrb[0].mxu0
        %v7068 = vpop.f32.mrb[0].mxu0
        %v7069 = vadd.f32 0.0, %v7068
        %v7070 = vpop.f32.mrb[0].mxu0
        %7071 = vdwg.mxu0
        %v7072 = vadd.f32 %v6890, %v7002
        %v7073 = vadd.f32 %v6891, %v7005
        %v7074 = vadd.f32 %v6892, %v7010
        %v7075 = vadd.f32 %v6893, %v7013
        %v7076 = vadd.f32 %v6894, %v7018
        %v7077 = vadd.f32 %v6895, %v7021
        %v7078 = vadd.f32 %v6896, %v7026
        %v7079 = vadd.f32 %v6897, %v7029
        %v7080 = vadd.f32 %v6898, %v7034
        %v7081 = vadd.f32 %v6899, %v7037
        %v7082 = vadd.f32 %v6900, %v7042
        %v7083 = vadd.f32 %v6901, %v7045
        %v7084 = vadd.f32 %v6902, %v7050
        %v7085 = vadd.f32 %v6903, %v7053
        %v7086 = vadd.f32 %v6904, %v7058
        %v7087 = vadd.f32 %v6905, %v7061
        %v7088 = vadd.f32 %v6906, %v7066
        %v7089 = vadd.f32 %v6907, %v7069
        %v7090 = vld [vmem:[#allocation3 + $0x39] sm:$0xff]
        %v7091 = vld [vmem:[#allocation3 + $0x41] sm:$0xff]
        %v7092 = vld [vmem:[#allocation3 + $0x49] sm:$0xff]
        %v7093 = vld [vmem:[#allocation3 + $0x51] sm:$0xff]
        %v7094 = vld [vmem:[#allocation3 + $0x59] sm:$0xff]
        %v7095 = vld [vmem:[#allocation3 + $0x61] sm:$0xff]
        %v7096 = vld [vmem:[#allocation3 + $0x69] sm:$0xff]
        %v7097 = vld [vmem:[#allocation3 + $0x71] sm:$0xff]
        %v7098 = vld [vmem:[#allocation3 + $0x79] sm:$0xff]
        %v7099 = vld [vmem:[#allocation3 + $0x81] sm:$0xff]
        %v7100 = vld [vmem:[#allocation3 + $0x89] sm:$0xff]
        %v7101 = vld [vmem:[#allocation3 + $0x91] sm:$0xff]
        %v7102 = vld [vmem:[#allocation3 + $0x99] sm:$0xff]
        %v7103 = vld [vmem:[#allocation3 + $0xa1] sm:$0xff]
        %v7104 = vld [vmem:[#allocation3 + $0xa9] sm:$0xff]
        %v7105 = vld [vmem:[#allocation3 + $0xb1] sm:$0xff]
        %v7106 = vld [vmem:[#allocation3 + $0xb9] sm:$0xff]
        %v7107 = vld [vmem:[#allocation3 + $0xc1] sm:$0xf]
        %s7108 = scalar_lea.vmem %s4, 84
        %v7109 = vld [vmem:[%s7108] sm:$0x7]
        %v7110 = vpack.c.bf16 %v7091, %v7090
        %v7111 = vpack.c.bf16 %v7093, %v7092
        %v7112 = vpack.c.bf16 %v7095, %v7094
        %v7113 = vpack.c.bf16 %v7097, %v7096
        %v7114 = vpack.c.bf16 %v7099, %v7098
        %v7115 = vpack.c.bf16 %v7101, %v7100
        %v7116 = vpack.c.bf16 %v7103, %v7102
        %v7117 = vpack.c.bf16 %v7105, %v7104
        %v7118 = vpack.c.bf16 %v7107, %v7106
        %v7120 = vsel %vm1497, %v7110, 0
        %v7123 = vsel %vm1497, %v7111, 0
        %v7126 = vsel %vm1497, %v7112, 0
        %v7129 = vsel %vm1497, %v7113, 0
        %v7132 = vsel %vm1497, %v7114, 0
        %v7135 = vsel %vm1497, %v7115, 0
        %v7138 = vsel %vm1497, %v7116, 0
        %v7141 = vsel %vm1497, %v7117, 0
        %v7144 = vsel %vm1497, %v7118, 0
        %v7147 = vsel %vm3388, %v7109, 0
        %7149 = vmatprep.subr.bf16.mxu0 0
        %7150 = vmatpush1.bf16.msra.mxu0 %v7147
        %7151 = vmatprep.subr.bf16.mxu0 0
        %7152 = vmatpush1.bf16.msra.mxu0 0
        %7153 = vmatprep.subr.bf16.mxu0 0
        %7154 = vmatpush1.bf16.msra.mxu0 0
        %7155 = vmatprep.subr.bf16.mxu0 0
        %7156 = vmatpush1.bf16.msra.mxu0 0
        %7157 = vmatprep.subr.bf16.mxu0 0
        %7158 = vmatpush1.bf16.msra.mxu0 0
        %7159 = vmatprep.subr.bf16.mxu0 0
        %7160 = vmatpush1.bf16.msra.mxu0 0
        %7161 = vmatprep.subr.bf16.mxu0 0
        %7162 = vmatpush1.bf16.msra.mxu0 0
        %7163 = vmatprep.subr.bf16.mxu0 0
        %7164 = vmatpush1.bf16.msra.mxu0 0
        %7165 = vmatprep.subr.bf16.mxu0 0
        %7166 = vmatpush1.bf16.msra.mxu0 0
        %7167 = vmatprep.subr.bf16.mxu0 0
        %7168 = vmatpush1.bf16.msra.mxu0 0
        %7169 = vmatprep.subr.bf16.mxu0 0
        %7170 = vmatpush1.bf16.msra.mxu0 0
        %7171 = vmatprep.subr.bf16.mxu0 0
        %7172 = vmatpush1.bf16.msra.mxu0 0
        %7173 = vmatprep.subr.bf16.mxu0 0
        %7174 = vmatpush1.bf16.msra.mxu0 0
        %7175 = vmatprep.subr.bf16.mxu0 0
        %7176 = vmatpush1.bf16.msra.mxu0 0
        %7177 = vmatprep.subr.bf16.mxu0 0
        %7178 = vmatpush1.bf16.msra.mxu0 0
        %7179 = vmatprep.subr.bf16.mxu0 0
        %7180 = vmatpush1.bf16.msra.mxu0 0
        %7181 = vmatprep.mubr.bf16.mxu0 0
        %7182 = vmatmul.mubr.bf16.gmra.mrb[0].mxu0 %v7120
        %v7183 = vpop.f32.mrb[0].mxu0
        %v7184 = vadd.f32 0.0, %v7183
        %v7185 = vpop.f32.mrb[0].mxu0
        %v7186 = vpop.f32.mrb[0].mxu0
        %v7187 = vadd.f32 0.0, %v7186
        %v7188 = vpop.f32.mrb[0].mxu0
        %7189 = vmatprep.mubr.bf16.mxu0 0
        %7190 = vmatmul.mubr.bf16.gmra.mrb[0].mxu0 %v7123
        %v7191 = vpop.f32.mrb[0].mxu0
        %v7192 = vadd.f32 0.0, %v7191
        %v7193 = vpop.f32.mrb[0].mxu0
        %v7194 = vpop.f32.mrb[0].mxu0
        %v7195 = vadd.f32 0.0, %v7194
        %v7196 = vpop.f32.mrb[0].mxu0
        %7197 = vmatprep.mubr.bf16.mxu0 0
        %7198 = vmatmul.mubr.bf16.gmra.mrb[0].mxu0 %v7126
        %v7199 = vpop.f32.mrb[0].mxu0
        %v7200 = vadd.f32 0.0, %v7199
        %v7201 = vpop.f32.mrb[0].mxu0
        %v7202 = vpop.f32.mrb[0].mxu0
        %v7203 = vadd.f32 0.0, %v7202
        %v7204 = vpop.f32.mrb[0].mxu0
        %7205 = vmatprep.mubr.bf16.mxu0 0
        %7206 = vmatmul.mubr.bf16.gmra.mrb[0].mxu0 %v7129
        %v7207 = vpop.f32.mrb[0].mxu0
        %v7208 = vadd.f32 0.0, %v7207
        %v7209 = vpop.f32.mrb[0].mxu0
        %v7210 = vpop.f32.mrb[0].mxu0
        %v7211 = vadd.f32 0.0, %v7210
        %v7212 = vpop.f32.mrb[0].mxu0
        %7213 = vmatprep.mubr.bf16.mxu0 0
        %7214 = vmatmul.mubr.bf16.gmra.mrb[0].mxu0 %v7132
        %v7215 = vpop.f32.mrb[0].mxu0
        %v7216 = vadd.f32 0.0, %v7215
        %v7217 = vpop.f32.mrb[0].mxu0
        %v7218 = vpop.f32.mrb[0].mxu0
        %v7219 = vadd.f32 0.0, %v7218
        %v7220 = vpop.f32.mrb[0].mxu0
        %7221 = vmatprep.mubr.bf16.mxu0 0
        %7222 = vmatmul.mubr.bf16.gmra.mrb[0].mxu0 %v7135
        %v7223 = vpop.f32.mrb[0].mxu0
        %v7224 = vadd.f32 0.0, %v7223
        %v7225 = vpop.f32.mrb[0].mxu0
        %v7226 = vpop.f32.mrb[0].mxu0
        %v7227 = vadd.f32 0.0, %v7226
        %v7228 = vpop.f32.mrb[0].mxu0
        %7229 = vmatprep.mubr.bf16.mxu0 0
        %7230 = vmatmul.mubr.bf16.gmra.mrb[0].mxu0 %v7138
        %v7231 = vpop.f32.mrb[0].mxu0
        %v7232 = vadd.f32 0.0, %v7231
        %v7233 = vpop.f32.mrb[0].mxu0
        %v7234 = vpop.f32.mrb[0].mxu0
        %v7235 = vadd.f32 0.0, %v7234
        %v7236 = vpop.f32.mrb[0].mxu0
        %7237 = vmatprep.mubr.bf16.mxu0 0
        %7238 = vmatmul.mubr.bf16.gmra.mrb[0].mxu0 %v7141
        %v7239 = vpop.f32.mrb[0].mxu0
        %v7240 = vadd.f32 0.0, %v7239
        %v7241 = vpop.f32.mrb[0].mxu0
        %v7242 = vpop.f32.mrb[0].mxu0
        %v7243 = vadd.f32 0.0, %v7242
        %v7244 = vpop.f32.mrb[0].mxu0
        %7245 = vmatprep.mubr.bf16.mxu0 0
        %7246 = vmatmul.mubr.bf16.gmra.mrb[0].mxu0 %v7144
        %v7247 = vpop.f32.mrb[0].mxu0
        %v7248 = vadd.f32 0.0, %v7247
        %v7249 = vpop.f32.mrb[0].mxu0
        %v7250 = vpop.f32.mrb[0].mxu0
        %v7251 = vadd.f32 0.0, %v7250
        %v7252 = vpop.f32.mrb[0].mxu0
        %7253 = vdwg.mxu0
        %v7254 = vadd.f32 %v7072, %v7184
        %v7255 = vadd.f32 %v7073, %v7187
        %v7256 = vadd.f32 %v7074, %v7192
        %v7257 = vadd.f32 %v7075, %v7195
        %v7258 = vadd.f32 %v7076, %v7200
        %v7259 = vadd.f32 %v7077, %v7203
        %v7260 = vadd.f32 %v7078, %v7208
        %v7261 = vadd.f32 %v7079, %v7211
        %v7262 = vadd.f32 %v7080, %v7216
        %v7263 = vadd.f32 %v7081, %v7219
        %v7264 = vadd.f32 %v7082, %v7224
        %v7265 = vadd.f32 %v7083, %v7227
        %v7266 = vadd.f32 %v7084, %v7232
        %v7267 = vadd.f32 %v7085, %v7235
        %v7268 = vadd.f32 %v7086, %v7240
        %v7269 = vadd.f32 %v7087, %v7243
        %v7270 = vadd.f32 %v7088, %v7248
        %v7271 = vadd.f32 %v7089, %v7251
        %v7272 = vld [vmem:[#allocation3 + $0x3a] sm:$0xff]
        %v7273 = vld [vmem:[#allocation3 + $0x42] sm:$0xff]
        %v7274 = vld [vmem:[#allocation3 + $0x4a] sm:$0xff]
        %v7275 = vld [vmem:[#allocation3 + $0x52] sm:$0xff]
        %v7276 = vld [vmem:[#allocation3 + $0x5a] sm:$0xff]
        %v7277 = vld [vmem:[#allocation3 + $0x62] sm:$0xff]
        %v7278 = vld [vmem:[#allocation3 + $0x6a] sm:$0xff]
        %v7279 = vld [vmem:[#allocation3 + $0x72] sm:$0xff]
        %v7280 = vld [vmem:[#allocation3 + $0x7a] sm:$0xff]
        %v7281 = vld [vmem:[#allocation3 + $0x82] sm:$0xff]
        %v7282 = vld [vmem:[#allocation3 + $0x8a] sm:$0xff]
        %v7283 = vld [vmem:[#allocation3 + $0x92] sm:$0xff]
        %v7284 = vld [vmem:[#allocation3 + $0x9a] sm:$0xff]
        %v7285 = vld [vmem:[#allocation3 + $0xa2] sm:$0xff]
        %v7286 = vld [vmem:[#allocation3 + $0xaa] sm:$0xff]
        %v7287 = vld [vmem:[#allocation3 + $0xb2] sm:$0xff]
        %v7288 = vld [vmem:[#allocation3 + $0xba] sm:$0xff]
        %v7289 = vld [vmem:[#allocation3 + $0xc2] sm:$0xf]
        %s7290 = scalar_lea.vmem %s4, 88
        %v7291 = vld [vmem:[%s7290] sm:$0x7]
        %v7292 = vpack.c.bf16 %v7273, %v7272
        %v7293 = vpack.c.bf16 %v7275, %v7274
        %v7294 = vpack.c.bf16 %v7277, %v7276
        %v7295 = vpack.c.bf16 %v7279, %v7278
        %v7296 = vpack.c.bf16 %v7281, %v7280
        %v7297 = vpack.c.bf16 %v7283, %v7282
        %v7298 = vpack.c.bf16 %v7285, %v7284
        %v7299 = vpack.c.bf16 %v7287, %v7286
        %v7300 = vpack.c.bf16 %v7289, %v7288
        %v7302 = vsel %vm1497, %v7292, 0
        %v7305 = vsel %vm1497, %v7293, 0
        %v7308 = vsel %vm1497, %v7294, 0
        %v7311 = vsel %vm1497, %v7295, 0
        %v7314 = vsel %vm1497, %v7296, 0
        %v7317 = vsel %vm1497, %v7297, 0
        %v7320 = vsel %vm1497, %v7298, 0
        %v7323 = vsel %vm1497, %v7299, 0
        %v7326 = vsel %vm1497, %v7300, 0
        %v7329 = vsel %vm3388, %v7291, 0
        %7331 = vmatprep.subr.bf16.mxu0 0
        %7332 = vmatpush1.bf16.msra.mxu0 %v7329
        %7333 = vmatprep.subr.bf16.mxu0 0
        %7334 = vmatpush1.bf16.msra.mxu0 0
        %7335 = vmatprep.subr.bf16.mxu0 0
        %7336 = vmatpush1.bf16.msra.mxu0 0
        %7337 = vmatprep.subr.bf16.mxu0 0
        %7338 = vmatpush1.bf16.msra.mxu0 0
        %7339 = vmatprep.subr.bf16.mxu0 0
        %7340 = vmatpush1.bf16.msra.mxu0 0
        %7341 = vmatprep.subr.bf16.mxu0 0
        %7342 = vmatpush1.bf16.msra.mxu0 0
        %7343 = vmatprep.subr.bf16.mxu0 0
        %7344 = vmatpush1.bf16.msra.mxu0 0
        %7345 = vmatprep.subr.bf16.mxu0 0
        %7346 = vmatpush1.bf16.msra.mxu0 0
        %7347 = vmatprep.subr.bf16.mxu0 0
        %7348 = vmatpush1.bf16.msra.mxu0 0
        %7349 = vmatprep.subr.bf16.mxu0 0
        %7350 = vmatpush1.bf16.msra.mxu0 0
        %7351 = vmatprep.subr.bf16.mxu0 0
        %7352 = vmatpush1.bf16.msra.mxu0 0
        %7353 = vmatprep.subr.bf16.mxu0 0
        %7354 = vmatpush1.bf16.msra.mxu0 0
        %7355 = vmatprep.subr.bf16.mxu0 0
        %7356 = vmatpush1.bf16.msra.mxu0 0
        %7357 = vmatprep.subr.bf16.mxu0 0
        %7358 = vmatpush1.bf16.msra.mxu0 0
        %7359 = vmatprep.subr.bf16.mxu0 0
        %7360 = vmatpush1.bf16.msra.mxu0 0
        %7361 = vmatprep.subr.bf16.mxu0 0
        %7362 = vmatpush1.bf16.msra.mxu0 0
        %7363 = vmatprep.mubr.bf16.mxu0 0
        %7364 = vmatmul.mubr.bf16.gmra.mrb[0].mxu0 %v7302
        %v7365 = vpop.f32.mrb[0].mxu0
        %v7366 = vadd.f32 0.0, %v7365
        %v7367 = vpop.f32.mrb[0].mxu0
        %v7368 = vpop.f32.mrb[0].mxu0
        %v7369 = vadd.f32 0.0, %v7368
        %v7370 = vpop.f32.mrb[0].mxu0
        %7371 = vmatprep.mubr.bf16.mxu0 0
        %7372 = vmatmul.mubr.bf16.gmra.mrb[0].mxu0 %v7305
        %v7373 = vpop.f32.mrb[0].mxu0
        %v7374 = vadd.f32 0.0, %v7373
        %v7375 = vpop.f32.mrb[0].mxu0
        %v7376 = vpop.f32.mrb[0].mxu0
        %v7377 = vadd.f32 0.0, %v7376
        %v7378 = vpop.f32.mrb[0].mxu0
        %7379 = vmatprep.mubr.bf16.mxu0 0
        %7380 = vmatmul.mubr.bf16.gmra.mrb[0].mxu0 %v7308
        %v7381 = vpop.f32.mrb[0].mxu0
        %v7382 = vadd.f32 0.0, %v7381
        %v7383 = vpop.f32.mrb[0].mxu0
        %v7384 = vpop.f32.mrb[0].mxu0
        %v7385 = vadd.f32 0.0, %v7384
        %v7386 = vpop.f32.mrb[0].mxu0
        %7387 = vmatprep.mubr.bf16.mxu0 0
        %7388 = vmatmul.mubr.bf16.gmra.mrb[0].mxu0 %v7311
        %v7389 = vpop.f32.mrb[0].mxu0
        %v7390 = vadd.f32 0.0, %v7389
        %v7391 = vpop.f32.mrb[0].mxu0
        %v7392 = vpop.f32.mrb[0].mxu0
        %v7393 = vadd.f32 0.0, %v7392
        %v7394 = vpop.f32.mrb[0].mxu0
        %7395 = vmatprep.mubr.bf16.mxu0 0
        %7396 = vmatmul.mubr.bf16.gmra.mrb[0].mxu0 %v7314
        %v7397 = vpop.f32.mrb[0].mxu0
        %v7398 = vadd.f32 0.0, %v7397
        %v7399 = vpop.f32.mrb[0].mxu0
        %v7400 = vpop.f32.mrb[0].mxu0
        %v7401 = vadd.f32 0.0, %v7400
        %v7402 = vpop.f32.mrb[0].mxu0
        %7403 = vmatprep.mubr.bf16.mxu0 0
        %7404 = vmatmul.mubr.bf16.gmra.mrb[0].mxu0 %v7317
        %v7405 = vpop.f32.mrb[0].mxu0
        %v7406 = vadd.f32 0.0, %v7405
        %v7407 = vpop.f32.mrb[0].mxu0
        %v7408 = vpop.f32.mrb[0].mxu0
        %v7409 = vadd.f32 0.0, %v7408
        %v7410 = vpop.f32.mrb[0].mxu0
        %7411 = vmatprep.mubr.bf16.mxu0 0
        %7412 = vmatmul.mubr.bf16.gmra.mrb[0].mxu0 %v7320
        %v7413 = vpop.f32.mrb[0].mxu0
        %v7414 = vadd.f32 0.0, %v7413
        %v7415 = vpop.f32.mrb[0].mxu0
        %v7416 = vpop.f32.mrb[0].mxu0
        %v7417 = vadd.f32 0.0, %v7416
        %v7418 = vpop.f32.mrb[0].mxu0
        %7419 = vmatprep.mubr.bf16.mxu0 0
        %7420 = vmatmul.mubr.bf16.gmra.mrb[0].mxu0 %v7323
        %v7421 = vpop.f32.mrb[0].mxu0
        %v7422 = vadd.f32 0.0, %v7421
        %v7423 = vpop.f32.mrb[0].mxu0
        %v7424 = vpop.f32.mrb[0].mxu0
        %v7425 = vadd.f32 0.0, %v7424
        %v7426 = vpop.f32.mrb[0].mxu0
        %7427 = vmatprep.mubr.bf16.mxu0 0
        %7428 = vmatmul.mubr.bf16.gmra.mrb[0].mxu0 %v7326
        %v7429 = vpop.f32.mrb[0].mxu0
        %v7430 = vadd.f32 0.0, %v7429
        %v7431 = vpop.f32.mrb[0].mxu0
        %v7432 = vpop.f32.mrb[0].mxu0
        %v7433 = vadd.f32 0.0, %v7432
        %v7434 = vpop.f32.mrb[0].mxu0
        %7435 = vdwg.mxu0
        %v7436 = vadd.f32 %v7254, %v7366
        %v7437 = vadd.f32 %v7255, %v7369
        %v7438 = vadd.f32 %v7256, %v7374
        %v7439 = vadd.f32 %v7257, %v7377
        %v7440 = vadd.f32 %v7258, %v7382
        %v7441 = vadd.f32 %v7259, %v7385
        %v7442 = vadd.f32 %v7260, %v7390
        %v7443 = vadd.f32 %v7261, %v7393
        %v7444 = vadd.f32 %v7262, %v7398
        %v7445 = vadd.f32 %v7263, %v7401
        %v7446 = vadd.f32 %v7264, %v7406
        %v7447 = vadd.f32 %v7265, %v7409
        %v7448 = vadd.f32 %v7266, %v7414
        %v7449 = vadd.f32 %v7267, %v7417
        %v7450 = vadd.f32 %v7268, %v7422
        %v7451 = vadd.f32 %v7269, %v7425
        %v7452 = vadd.f32 %v7270, %v7430
        %v7453 = vadd.f32 %v7271, %v7433
        %v7454 = vld [vmem:[#allocation3 + $0x3b] sm:$0xff]
        %v7455 = vld [vmem:[#allocation3 + $0x43] sm:$0xff]
        %v7456 = vld [vmem:[#allocation3 + $0x4b] sm:$0xff]
        %v7457 = vld [vmem:[#allocation3 + $0x53] sm:$0xff]
        %v7458 = vld [vmem:[#allocation3 + $0x5b] sm:$0xff]
        %v7459 = vld [vmem:[#allocation3 + $0x63] sm:$0xff]
        %v7460 = vld [vmem:[#allocation3 + $0x6b] sm:$0xff]
        %v7461 = vld [vmem:[#allocation3 + $0x73] sm:$0xff]
        %v7462 = vld [vmem:[#allocation3 + $0x7b] sm:$0xff]
        %v7463 = vld [vmem:[#allocation3 + $0x83] sm:$0xff]
        %v7464 = vld [vmem:[#allocation3 + $0x8b] sm:$0xff]
        %v7465 = vld [vmem:[#allocation3 + $0x93] sm:$0xff]
        %v7466 = vld [vmem:[#allocation3 + $0x9b] sm:$0xff]
        %v7467 = vld [vmem:[#allocation3 + $0xa3] sm:$0xff]
        %v7468 = vld [vmem:[#allocation3 + $0xab] sm:$0xff]
        %v7469 = vld [vmem:[#allocation3 + $0xb3] sm:$0xff]
        %v7470 = vld [vmem:[#allocation3 + $0xbb] sm:$0xff]
        %v7471 = vld [vmem:[#allocation3 + $0xc3] sm:$0xf]
        %s7472 = scalar_lea.vmem %s4, 92
        %v7473 = vld [vmem:[%s7472] sm:$0x7]
        %v7474 = vpack.c.bf16 %v7455, %v7454
        %v7475 = vpack.c.bf16 %v7457, %v7456
        %v7476 = vpack.c.bf16 %v7459, %v7458
        %v7477 = vpack.c.bf16 %v7461, %v7460
        %v7478 = vpack.c.bf16 %v7463, %v7462
        %v7479 = vpack.c.bf16 %v7465, %v7464
        %v7480 = vpack.c.bf16 %v7467, %v7466
        %v7481 = vpack.c.bf16 %v7469, %v7468
        %v7482 = vpack.c.bf16 %v7471, %v7470
        %v7484 = vsel %vm1497, %v7474, 0
        %v7487 = vsel %vm1497, %v7475, 0
        %v7490 = vsel %vm1497, %v7476, 0
        %v7493 = vsel %vm1497, %v7477, 0
        %v7496 = vsel %vm1497, %v7478, 0
        %v7499 = vsel %vm1497, %v7479, 0
        %v7502 = vsel %vm1497, %v7480, 0
        %v7505 = vsel %vm1497, %v7481, 0
        %v7508 = vsel %vm1497, %v7482, 0
        %v7511 = vsel %vm3388, %v7473, 0
        %7513 = vmatprep.subr.bf16.mxu0 0
        %7514 = vmatpush1.bf16.msra.mxu0 %v7511
        %7515 = vmatprep.subr.bf16.mxu0 0
        %7516 = vmatpush1.bf16.msra.mxu0 0
        %7517 = vmatprep.subr.bf16.mxu0 0
        %7518 = vmatpush1.bf16.msra.mxu0 0
        %7519 = vmatprep.subr.bf16.mxu0 0
        %7520 = vmatpush1.bf16.msra.mxu0 0
        %7521 = vmatprep.subr.bf16.mxu0 0
        %7522 = vmatpush1.bf16.msra.mxu0 0
        %7523 = vmatprep.subr.bf16.mxu0 0
        %7524 = vmatpush1.bf16.msra.mxu0 0
        %7525 = vmatprep.subr.bf16.mxu0 0
        %7526 = vmatpush1.bf16.msra.mxu0 0
        %7527 = vmatprep.subr.bf16.mxu0 0
        %7528 = vmatpush1.bf16.msra.mxu0 0
        %7529 = vmatprep.subr.bf16.mxu0 0
        %7530 = vmatpush1.bf16.msra.mxu0 0
        %7531 = vmatprep.subr.bf16.mxu0 0
        %7532 = vmatpush1.bf16.msra.mxu0 0
        %7533 = vmatprep.subr.bf16.mxu0 0
        %7534 = vmatpush1.bf16.msra.mxu0 0
        %7535 = vmatprep.subr.bf16.mxu0 0
        %7536 = vmatpush1.bf16.msra.mxu0 0
        %7537 = vmatprep.subr.bf16.mxu0 0
        %7538 = vmatpush1.bf16.msra.mxu0 0
        %7539 = vmatprep.subr.bf16.mxu0 0
        %7540 = vmatpush1.bf16.msra.mxu0 0
        %7541 = vmatprep.subr.bf16.mxu0 0
        %7542 = vmatpush1.bf16.msra.mxu0 0
        %7543 = vmatprep.subr.bf16.mxu0 0
        %7544 = vmatpush1.bf16.msra.mxu0 0
        %7545 = vmatprep.mubr.bf16.mxu0 0
        %7546 = vmatmul.mubr.bf16.gmra.mrb[0].mxu0 %v7484
        %v7547 = vpop.f32.mrb[0].mxu0
        %v7548 = vadd.f32 0.0, %v7547
        %v7549 = vpop.f32.mrb[0].mxu0
        %v7550 = vpop.f32.mrb[0].mxu0
        %v7551 = vadd.f32 0.0, %v7550
        %v7552 = vpop.f32.mrb[0].mxu0
        %7553 = vmatprep.mubr.bf16.mxu0 0
        %7554 = vmatmul.mubr.bf16.gmra.mrb[0].mxu0 %v7487
        %v7555 = vpop.f32.mrb[0].mxu0
        %v7556 = vadd.f32 0.0, %v7555
        %v7557 = vpop.f32.mrb[0].mxu0
        %v7558 = vpop.f32.mrb[0].mxu0
        %v7559 = vadd.f32 0.0, %v7558
        %v7560 = vpop.f32.mrb[0].mxu0
        %7561 = vmatprep.mubr.bf16.mxu0 0
        %7562 = vmatmul.mubr.bf16.gmra.mrb[0].mxu0 %v7490
        %v7563 = vpop.f32.mrb[0].mxu0
        %v7564 = vadd.f32 0.0, %v7563
        %v7565 = vpop.f32.mrb[0].mxu0
        %v7566 = vpop.f32.mrb[0].mxu0
        %v7567 = vadd.f32 0.0, %v7566
        %v7568 = vpop.f32.mrb[0].mxu0
        %7569 = vmatprep.mubr.bf16.mxu0 0
        %7570 = vmatmul.mubr.bf16.gmra.mrb[0].mxu0 %v7493
        %v7571 = vpop.f32.mrb[0].mxu0
        %v7572 = vadd.f32 0.0, %v7571
        %v7573 = vpop.f32.mrb[0].mxu0
        %v7574 = vpop.f32.mrb[0].mxu0
        %v7575 = vadd.f32 0.0, %v7574
        %v7576 = vpop.f32.mrb[0].mxu0
        %7577 = vmatprep.mubr.bf16.mxu0 0
        %7578 = vmatmul.mubr.bf16.gmra.mrb[0].mxu0 %v7496
        %v7579 = vpop.f32.mrb[0].mxu0
        %v7580 = vadd.f32 0.0, %v7579
        %v7581 = vpop.f32.mrb[0].mxu0
        %v7582 = vpop.f32.mrb[0].mxu0
        %v7583 = vadd.f32 0.0, %v7582
        %v7584 = vpop.f32.mrb[0].mxu0
        %7585 = vmatprep.mubr.bf16.mxu0 0
        %7586 = vmatmul.mubr.bf16.gmra.mrb[0].mxu0 %v7499
        %v7587 = vpop.f32.mrb[0].mxu0
        %v7588 = vadd.f32 0.0, %v7587
        %v7589 = vpop.f32.mrb[0].mxu0
        %v7590 = vpop.f32.mrb[0].mxu0
        %v7591 = vadd.f32 0.0, %v7590
        %v7592 = vpop.f32.mrb[0].mxu0
        %7593 = vmatprep.mubr.bf16.mxu0 0
        %7594 = vmatmul.mubr.bf16.gmra.mrb[0].mxu0 %v7502
        %v7595 = vpop.f32.mrb[0].mxu0
        %v7596 = vadd.f32 0.0, %v7595
        %v7597 = vpop.f32.mrb[0].mxu0
        %v7598 = vpop.f32.mrb[0].mxu0
        %v7599 = vadd.f32 0.0, %v7598
        %v7600 = vpop.f32.mrb[0].mxu0
        %7601 = vmatprep.mubr.bf16.mxu0 0
        %7602 = vmatmul.mubr.bf16.gmra.mrb[0].mxu0 %v7505
        %v7603 = vpop.f32.mrb[0].mxu0
        %v7604 = vadd.f32 0.0, %v7603
        %v7605 = vpop.f32.mrb[0].mxu0
        %v7606 = vpop.f32.mrb[0].mxu0
        %v7607 = vadd.f32 0.0, %v7606
        %v7608 = vpop.f32.mrb[0].mxu0
        %7609 = vmatprep.mubr.bf16.mxu0 0
        %7610 = vmatmul.mubr.bf16.gmra.mrb[0].mxu0 %v7508
        %v7611 = vpop.f32.mrb[0].mxu0
        %v7612 = vadd.f32 0.0, %v7611
        %v7613 = vpop.f32.mrb[0].mxu0
        %v7614 = vpop.f32.mrb[0].mxu0
        %v7615 = vadd.f32 0.0, %v7614
        %v7616 = vpop.f32.mrb[0].mxu0
        %7617 = vdwg.mxu0
        %v7618 = vadd.f32 %v7436, %v7548
        %v7619 = vadd.f32 %v7437, %v7551
        %v7620 = vadd.f32 %v7438, %v7556
        %v7621 = vadd.f32 %v7439, %v7559
        %v7622 = vadd.f32 %v7440, %v7564
        %v7623 = vadd.f32 %v7441, %v7567
        %v7624 = vadd.f32 %v7442, %v7572
        %v7625 = vadd.f32 %v7443, %v7575
        %v7626 = vadd.f32 %v7444, %v7580
        %v7627 = vadd.f32 %v7445, %v7583
        %v7628 = vadd.f32 %v7446, %v7588
        %v7629 = vadd.f32 %v7447, %v7591
        %v7630 = vadd.f32 %v7448, %v7596
        %v7631 = vadd.f32 %v7449, %v7599
        %v7632 = vadd.f32 %v7450, %v7604
        %v7633 = vadd.f32 %v7451, %v7607
        %v7634 = vadd.f32 %v7452, %v7612
        %v7635 = vadd.f32 %v7453, %v7615
        %v7636 = vld [vmem:[#allocation3 + $0x3c] sm:$0xff]
        %v7637 = vld [vmem:[#allocation3 + $0x44] sm:$0xff]
        %v7638 = vld [vmem:[#allocation3 + $0x4c] sm:$0xff]
        %v7639 = vld [vmem:[#allocation3 + $0x54] sm:$0xff]
        %v7640 = vld [vmem:[#allocation3 + $0x5c] sm:$0xff]
        %v7641 = vld [vmem:[#allocation3 + $0x64] sm:$0xff]
        %v7642 = vld [vmem:[#allocation3 + $0x6c] sm:$0xff]
        %v7643 = vld [vmem:[#allocation3 + $0x74] sm:$0xff]
        %v7644 = vld [vmem:[#allocation3 + $0x7c] sm:$0xff]
        %v7645 = vld [vmem:[#allocation3 + $0x84] sm:$0xff]
        %v7646 = vld [vmem:[#allocation3 + $0x8c] sm:$0xff]
        %v7647 = vld [vmem:[#allocation3 + $0x94] sm:$0xff]
        %v7648 = vld [vmem:[#allocation3 + $0x9c] sm:$0xff]
        %v7649 = vld [vmem:[#allocation3 + $0xa4] sm:$0xff]
        %v7650 = vld [vmem:[#allocation3 + $0xac] sm:$0xff]
        %v7651 = vld [vmem:[#allocation3 + $0xb4] sm:$0xff]
        %v7652 = vld [vmem:[#allocation3 + $0xbc] sm:$0xff]
        %v7653 = vld [vmem:[#allocation3 + $0xc4] sm:$0xf]
        %s7654 = scalar_lea.vmem %s4, 96
        %v7655 = vld [vmem:[%s7654] sm:$0x7]
        %v7656 = vpack.c.bf16 %v7637, %v7636
        %v7657 = vpack.c.bf16 %v7639, %v7638
        %v7658 = vpack.c.bf16 %v7641, %v7640
        %v7659 = vpack.c.bf16 %v7643, %v7642
        %v7660 = vpack.c.bf16 %v7645, %v7644
        %v7661 = vpack.c.bf16 %v7647, %v7646
        %v7662 = vpack.c.bf16 %v7649, %v7648
        %v7663 = vpack.c.bf16 %v7651, %v7650
        %v7664 = vpack.c.bf16 %v7653, %v7652
        %v7666 = vsel %vm1497, %v7656, 0
        %v7669 = vsel %vm1497, %v7657, 0
        %v7672 = vsel %vm1497, %v7658, 0
        %v7675 = vsel %vm1497, %v7659, 0
        %v7678 = vsel %vm1497, %v7660, 0
        %v7681 = vsel %vm1497, %v7661, 0
        %v7684 = vsel %vm1497, %v7662, 0
        %v7687 = vsel %vm1497, %v7663, 0
        %v7690 = vsel %vm1497, %v7664, 0
        %v7693 = vsel %vm3388, %v7655, 0
        %7695 = vmatprep.subr.bf16.mxu0 0
        %7696 = vmatpush1.bf16.msra.mxu0 %v7693
        %7697 = vmatprep.subr.bf16.mxu0 0
        %7698 = vmatpush1.bf16.msra.mxu0 0
        %7699 = vmatprep.subr.bf16.mxu0 0
        %7700 = vmatpush1.bf16.msra.mxu0 0
        %7701 = vmatprep.subr.bf16.mxu0 0
        %7702 = vmatpush1.bf16.msra.mxu0 0
        %7703 = vmatprep.subr.bf16.mxu0 0
        %7704 = vmatpush1.bf16.msra.mxu0 0
        %7705 = vmatprep.subr.bf16.mxu0 0
        %7706 = vmatpush1.bf16.msra.mxu0 0
        %7707 = vmatprep.subr.bf16.mxu0 0
        %7708 = vmatpush1.bf16.msra.mxu0 0
        %7709 = vmatprep.subr.bf16.mxu0 0
        %7710 = vmatpush1.bf16.msra.mxu0 0
        %7711 = vmatprep.subr.bf16.mxu0 0
        %7712 = vmatpush1.bf16.msra.mxu0 0
        %7713 = vmatprep.subr.bf16.mxu0 0
        %7714 = vmatpush1.bf16.msra.mxu0 0
        %7715 = vmatprep.subr.bf16.mxu0 0
        %7716 = vmatpush1.bf16.msra.mxu0 0
        %7717 = vmatprep.subr.bf16.mxu0 0
        %7718 = vmatpush1.bf16.msra.mxu0 0
        %7719 = vmatprep.subr.bf16.mxu0 0
        %7720 = vmatpush1.bf16.msra.mxu0 0
        %7721 = vmatprep.subr.bf16.mxu0 0
        %7722 = vmatpush1.bf16.msra.mxu0 0
        %7723 = vmatprep.subr.bf16.mxu0 0
        %7724 = vmatpush1.bf16.msra.mxu0 0
        %7725 = vmatprep.subr.bf16.mxu0 0
        %7726 = vmatpush1.bf16.msra.mxu0 0
        %7727 = vmatprep.mubr.bf16.mxu0 0
        %7728 = vmatmul.mubr.bf16.gmra.mrb[0].mxu0 %v7666
        %v7729 = vpop.f32.mrb[0].mxu0
        %v7730 = vadd.f32 0.0, %v7729
        %v7731 = vpop.f32.mrb[0].mxu0
        %v7732 = vpop.f32.mrb[0].mxu0
        %v7733 = vadd.f32 0.0, %v7732
        %v7734 = vpop.f32.mrb[0].mxu0
        %7735 = vmatprep.mubr.bf16.mxu0 0
        %7736 = vmatmul.mubr.bf16.gmra.mrb[0].mxu0 %v7669
        %v7737 = vpop.f32.mrb[0].mxu0
        %v7738 = vadd.f32 0.0, %v7737
        %v7739 = vpop.f32.mrb[0].mxu0
        %v7740 = vpop.f32.mrb[0].mxu0
        %v7741 = vadd.f32 0.0, %v7740
        %v7742 = vpop.f32.mrb[0].mxu0
        %7743 = vmatprep.mubr.bf16.mxu0 0
        %7744 = vmatmul.mubr.bf16.gmra.mrb[0].mxu0 %v7672
        %v7745 = vpop.f32.mrb[0].mxu0
        %v7746 = vadd.f32 0.0, %v7745
        %v7747 = vpop.f32.mrb[0].mxu0
        %v7748 = vpop.f32.mrb[0].mxu0
        %v7749 = vadd.f32 0.0, %v7748
        %v7750 = vpop.f32.mrb[0].mxu0
        %7751 = vmatprep.mubr.bf16.mxu0 0
        %7752 = vmatmul.mubr.bf16.gmra.mrb[0].mxu0 %v7675
        %v7753 = vpop.f32.mrb[0].mxu0
        %v7754 = vadd.f32 0.0, %v7753
        %v7755 = vpop.f32.mrb[0].mxu0
        %v7756 = vpop.f32.mrb[0].mxu0
        %v7757 = vadd.f32 0.0, %v7756
        %v7758 = vpop.f32.mrb[0].mxu0
        %7759 = vmatprep.mubr.bf16.mxu0 0
        %7760 = vmatmul.mubr.bf16.gmra.mrb[0].mxu0 %v7678
        %v7761 = vpop.f32.mrb[0].mxu0
        %v7762 = vadd.f32 0.0, %v7761
        %v7763 = vpop.f32.mrb[0].mxu0
        %v7764 = vpop.f32.mrb[0].mxu0
        %v7765 = vadd.f32 0.0, %v7764
        %v7766 = vpop.f32.mrb[0].mxu0
        %7767 = vmatprep.mubr.bf16.mxu0 0
        %7768 = vmatmul.mubr.bf16.gmra.mrb[0].mxu0 %v7681
        %v7769 = vpop.f32.mrb[0].mxu0
        %v7770 = vadd.f32 0.0, %v7769
        %v7771 = vpop.f32.mrb[0].mxu0
        %v7772 = vpop.f32.mrb[0].mxu0
        %v7773 = vadd.f32 0.0, %v7772
        %v7774 = vpop.f32.mrb[0].mxu0
        %7775 = vmatprep.mubr.bf16.mxu0 0
        %7776 = vmatmul.mubr.bf16.gmra.mrb[0].mxu0 %v7684
        %v7777 = vpop.f32.mrb[0].mxu0
        %v7778 = vadd.f32 0.0, %v7777
        %v7779 = vpop.f32.mrb[0].mxu0
        %v7780 = vpop.f32.mrb[0].mxu0
        %v7781 = vadd.f32 0.0, %v7780
        %v7782 = vpop.f32.mrb[0].mxu0
        %7783 = vmatprep.mubr.bf16.mxu0 0
        %7784 = vmatmul.mubr.bf16.gmra.mrb[0].mxu0 %v7687
        %v7785 = vpop.f32.mrb[0].mxu0
        %v7786 = vadd.f32 0.0, %v7785
        %v7787 = vpop.f32.mrb[0].mxu0
        %v7788 = vpop.f32.mrb[0].mxu0
        %v7789 = vadd.f32 0.0, %v7788
        %v7790 = vpop.f32.mrb[0].mxu0
        %7791 = vmatprep.mubr.bf16.mxu0 0
        %7792 = vmatmul.mubr.bf16.gmra.mrb[0].mxu0 %v7690
        %v7793 = vpop.f32.mrb[0].mxu0
        %v7794 = vadd.f32 0.0, %v7793
        %v7795 = vpop.f32.mrb[0].mxu0
        %v7796 = vpop.f32.mrb[0].mxu0
        %v7797 = vadd.f32 0.0, %v7796
        %v7798 = vpop.f32.mrb[0].mxu0
        %7799 = vdwg.mxu0
        %v7800 = vadd.f32 %v7618, %v7730
        %v7801 = vadd.f32 %v7619, %v7733
        %v7802 = vadd.f32 %v7620, %v7738
        %v7803 = vadd.f32 %v7621, %v7741
        %v7804 = vadd.f32 %v7622, %v7746
        %v7805 = vadd.f32 %v7623, %v7749
        %v7806 = vadd.f32 %v7624, %v7754
        %v7807 = vadd.f32 %v7625, %v7757
        %v7808 = vadd.f32 %v7626, %v7762
        %v7809 = vadd.f32 %v7627, %v7765
        %v7810 = vadd.f32 %v7628, %v7770
        %v7811 = vadd.f32 %v7629, %v7773
        %v7812 = vadd.f32 %v7630, %v7778
        %v7813 = vadd.f32 %v7631, %v7781
        %v7814 = vadd.f32 %v7632, %v7786
        %v7815 = vadd.f32 %v7633, %v7789
        %v7816 = vadd.f32 %v7634, %v7794
        %v7817 = vadd.f32 %v7635, %v7797
        %vm7818 = vcmask 130048
        %7819 = vst.msk [vmem:[#allocation4] sm:$0xff] %vm7818, %v7800
        %7820 = vst.msk [vmem:[#allocation4 + $0x8] sm:$0xff] %vm7818, %v7801
        %7821 = vst.msk [vmem:[#allocation4 + $0x10] sm:$0xff] %vm7818, %v7802
        %7822 = vst.msk [vmem:[#allocation4 + $0x18] sm:$0xff] %vm7818, %v7803
        %7823 = vst.msk [vmem:[#allocation4 + $0x20] sm:$0xff] %vm7818, %v7804
        %7824 = vst.msk [vmem:[#allocation4 + $0x28] sm:$0xff] %vm7818, %v7805
        %7825 = vst.msk [vmem:[#allocation4 + $0x30] sm:$0xff] %vm7818, %v7806
        %7826 = vst.msk [vmem:[#allocation4 + $0x38] sm:$0xff] %vm7818, %v7807
        %7827 = vst.msk [vmem:[#allocation4 + $0x40] sm:$0xff] %vm7818, %v7808
        %7828 = vst.msk [vmem:[#allocation4 + $0x48] sm:$0xff] %vm7818, %v7809
        %7829 = vst.msk [vmem:[#allocation4 + $0x50] sm:$0xff] %vm7818, %v7810
        %7830 = vst.msk [vmem:[#allocation4 + $0x58] sm:$0xff] %vm7818, %v7811
        %7831 = vst.msk [vmem:[#allocation4 + $0x60] sm:$0xff] %vm7818, %v7812
        %7832 = vst.msk [vmem:[#allocation4 + $0x68] sm:$0xff] %vm7818, %v7813
        %7833 = vst.msk [vmem:[#allocation4 + $0x70] sm:$0xff] %vm7818, %v7814
        %7834 = vst.msk [vmem:[#allocation4 + $0x78] sm:$0xff] %vm7818, %v7815
        %7835 = vst.msk [vmem:[#allocation4 + $0x80] sm:$0xff] %vm7818, %v7816
        %vm7836 = vcmask 125952
        %7837 = vst.msk [vmem:[#allocation4 + $0x88] sm:$0xf] %vm7836, %v7817
        %v7838 = vld [vmem:[#allocation4] sm:$0xff]
        %v7839 = vld [vmem:[#allocation4 + $0x8] sm:$0xff]
        %v7840 = vld [vmem:[#allocation4 + $0x10] sm:$0xff]
        %v7841 = vld [vmem:[#allocation4 + $0x18] sm:$0xff]
        %v7842 = vld [vmem:[#allocation4 + $0x20] sm:$0xff]
        %v7843 = vld [vmem:[#allocation4 + $0x28] sm:$0xff]
        %v7844 = vld [vmem:[#allocation4 + $0x30] sm:$0xff]
        %v7845 = vld [vmem:[#allocation4 + $0x38] sm:$0xff]
        %v7846 = vld [vmem:[#allocation4 + $0x40] sm:$0xff]
        %v7847 = vld [vmem:[#allocation4 + $0x48] sm:$0xff]
        %v7848 = vld [vmem:[#allocation4 + $0x50] sm:$0xff]
        %v7849 = vld [vmem:[#allocation4 + $0x58] sm:$0xff]
        %v7850 = vld [vmem:[#allocation4 + $0x60] sm:$0xff]
        %v7851 = vld [vmem:[#allocation4 + $0x68] sm:$0xff]
        %v7852 = vld [vmem:[#allocation4 + $0x70] sm:$0xff]
        %v7853 = vld [vmem:[#allocation4 + $0x78] sm:$0x1f]
        %v7854 = vld [vmem:[#allocation4 + $0x1] sm:$0xff]
        %v7855 = vld [vmem:[#allocation4 + $0x9] sm:$0xff]
        %v7856 = vld [vmem:[#allocation4 + $0x11] sm:$0xff]
        %v7857 = vld [vmem:[#allocation4 + $0x19] sm:$0xff]
        %v7858 = vld [vmem:[#allocation4 + $0x21] sm:$0xff]
        %v7859 = vld [vmem:[#allocation4 + $0x29] sm:$0xff]
        %v7860 = vld [vmem:[#allocation4 + $0x31] sm:$0xff]
        %v7861 = vld [vmem:[#allocation4 + $0x39] sm:$0xff]
        %v7862 = vld [vmem:[#allocation4 + $0x41] sm:$0xff]
        %v7863 = vld [vmem:[#allocation4 + $0x49] sm:$0xff]
        %v7864 = vld [vmem:[#allocation4 + $0x51] sm:$0xff]
        %v7865 = vld [vmem:[#allocation4 + $0x59] sm:$0xff]
        %v7866 = vld [vmem:[#allocation4 + $0x61] sm:$0xff]
        %v7867 = vld [vmem:[#allocation4 + $0x69] sm:$0xff]
        %v7868 = vld [vmem:[#allocation4 + $0x71] sm:$0xff]
        %v7869 = vld [vmem:[#allocation4 + $0x79] sm:$0x1f]
        %v7870 = vmax.f32 %v7838, %v7854
        %v7871 = vmax.f32 %v7839, %v7855
        %v7872 = vmax.f32 %v7840, %v7856
        %v7873 = vmax.f32 %v7841, %v7857
        %v7874 = vmax.f32 %v7842, %v7858
        %v7875 = vmax.f32 %v7843, %v7859
        %v7876 = vmax.f32 %v7844, %v7860
        %v7877 = vmax.f32 %v7845, %v7861
        %v7878 = vmax.f32 %v7846, %v7862
        %v7879 = vmax.f32 %v7847, %v7863
        %v7880 = vmax.f32 %v7848, %v7864
        %v7881 = vmax.f32 %v7849, %v7865
        %v7882 = vmax.f32 %v7850, %v7866
        %v7883 = vmax.f32 %v7851, %v7867
        %v7884 = vmax.f32 %v7852, %v7868
        %v7885 = vmax.f32 %v7853, %v7869
        %v7886 = vld [vmem:[#allocation4 + $0xe] sm:$0xff]
        %v7887 = vld [vmem:[#allocation4 + $0x16] sm:$0xff]
        %v7888 = vld [vmem:[#allocation4 + $0x1e] sm:$0xff]
        %v7889 = vld [vmem:[#allocation4 + $0x26] sm:$0xff]
        %v7890 = vld [vmem:[#allocation4 + $0x2e] sm:$0xff]
        %v7891 = vld [vmem:[#allocation4 + $0x36] sm:$0xff]
        %v7892 = vld [vmem:[#allocation4 + $0x3e] sm:$0xff]
        %v7893 = vld [vmem:[#allocation4 + $0x46] sm:$0xff]
        %v7894 = vld [vmem:[#allocation4 + $0x4e] sm:$0xff]
        %v7895 = vld [vmem:[#allocation4 + $0x56] sm:$0xff]
        %v7896 = vld [vmem:[#allocation4 + $0x5e] sm:$0xff]
        %v7897 = vld [vmem:[#allocation4 + $0x66] sm:$0xff]
        %v7898 = vld [vmem:[#allocation4 + $0x6e] sm:$0xff]
        %v7899 = vld [vmem:[#allocation4 + $0x76] sm:$0xff]
        %v7900 = vld [vmem:[#allocation4 + $0x7e] sm:$0xff]
        %v7901 = vld [vmem:[#allocation4 + $0x86] sm:$0x1f]
        %v7902 = vld [vmem:[#allocation4 + $0xf] sm:$0xff]
        %v7903 = vld [vmem:[#allocation4 + $0x17] sm:$0xff]
        %v7904 = vld [vmem:[#allocation4 + $0x1f] sm:$0xff]
        %v7905 = vld [vmem:[#allocation4 + $0x27] sm:$0xff]
        %v7906 = vld [vmem:[#allocation4 + $0x2f] sm:$0xff]
        %v7907 = vld [vmem:[#allocation4 + $0x37] sm:$0xff]
        %v7908 = vld [vmem:[#allocation4 + $0x3f] sm:$0xff]
        %v7909 = vld [vmem:[#allocation4 + $0x47] sm:$0xff]
        %v7910 = vld [vmem:[#allocation4 + $0x4f] sm:$0xff]
        %v7911 = vld [vmem:[#allocation4 + $0x57] sm:$0xff]
        %v7912 = vld [vmem:[#allocation4 + $0x5f] sm:$0xff]
        %v7913 = vld [vmem:[#allocation4 + $0x67] sm:$0xff]
        %v7914 = vld [vmem:[#allocation4 + $0x6f] sm:$0xff]
        %v7915 = vld [vmem:[#allocation4 + $0x77] sm:$0xff]
        %v7916 = vld [vmem:[#allocation4 + $0x7f] sm:$0xff]
        %v7917 = vld [vmem:[#allocation4 + $0x87] sm:$0x1f]
        %v7918 = vmax.f32 %v7886, %v7902
        %v7919 = vmax.f32 %v7887, %v7903
        %v7920 = vmax.f32 %v7888, %v7904
        %v7921 = vmax.f32 %v7889, %v7905
        %v7922 = vmax.f32 %v7890, %v7906
        %v7923 = vmax.f32 %v7891, %v7907
        %v7924 = vmax.f32 %v7892, %v7908
        %v7925 = vmax.f32 %v7893, %v7909
        %v7926 = vmax.f32 %v7894, %v7910
        %v7927 = vmax.f32 %v7895, %v7911
        %v7928 = vmax.f32 %v7896, %v7912
        %v7929 = vmax.f32 %v7897, %v7913
        %v7930 = vmax.f32 %v7898, %v7914
        %v7931 = vmax.f32 %v7899, %v7915
        %v7932 = vmax.f32 %v7900, %v7916
        %v7933 = vmax.f32 %v7901, %v7917
        %v7934 = vmax.f32 %v7870, %v7918
        %v7935 = vmax.f32 %v7871, %v7919
        %v7936 = vmax.f32 %v7872, %v7920
        %v7937 = vmax.f32 %v7873, %v7921
        %v7938 = vmax.f32 %v7874, %v7922
        %v7939 = vmax.f32 %v7875, %v7923
        %v7940 = vmax.f32 %v7876, %v7924
        %v7941 = vmax.f32 %v7877, %v7925
        %v7942 = vmax.f32 %v7878, %v7926
        %v7943 = vmax.f32 %v7879, %v7927
        %v7944 = vmax.f32 %v7880, %v7928
        %v7945 = vmax.f32 %v7881, %v7929
        %v7946 = vmax.f32 %v7882, %v7930
        %v7947 = vmax.f32 %v7883, %v7931
        %v7948 = vmax.f32 %v7884, %v7932
        %v7949 = vmax.f32 %v7885, %v7933
        %v7950 = vld [vmem:[%s6] sm:$0xf]
        %v7951 = vld [vmem:[%s6 + $0x4] sm:$0xf]
        %v7952 = vld [vmem:[%s6 + $0x8] sm:$0xf]
        %v7953 = vld [vmem:[%s6 + $0xc] sm:$0x1]
        %v7954 = vpack.c.bf16 %v7935, %v7934
        %v7955 = vpack.c.bf16 %v7937, %v7936
        %v7956 = vpack.c.bf16 %v7939, %v7938
        %v7957 = vpack.c.bf16 %v7941, %v7940
        %v7958 = vpack.c.bf16 %v7943, %v7942
        %v7959 = vpack.c.bf16 %v7945, %v7944
        %v7960 = vpack.c.bf16 %v7947, %v7946
        %v7961 = vpack.c.bf16 %v7949, %v7948
        %v7962 = vld [vmem:[%s5] sm:$0x1]
        %v7964 = vlaneseq
        %v7965 = vshrl.u32 %v7964, 7
        %v7966 = vsub.s32 0, %v7965
        %v7967 = vrot.slane %v7962, %v7966
        %v7973 = vunpack.c.l.b16 %v7950
        %v7974 = vunpack.c.l.b16 %v7951
        %v7975 = vunpack.c.l.b16 %v7952
        %v7976 = vunpack.c.l.b16 %v7953
        %v7977 = vpack.c.b16 %v7974, %v7973
        %v7978 = vpack.c.b16 %v7976, %v7975
        %vm7979 = vcmask 1022976
        %v7981 = vsel %vm7979, %v7977, 0
        %v7984 = vsel %vm7979, %v7978, 0
        %vm7986 = vcmask 1046528
        %v7987 = vsel %vm2704, 4294967295, 65535
        %v7988 = vsel %vm7986, %v7987, 0
        %v7990 = vand.u32 %v7961, %v7988
        %7992 = vmatprep.subr.bf16.mxu0 0
        %7993 = vmatpush1.bf16.msra.mxu0 %v7954
        %7994 = vmatprep.subr.bf16.mxu0 0
        %7995 = vmatpush1.bf16.msra.mxu0 %v7955
        %7996 = vmatprep.subr.bf16.mxu0 0
        %7997 = vmatpush1.bf16.msra.mxu0 %v7956
        %7998 = vmatprep.subr.bf16.mxu0 0
        %7999 = vmatpush1.bf16.msra.mxu0 %v7957
        %8000 = vmatprep.subr.bf16.mxu0 0
        %8001 = vmatpush1.bf16.msra.mxu0 %v7958
        %8002 = vmatprep.subr.bf16.mxu0 0
        %8003 = vmatpush1.bf16.msra.mxu0 %v7959
        %8004 = vmatprep.subr.bf16.mxu0 0
        %8005 = vmatpush1.bf16.msra.mxu0 %v7960
        %8006 = vmatprep.subr.bf16.mxu0 0
        %8007 = vmatpush1.bf16.msra.mxu0 %v7990
        %8008 = vmatprep.subr.bf16.mxu0 0
        %8009 = vmatpush1.bf16.msra.mxu0 0
        %8010 = vmatprep.subr.bf16.mxu0 0
        %8011 = vmatpush1.bf16.msra.mxu0 0
        %8012 = vmatprep.subr.bf16.mxu0 0
        %8013 = vmatpush1.bf16.msra.mxu0 0
        %8014 = vmatprep.subr.bf16.mxu0 0
        %8015 = vmatpush1.bf16.msra.mxu0 0
        %8016 = vmatprep.subr.bf16.mxu0 0
        %8017 = vmatpush1.bf16.msra.mxu0 0
        %8018 = vmatprep.subr.bf16.mxu0 0
        %8019 = vmatpush1.bf16.msra.mxu0 0
        %8020 = vmatprep.subr.bf16.mxu0 0
        %8021 = vmatpush1.bf16.msra.mxu0 0
        %8022 = vmatprep.subr.bf16.mxu0 0
        %8023 = vmatpush1.bf16.msra.mxu0 0
        %8024 = vmatprep.mubr.bf16.mxu0 0
        %8025 = vmatmul.mubr.bf16.gmra.mrb[0].mxu0 %v7981
        %v8026 = vpop.f32.mrb[0].mxu0
        %v8027 = vadd.f32 %v7967, %v8026
        %v8028 = vpop.f32.mrb[0].mxu0
        %v8029 = vpop.f32.mrb[0].mxu0
        %v8030 = vadd.f32 %v7967, %v8029
        %v8031 = vpop.f32.mrb[0].mxu0
        %8032 = vmatprep.mubr.bf16.mxu0 0
        %8033 = vmatmul.mubr.bf16.gmra.mrb[0].mxu0 %v7984
        %v8034 = vpop.f32.mrb[0].mxu0
        %v8035 = vadd.f32 %v7967, %v8034
        %v8036 = vpop.f32.mrb[0].mxu0
        %v8037 = vpop.f32.mrb[0].mxu0
        %v8038 = vadd.f32 %v7967, %v8037
        %v8039 = vpop.f32.mrb[0].mxu0
        %8040 = vdwg.mxu0
        %v8041 = vmax.f32 %v8027, 0.0
        %v8042 = vmax.f32 %v8030, 0.0
        %v8043 = vmax.f32 %v8035, 0.0
        %v8044 = vmax.f32 %v8038, 0.0
        %8045 = vst.msk [vmem:[#allocation5] sm:$0xff] %vm7818, %v8041
        %8046 = vst.msk [vmem:[#allocation5 + $0x8] sm:$0xff] %vm7818, %v8042
        %8047 = vst.msk [vmem:[#allocation5 + $0x10] sm:$0xff] %vm7818, %v8043
        %vm8048 = vcmask 122880
        %8049 = vst.msk [vmem:[#allocation5 + $0x18] sm:$0x1] %vm8048, %v8044
        %v8050 = vld [vmem:[#allocation5] sm:$0x1]
        %v8051 = vld [vmem:[%s7] sm:$0xf]
        %v8052 = vld [vmem:[%s7 + $0x4] sm:$0xf]
        %v8053 = vpack.c.bf16 %v8050, %v8050
        %v8054 = vld [vmem:[#allocation5 + $0x1] sm:$0x1]
        %s8055 = scalar_lea.vmem %s7, 8
        %v8056 = vld [vmem:[%s8055] sm:$0xf]
        %v8057 = vld [vmem:[%s8055 + $0x4] sm:$0xf]
        %v8058 = vpack.c.bf16 %v8054, %v8054
        %v8061 = vunpack.c.l.b16 %v8056
        %v8062 = vunpack.c.l.b16 %v8057
        %v8063 = vpack.c.b16 %v8062, %v8061
        %v8066 = vsel %vm7818, %v8058, 0
        %8068 = vmatprep.subr.bf16.mxu0 0
        %8069 = vmatpush1.bf16.msra.mxu0 %v8063
        %8070 = vmatprep.subr.bf16.mxu0 0
        %8071 = vmatpush1.bf16.msra.mxu0 0
        %8072 = vmatprep.subr.bf16.mxu0 0
        %8073 = vmatpush1.bf16.msra.mxu0 0
        %8074 = vmatprep.subr.bf16.mxu0 0
        %8075 = vmatpush1.bf16.msra.mxu0 0
        %8076 = vmatprep.subr.bf16.mxu0 0
        %8077 = vmatpush1.bf16.msra.mxu0 0
        %8078 = vmatprep.subr.bf16.mxu0 0
        %8079 = vmatpush1.bf16.msra.mxu0 0
        %8080 = vmatprep.subr.bf16.mxu0 0
        %8081 = vmatpush1.bf16.msra.mxu0 0
        %8082 = vmatprep.subr.bf16.mxu0 0
        %8083 = vmatpush1.bf16.msra.mxu0 0
        %8084 = vmatprep.subr.bf16.mxu0 0
        %8085 = vmatpush1.bf16.msra.mxu0 0
        %8086 = vmatprep.subr.bf16.mxu0 0
        %8087 = vmatpush1.bf16.msra.mxu0 0
        %8088 = vmatprep.subr.bf16.mxu0 0
        %8089 = vmatpush1.bf16.msra.mxu0 0
        %8090 = vmatprep.subr.bf16.mxu0 0
        %8091 = vmatpush1.bf16.msra.mxu0 0
        %8092 = vmatprep.subr.bf16.mxu0 0
        %8093 = vmatpush1.bf16.msra.mxu0 0
        %8094 = vmatprep.subr.bf16.mxu0 0
        %8095 = vmatpush1.bf16.msra.mxu0 0
        %8096 = vmatprep.subr.bf16.mxu0 0
        %8097 = vmatpush1.bf16.msra.mxu0 0
        %8098 = vmatprep.subr.bf16.mxu0 0
        %8099 = vmatpush1.bf16.msra.mxu0 0
        %8100 = vmatprep.mubr.bf16.mxu0 0
        %8101 = vmatmul.mubr.bf16.gmra.mrb[0].mxu0 %v8066
        %v8102 = vpop.f32.mrb[0].mxu0
        %v8103 = vadd.f32 0.0, %v8102
        %v8104 = vpop.f32.mrb[0].mxu0
        %v8105 = vpop.f32.mrb[0].mxu0
        %v8106 = vpop.f32.mrb[0].mxu0
        %8107 = vdwg.mxu0
        %v8110 = vunpack.c.l.b16 %v8051
        %v8111 = vunpack.c.l.b16 %v8052
        %v8112 = vpack.c.b16 %v8111, %v8110
        %v8115 = vsel %vm7818, %v8053, 0
        %8117 = vmatprep.subr.bf16.mxu0 0
        %8118 = vmatpush1.bf16.msra.mxu0 %v8112
        %8119 = vmatprep.subr.bf16.mxu0 0
        %8120 = vmatpush1.bf16.msra.mxu0 0
        %8121 = vmatprep.subr.bf16.mxu0 0
        %8122 = vmatpush1.bf16.msra.mxu0 0
        %8123 = vmatprep.subr.bf16.mxu0 0
        %8124 = vmatpush1.bf16.msra.mxu0 0
        %8125 = vmatprep.subr.bf16.mxu0 0
        %8126 = vmatpush1.bf16.msra.mxu0 0
        %8127 = vmatprep.subr.bf16.mxu0 0
        %8128 = vmatpush1.bf16.msra.mxu0 0
        %8129 = vmatprep.subr.bf16.mxu0 0
        %8130 = vmatpush1.bf16.msra.mxu0 0
        %8131 = vmatprep.subr.bf16.mxu0 0
        %8132 = vmatpush1.bf16.msra.mxu0 0
        %8133 = vmatprep.subr.bf16.mxu0 0
        %8134 = vmatpush1.bf16.msra.mxu0 0
        %8135 = vmatprep.subr.bf16.mxu0 0
        %8136 = vmatpush1.bf16.msra.mxu0 0
        %8137 = vmatprep.subr.bf16.mxu0 0
        %8138 = vmatpush1.bf16.msra.mxu0 0
        %8139 = vmatprep.subr.bf16.mxu0 0
        %8140 = vmatpush1.bf16.msra.mxu0 0
        %8141 = vmatprep.subr.bf16.mxu0 0
        %8142 = vmatpush1.bf16.msra.mxu0 0
        %8143 = vmatprep.subr.bf16.mxu0 0
        %8144 = vmatpush1.bf16.msra.mxu0 0
        %8145 = vmatprep.subr.bf16.mxu0 0
        %8146 = vmatpush1.bf16.msra.mxu0 0
        %8147 = vmatprep.subr.bf16.mxu0 0
        %8148 = vmatpush1.bf16.msra.mxu0 0
        %8149 = vmatprep.mubr.bf16.mxu0 0
        %8150 = vmatmul.mubr.bf16.gmra.mrb[0].mxu0 %v8115
        %v8151 = vpop.f32.mrb[0].mxu0
        %v8152 = vadd.f32 %v8103, %v8151
        %v8153 = vpop.f32.mrb[0].mxu0
        %v8154 = vpop.f32.mrb[0].mxu0
        %v8155 = vpop.f32.mrb[0].mxu0
        %8156 = vdwg.mxu0
        %v8157 = vld [vmem:[#allocation5 + $0x2] sm:$0x1]
        %s8158 = scalar_lea.vmem %s7, 16
        %v8159 = vld [vmem:[%s8158] sm:$0xf]
        %v8160 = vld [vmem:[%s8158 + $0x4] sm:$0xf]
        %v8161 = vpack.c.bf16 %v8157, %v8157
        %v8164 = vunpack.c.l.b16 %v8159
        %v8165 = vunpack.c.l.b16 %v8160
        %v8166 = vpack.c.b16 %v8165, %v8164
        %v8169 = vsel %vm7818, %v8161, 0
        %8171 = vmatprep.subr.bf16.mxu0 0
        %8172 = vmatpush1.bf16.msra.mxu0 %v8166
        %8173 = vmatprep.subr.bf16.mxu0 0
        %8174 = vmatpush1.bf16.msra.mxu0 0
        %8175 = vmatprep.subr.bf16.mxu0 0
        %8176 = vmatpush1.bf16.msra.mxu0 0
        %8177 = vmatprep.subr.bf16.mxu0 0
        %8178 = vmatpush1.bf16.msra.mxu0 0
        %8179 = vmatprep.subr.bf16.mxu0 0
        %8180 = vmatpush1.bf16.msra.mxu0 0
        %8181 = vmatprep.subr.bf16.mxu0 0
        %8182 = vmatpush1.bf16.msra.mxu0 0
        %8183 = vmatprep.subr.bf16.mxu0 0
        %8184 = vmatpush1.bf16.msra.mxu0 0
        %8185 = vmatprep.subr.bf16.mxu0 0
        %8186 = vmatpush1.bf16.msra.mxu0 0
        %8187 = vmatprep.subr.bf16.mxu0 0
        %8188 = vmatpush1.bf16.msra.mxu0 0
        %8189 = vmatprep.subr.bf16.mxu0 0
        %8190 = vmatpush1.bf16.msra.mxu0 0
        %8191 = vmatprep.subr.bf16.mxu0 0
        %8192 = vmatpush1.bf16.msra.mxu0 0
        %8193 = vmatprep.subr.bf16.mxu0 0
        %8194 = vmatpush1.bf16.msra.mxu0 0
        %8195 = vmatprep.subr.bf16.mxu0 0
        %8196 = vmatpush1.bf16.msra.mxu0 0
        %8197 = vmatprep.subr.bf16.mxu0 0
        %8198 = vmatpush1.bf16.msra.mxu0 0
        %8199 = vmatprep.subr.bf16.mxu0 0
        %8200 = vmatpush1.bf16.msra.mxu0 0
        %8201 = vmatprep.subr.bf16.mxu0 0
        %8202 = vmatpush1.bf16.msra.mxu0 0
        %8203 = vmatprep.mubr.bf16.mxu0 0
        %8204 = vmatmul.mubr.bf16.gmra.mrb[0].mxu0 %v8169
        %v8205 = vpop.f32.mrb[0].mxu0
        %v8206 = vadd.f32 0.0, %v8205
        %v8207 = vpop.f32.mrb[0].mxu0
        %v8208 = vpop.f32.mrb[0].mxu0
        %v8209 = vpop.f32.mrb[0].mxu0
        %8210 = vdwg.mxu0
        %v8211 = vadd.f32 %v8152, %v8206
        %v8212 = vld [vmem:[#allocation5 + $0x3] sm:$0x1]
        %s8213 = scalar_lea.vmem %s7, 24
        %v8214 = vld [vmem:[%s8213] sm:$0xf]
        %v8215 = vld [vmem:[%s8213 + $0x4] sm:$0xf]
        %v8216 = vpack.c.bf16 %v8212, %v8212
        %v8219 = vunpack.c.l.b16 %v8214
        %v8220 = vunpack.c.l.b16 %v8215
        %v8221 = vpack.c.b16 %v8220, %v8219
        %v8224 = vsel %vm7818, %v8216, 0
        %8226 = vmatprep.subr.bf16.mxu0 0
        %8227 = vmatpush1.bf16.msra.mxu0 %v8221
        %8228 = vmatprep.subr.bf16.mxu0 0
        %8229 = vmatpush1.bf16.msra.mxu0 0
        %8230 = vmatprep.subr.bf16.mxu0 0
        %8231 = vmatpush1.bf16.msra.mxu0 0
        %8232 = vmatprep.subr.bf16.mxu0 0
        %8233 = vmatpush1.bf16.msra.mxu0 0
        %8234 = vmatprep.subr.bf16.mxu0 0
        %8235 = vmatpush1.bf16.msra.mxu0 0
        %8236 = vmatprep.subr.bf16.mxu0 0
        %8237 = vmatpush1.bf16.msra.mxu0 0
        %8238 = vmatprep.subr.bf16.mxu0 0
        %8239 = vmatpush1.bf16.msra.mxu0 0
        %8240 = vmatprep.subr.bf16.mxu0 0
        %8241 = vmatpush1.bf16.msra.mxu0 0
        %8242 = vmatprep.subr.bf16.mxu0 0
        %8243 = vmatpush1.bf16.msra.mxu0 0
        %8244 = vmatprep.subr.bf16.mxu0 0
        %8245 = vmatpush1.bf16.msra.mxu0 0
        %8246 = vmatprep.subr.bf16.mxu0 0
        %8247 = vmatpush1.bf16.msra.mxu0 0
        %8248 = vmatprep.subr.bf16.mxu0 0
        %8249 = vmatpush1.bf16.msra.mxu0 0
        %8250 = vmatprep.subr.bf16.mxu0 0
        %8251 = vmatpush1.bf16.msra.mxu0 0
        %8252 = vmatprep.subr.bf16.mxu0 0
        %8253 = vmatpush1.bf16.msra.mxu0 0
        %8254 = vmatprep.subr.bf16.mxu0 0
        %8255 = vmatpush1.bf16.msra.mxu0 0
        %8256 = vmatprep.subr.bf16.mxu0 0
        %8257 = vmatpush1.bf16.msra.mxu0 0
        %8258 = vmatprep.mubr.bf16.mxu0 0
        %8259 = vmatmul.mubr.bf16.gmra.mrb[0].mxu0 %v8224
        %v8260 = vpop.f32.mrb[0].mxu0
        %v8261 = vadd.f32 0.0, %v8260
        %v8262 = vpop.f32.mrb[0].mxu0
        %v8263 = vpop.f32.mrb[0].mxu0
        %v8264 = vpop.f32.mrb[0].mxu0
        %8265 = vdwg.mxu0
        %v8266 = vadd.f32 %v8211, %v8261
        %v8267 = vld [vmem:[#allocation5 + $0x4] sm:$0x1]
        %s8268 = scalar_lea.vmem %s7, 32
        %v8269 = vld [vmem:[%s8268] sm:$0xf]
        %v8270 = vld [vmem:[%s8268 + $0x4] sm:$0xf]
        %v8271 = vpack.c.bf16 %v8267, %v8267
        %v8274 = vunpack.c.l.b16 %v8269
        %v8275 = vunpack.c.l.b16 %v8270
        %v8276 = vpack.c.b16 %v8275, %v8274
        %v8279 = vsel %vm7818, %v8271, 0
        %8281 = vmatprep.subr.bf16.mxu0 0
        %8282 = vmatpush1.bf16.msra.mxu0 %v8276
        %8283 = vmatprep.subr.bf16.mxu0 0
        %8284 = vmatpush1.bf16.msra.mxu0 0
        %8285 = vmatprep.subr.bf16.mxu0 0
        %8286 = vmatpush1.bf16.msra.mxu0 0
        %8287 = vmatprep.subr.bf16.mxu0 0
        %8288 = vmatpush1.bf16.msra.mxu0 0
        %8289 = vmatprep.subr.bf16.mxu0 0
        %8290 = vmatpush1.bf16.msra.mxu0 0
        %8291 = vmatprep.subr.bf16.mxu0 0
        %8292 = vmatpush1.bf16.msra.mxu0 0
        %8293 = vmatprep.subr.bf16.mxu0 0
        %8294 = vmatpush1.bf16.msra.mxu0 0
        %8295 = vmatprep.subr.bf16.mxu0 0
        %8296 = vmatpush1.bf16.msra.mxu0 0
        %8297 = vmatprep.subr.bf16.mxu0 0
        %8298 = vmatpush1.bf16.msra.mxu0 0
        %8299 = vmatprep.subr.bf16.mxu0 0
        %8300 = vmatpush1.bf16.msra.mxu0 0
        %8301 = vmatprep.subr.bf16.mxu0 0
        %8302 = vmatpush1.bf16.msra.mxu0 0
        %8303 = vmatprep.subr.bf16.mxu0 0
        %8304 = vmatpush1.bf16.msra.mxu0 0
        %8305 = vmatprep.subr.bf16.mxu0 0
        %8306 = vmatpush1.bf16.msra.mxu0 0
        %8307 = vmatprep.subr.bf16.mxu0 0
        %8308 = vmatpush1.bf16.msra.mxu0 0
        %8309 = vmatprep.subr.bf16.mxu0 0
        %8310 = vmatpush1.bf16.msra.mxu0 0
        %8311 = vmatprep.subr.bf16.mxu0 0
        %8312 = vmatpush1.bf16.msra.mxu0 0
        %8313 = vmatprep.mubr.bf16.mxu0 0
        %8314 = vmatmul.mubr.bf16.gmra.mrb[0].mxu0 %v8279
        %v8315 = vpop.f32.mrb[0].mxu0
        %v8316 = vadd.f32 0.0, %v8315
        %v8317 = vpop.f32.mrb[0].mxu0
        %v8318 = vpop.f32.mrb[0].mxu0
        %v8319 = vpop.f32.mrb[0].mxu0
        %8320 = vdwg.mxu0
        %v8321 = vadd.f32 %v8266, %v8316
        %v8322 = vld [vmem:[#allocation5 + $0x5] sm:$0x1]
        %s8323 = scalar_lea.vmem %s7, 40
        %v8324 = vld [vmem:[%s8323] sm:$0xf]
        %v8325 = vld [vmem:[%s8323 + $0x4] sm:$0xf]
        %v8326 = vpack.c.bf16 %v8322, %v8322
        %v8329 = vunpack.c.l.b16 %v8324
        %v8330 = vunpack.c.l.b16 %v8325
        %v8331 = vpack.c.b16 %v8330, %v8329
        %v8334 = vsel %vm7818, %v8326, 0
        %8336 = vmatprep.subr.bf16.mxu0 0
        %8337 = vmatpush1.bf16.msra.mxu0 %v8331
        %8338 = vmatprep.subr.bf16.mxu0 0
        %8339 = vmatpush1.bf16.msra.mxu0 0
        %8340 = vmatprep.subr.bf16.mxu0 0
        %8341 = vmatpush1.bf16.msra.mxu0 0
        %8342 = vmatprep.subr.bf16.mxu0 0
        %8343 = vmatpush1.bf16.msra.mxu0 0
        %8344 = vmatprep.subr.bf16.mxu0 0
        %8345 = vmatpush1.bf16.msra.mxu0 0
        %8346 = vmatprep.subr.bf16.mxu0 0
        %8347 = vmatpush1.bf16.msra.mxu0 0
        %8348 = vmatprep.subr.bf16.mxu0 0
        %8349 = vmatpush1.bf16.msra.mxu0 0
        %8350 = vmatprep.subr.bf16.mxu0 0
        %8351 = vmatpush1.bf16.msra.mxu0 0
        %8352 = vmatprep.subr.bf16.mxu0 0
        %8353 = vmatpush1.bf16.msra.mxu0 0
        %8354 = vmatprep.subr.bf16.mxu0 0
        %8355 = vmatpush1.bf16.msra.mxu0 0
        %8356 = vmatprep.subr.bf16.mxu0 0
        %8357 = vmatpush1.bf16.msra.mxu0 0
        %8358 = vmatprep.subr.bf16.mxu0 0
        %8359 = vmatpush1.bf16.msra.mxu0 0
        %8360 = vmatprep.subr.bf16.mxu0 0
        %8361 = vmatpush1.bf16.msra.mxu0 0
        %8362 = vmatprep.subr.bf16.mxu0 0
        %8363 = vmatpush1.bf16.msra.mxu0 0
        %8364 = vmatprep.subr.bf16.mxu0 0
        %8365 = vmatpush1.bf16.msra.mxu0 0
        %8366 = vmatprep.subr.bf16.mxu0 0
        %8367 = vmatpush1.bf16.msra.mxu0 0
        %8368 = vmatprep.mubr.bf16.mxu0 0
        %8369 = vmatmul.mubr.bf16.gmra.mrb[0].mxu0 %v8334
        %v8370 = vpop.f32.mrb[0].mxu0
        %v8371 = vadd.f32 0.0, %v8370
        %v8372 = vpop.f32.mrb[0].mxu0
        %v8373 = vpop.f32.mrb[0].mxu0
        %v8374 = vpop.f32.mrb[0].mxu0
        %8375 = vdwg.mxu0
        %v8376 = vadd.f32 %v8321, %v8371
        %v8377 = vld [vmem:[#allocation5 + $0x6] sm:$0x1]
        %s8378 = scalar_lea.vmem %s7, 48
        %v8379 = vld [vmem:[%s8378] sm:$0xf]
        %v8380 = vld [vmem:[%s8378 + $0x4] sm:$0xf]
        %v8381 = vpack.c.bf16 %v8377, %v8377
        %v8384 = vunpack.c.l.b16 %v8379
        %v8385 = vunpack.c.l.b16 %v8380
        %v8386 = vpack.c.b16 %v8385, %v8384
        %v8389 = vsel %vm7818, %v8381, 0
        %8391 = vmatprep.subr.bf16.mxu0 0
        %8392 = vmatpush1.bf16.msra.mxu0 %v8386
        %8393 = vmatprep.subr.bf16.mxu0 0
        %8394 = vmatpush1.bf16.msra.mxu0 0
        %8395 = vmatprep.subr.bf16.mxu0 0
        %8396 = vmatpush1.bf16.msra.mxu0 0
        %8397 = vmatprep.subr.bf16.mxu0 0
        %8398 = vmatpush1.bf16.msra.mxu0 0
        %8399 = vmatprep.subr.bf16.mxu0 0
        %8400 = vmatpush1.bf16.msra.mxu0 0
        %8401 = vmatprep.subr.bf16.mxu0 0
        %8402 = vmatpush1.bf16.msra.mxu0 0
        %8403 = vmatprep.subr.bf16.mxu0 0
        %8404 = vmatpush1.bf16.msra.mxu0 0
        %8405 = vmatprep.subr.bf16.mxu0 0
        %8406 = vmatpush1.bf16.msra.mxu0 0
        %8407 = vmatprep.subr.bf16.mxu0 0
        %8408 = vmatpush1.bf16.msra.mxu0 0
        %8409 = vmatprep.subr.bf16.mxu0 0
        %8410 = vmatpush1.bf16.msra.mxu0 0
        %8411 = vmatprep.subr.bf16.mxu0 0
        %8412 = vmatpush1.bf16.msra.mxu0 0
        %8413 = vmatprep.subr.bf16.mxu0 0
        %8414 = vmatpush1.bf16.msra.mxu0 0
        %8415 = vmatprep.subr.bf16.mxu0 0
        %8416 = vmatpush1.bf16.msra.mxu0 0
        %8417 = vmatprep.subr.bf16.mxu0 0
        %8418 = vmatpush1.bf16.msra.mxu0 0
        %8419 = vmatprep.subr.bf16.mxu0 0
        %8420 = vmatpush1.bf16.msra.mxu0 0
        %8421 = vmatprep.subr.bf16.mxu0 0
        %8422 = vmatpush1.bf16.msra.mxu0 0
        %8423 = vmatprep.mubr.bf16.mxu0 0
        %8424 = vmatmul.mubr.bf16.gmra.mrb[0].mxu0 %v8389
        %v8425 = vpop.f32.mrb[0].mxu0
        %v8426 = vadd.f32 0.0, %v8425
        %v8427 = vpop.f32.mrb[0].mxu0
        %v8428 = vpop.f32.mrb[0].mxu0
        %v8429 = vpop.f32.mrb[0].mxu0
        %8430 = vdwg.mxu0
        %v8431 = vadd.f32 %v8376, %v8426
        %v8432 = vld [vmem:[#allocation5 + $0x7] sm:$0x1]
        %s8433 = scalar_lea.vmem %s7, 56
        %v8434 = vld [vmem:[%s8433] sm:$0xf]
        %v8435 = vld [vmem:[%s8433 + $0x4] sm:$0xf]
        %v8436 = vpack.c.bf16 %v8432, %v8432
        %v8439 = vunpack.c.l.b16 %v8434
        %v8440 = vunpack.c.l.b16 %v8435
        %v8441 = vpack.c.b16 %v8440, %v8439
        %v8444 = vsel %vm7818, %v8436, 0
        %8446 = vmatprep.subr.bf16.mxu0 0
        %8447 = vmatpush1.bf16.msra.mxu0 %v8441
        %8448 = vmatprep.subr.bf16.mxu0 0
        %8449 = vmatpush1.bf16.msra.mxu0 0
        %8450 = vmatprep.subr.bf16.mxu0 0
        %8451 = vmatpush1.bf16.msra.mxu0 0
        %8452 = vmatprep.subr.bf16.mxu0 0
        %8453 = vmatpush1.bf16.msra.mxu0 0
        %8454 = vmatprep.subr.bf16.mxu0 0
        %8455 = vmatpush1.bf16.msra.mxu0 0
        %8456 = vmatprep.subr.bf16.mxu0 0
        %8457 = vmatpush1.bf16.msra.mxu0 0
        %8458 = vmatprep.subr.bf16.mxu0 0
        %8459 = vmatpush1.bf16.msra.mxu0 0
        %8460 = vmatprep.subr.bf16.mxu0 0
        %8461 = vmatpush1.bf16.msra.mxu0 0
        %8462 = vmatprep.subr.bf16.mxu0 0
        %8463 = vmatpush1.bf16.msra.mxu0 0
        %8464 = vmatprep.subr.bf16.mxu0 0
        %8465 = vmatpush1.bf16.msra.mxu0 0
        %8466 = vmatprep.subr.bf16.mxu0 0
        %8467 = vmatpush1.bf16.msra.mxu0 0
        %8468 = vmatprep.subr.bf16.mxu0 0
        %8469 = vmatpush1.bf16.msra.mxu0 0
        %8470 = vmatprep.subr.bf16.mxu0 0
        %8471 = vmatpush1.bf16.msra.mxu0 0
        %8472 = vmatprep.subr.bf16.mxu0 0
        %8473 = vmatpush1.bf16.msra.mxu0 0
        %8474 = vmatprep.subr.bf16.mxu0 0
        %8475 = vmatpush1.bf16.msra.mxu0 0
        %8476 = vmatprep.subr.bf16.mxu0 0
        %8477 = vmatpush1.bf16.msra.mxu0 0
        %8478 = vmatprep.mubr.bf16.mxu0 0
        %8479 = vmatmul.mubr.bf16.gmra.mrb[0].mxu0 %v8444
        %v8480 = vpop.f32.mrb[0].mxu0
        %v8481 = vadd.f32 0.0, %v8480
        %v8482 = vpop.f32.mrb[0].mxu0
        %v8483 = vpop.f32.mrb[0].mxu0
        %v8484 = vpop.f32.mrb[0].mxu0
        %8485 = vdwg.mxu0
        %v8486 = vadd.f32 %v8431, %v8481
        %v8487 = vld [vmem:[#allocation5 + $0x8] sm:$0x1]
        %s8488 = scalar_lea.vmem %s7, 64
        %v8489 = vld [vmem:[%s8488] sm:$0xf]
        %v8490 = vld [vmem:[%s8488 + $0x4] sm:$0xf]
        %v8491 = vpack.c.bf16 %v8487, %v8487
        %v8494 = vunpack.c.l.b16 %v8489
        %v8495 = vunpack.c.l.b16 %v8490
        %v8496 = vpack.c.b16 %v8495, %v8494
        %v8499 = vsel %vm7818, %v8491, 0
        %8501 = vmatprep.subr.bf16.mxu0 0
        %8502 = vmatpush1.bf16.msra.mxu0 %v8496
        %8503 = vmatprep.subr.bf16.mxu0 0
        %8504 = vmatpush1.bf16.msra.mxu0 0
        %8505 = vmatprep.subr.bf16.mxu0 0
        %8506 = vmatpush1.bf16.msra.mxu0 0
        %8507 = vmatprep.subr.bf16.mxu0 0
        %8508 = vmatpush1.bf16.msra.mxu0 0
        %8509 = vmatprep.subr.bf16.mxu0 0
        %8510 = vmatpush1.bf16.msra.mxu0 0
        %8511 = vmatprep.subr.bf16.mxu0 0
        %8512 = vmatpush1.bf16.msra.mxu0 0
        %8513 = vmatprep.subr.bf16.mxu0 0
        %8514 = vmatpush1.bf16.msra.mxu0 0
        %8515 = vmatprep.subr.bf16.mxu0 0
        %8516 = vmatpush1.bf16.msra.mxu0 0
        %8517 = vmatprep.subr.bf16.mxu0 0
        %8518 = vmatpush1.bf16.msra.mxu0 0
        %8519 = vmatprep.subr.bf16.mxu0 0
        %8520 = vmatpush1.bf16.msra.mxu0 0
        %8521 = vmatprep.subr.bf16.mxu0 0
        %8522 = vmatpush1.bf16.msra.mxu0 0
        %8523 = vmatprep.subr.bf16.mxu0 0
        %8524 = vmatpush1.bf16.msra.mxu0 0
        %8525 = vmatprep.subr.bf16.mxu0 0
        %8526 = vmatpush1.bf16.msra.mxu0 0
        %8527 = vmatprep.subr.bf16.mxu0 0
        %8528 = vmatpush1.bf16.msra.mxu0 0
        %8529 = vmatprep.subr.bf16.mxu0 0
        %8530 = vmatpush1.bf16.msra.mxu0 0
        %8531 = vmatprep.subr.bf16.mxu0 0
        %8532 = vmatpush1.bf16.msra.mxu0 0
        %8533 = vmatprep.mubr.bf16.mxu0 0
        %8534 = vmatmul.mubr.bf16.gmra.mrb[0].mxu0 %v8499
        %v8535 = vpop.f32.mrb[0].mxu0
        %v8536 = vadd.f32 0.0, %v8535
        %v8537 = vpop.f32.mrb[0].mxu0
        %v8538 = vpop.f32.mrb[0].mxu0
        %v8539 = vpop.f32.mrb[0].mxu0
        %8540 = vdwg.mxu0
        %v8541 = vadd.f32 %v8486, %v8536
        %v8542 = vld [vmem:[#allocation5 + $0x9] sm:$0x1]
        %s8543 = scalar_lea.vmem %s7, 72
        %v8544 = vld [vmem:[%s8543] sm:$0xf]
        %v8545 = vld [vmem:[%s8543 + $0x4] sm:$0xf]
        %v8546 = vpack.c.bf16 %v8542, %v8542
        %v8549 = vunpack.c.l.b16 %v8544
        %v8550 = vunpack.c.l.b16 %v8545
        %v8551 = vpack.c.b16 %v8550, %v8549
        %v8554 = vsel %vm7818, %v8546, 0
        %8556 = vmatprep.subr.bf16.mxu0 0
        %8557 = vmatpush1.bf16.msra.mxu0 %v8551
        %8558 = vmatprep.subr.bf16.mxu0 0
        %8559 = vmatpush1.bf16.msra.mxu0 0
        %8560 = vmatprep.subr.bf16.mxu0 0
        %8561 = vmatpush1.bf16.msra.mxu0 0
        %8562 = vmatprep.subr.bf16.mxu0 0
        %8563 = vmatpush1.bf16.msra.mxu0 0
        %8564 = vmatprep.subr.bf16.mxu0 0
        %8565 = vmatpush1.bf16.msra.mxu0 0
        %8566 = vmatprep.subr.bf16.mxu0 0
        %8567 = vmatpush1.bf16.msra.mxu0 0
        %8568 = vmatprep.subr.bf16.mxu0 0
        %8569 = vmatpush1.bf16.msra.mxu0 0
        %8570 = vmatprep.subr.bf16.mxu0 0
        %8571 = vmatpush1.bf16.msra.mxu0 0
        %8572 = vmatprep.subr.bf16.mxu0 0
        %8573 = vmatpush1.bf16.msra.mxu0 0
        %8574 = vmatprep.subr.bf16.mxu0 0
        %8575 = vmatpush1.bf16.msra.mxu0 0
        %8576 = vmatprep.subr.bf16.mxu0 0
        %8577 = vmatpush1.bf16.msra.mxu0 0
        %8578 = vmatprep.subr.bf16.mxu0 0
        %8579 = vmatpush1.bf16.msra.mxu0 0
        %8580 = vmatprep.subr.bf16.mxu0 0
        %8581 = vmatpush1.bf16.msra.mxu0 0
        %8582 = vmatprep.subr.bf16.mxu0 0
        %8583 = vmatpush1.bf16.msra.mxu0 0
        %8584 = vmatprep.subr.bf16.mxu0 0
        %8585 = vmatpush1.bf16.msra.mxu0 0
        %8586 = vmatprep.subr.bf16.mxu0 0
        %8587 = vmatpush1.bf16.msra.mxu0 0
        %8588 = vmatprep.mubr.bf16.mxu0 0
        %8589 = vmatmul.mubr.bf16.gmra.mrb[0].mxu0 %v8554
        %v8590 = vpop.f32.mrb[0].mxu0
        %v8591 = vadd.f32 0.0, %v8590
        %v8592 = vpop.f32.mrb[0].mxu0
        %v8593 = vpop.f32.mrb[0].mxu0
        %v8594 = vpop.f32.mrb[0].mxu0
        %8595 = vdwg.mxu0
        %v8596 = vadd.f32 %v8541, %v8591
        %v8597 = vld [vmem:[#allocation5 + $0xa] sm:$0x1]
        %s8598 = scalar_lea.vmem %s7, 80
        %v8599 = vld [vmem:[%s8598] sm:$0xf]
        %v8600 = vld [vmem:[%s8598 + $0x4] sm:$0xf]
        %v8601 = vpack.c.bf16 %v8597, %v8597
        %v8604 = vunpack.c.l.b16 %v8599
        %v8605 = vunpack.c.l.b16 %v8600
        %v8606 = vpack.c.b16 %v8605, %v8604
        %v8609 = vsel %vm7818, %v8601, 0
        %8611 = vmatprep.subr.bf16.mxu0 0
        %8612 = vmatpush1.bf16.msra.mxu0 %v8606
        %8613 = vmatprep.subr.bf16.mxu0 0
        %8614 = vmatpush1.bf16.msra.mxu0 0
        %8615 = vmatprep.subr.bf16.mxu0 0
        %8616 = vmatpush1.bf16.msra.mxu0 0
        %8617 = vmatprep.subr.bf16.mxu0 0
        %8618 = vmatpush1.bf16.msra.mxu0 0
        %8619 = vmatprep.subr.bf16.mxu0 0
        %8620 = vmatpush1.bf16.msra.mxu0 0
        %8621 = vmatprep.subr.bf16.mxu0 0
        %8622 = vmatpush1.bf16.msra.mxu0 0
        %8623 = vmatprep.subr.bf16.mxu0 0
        %8624 = vmatpush1.bf16.msra.mxu0 0
        %8625 = vmatprep.subr.bf16.mxu0 0
        %8626 = vmatpush1.bf16.msra.mxu0 0
        %8627 = vmatprep.subr.bf16.mxu0 0
        %8628 = vmatpush1.bf16.msra.mxu0 0
        %8629 = vmatprep.subr.bf16.mxu0 0
        %8630 = vmatpush1.bf16.msra.mxu0 0
        %8631 = vmatprep.subr.bf16.mxu0 0
        %8632 = vmatpush1.bf16.msra.mxu0 0
        %8633 = vmatprep.subr.bf16.mxu0 0
        %8634 = vmatpush1.bf16.msra.mxu0 0
        %8635 = vmatprep.subr.bf16.mxu0 0
        %8636 = vmatpush1.bf16.msra.mxu0 0
        %8637 = vmatprep.subr.bf16.mxu0 0
        %8638 = vmatpush1.bf16.msra.mxu0 0
        %8639 = vmatprep.subr.bf16.mxu0 0
        %8640 = vmatpush1.bf16.msra.mxu0 0
        %8641 = vmatprep.subr.bf16.mxu0 0
        %8642 = vmatpush1.bf16.msra.mxu0 0
        %8643 = vmatprep.mubr.bf16.mxu0 0
        %8644 = vmatmul.mubr.bf16.gmra.mrb[0].mxu0 %v8609
        %v8645 = vpop.f32.mrb[0].mxu0
        %v8646 = vadd.f32 0.0, %v8645
        %v8647 = vpop.f32.mrb[0].mxu0
        %v8648 = vpop.f32.mrb[0].mxu0
        %v8649 = vpop.f32.mrb[0].mxu0
        %8650 = vdwg.mxu0
        %v8651 = vadd.f32 %v8596, %v8646
        %v8652 = vld [vmem:[#allocation5 + $0xb] sm:$0x1]
        %s8653 = scalar_lea.vmem %s7, 88
        %v8654 = vld [vmem:[%s8653] sm:$0xf]
        %v8655 = vld [vmem:[%s8653 + $0x4] sm:$0xf]
        %v8656 = vpack.c.bf16 %v8652, %v8652
        %v8659 = vunpack.c.l.b16 %v8654
        %v8660 = vunpack.c.l.b16 %v8655
        %v8661 = vpack.c.b16 %v8660, %v8659
        %v8664 = vsel %vm7818, %v8656, 0
        %8666 = vmatprep.subr.bf16.mxu0 0
        %8667 = vmatpush1.bf16.msra.mxu0 %v8661
        %8668 = vmatprep.subr.bf16.mxu0 0
        %8669 = vmatpush1.bf16.msra.mxu0 0
        %8670 = vmatprep.subr.bf16.mxu0 0
        %8671 = vmatpush1.bf16.msra.mxu0 0
        %8672 = vmatprep.subr.bf16.mxu0 0
        %8673 = vmatpush1.bf16.msra.mxu0 0
        %8674 = vmatprep.subr.bf16.mxu0 0
        %8675 = vmatpush1.bf16.msra.mxu0 0
        %8676 = vmatprep.subr.bf16.mxu0 0
        %8677 = vmatpush1.bf16.msra.mxu0 0
        %8678 = vmatprep.subr.bf16.mxu0 0
        %8679 = vmatpush1.bf16.msra.mxu0 0
        %8680 = vmatprep.subr.bf16.mxu0 0
        %8681 = vmatpush1.bf16.msra.mxu0 0
        %8682 = vmatprep.subr.bf16.mxu0 0
        %8683 = vmatpush1.bf16.msra.mxu0 0
        %8684 = vmatprep.subr.bf16.mxu0 0
        %8685 = vmatpush1.bf16.msra.mxu0 0
        %8686 = vmatprep.subr.bf16.mxu0 0
        %8687 = vmatpush1.bf16.msra.mxu0 0
        %8688 = vmatprep.subr.bf16.mxu0 0
        %8689 = vmatpush1.bf16.msra.mxu0 0
        %8690 = vmatprep.subr.bf16.mxu0 0
        %8691 = vmatpush1.bf16.msra.mxu0 0
        %8692 = vmatprep.subr.bf16.mxu0 0
        %8693 = vmatpush1.bf16.msra.mxu0 0
        %8694 = vmatprep.subr.bf16.mxu0 0
        %8695 = vmatpush1.bf16.msra.mxu0 0
        %8696 = vmatprep.subr.bf16.mxu0 0
        %8697 = vmatpush1.bf16.msra.mxu0 0
        %8698 = vmatprep.mubr.bf16.mxu0 0
        %8699 = vmatmul.mubr.bf16.gmra.mrb[0].mxu0 %v8664
        %v8700 = vpop.f32.mrb[0].mxu0
        %v8701 = vadd.f32 0.0, %v8700
        %v8702 = vpop.f32.mrb[0].mxu0
        %v8703 = vpop.f32.mrb[0].mxu0
        %v8704 = vpop.f32.mrb[0].mxu0
        %8705 = vdwg.mxu0
        %v8706 = vadd.f32 %v8651, %v8701
        %v8707 = vld [vmem:[#allocation5 + $0xc] sm:$0x1]
        %s8708 = scalar_lea.vmem %s7, 96
        %v8709 = vld [vmem:[%s8708] sm:$0xf]
        %v8710 = vld [vmem:[%s8708 + $0x4] sm:$0xf]
        %v8711 = vpack.c.bf16 %v8707, %v8707
        %v8714 = vunpack.c.l.b16 %v8709
        %v8715 = vunpack.c.l.b16 %v8710
        %v8716 = vpack.c.b16 %v8715, %v8714
        %v8719 = vsel %vm7818, %v8711, 0
        %8721 = vmatprep.subr.bf16.mxu0 0
        %8722 = vmatpush1.bf16.msra.mxu0 %v8716
        %8723 = vmatprep.subr.bf16.mxu0 0
        %8724 = vmatpush1.bf16.msra.mxu0 0
        %8725 = vmatprep.subr.bf16.mxu0 0
        %8726 = vmatpush1.bf16.msra.mxu0 0
        %8727 = vmatprep.subr.bf16.mxu0 0
        %8728 = vmatpush1.bf16.msra.mxu0 0
        %8729 = vmatprep.subr.bf16.mxu0 0
        %8730 = vmatpush1.bf16.msra.mxu0 0
        %8731 = vmatprep.subr.bf16.mxu0 0
        %8732 = vmatpush1.bf16.msra.mxu0 0
        %8733 = vmatprep.subr.bf16.mxu0 0
        %8734 = vmatpush1.bf16.msra.mxu0 0
        %8735 = vmatprep.subr.bf16.mxu0 0
        %8736 = vmatpush1.bf16.msra.mxu0 0
        %8737 = vmatprep.subr.bf16.mxu0 0
        %8738 = vmatpush1.bf16.msra.mxu0 0
        %8739 = vmatprep.subr.bf16.mxu0 0
        %8740 = vmatpush1.bf16.msra.mxu0 0
        %8741 = vmatprep.subr.bf16.mxu0 0
        %8742 = vmatpush1.bf16.msra.mxu0 0
        %8743 = vmatprep.subr.bf16.mxu0 0
        %8744 = vmatpush1.bf16.msra.mxu0 0
        %8745 = vmatprep.subr.bf16.mxu0 0
        %8746 = vmatpush1.bf16.msra.mxu0 0
        %8747 = vmatprep.subr.bf16.mxu0 0
        %8748 = vmatpush1.bf16.msra.mxu0 0
        %8749 = vmatprep.subr.bf16.mxu0 0
        %8750 = vmatpush1.bf16.msra.mxu0 0
        %8751 = vmatprep.subr.bf16.mxu0 0
        %8752 = vmatpush1.bf16.msra.mxu0 0
        %8753 = vmatprep.mubr.bf16.mxu0 0
        %8754 = vmatmul.mubr.bf16.gmra.mrb[0].mxu0 %v8719
        %v8755 = vpop.f32.mrb[0].mxu0
        %v8756 = vadd.f32 0.0, %v8755
        %v8757 = vpop.f32.mrb[0].mxu0
        %v8758 = vpop.f32.mrb[0].mxu0
        %v8759 = vpop.f32.mrb[0].mxu0
        %8760 = vdwg.mxu0
        %v8761 = vadd.f32 %v8706, %v8756
        %v8762 = vld [vmem:[#allocation5 + $0xd] sm:$0x1]
        %s8763 = scalar_lea.vmem %s7, 104
        %v8764 = vld [vmem:[%s8763] sm:$0xf]
        %v8765 = vld [vmem:[%s8763 + $0x4] sm:$0xf]
        %v8766 = vpack.c.bf16 %v8762, %v8762
        %v8769 = vunpack.c.l.b16 %v8764
        %v8770 = vunpack.c.l.b16 %v8765
        %v8771 = vpack.c.b16 %v8770, %v8769
        %v8774 = vsel %vm7818, %v8766, 0
        %8776 = vmatprep.subr.bf16.mxu0 0
        %8777 = vmatpush1.bf16.msra.mxu0 %v8771
        %8778 = vmatprep.subr.bf16.mxu0 0
        %8779 = vmatpush1.bf16.msra.mxu0 0
        %8780 = vmatprep.subr.bf16.mxu0 0
        %8781 = vmatpush1.bf16.msra.mxu0 0
        %8782 = vmatprep.subr.bf16.mxu0 0
        %8783 = vmatpush1.bf16.msra.mxu0 0
        %8784 = vmatprep.subr.bf16.mxu0 0
        %8785 = vmatpush1.bf16.msra.mxu0 0
        %8786 = vmatprep.subr.bf16.mxu0 0
        %8787 = vmatpush1.bf16.msra.mxu0 0
        %8788 = vmatprep.subr.bf16.mxu0 0
        %8789 = vmatpush1.bf16.msra.mxu0 0
        %8790 = vmatprep.subr.bf16.mxu0 0
        %8791 = vmatpush1.bf16.msra.mxu0 0
        %8792 = vmatprep.subr.bf16.mxu0 0
        %8793 = vmatpush1.bf16.msra.mxu0 0
        %8794 = vmatprep.subr.bf16.mxu0 0
        %8795 = vmatpush1.bf16.msra.mxu0 0
        %8796 = vmatprep.subr.bf16.mxu0 0
        %8797 = vmatpush1.bf16.msra.mxu0 0
        %8798 = vmatprep.subr.bf16.mxu0 0
        %8799 = vmatpush1.bf16.msra.mxu0 0
        %8800 = vmatprep.subr.bf16.mxu0 0
        %8801 = vmatpush1.bf16.msra.mxu0 0
        %8802 = vmatprep.subr.bf16.mxu0 0
        %8803 = vmatpush1.bf16.msra.mxu0 0
        %8804 = vmatprep.subr.bf16.mxu0 0
        %8805 = vmatpush1.bf16.msra.mxu0 0
        %8806 = vmatprep.subr.bf16.mxu0 0
        %8807 = vmatpush1.bf16.msra.mxu0 0
        %8808 = vmatprep.mubr.bf16.mxu0 0
        %8809 = vmatmul.mubr.bf16.gmra.mrb[0].mxu0 %v8774
        %v8810 = vpop.f32.mrb[0].mxu0
        %v8811 = vadd.f32 0.0, %v8810
        %v8812 = vpop.f32.mrb[0].mxu0
        %v8813 = vpop.f32.mrb[0].mxu0
        %v8814 = vpop.f32.mrb[0].mxu0
        %8815 = vdwg.mxu0
        %v8816 = vadd.f32 %v8761, %v8811
        %v8817 = vld [vmem:[#allocation5 + $0xe] sm:$0x1]
        %s8818 = scalar_lea.vmem %s7, 112
        %v8819 = vld [vmem:[%s8818] sm:$0xf]
        %v8820 = vld [vmem:[%s8818 + $0x4] sm:$0xf]
        %v8821 = vpack.c.bf16 %v8817, %v8817
        %v8824 = vunpack.c.l.b16 %v8819
        %v8825 = vunpack.c.l.b16 %v8820
        %v8826 = vpack.c.b16 %v8825, %v8824
        %v8829 = vsel %vm7818, %v8821, 0
        %8831 = vmatprep.subr.bf16.mxu0 0
        %8832 = vmatpush1.bf16.msra.mxu0 %v8826
        %8833 = vmatprep.subr.bf16.mxu0 0
        %8834 = vmatpush1.bf16.msra.mxu0 0
        %8835 = vmatprep.subr.bf16.mxu0 0
        %8836 = vmatpush1.bf16.msra.mxu0 0
        %8837 = vmatprep.subr.bf16.mxu0 0
        %8838 = vmatpush1.bf16.msra.mxu0 0
        %8839 = vmatprep.subr.bf16.mxu0 0
        %8840 = vmatpush1.bf16.msra.mxu0 0
        %8841 = vmatprep.subr.bf16.mxu0 0
        %8842 = vmatpush1.bf16.msra.mxu0 0
        %8843 = vmatprep.subr.bf16.mxu0 0
        %8844 = vmatpush1.bf16.msra.mxu0 0
        %8845 = vmatprep.subr.bf16.mxu0 0
        %8846 = vmatpush1.bf16.msra.mxu0 0
        %8847 = vmatprep.subr.bf16.mxu0 0
        %8848 = vmatpush1.bf16.msra.mxu0 0
        %8849 = vmatprep.subr.bf16.mxu0 0
        %8850 = vmatpush1.bf16.msra.mxu0 0
        %8851 = vmatprep.subr.bf16.mxu0 0
        %8852 = vmatpush1.bf16.msra.mxu0 0
        %8853 = vmatprep.subr.bf16.mxu0 0
        %8854 = vmatpush1.bf16.msra.mxu0 0
        %8855 = vmatprep.subr.bf16.mxu0 0
        %8856 = vmatpush1.bf16.msra.mxu0 0
        %8857 = vmatprep.subr.bf16.mxu0 0
        %8858 = vmatpush1.bf16.msra.mxu0 0
        %8859 = vmatprep.subr.bf16.mxu0 0
        %8860 = vmatpush1.bf16.msra.mxu0 0
        %8861 = vmatprep.subr.bf16.mxu0 0
        %8862 = vmatpush1.bf16.msra.mxu0 0
        %8863 = vmatprep.mubr.bf16.mxu0 0
        %8864 = vmatmul.mubr.bf16.gmra.mrb[0].mxu0 %v8829
        %v8865 = vpop.f32.mrb[0].mxu0
        %v8866 = vadd.f32 0.0, %v8865
        %v8867 = vpop.f32.mrb[0].mxu0
        %v8868 = vpop.f32.mrb[0].mxu0
        %v8869 = vpop.f32.mrb[0].mxu0
        %8870 = vdwg.mxu0
        %v8871 = vadd.f32 %v8816, %v8866
        %v8872 = vld [vmem:[#allocation5 + $0xf] sm:$0x1]
        %s8873 = scalar_lea.vmem %s7, 120
        %v8874 = vld [vmem:[%s8873] sm:$0xf]
        %v8875 = vld [vmem:[%s8873 + $0x4] sm:$0xf]
        %v8876 = vpack.c.bf16 %v8872, %v8872
        %v8879 = vunpack.c.l.b16 %v8874
        %v8880 = vunpack.c.l.b16 %v8875
        %v8881 = vpack.c.b16 %v8880, %v8879
        %v8884 = vsel %vm7818, %v8876, 0
        %8886 = vmatprep.subr.bf16.mxu0 0
        %8887 = vmatpush1.bf16.msra.mxu0 %v8881
        %8888 = vmatprep.subr.bf16.mxu0 0
        %8889 = vmatpush1.bf16.msra.mxu0 0
        %8890 = vmatprep.subr.bf16.mxu0 0
        %8891 = vmatpush1.bf16.msra.mxu0 0
        %8892 = vmatprep.subr.bf16.mxu0 0
        %8893 = vmatpush1.bf16.msra.mxu0 0
        %8894 = vmatprep.subr.bf16.mxu0 0
        %8895 = vmatpush1.bf16.msra.mxu0 0
        %8896 = vmatprep.subr.bf16.mxu0 0
        %8897 = vmatpush1.bf16.msra.mxu0 0
        %8898 = vmatprep.subr.bf16.mxu0 0
        %8899 = vmatpush1.bf16.msra.mxu0 0
        %8900 = vmatprep.subr.bf16.mxu0 0
        %8901 = vmatpush1.bf16.msra.mxu0 0
        %8902 = vmatprep.subr.bf16.mxu0 0
        %8903 = vmatpush1.bf16.msra.mxu0 0
        %8904 = vmatprep.subr.bf16.mxu0 0
        %8905 = vmatpush1.bf16.msra.mxu0 0
        %8906 = vmatprep.subr.bf16.mxu0 0
        %8907 = vmatpush1.bf16.msra.mxu0 0
        %8908 = vmatprep.subr.bf16.mxu0 0
        %8909 = vmatpush1.bf16.msra.mxu0 0
        %8910 = vmatprep.subr.bf16.mxu0 0
        %8911 = vmatpush1.bf16.msra.mxu0 0
        %8912 = vmatprep.subr.bf16.mxu0 0
        %8913 = vmatpush1.bf16.msra.mxu0 0
        %8914 = vmatprep.subr.bf16.mxu0 0
        %8915 = vmatpush1.bf16.msra.mxu0 0
        %8916 = vmatprep.subr.bf16.mxu0 0
        %8917 = vmatpush1.bf16.msra.mxu0 0
        %8918 = vmatprep.mubr.bf16.mxu0 0
        %8919 = vmatmul.mubr.bf16.gmra.mrb[0].mxu0 %v8884
        %v8920 = vpop.f32.mrb[0].mxu0
        %v8921 = vadd.f32 0.0, %v8920
        %v8922 = vpop.f32.mrb[0].mxu0
        %v8923 = vpop.f32.mrb[0].mxu0
        %v8924 = vpop.f32.mrb[0].mxu0
        %8925 = vdwg.mxu0
        %v8926 = vadd.f32 %v8871, %v8921
        %v8927 = vld [vmem:[#allocation5 + $0x10] sm:$0x1]
        %s8928 = scalar_lea.vmem %s7, 128
        %v8929 = vld [vmem:[%s8928] sm:$0xf]
        %v8930 = vld [vmem:[%s8928 + $0x4] sm:$0xf]
        %v8931 = vpack.c.bf16 %v8927, %v8927
        %v8934 = vunpack.c.l.b16 %v8929
        %v8935 = vunpack.c.l.b16 %v8930
        %v8936 = vpack.c.b16 %v8935, %v8934
        %v8939 = vsel %vm7818, %v8931, 0
        %8941 = vmatprep.subr.bf16.mxu0 0
        %8942 = vmatpush1.bf16.msra.mxu0 %v8936
        %8943 = vmatprep.subr.bf16.mxu0 0
        %8944 = vmatpush1.bf16.msra.mxu0 0
        %8945 = vmatprep.subr.bf16.mxu0 0
        %8946 = vmatpush1.bf16.msra.mxu0 0
        %8947 = vmatprep.subr.bf16.mxu0 0
        %8948 = vmatpush1.bf16.msra.mxu0 0
        %8949 = vmatprep.subr.bf16.mxu0 0
        %8950 = vmatpush1.bf16.msra.mxu0 0
        %8951 = vmatprep.subr.bf16.mxu0 0
        %8952 = vmatpush1.bf16.msra.mxu0 0
        %8953 = vmatprep.subr.bf16.mxu0 0
        %8954 = vmatpush1.bf16.msra.mxu0 0
        %8955 = vmatprep.subr.bf16.mxu0 0
        %8956 = vmatpush1.bf16.msra.mxu0 0
        %8957 = vmatprep.subr.bf16.mxu0 0
        %8958 = vmatpush1.bf16.msra.mxu0 0
        %8959 = vmatprep.subr.bf16.mxu0 0
        %8960 = vmatpush1.bf16.msra.mxu0 0
        %8961 = vmatprep.subr.bf16.mxu0 0
        %8962 = vmatpush1.bf16.msra.mxu0 0
        %8963 = vmatprep.subr.bf16.mxu0 0
        %8964 = vmatpush1.bf16.msra.mxu0 0
        %8965 = vmatprep.subr.bf16.mxu0 0
        %8966 = vmatpush1.bf16.msra.mxu0 0
        %8967 = vmatprep.subr.bf16.mxu0 0
        %8968 = vmatpush1.bf16.msra.mxu0 0
        %8969 = vmatprep.subr.bf16.mxu0 0
        %8970 = vmatpush1.bf16.msra.mxu0 0
        %8971 = vmatprep.subr.bf16.mxu0 0
        %8972 = vmatpush1.bf16.msra.mxu0 0
        %8973 = vmatprep.mubr.bf16.mxu0 0
        %8974 = vmatmul.mubr.bf16.gmra.mrb[0].mxu0 %v8939
        %v8975 = vpop.f32.mrb[0].mxu0
        %v8976 = vadd.f32 0.0, %v8975
        %v8977 = vpop.f32.mrb[0].mxu0
        %v8978 = vpop.f32.mrb[0].mxu0
        %v8979 = vpop.f32.mrb[0].mxu0
        %8980 = vdwg.mxu0
        %v8981 = vadd.f32 %v8926, %v8976
        %v8982 = vld [vmem:[#allocation5 + $0x11] sm:$0x1]
        %s8983 = scalar_lea.vmem %s7, 136
        %v8984 = vld [vmem:[%s8983] sm:$0xf]
        %v8985 = vld [vmem:[%s8983 + $0x4] sm:$0xf]
        %v8986 = vpack.c.bf16 %v8982, %v8982
        %v8989 = vunpack.c.l.b16 %v8984
        %v8990 = vunpack.c.l.b16 %v8985
        %v8991 = vpack.c.b16 %v8990, %v8989
        %v8994 = vsel %vm7818, %v8986, 0
        %8996 = vmatprep.subr.bf16.mxu0 0
        %8997 = vmatpush1.bf16.msra.mxu0 %v8991
        %8998 = vmatprep.subr.bf16.mxu0 0
        %8999 = vmatpush1.bf16.msra.mxu0 0
        %9000 = vmatprep.subr.bf16.mxu0 0
        %9001 = vmatpush1.bf16.msra.mxu0 0
        %9002 = vmatprep.subr.bf16.mxu0 0
        %9003 = vmatpush1.bf16.msra.mxu0 0
        %9004 = vmatprep.subr.bf16.mxu0 0
        %9005 = vmatpush1.bf16.msra.mxu0 0
        %9006 = vmatprep.subr.bf16.mxu0 0
        %9007 = vmatpush1.bf16.msra.mxu0 0
        %9008 = vmatprep.subr.bf16.mxu0 0
        %9009 = vmatpush1.bf16.msra.mxu0 0
        %9010 = vmatprep.subr.bf16.mxu0 0
        %9011 = vmatpush1.bf16.msra.mxu0 0
        %9012 = vmatprep.subr.bf16.mxu0 0
        %9013 = vmatpush1.bf16.msra.mxu0 0
        %9014 = vmatprep.subr.bf16.mxu0 0
        %9015 = vmatpush1.bf16.msra.mxu0 0
        %9016 = vmatprep.subr.bf16.mxu0 0
        %9017 = vmatpush1.bf16.msra.mxu0 0
        %9018 = vmatprep.subr.bf16.mxu0 0
        %9019 = vmatpush1.bf16.msra.mxu0 0
        %9020 = vmatprep.subr.bf16.mxu0 0
        %9021 = vmatpush1.bf16.msra.mxu0 0
        %9022 = vmatprep.subr.bf16.mxu0 0
        %9023 = vmatpush1.bf16.msra.mxu0 0
        %9024 = vmatprep.subr.bf16.mxu0 0
        %9025 = vmatpush1.bf16.msra.mxu0 0
        %9026 = vmatprep.subr.bf16.mxu0 0
        %9027 = vmatpush1.bf16.msra.mxu0 0
        %9028 = vmatprep.mubr.bf16.mxu0 0
        %9029 = vmatmul.mubr.bf16.gmra.mrb[0].mxu0 %v8994
        %v9030 = vpop.f32.mrb[0].mxu0
        %v9031 = vadd.f32 0.0, %v9030
        %v9032 = vpop.f32.mrb[0].mxu0
        %v9033 = vpop.f32.mrb[0].mxu0
        %v9034 = vpop.f32.mrb[0].mxu0
        %9035 = vdwg.mxu0
        %v9036 = vadd.f32 %v8981, %v9031
        %v9037 = vld [vmem:[#allocation5 + $0x12] sm:$0x1]
        %s9038 = scalar_lea.vmem %s7, 144
        %v9039 = vld [vmem:[%s9038] sm:$0xf]
        %v9040 = vld [vmem:[%s9038 + $0x4] sm:$0xf]
        %v9041 = vpack.c.bf16 %v9037, %v9037
        %v9044 = vunpack.c.l.b16 %v9039
        %v9045 = vunpack.c.l.b16 %v9040
        %v9046 = vpack.c.b16 %v9045, %v9044
        %v9049 = vsel %vm7818, %v9041, 0
        %9051 = vmatprep.subr.bf16.mxu0 0
        %9052 = vmatpush1.bf16.msra.mxu0 %v9046
        %9053 = vmatprep.subr.bf16.mxu0 0
        %9054 = vmatpush1.bf16.msra.mxu0 0
        %9055 = vmatprep.subr.bf16.mxu0 0
        %9056 = vmatpush1.bf16.msra.mxu0 0
        %9057 = vmatprep.subr.bf16.mxu0 0
        %9058 = vmatpush1.bf16.msra.mxu0 0
        %9059 = vmatprep.subr.bf16.mxu0 0
        %9060 = vmatpush1.bf16.msra.mxu0 0
        %9061 = vmatprep.subr.bf16.mxu0 0
        %9062 = vmatpush1.bf16.msra.mxu0 0
        %9063 = vmatprep.subr.bf16.mxu0 0
        %9064 = vmatpush1.bf16.msra.mxu0 0
        %9065 = vmatprep.subr.bf16.mxu0 0
        %9066 = vmatpush1.bf16.msra.mxu0 0
        %9067 = vmatprep.subr.bf16.mxu0 0
        %9068 = vmatpush1.bf16.msra.mxu0 0
        %9069 = vmatprep.subr.bf16.mxu0 0
        %9070 = vmatpush1.bf16.msra.mxu0 0
        %9071 = vmatprep.subr.bf16.mxu0 0
        %9072 = vmatpush1.bf16.msra.mxu0 0
        %9073 = vmatprep.subr.bf16.mxu0 0
        %9074 = vmatpush1.bf16.msra.mxu0 0
        %9075 = vmatprep.subr.bf16.mxu0 0
        %9076 = vmatpush1.bf16.msra.mxu0 0
        %9077 = vmatprep.subr.bf16.mxu0 0
        %9078 = vmatpush1.bf16.msra.mxu0 0
        %9079 = vmatprep.subr.bf16.mxu0 0
        %9080 = vmatpush1.bf16.msra.mxu0 0
        %9081 = vmatprep.subr.bf16.mxu0 0
        %9082 = vmatpush1.bf16.msra.mxu0 0
        %9083 = vmatprep.mubr.bf16.mxu0 0
        %9084 = vmatmul.mubr.bf16.gmra.mrb[0].mxu0 %v9049
        %v9085 = vpop.f32.mrb[0].mxu0
        %v9086 = vadd.f32 0.0, %v9085
        %v9087 = vpop.f32.mrb[0].mxu0
        %v9088 = vpop.f32.mrb[0].mxu0
        %v9089 = vpop.f32.mrb[0].mxu0
        %9090 = vdwg.mxu0
        %v9091 = vadd.f32 %v9036, %v9086
        %v9092 = vld [vmem:[#allocation5 + $0x13] sm:$0x1]
        %s9093 = scalar_lea.vmem %s7, 152
        %v9094 = vld [vmem:[%s9093] sm:$0xf]
        %v9095 = vld [vmem:[%s9093 + $0x4] sm:$0xf]
        %v9096 = vpack.c.bf16 %v9092, %v9092
        %v9099 = vunpack.c.l.b16 %v9094
        %v9100 = vunpack.c.l.b16 %v9095
        %v9101 = vpack.c.b16 %v9100, %v9099
        %v9104 = vsel %vm7818, %v9096, 0
        %9106 = vmatprep.subr.bf16.mxu0 0
        %9107 = vmatpush1.bf16.msra.mxu0 %v9101
        %9108 = vmatprep.subr.bf16.mxu0 0
        %9109 = vmatpush1.bf16.msra.mxu0 0
        %9110 = vmatprep.subr.bf16.mxu0 0
        %9111 = vmatpush1.bf16.msra.mxu0 0
        %9112 = vmatprep.subr.bf16.mxu0 0
        %9113 = vmatpush1.bf16.msra.mxu0 0
        %9114 = vmatprep.subr.bf16.mxu0 0
        %9115 = vmatpush1.bf16.msra.mxu0 0
        %9116 = vmatprep.subr.bf16.mxu0 0
        %9117 = vmatpush1.bf16.msra.mxu0 0
        %9118 = vmatprep.subr.bf16.mxu0 0
        %9119 = vmatpush1.bf16.msra.mxu0 0
        %9120 = vmatprep.subr.bf16.mxu0 0
        %9121 = vmatpush1.bf16.msra.mxu0 0
        %9122 = vmatprep.subr.bf16.mxu0 0
        %9123 = vmatpush1.bf16.msra.mxu0 0
        %9124 = vmatprep.subr.bf16.mxu0 0
        %9125 = vmatpush1.bf16.msra.mxu0 0
        %9126 = vmatprep.subr.bf16.mxu0 0
        %9127 = vmatpush1.bf16.msra.mxu0 0
        %9128 = vmatprep.subr.bf16.mxu0 0
        %9129 = vmatpush1.bf16.msra.mxu0 0
        %9130 = vmatprep.subr.bf16.mxu0 0
        %9131 = vmatpush1.bf16.msra.mxu0 0
        %9132 = vmatprep.subr.bf16.mxu0 0
        %9133 = vmatpush1.bf16.msra.mxu0 0
        %9134 = vmatprep.subr.bf16.mxu0 0
        %9135 = vmatpush1.bf16.msra.mxu0 0
        %9136 = vmatprep.subr.bf16.mxu0 0
        %9137 = vmatpush1.bf16.msra.mxu0 0
        %9138 = vmatprep.mubr.bf16.mxu0 0
        %9139 = vmatmul.mubr.bf16.gmra.mrb[0].mxu0 %v9104
        %v9140 = vpop.f32.mrb[0].mxu0
        %v9141 = vadd.f32 0.0, %v9140
        %v9142 = vpop.f32.mrb[0].mxu0
        %v9143 = vpop.f32.mrb[0].mxu0
        %v9144 = vpop.f32.mrb[0].mxu0
        %9145 = vdwg.mxu0
        %v9146 = vadd.f32 %v9091, %v9141
        %v9147 = vld [vmem:[#allocation5 + $0x14] sm:$0x1]
        %s9148 = scalar_lea.vmem %s7, 160
        %v9149 = vld [vmem:[%s9148] sm:$0xf]
        %v9150 = vld [vmem:[%s9148 + $0x4] sm:$0xf]
        %v9151 = vpack.c.bf16 %v9147, %v9147
        %v9154 = vunpack.c.l.b16 %v9149
        %v9155 = vunpack.c.l.b16 %v9150
        %v9156 = vpack.c.b16 %v9155, %v9154
        %v9159 = vsel %vm7818, %v9151, 0
        %9161 = vmatprep.subr.bf16.mxu0 0
        %9162 = vmatpush1.bf16.msra.mxu0 %v9156
        %9163 = vmatprep.subr.bf16.mxu0 0
        %9164 = vmatpush1.bf16.msra.mxu0 0
        %9165 = vmatprep.subr.bf16.mxu0 0
        %9166 = vmatpush1.bf16.msra.mxu0 0
        %9167 = vmatprep.subr.bf16.mxu0 0
        %9168 = vmatpush1.bf16.msra.mxu0 0
        %9169 = vmatprep.subr.bf16.mxu0 0
        %9170 = vmatpush1.bf16.msra.mxu0 0
        %9171 = vmatprep.subr.bf16.mxu0 0
        %9172 = vmatpush1.bf16.msra.mxu0 0
        %9173 = vmatprep.subr.bf16.mxu0 0
        %9174 = vmatpush1.bf16.msra.mxu0 0
        %9175 = vmatprep.subr.bf16.mxu0 0
        %9176 = vmatpush1.bf16.msra.mxu0 0
        %9177 = vmatprep.subr.bf16.mxu0 0
        %9178 = vmatpush1.bf16.msra.mxu0 0
        %9179 = vmatprep.subr.bf16.mxu0 0
        %9180 = vmatpush1.bf16.msra.mxu0 0
        %9181 = vmatprep.subr.bf16.mxu0 0
        %9182 = vmatpush1.bf16.msra.mxu0 0
        %9183 = vmatprep.subr.bf16.mxu0 0
        %9184 = vmatpush1.bf16.msra.mxu0 0
        %9185 = vmatprep.subr.bf16.mxu0 0
        %9186 = vmatpush1.bf16.msra.mxu0 0
        %9187 = vmatprep.subr.bf16.mxu0 0
        %9188 = vmatpush1.bf16.msra.mxu0 0
        %9189 = vmatprep.subr.bf16.mxu0 0
        %9190 = vmatpush1.bf16.msra.mxu0 0
        %9191 = vmatprep.subr.bf16.mxu0 0
        %9192 = vmatpush1.bf16.msra.mxu0 0
        %9193 = vmatprep.mubr.bf16.mxu0 0
        %9194 = vmatmul.mubr.bf16.gmra.mrb[0].mxu0 %v9159
        %v9195 = vpop.f32.mrb[0].mxu0
        %v9196 = vadd.f32 0.0, %v9195
        %v9197 = vpop.f32.mrb[0].mxu0
        %v9198 = vpop.f32.mrb[0].mxu0
        %v9199 = vpop.f32.mrb[0].mxu0
        %9200 = vdwg.mxu0
        %v9201 = vadd.f32 %v9146, %v9196
        %v9202 = vld [vmem:[#allocation5 + $0x15] sm:$0x1]
        %s9203 = scalar_lea.vmem %s7, 168
        %v9204 = vld [vmem:[%s9203] sm:$0xf]
        %v9205 = vld [vmem:[%s9203 + $0x4] sm:$0xf]
        %v9206 = vpack.c.bf16 %v9202, %v9202
        %v9209 = vunpack.c.l.b16 %v9204
        %v9210 = vunpack.c.l.b16 %v9205
        %v9211 = vpack.c.b16 %v9210, %v9209
        %v9214 = vsel %vm7818, %v9206, 0
        %9216 = vmatprep.subr.bf16.mxu0 0
        %9217 = vmatpush1.bf16.msra.mxu0 %v9211
        %9218 = vmatprep.subr.bf16.mxu0 0
        %9219 = vmatpush1.bf16.msra.mxu0 0
        %9220 = vmatprep.subr.bf16.mxu0 0
        %9221 = vmatpush1.bf16.msra.mxu0 0
        %9222 = vmatprep.subr.bf16.mxu0 0
        %9223 = vmatpush1.bf16.msra.mxu0 0
        %9224 = vmatprep.subr.bf16.mxu0 0
        %9225 = vmatpush1.bf16.msra.mxu0 0
        %9226 = vmatprep.subr.bf16.mxu0 0
        %9227 = vmatpush1.bf16.msra.mxu0 0
        %9228 = vmatprep.subr.bf16.mxu0 0
        %9229 = vmatpush1.bf16.msra.mxu0 0
        %9230 = vmatprep.subr.bf16.mxu0 0
        %9231 = vmatpush1.bf16.msra.mxu0 0
        %9232 = vmatprep.subr.bf16.mxu0 0
        %9233 = vmatpush1.bf16.msra.mxu0 0
        %9234 = vmatprep.subr.bf16.mxu0 0
        %9235 = vmatpush1.bf16.msra.mxu0 0
        %9236 = vmatprep.subr.bf16.mxu0 0
        %9237 = vmatpush1.bf16.msra.mxu0 0
        %9238 = vmatprep.subr.bf16.mxu0 0
        %9239 = vmatpush1.bf16.msra.mxu0 0
        %9240 = vmatprep.subr.bf16.mxu0 0
        %9241 = vmatpush1.bf16.msra.mxu0 0
        %9242 = vmatprep.subr.bf16.mxu0 0
        %9243 = vmatpush1.bf16.msra.mxu0 0
        %9244 = vmatprep.subr.bf16.mxu0 0
        %9245 = vmatpush1.bf16.msra.mxu0 0
        %9246 = vmatprep.subr.bf16.mxu0 0
        %9247 = vmatpush1.bf16.msra.mxu0 0
        %9248 = vmatprep.mubr.bf16.mxu0 0
        %9249 = vmatmul.mubr.bf16.gmra.mrb[0].mxu0 %v9214
        %v9250 = vpop.f32.mrb[0].mxu0
        %v9251 = vadd.f32 0.0, %v9250
        %v9252 = vpop.f32.mrb[0].mxu0
        %v9253 = vpop.f32.mrb[0].mxu0
        %v9254 = vpop.f32.mrb[0].mxu0
        %9255 = vdwg.mxu0
        %v9256 = vadd.f32 %v9201, %v9251
        %v9257 = vld [vmem:[#allocation5 + $0x16] sm:$0x1]
        %s9258 = scalar_lea.vmem %s7, 176
        %v9259 = vld [vmem:[%s9258] sm:$0xf]
        %v9260 = vld [vmem:[%s9258 + $0x4] sm:$0xf]
        %v9261 = vpack.c.bf16 %v9257, %v9257
        %v9264 = vunpack.c.l.b16 %v9259
        %v9265 = vunpack.c.l.b16 %v9260
        %v9266 = vpack.c.b16 %v9265, %v9264
        %v9269 = vsel %vm7818, %v9261, 0
        %9271 = vmatprep.subr.bf16.mxu0 0
        %9272 = vmatpush1.bf16.msra.mxu0 %v9266
        %9273 = vmatprep.subr.bf16.mxu0 0
        %9274 = vmatpush1.bf16.msra.mxu0 0
        %9275 = vmatprep.subr.bf16.mxu0 0
        %9276 = vmatpush1.bf16.msra.mxu0 0
        %9277 = vmatprep.subr.bf16.mxu0 0
        %9278 = vmatpush1.bf16.msra.mxu0 0
        %9279 = vmatprep.subr.bf16.mxu0 0
        %9280 = vmatpush1.bf16.msra.mxu0 0
        %9281 = vmatprep.subr.bf16.mxu0 0
        %9282 = vmatpush1.bf16.msra.mxu0 0
        %9283 = vmatprep.subr.bf16.mxu0 0
        %9284 = vmatpush1.bf16.msra.mxu0 0
        %9285 = vmatprep.subr.bf16.mxu0 0
        %9286 = vmatpush1.bf16.msra.mxu0 0
        %9287 = vmatprep.subr.bf16.mxu0 0
        %9288 = vmatpush1.bf16.msra.mxu0 0
        %9289 = vmatprep.subr.bf16.mxu0 0
        %9290 = vmatpush1.bf16.msra.mxu0 0
        %9291 = vmatprep.subr.bf16.mxu0 0
        %9292 = vmatpush1.bf16.msra.mxu0 0
        %9293 = vmatprep.subr.bf16.mxu0 0
        %9294 = vmatpush1.bf16.msra.mxu0 0
        %9295 = vmatprep.subr.bf16.mxu0 0
        %9296 = vmatpush1.bf16.msra.mxu0 0
        %9297 = vmatprep.subr.bf16.mxu0 0
        %9298 = vmatpush1.bf16.msra.mxu0 0
        %9299 = vmatprep.subr.bf16.mxu0 0
        %9300 = vmatpush1.bf16.msra.mxu0 0
        %9301 = vmatprep.subr.bf16.mxu0 0
        %9302 = vmatpush1.bf16.msra.mxu0 0
        %9303 = vmatprep.mubr.bf16.mxu0 0
        %9304 = vmatmul.mubr.bf16.gmra.mrb[0].mxu0 %v9269
        %v9305 = vpop.f32.mrb[0].mxu0
        %v9306 = vadd.f32 0.0, %v9305
        %v9307 = vpop.f32.mrb[0].mxu0
        %v9308 = vpop.f32.mrb[0].mxu0
        %v9309 = vpop.f32.mrb[0].mxu0
        %9310 = vdwg.mxu0
        %v9311 = vadd.f32 %v9256, %v9306
        %v9312 = vld [vmem:[#allocation5 + $0x17] sm:$0x1]
        %s9313 = scalar_lea.vmem %s7, 184
        %v9314 = vld [vmem:[%s9313] sm:$0xf]
        %v9315 = vld [vmem:[%s9313 + $0x4] sm:$0xf]
        %v9316 = vpack.c.bf16 %v9312, %v9312
        %v9319 = vunpack.c.l.b16 %v9314
        %v9320 = vunpack.c.l.b16 %v9315
        %v9321 = vpack.c.b16 %v9320, %v9319
        %v9324 = vsel %vm7818, %v9316, 0
        %9326 = vmatprep.subr.bf16.mxu0 0
        %9327 = vmatpush1.bf16.msra.mxu0 %v9321
        %9328 = vmatprep.subr.bf16.mxu0 0
        %9329 = vmatpush1.bf16.msra.mxu0 0
        %9330 = vmatprep.subr.bf16.mxu0 0
        %9331 = vmatpush1.bf16.msra.mxu0 0
        %9332 = vmatprep.subr.bf16.mxu0 0
        %9333 = vmatpush1.bf16.msra.mxu0 0
        %9334 = vmatprep.subr.bf16.mxu0 0
        %9335 = vmatpush1.bf16.msra.mxu0 0
        %9336 = vmatprep.subr.bf16.mxu0 0
        %9337 = vmatpush1.bf16.msra.mxu0 0
        %9338 = vmatprep.subr.bf16.mxu0 0
        %9339 = vmatpush1.bf16.msra.mxu0 0
        %9340 = vmatprep.subr.bf16.mxu0 0
        %9341 = vmatpush1.bf16.msra.mxu0 0
        %9342 = vmatprep.subr.bf16.mxu0 0
        %9343 = vmatpush1.bf16.msra.mxu0 0
        %9344 = vmatprep.subr.bf16.mxu0 0
        %9345 = vmatpush1.bf16.msra.mxu0 0
        %9346 = vmatprep.subr.bf16.mxu0 0
        %9347 = vmatpush1.bf16.msra.mxu0 0
        %9348 = vmatprep.subr.bf16.mxu0 0
        %9349 = vmatpush1.bf16.msra.mxu0 0
        %9350 = vmatprep.subr.bf16.mxu0 0
        %9351 = vmatpush1.bf16.msra.mxu0 0
        %9352 = vmatprep.subr.bf16.mxu0 0
        %9353 = vmatpush1.bf16.msra.mxu0 0
        %9354 = vmatprep.subr.bf16.mxu0 0
        %9355 = vmatpush1.bf16.msra.mxu0 0
        %9356 = vmatprep.subr.bf16.mxu0 0
        %9357 = vmatpush1.bf16.msra.mxu0 0
        %9358 = vmatprep.mubr.bf16.mxu0 0
        %9359 = vmatmul.mubr.bf16.gmra.mrb[0].mxu0 %v9324
        %v9360 = vpop.f32.mrb[0].mxu0
        %v9361 = vadd.f32 0.0, %v9360
        %v9362 = vpop.f32.mrb[0].mxu0
        %v9363 = vpop.f32.mrb[0].mxu0
        %v9364 = vpop.f32.mrb[0].mxu0
        %9365 = vdwg.mxu0
        %v9366 = vadd.f32 %v9311, %v9361
        %v9367 = vld [vmem:[#allocation5 + $0x18] sm:$0x1]
        %s9368 = scalar_lea.vmem %s7, 192
        %v9369 = vld [vmem:[%s9368] sm:$0xf]
        %v9370 = vld [vmem:[%s9368 + $0x4] sm:$0xf]
        %v9371 = vpack.c.bf16 %v9367, %v9367
        %v9374 = vunpack.c.l.b16 %v9369
        %v9375 = vunpack.c.l.b16 %v9370
        %v9376 = vpack.c.b16 %v9375, %v9374
        %v9379 = vsel %vm7818, %v9371, 0
        %9381 = vmatprep.subr.bf16.mxu0 0
        %9382 = vmatpush1.bf16.msra.mxu0 %v9376
        %9383 = vmatprep.subr.bf16.mxu0 0
        %9384 = vmatpush1.bf16.msra.mxu0 0
        %9385 = vmatprep.subr.bf16.mxu0 0
        %9386 = vmatpush1.bf16.msra.mxu0 0
        %9387 = vmatprep.subr.bf16.mxu0 0
        %9388 = vmatpush1.bf16.msra.mxu0 0
        %9389 = vmatprep.subr.bf16.mxu0 0
        %9390 = vmatpush1.bf16.msra.mxu0 0
        %9391 = vmatprep.subr.bf16.mxu0 0
        %9392 = vmatpush1.bf16.msra.mxu0 0
        %9393 = vmatprep.subr.bf16.mxu0 0
        %9394 = vmatpush1.bf16.msra.mxu0 0
        %9395 = vmatprep.subr.bf16.mxu0 0
        %9396 = vmatpush1.bf16.msra.mxu0 0
        %9397 = vmatprep.subr.bf16.mxu0 0
        %9398 = vmatpush1.bf16.msra.mxu0 0
        %9399 = vmatprep.subr.bf16.mxu0 0
        %9400 = vmatpush1.bf16.msra.mxu0 0
        %9401 = vmatprep.subr.bf16.mxu0 0
        %9402 = vmatpush1.bf16.msra.mxu0 0
        %9403 = vmatprep.subr.bf16.mxu0 0
        %9404 = vmatpush1.bf16.msra.mxu0 0
        %9405 = vmatprep.subr.bf16.mxu0 0
        %9406 = vmatpush1.bf16.msra.mxu0 0
        %9407 = vmatprep.subr.bf16.mxu0 0
        %9408 = vmatpush1.bf16.msra.mxu0 0
        %9409 = vmatprep.subr.bf16.mxu0 0
        %9410 = vmatpush1.bf16.msra.mxu0 0
        %9411 = vmatprep.subr.bf16.mxu0 0
        %9412 = vmatpush1.bf16.msra.mxu0 0
        %9413 = vmatprep.mubr.bf16.mxu0 0
        %9414 = vmatmul.mubr.bf16.gmra.mrb[0].mxu0 %v9379
        %v9415 = vpop.f32.mrb[0].mxu0
        %v9416 = vadd.f32 0.0, %v9415
        %v9417 = vpop.f32.mrb[0].mxu0
        %v9418 = vpop.f32.mrb[0].mxu0
        %v9419 = vpop.f32.mrb[0].mxu0
        %9420 = vdwg.mxu0
        %v9421 = vadd.f32 %v9366, %v9416
        %v9422 = vld [vmem:[%s8] sm:$0x1]
        %v9423 = vadd.f32 %v9421, %v9422
        %v9424 = vmax.f32 %v9423, 0.0
        %v9425 = vld [vmem:[%s9] sm:$0xf]
        %v9426 = vld [vmem:[%s9 + $0x4] sm:$0xf]
        %v9427 = vld [vmem:[%s9 + $0x8] sm:$0xf]
        %v9428 = vld [vmem:[%s9 + $0xc] sm:$0xf]
        %v9429 = vld [vmem:[%s9 + $0x10] sm:$0xf]
        %v9430 = vld [vmem:[%s9 + $0x14] sm:$0xf]
        %v9431 = vld [vmem:[%s9 + $0x18] sm:$0xf]
        %v9432 = vld [vmem:[%s9 + $0x1c] sm:$0xf]
        %v9433 = vld [vmem:[%s9 + $0x20] sm:$0xf]
        %v9434 = vld [vmem:[%s9 + $0x24] sm:$0xf]
        %v9435 = vld [vmem:[%s9 + $0x28] sm:$0xf]
        %v9436 = vld [vmem:[%s9 + $0x2c] sm:$0xf]
        %v9437 = vld [vmem:[%s9 + $0x30] sm:$0xf]
        %v9438 = vld [vmem:[%s9 + $0x34] sm:$0xf]
        %v9439 = vld [vmem:[%s9 + $0x38] sm:$0xf]
        %v9440 = vld [vmem:[%s9 + $0x3c] sm:$0xf]
        %v9441 = vpack.c.bf16 %v9424, %v9424
        %v9442 = vld [vmem:[%s10] sm:$0x1]
        %v9459 = vunpack.c.l.b16 %v9425
        %v9460 = vunpack.c.l.b16 %v9426
        %v9461 = vunpack.c.l.b16 %v9427
        %v9462 = vunpack.c.l.b16 %v9428
        %v9463 = vunpack.c.l.b16 %v9429
        %v9464 = vunpack.c.l.b16 %v9430
        %v9465 = vunpack.c.l.b16 %v9431
        %v9466 = vunpack.c.l.b16 %v9432
        %v9467 = vunpack.c.l.b16 %v9433
        %v9468 = vunpack.c.l.b16 %v9434
        %v9469 = vunpack.c.l.b16 %v9435
        %v9470 = vunpack.c.l.b16 %v9436
        %v9471 = vunpack.c.l.b16 %v9437
        %v9472 = vunpack.c.l.b16 %v9438
        %v9473 = vunpack.c.l.b16 %v9439
        %v9474 = vunpack.c.l.b16 %v9440
        %v9475 = vpack.c.b16 %v9460, %v9459
        %v9476 = vpack.c.b16 %v9462, %v9461
        %v9477 = vpack.c.b16 %v9464, %v9463
        %v9478 = vpack.c.b16 %v9466, %v9465
        %v9479 = vpack.c.b16 %v9468, %v9467
        %v9480 = vpack.c.b16 %v9470, %v9469
        %v9481 = vpack.c.b16 %v9472, %v9471
        %v9482 = vpack.c.b16 %v9474, %v9473
        %9491 = vmatprep.subr.bf16.mxu0 0
        %9492 = vmatpush1.bf16.msra.mxu0 %v9475
        %9493 = vmatprep.subr.bf16.mxu0 0
        %9494 = vmatpush1.bf16.msra.mxu0 %v9476
        %9495 = vmatprep.subr.bf16.mxu0 0
        %9496 = vmatpush1.bf16.msra.mxu0 %v9477
        %9497 = vmatprep.subr.bf16.mxu0 0
        %9498 = vmatpush1.bf16.msra.mxu0 %v9478
        %9499 = vmatprep.subr.bf16.mxu0 0
        %9500 = vmatpush1.bf16.msra.mxu0 %v9479
        %9501 = vmatprep.subr.bf16.mxu0 0
        %9502 = vmatpush1.bf16.msra.mxu0 %v9480
        %9503 = vmatprep.subr.bf16.mxu0 0
        %9504 = vmatpush1.bf16.msra.mxu0 %v9481
        %9505 = vmatprep.subr.bf16.mxu0 0
        %9506 = vmatpush1.bf16.msra.mxu0 %v9482
        %9507 = vmatprep.subr.bf16.mxu0 0
        %9508 = vmatpush1.bf16.msra.mxu0 0
        %9509 = vmatprep.subr.bf16.mxu0 0
        %9510 = vmatpush1.bf16.msra.mxu0 0
        %9511 = vmatprep.subr.bf16.mxu0 0
        %9512 = vmatpush1.bf16.msra.mxu0 0
        %9513 = vmatprep.subr.bf16.mxu0 0
        %9514 = vmatpush1.bf16.msra.mxu0 0
        %9515 = vmatprep.subr.bf16.mxu0 0
        %9516 = vmatpush1.bf16.msra.mxu0 0
        %9517 = vmatprep.subr.bf16.mxu0 0
        %9518 = vmatpush1.bf16.msra.mxu0 0
        %9519 = vmatprep.subr.bf16.mxu0 0
        %9520 = vmatpush1.bf16.msra.mxu0 0
        %9521 = vmatprep.subr.bf16.mxu0 0
        %9522 = vmatpush1.bf16.msra.mxu0 0
        %9523 = vmatprep.mubr.bf16.mxu0 0
        %9524 = vmatmul.mubr.bf16.gmra.mrb[0].mxu0 %v9441
        %v9525 = vpop.f32.mrb[0].mxu0
        %v9526 = vadd.f32 %v9442, %v9525
        %v9527 = vpop.f32.mrb[0].mxu0
        %v9528 = vpop.f32.mrb[0].mxu0
        %v9529 = vpop.f32.mrb[0].mxu0
        %9530 = vdwg.mxu0
        %v9531 = vmax.f32 %v9526, 0.0
        %v9532 = vld [vmem:[%s11] sm:$0xf]
        %v9533 = vld [vmem:[%s11 + $0x4] sm:$0xf]
        %v9534 = vld [vmem:[%s11 + $0x8] sm:$0xf]
        %v9535 = vld [vmem:[%s11 + $0xc] sm:$0xf]
        %v9536 = vld [vmem:[%s11 + $0x10] sm:$0xf]
        %v9537 = vld [vmem:[%s11 + $0x14] sm:$0xf]
        %v9538 = vld [vmem:[%s11 + $0x18] sm:$0xf]
        %v9539 = vld [vmem:[%s11 + $0x1c] sm:$0xf]
        %v9540 = vld [vmem:[%s11 + $0x20] sm:$0xf]
        %v9541 = vld [vmem:[%s11 + $0x24] sm:$0xf]
        %v9542 = vld [vmem:[%s11 + $0x28] sm:$0xf]
        %v9543 = vld [vmem:[%s11 + $0x2c] sm:$0xf]
        %v9544 = vld [vmem:[%s11 + $0x30] sm:$0xf]
        %v9545 = vld [vmem:[%s11 + $0x34] sm:$0xf]
        %v9546 = vld [vmem:[%s11 + $0x38] sm:$0xf]
        %v9547 = vld [vmem:[%s11 + $0x3c] sm:$0xf]
        %v9548 = vpack.c.bf16 %v9531, %v9531
        %v9549 = vld [vmem:[%s12] sm:$0x1]
        %v9566 = vunpack.c.l.b16 %v9532
        %v9567 = vunpack.c.l.b16 %v9533
        %v9568 = vunpack.c.l.b16 %v9534
        %v9569 = vunpack.c.l.b16 %v9535
        %v9570 = vunpack.c.l.b16 %v9536
        %v9571 = vunpack.c.l.b16 %v9537
        %v9572 = vunpack.c.l.b16 %v9538
        %v9573 = vunpack.c.l.b16 %v9539
        %v9574 = vunpack.c.l.b16 %v9540
        %v9575 = vunpack.c.l.b16 %v9541
        %v9576 = vunpack.c.l.b16 %v9542
        %v9577 = vunpack.c.l.b16 %v9543
        %v9578 = vunpack.c.l.b16 %v9544
        %v9579 = vunpack.c.l.b16 %v9545
        %v9580 = vunpack.c.l.b16 %v9546
        %v9581 = vunpack.c.l.b16 %v9547
        %v9582 = vpack.c.b16 %v9567, %v9566
        %v9583 = vpack.c.b16 %v9569, %v9568
        %v9584 = vpack.c.b16 %v9571, %v9570
        %v9585 = vpack.c.b16 %v9573, %v9572
        %v9586 = vpack.c.b16 %v9575, %v9574
        %v9587 = vpack.c.b16 %v9577, %v9576
        %v9588 = vpack.c.b16 %v9579, %v9578
        %v9589 = vpack.c.b16 %v9581, %v9580
        %9598 = vmatprep.subr.bf16.mxu0 0
        %9599 = vmatpush1.bf16.msra.mxu0 %v9582
        %9600 = vmatprep.subr.bf16.mxu0 0
        %9601 = vmatpush1.bf16.msra.mxu0 %v9583
        %9602 = vmatprep.subr.bf16.mxu0 0
        %9603 = vmatpush1.bf16.msra.mxu0 %v9584
        %9604 = vmatprep.subr.bf16.mxu0 0
        %9605 = vmatpush1.bf16.msra.mxu0 %v9585
        %9606 = vmatprep.subr.bf16.mxu0 0
        %9607 = vmatpush1.bf16.msra.mxu0 %v9586
        %9608 = vmatprep.subr.bf16.mxu0 0
        %9609 = vmatpush1.bf16.msra.mxu0 %v9587
        %9610 = vmatprep.subr.bf16.mxu0 0
        %9611 = vmatpush1.bf16.msra.mxu0 %v9588
        %9612 = vmatprep.subr.bf16.mxu0 0
        %9613 = vmatpush1.bf16.msra.mxu0 %v9589
        %9614 = vmatprep.subr.bf16.mxu0 0
        %9615 = vmatpush1.bf16.msra.mxu0 0
        %9616 = vmatprep.subr.bf16.mxu0 0
        %9617 = vmatpush1.bf16.msra.mxu0 0
        %9618 = vmatprep.subr.bf16.mxu0 0
        %9619 = vmatpush1.bf16.msra.mxu0 0
        %9620 = vmatprep.subr.bf16.mxu0 0
        %9621 = vmatpush1.bf16.msra.mxu0 0
        %9622 = vmatprep.subr.bf16.mxu0 0
        %9623 = vmatpush1.bf16.msra.mxu0 0
        %9624 = vmatprep.subr.bf16.mxu0 0
        %9625 = vmatpush1.bf16.msra.mxu0 0
        %9626 = vmatprep.subr.bf16.mxu0 0
        %9627 = vmatpush1.bf16.msra.mxu0 0
        %9628 = vmatprep.subr.bf16.mxu0 0
        %9629 = vmatpush1.bf16.msra.mxu0 0
        %9630 = vmatprep.mubr.bf16.mxu0 0
        %9631 = vmatmul.mubr.bf16.gmra.mrb[0].mxu0 %v9548
        %v9632 = vpop.f32.mrb[0].mxu0
        %v9633 = vadd.f32 %v9549, %v9632
        %v9634 = vpop.f32.mrb[0].mxu0
        %v9635 = vpop.f32.mrb[0].mxu0
        %v9636 = vpop.f32.mrb[0].mxu0
        %9637 = vdwg.mxu0
        %9638 = vst [vmem:[%s432] sm:$0x1] %v9633
        %s9639 = sand.u32 %s313, 1
        %s9640 = scalar_lea.sflag [#allocation7], %s9639
        %s9641 = sand.u32 %s313, 1
        %s9642 = scalar_lea.vmem [#allocation6], %s9641
        // Predicated region
        $region73: #{lenet_forward.1} parent=71 // pred_check
          %p9643 = pneg %p323
        $region74: #{lenet_forward.1} parent=71 // pred_check_branch
          %9645 = sbr.rel (%p9643) target = $region76
        $region75: #{lenet_forward.1} parent=71 // pred_region
          %s9647 = ssub.s32 16, 16
          %9648 = vsyncadd %s9640, %s9647
          %s9649 = smul.addr %s27, 16
          %s9650 = scalar_lea.hbm %s13, %s9649
          %s9652 = sshll.u32 %s9642, 4
          %s9653 = int_to_ptr.vmem [resolvable:$true] %s9652
          %9655 = dma.vmem_to_hbm [thread:$0]  %s9653, 16, %s9650, %s9640
        $region76: #{lenet_forward.1} parent=71 // pred_fallthru
          _
      $region72: #{lenet_forward.1} parent=5 // pred_fallthru
        _
      %p9656 = scmp.le.s32.totalorder 2, %s22
      // Predicated region
      $region77: #{lenet_forward.1} parent=5 // pred_check
        %p9657 = pneg %p9656
      $region78: #{lenet_forward.1} parent=5 // pred_check_branch
        %9659 = sbr.rel (%p9657) target = $region80
      $region79: #{lenet_forward.1} parent=5 // pred_region
        %s9660 = ssub.s32 %s22, 2
        // Predicated region
        $region81: #{lenet_forward.1} parent=79 // pred_check
          %p9661 = pneg %p329
        $region82: #{lenet_forward.1} parent=79 // pred_check_branch
          %9663 = sbr.rel (%p9661) target = $region84
        $region83: #{lenet_forward.1} parent=79 // pred_region
          %s9664 = sand.u32 %s314, 1
          %s9665 = scalar_lea.sflag [#allocation7], %s9664
          %s9666 = sand.u32 %s314, 1
          %s9667 = scalar_lea.vmem [#allocation6], %s9666
          %9668 = dma.done %s9665, 16
        $region84: #{lenet_forward.1} parent=79 // pred_fallthru
          _
      $region80: #{lenet_forward.1} parent=5 // pred_fallthru
        _
    $region6: #{lenet_forward.1} parent=1 // loop_footer
      %s26 = sadd.s32 1, %s22
    $region7: #{lenet_forward.1} parent=1 // loop_footer_branch
      %21 = sbr.rel target = $region3
    $region8: #{lenet_forward.1} parent=1 // loop_exit
      _
    %9669 = vsyncpa [#allocation7], 1
    %s9670 = scalar_lea.sflag [#allocation7], 1
    %9671 = vsyncpa %s9670, 1

</llo_original>
